<compile_context>
chip_gen: v7x
topology: tpu7x:2x2x1
jax: 0.10.0
libtpu: 0.0.40
codegen_flags: <defaults>
</compile_context>

<pallas_src>
import functools
import math

import jax
import jax.numpy as jnp
from jax.experimental import pallas as pl
from jax.experimental.pallas import tpu as pltpu

# ----------------------------- configuration -------------------------------
IMG_SIZE = 52          # original: 299
PATCH = 13             # original: 13
CHANNELS = 3
DIM = 361              # must stay 19*19 so the reshape to (B,1,19,19) is valid
DIM_PAD = 384          # 361 padded to a lane multiple of 128
DEPTH = 2              # original: 6
HEADS = 4              # original: 16
DIM_HEAD = 32
INNER = HEADS * DIM_HEAD           # 128
MLP_DIM = 128          # original: 2048
NUM_CLASSES = DIM      # NOTE: original passes 1000; the reshape requires 361
GRID_H = IMG_SIZE // PATCH
NUM_PATCHES = GRID_H * GRID_H      # 16
N_TOK = NUM_PATCHES + 1            # 17
N_PAD = 24                         # tokens per image padded to a multiple of 8
PATCH_DIM = CHANNELS * PATCH * PATCH   # 507
PATCH_DIM_PAD = 512
MAP_H = MAP_W = 19     # ConvLSTM spatial size (19*19 = 361)
BBLK_MAX = 8           # images stacked per ViT grid step (M = 24*BBLK <= 192)

CDT = jnp.bfloat16     # MXU operand dtype (accumulation stays f32)
WDT = jnp.bfloat16     # storage dtype of matmul weights


def _erf(x):
    """Abramowitz & Stegun 7.1.26 erf approximation (|err| < 1.5e-7)."""
    a1, a2, a3, a4, a5 = (0.254829592, -0.284496736, 1.421413741,
                          -1.453152027, 1.061405429)
    p = 0.3275911
    sgn = jnp.where(x >= 0.0, 1.0, -1.0)
    z = jnp.abs(x)
    t = 1.0 / (1.0 + p * z)
    poly = ((((a5 * t + a4) * t + a3) * t + a2) * t + a1) * t
    return sgn * (1.0 - poly * jnp.exp(-z * z))


# --------------------------- fused ViT kernel --------------------------------
def _vit_kernel(patches_ref, tok_ref, patch_w_ref, patch_b_ref,
                ln1_g_ref, ln1_b_ref, qkv_w_ref, out_w_ref, out_b_ref,
                ln2_g_ref, ln2_b_ref, ff1_w_ref, ff1_b_ref, ff2_w_ref,
                ff2_b_ref, head_ln_g_ref, head_ln_b_ref, head_w_ref,
                head_b_ref, o_ref, *, bblk):
    f32 = jnp.float32

    # Padding masks. Real feature cols < DIM; real token rows (per image) < 17.
    dim_mask = jax.lax.broadcasted_iota(jnp.int32, (1, DIM_PAD), 1) < DIM
    key_mask = jax.lax.broadcasted_iota(jnp.int32, (N_PAD, N_PAD), 1) < N_TOK

    def layer_norm(x, g, b):
        # Padded feature columns of x stay exactly 0 through all layers, so the
        # sum over 384 lanes equals the sum over the 361 real features.
        mu = jnp.sum(x, axis=-1, keepdims=True) * (1.0 / DIM)
        xc = jnp.where(dim_mask, x - mu, 0.0)
        var = jnp.sum(xc * xc, axis=-1, keepdims=True) * (1.0 / DIM)
        inv = jax.lax.rsqrt(var + 1e-5)
        return xc * inv * g + b          # padded cols of g/b are zero -> 0

    def mm(a, w):
        # bf16 MXU matmul with f32 accumulation.
        return jax.lax.dot_general(
            a.astype(CDT), w.astype(CDT), (((1,), (0,)), ((), ())),
            preferred_element_type=f32)

    # ---- patch embedding for the whole block, stacked M = bblk*16 ----
    pe = mm(patches_ref[...], patch_w_ref[...]) + patch_b_ref[...]

    # ---- token assembly in registers (no scratch round trip) ----
    # Internal token order per image: rows 0..15 patch tokens, row 16 = cls,
    # rows 17..23 zero padding. tok_ref already carries pos/cls in this order,
    # so every concat piece is a multiple of 8 rows and 8-row aligned.
    pos_patch = tok_ref[0:NUM_PATCHES, :]      # (16, 384)
    tail = tok_ref[NUM_PATCHES:N_PAD, :]       # (8, 384): [cls+pos0 ; zeros]
    pieces = []
    for b in range(bblk):
        pieces.append(pe[b * NUM_PATCHES:(b + 1) * NUM_PATCHES, :] + pos_patch)
        pieces.append(tail)
    x = jnp.concatenate(pieces, axis=0)        # (bblk*24, 384) f32
    # NOTE: padded token rows become nonzero after the first residual; this is
    # harmless because padded keys are masked, LN/FFN are row-wise and pooling
    # reads a real row only.

    scale = DIM_HEAD ** -0.5
    for l in range(DEPTH):
        # -------- PreNorm multi-head self-attention + residual --------
        y = layer_norm(x, ln1_g_ref[l], ln1_b_ref[l])
        qkv = mm(y, qkv_w_ref[l])                     # (bblk*24, 384) f32
        img_out = []
        for b in range(bblk):
            r0 = b * N_PAD
            qkv_b = qkv[r0:r0 + N_PAD, :].astype(CDT)  # one bf16 cast / image
            heads = []
            for h in range(HEADS):
                q = qkv_b[:, h * DIM_HEAD:(h + 1) * DIM_HEAD]
                k = qkv_b[:, INNER + h * DIM_HEAD:INNER + (h + 1) * DIM_HEAD]
                v = qkv_b[:, 2 * INNER + h * DIM_HEAD:
                          2 * INNER + (h + 1) * DIM_HEAD]
                s = jax.lax.dot_general(               # q @ k^T -> (24, 24)
                    q, k, (((1,), (1,)), ((), ())),
                    preferred_element_type=f32) * scale
                s = jnp.where(key_mask, s, -1e30)      # mask padded keys
                s = s - jnp.max(s, axis=-1, keepdims=True)
                p = jnp.exp(s)
                p = p * pl.reciprocal(jnp.sum(p, axis=-1, keepdims=True),
                                      approx=True)
                heads.append(mm(p, v))                 # (24, 32) f32
            img_out.append(jnp.concatenate(heads, axis=1))   # (24, 128)
        attn = jnp.concatenate(img_out, axis=0)        # (bblk*24, 128)
        # Single K=128 out-projection at the stacked M (was 4x K=32).
        x = x + mm(attn, out_w_ref[l]) + out_b_ref[l]

        # -------- PreNorm feed-forward + residual --------
        y = layer_norm(x, ln2_g_ref[l], ln2_b_ref[l])
        h1 = mm(y, ff1_w_ref[l]) + ff1_b_ref[l]        # (bblk*24, 128)
        h1 = 0.5 * h1 * (1.0 + _erf(h1 * (1.0 / math.sqrt(2.0))))  # GELU
        x = x + mm(h1, ff2_w_ref[l]) + ff2_b_ref[l]

    # ---- cls pooling (row 16 of each image, 8-aligned) + MLP head ----
    cls_rows = jnp.concatenate(
        [x[b * N_PAD + NUM_PATCHES:b * N_PAD + NUM_PATCHES + 1, :]
         for b in range(bblk)], axis=0)                # (bblk, 384)
    yh = layer_norm(cls_rows, head_ln_g_ref[...], head_ln_b_ref[...])
    o_ref[...] = mm(yh, head_w_ref[...]) + head_b_ref[...]   # lane-dense store


def _rep(arr):
    """Weight stays resident across the grid (constant block index)."""
    nd = arr.ndim
    return pl.BlockSpec(arr.shape, lambda i, _n=nd: (0,) * _n)


def vit_fused(patches, vp, bblk):
    """patches: (B_pad*16, PATCH_DIM_PAD) bf16  ->  (B_pad, DIM_PAD) f32."""
    rows = patches.shape[0]
    n_steps = rows // (bblk * NUM_PATCHES)
    b_pad = n_steps * bblk

    weights = [vp["tok"], vp["patch_w"], vp["patch_b"],
               vp["ln1_g"], vp["ln1_b"], vp["qkv_w"], vp["out_w"], vp["out_b"],
               vp["ln2_g"], vp["ln2_b"], vp["ff1_w"], vp["ff1_b"],
               vp["ff2_w"], vp["ff2_b"], vp["head_ln_g"], vp["head_ln_b"],
               vp["head_w"], vp["head_b"]]

    # ~2 MB of resident bf16 weights; double-buffering headroom is ample, so
    # pipeline_mode=pl.Buffered(1) is intentionally not used (negligible win).
    in_specs = ([pl.BlockSpec((bblk * NUM_PATCHES, PATCH_DIM_PAD),
                              lambda i: (i, 0))]
                + [_rep(w) for w in weights])

    return pl.pallas_call(
        functools.partial(_vit_kernel, bblk=bblk),
        grid=(n_steps,),
        in_specs=in_specs,
        out_specs=pl.BlockSpec((bblk, DIM_PAD), lambda i: (i, 0)),
        out_shape=jax.ShapeDtypeStruct((b_pad, DIM_PAD), jnp.float32),
        compiler_params=pltpu.CompilerParams(
            dimension_semantics=("parallel",)),   # v7x: batch blocks per core
    )(patches, *weights)


# ------------------------------ ConvLSTM kernel ------------------------------
def _convlstm_kernel(x_ref, h0_ref, c0_ref, w_ref, b_ref, hout_ref):
    """Single grid step; lax.fori_loop over frames; lane-dense flattened maps.

    The 19x19 map lives in the first 361 lanes of a (1, 384) row. A 3x3 'same'
    conv tap (dy, dx) is a lane roll by dy*19+dx with column-edge masks; row
    out-of-range reads land on the (always-zero) padded lanes.
    """
    f32 = jnp.float32
    n_frames = x_ref.shape[0]

    lane = jax.lax.broadcasted_iota(jnp.int32, (1, DIM_PAD), 1)
    col = lane % MAP_W
    valid = lane < DIM                      # real map lanes
    keep_left = col != 0                    # taps reading column c-1
    keep_right = col != (MAP_W - 1)         # taps reading column c+1

    def shifted_taps(a):
        """Tap t=(ky*3+kx): out[k] = a[k + (ky-1)*19 + (kx-1)] (masked)."""
        outs = []
        for ky in range(3):
            for kx in range(3):
                off = (ky - 1) * MAP_W + (kx - 1)
                t = a if off == 0 else pltpu.roll(a, (-off) % DIM_PAD, 1)
                if kx == 0:
                    t = jnp.where(keep_left, t, 0.0)
                elif kx == 2:
                    t = jnp.where(keep_right, t, 0.0)
                outs.append(t)
        return outs

    # Hoist all SMEM scalar reads out of the frame loop.
    # Conv2d(2 -> 4, 3x3): weight (4, 2, 3, 3) flattened; ci=0 is x, ci=1 is h.
    wx = [[w_ref[(co * 2 + 0) * 9 + t] for t in range(9)] for co in range(4)]
    wh = [[w_ref[(co * 2 + 1) * 9 + t] for t in range(9)] for co in range(4)]
    bias = [b_ref[co] for co in range(4)]

    def step(fr, carry):
        h, c = carry
        x = x_ref[fr]                               # (1, 384); pad lanes are 0
        xt = shifted_taps(x)
        ht = shifted_taps(h)

        gates = []
        for co in range(4):
            acc = jnp.full((1, DIM_PAD), bias[co], f32)
            for t in range(9):
                acc = acc + wx[co][t] * xt[t] + wh[co][t] * ht[t]
            gates.append(acc)

        # Gate order i, f, o, g (ConvLSTMCell: conv(cat[x, h]) split into 4).
        # TODO(synk): verify gate order against the exact ConvLSTMCell used
        #             (some variants use i,f,g,o).
        i_g = jax.nn.sigmoid(gates[0])
        f_g = jax.nn.sigmoid(gates[1])
        o_g = jax.nn.sigmoid(gates[2])
        g_g = jnp.tanh(gates[3])
        c_n = f_g * c + i_g * g_g
        h_n = o_g * jnp.tanh(c_n)
        # Keep padded lanes exactly zero so next frame's rolls stay clean.
        h_n = jnp.where(valid, h_n, 0.0)
        c_n = jnp.where(valid, c_n, 0.0)

        hout_ref[fr] = h_n                          # lane-dense unmasked store
        return (h_n, c_n)

    jax.lax.fori_loop(0, n_frames, step, (h0_ref[...], c0_ref[...]))


def conv_lstm(frames, h0f, c0f, conv_w, conv_b):
    """frames: (B, 1, DIM_PAD) f32 -> h sequence (B, 1, DIM_PAD) f32."""
    bsz = frames.shape[0]
    return pl.pallas_call(
        _convlstm_kernel,
        grid=(1,),                              # ONE step; frame loop in-kernel
        in_specs=[
            pl.BlockSpec((bsz, 1, DIM_PAD), lambda i: (0, 0, 0)),
            pl.BlockSpec((1, DIM_PAD), lambda i: (0, 0)),
            pl.BlockSpec((1, DIM_PAD), lambda i: (0, 0)),
            pl.BlockSpec(memory_space=pltpu.SMEM),   # conv weights (72,)
            pl.BlockSpec(memory_space=pltpu.SMEM),   # conv bias (4,)
        ],
        out_specs=pl.BlockSpec((bsz, 1, DIM_PAD), lambda i: (0, 0, 0)),
        out_shape=jax.ShapeDtypeStruct((bsz, 1, DIM_PAD), jnp.float32),
        compiler_params=pltpu.CompilerParams(
            dimension_semantics=("arbitrary",)),
    )(frames, h0f, c0f, conv_w.reshape(-1), conv_b)


# ------------------------------- full forward --------------------------------
def vit_lstm_forward(params, img, h0, c0, bblk_max=BBLK_MAX):
    b = img.shape[0]
    # Rearrange 'b c (h p1) (w p2) -> b (h w) (p1 p2 c)'.
    x = img.reshape(b, CHANNELS, GRID_H, PATCH, GRID_H, PATCH)
    x = x.transpose(0, 2, 4, 3, 5, 1).reshape(b, NUM_PATCHES, PATCH_DIM)

    # Batch blocking for stacked-M ViT matmuls.
    bblk = min(bblk_max, b)
    b_pad = ((b + bblk - 1) // bblk) * bblk
    if b_pad != b:
        x = jnp.pad(x, ((0, b_pad - b), (0, 0), (0, 0)))
    patches = jnp.pad(x, ((0, 0), (0, 0), (0, PATCH_DIM_PAD - PATCH_DIM)))
    patches = patches.reshape(b_pad * NUM_PATCHES, PATCH_DIM_PAD).astype(CDT)

    logits = vit_fused(patches, params["vit"], bblk)        # (b_pad, 384) f32
    frames = logits[:b].reshape(b, 1, DIM_PAD)              # lane-dense handoff

    h0f = jnp.pad(h0.reshape(1, DIM), ((0, 0), (0, DIM_PAD - DIM)))
    c0f = jnp.pad(c0.reshape(1, DIM), ((0, 0), (0, DIM_PAD - DIM)))
    hseq = conv_lstm(frames, h0f, c0f,
                     params["map"]["w"], params["map"]["b"])  # (b, 1, 384)
    return hseq[:, 0, :DIM].reshape(b, 1, MAP_H, MAP_W)       # (B, 1, 19, 19)


# ------------------------------ parameter init -------------------------------
def init_params(key):
    keys = iter(jax.random.split(key, 64))

    def dense(fan_in, fan_out, pad_in, pad_out):
        w = jax.random.normal(next(keys), (fan_in, fan_out), jnp.float32) * 0.02
        w = jnp.pad(w, ((0, pad_in - fan_in), (0, pad_out - fan_out)))
        return w.astype(WDT)                   # matmul weights stored in bf16

    def vecpad(v, pad):
        return jnp.pad(v, (0, pad - v.shape[0])).reshape(1, pad)

    layers = {k: [] for k in ["ln1_g", "ln1_b", "qkv_w", "out_w", "out_b",
                              "ln2_g", "ln2_b", "ff1_w", "ff1_b",
                              "ff2_w", "ff2_b"]}
    for _ in range(DEPTH):
        layers["ln1_g"].append(vecpad(jnp.ones((DIM,), jnp.float32), DIM_PAD))
        layers["ln1_b"].append(vecpad(jnp.zeros((DIM,), jnp.float32), DIM_PAD))
        layers["qkv_w"].append(dense(DIM, 3 * INNER, DIM_PAD, 3 * INNER))
        layers["out_w"].append(dense(INNER, DIM, INNER, DIM_PAD))
        layers["out_b"].append(vecpad(jnp.zeros((DIM,), jnp.float32), DIM_PAD))
        layers["ln2_g"].append(vecpad(jnp.ones((DIM,), jnp.float32), DIM_PAD))
        layers["ln2_b"].append(vecpad(jnp.zeros((DIM,), jnp.float32), DIM_PAD))
        layers["ff1_w"].append(dense(DIM, MLP_DIM, DIM_PAD, MLP_DIM))
        layers["ff1_b"].append(vecpad(jnp.zeros((MLP_DIM,), jnp.float32),
                                      MLP_DIM))
        layers["ff2_w"].append(dense(MLP_DIM, DIM, MLP_DIM, DIM_PAD))
        layers["ff2_b"].append(vecpad(jnp.zeros((DIM,), jnp.float32), DIM_PAD))

    vit = {k: jnp.stack(v) for k, v in layers.items()}
    vit["patch_w"] = dense(PATCH_DIM, DIM, PATCH_DIM_PAD, DIM_PAD)
    vit["patch_b"] = vecpad(jnp.zeros((DIM,), jnp.float32), DIM_PAD)

    # cls token + positional embedding, pre-arranged in the kernel's internal
    # token order: rows 0..15 = pos[1..16], row 16 = cls + pos[0], rest zero.
    cls = jax.random.normal(next(keys), (1, DIM), jnp.float32) * 0.02
    pos = jax.random.normal(next(keys), (N_TOK, DIM), jnp.float32) * 0.02
    tok = jnp.zeros((N_PAD, DIM_PAD), jnp.float32)
    tok = tok.at[:NUM_PATCHES, :DIM].set(pos[1:N_TOK])
    tok = tok.at[NUM_PATCHES, :DIM].set(cls[0] + pos[0])
    vit["tok"] = tok

    vit["head_ln_g"] = vecpad(jnp.ones((DIM,), jnp.float32), DIM_PAD)
    vit["head_ln_b"] = vecpad(jnp.zeros((DIM,), jnp.float32), DIM_PAD)
    vit["head_w"] = dense(DIM, NUM_CLASSES, DIM_PAD, DIM_PAD)
    vit["head_b"] = vecpad(jnp.zeros((NUM_CLASSES,), jnp.float32), DIM_PAD)

    # ConvLSTMCell(1, 1, (3,3), True): Conv2d(2 -> 4, 3x3, pad 1, bias)
    conv_w = jax.random.normal(next(keys), (4, 2, 3, 3), jnp.float32) * 0.1
    conv_b = jnp.zeros((4,), jnp.float32)
    return {"vit": vit, "map": {"w": conv_w, "b": conv_b}}


# ----------------------------------- main ------------------------------------
if __name__ == "__main__":
    key = jax.random.PRNGKey(0)
    k_param, k_img, k_h0, k_c0 = jax.random.split(key, 4)

    params = init_params(k_param)
    img = jax.random.normal(k_img, (2, CHANNELS, IMG_SIZE, IMG_SIZE),
                            jnp.float32)
    # torch.rand(1, 1, 19, 19) analogues (random initial LSTM state in forward)
    h0 = jax.random.uniform(k_h0, (1, 1, MAP_H, MAP_W), jnp.float32)
    c0 = jax.random.uniform(k_c0, (1, 1, MAP_H, MAP_W), jnp.float32)

    mask = jax.jit(vit_lstm_forward)(params, img, h0, c0)
    mask = jax.block_until_ready(mask)
    assert mask.shape == (2, 1, MAP_H, MAP_W)
    assert mask.dtype == jnp.float32
    assert bool(jnp.all(jnp.isfinite(mask)))
    print("KERNEL_OK")
</pallas_src>

<mosaic_0001>
module attributes {stable_mosaic.version = 11 : i64} {
  func.func @_vit_kernel(%arg0: i32, %arg1: memref<32x512xbf16, #tpu.memory_space<vmem>>, %arg2: memref<24x384xf32, #tpu.memory_space<vmem>>, %arg3: memref<512x384xbf16, #tpu.memory_space<vmem>>, %arg4: memref<1x384xf32, #tpu.memory_space<vmem>>, %arg5: memref<2x1x384xf32, #tpu.memory_space<vmem>>, %arg6: memref<2x1x384xf32, #tpu.memory_space<vmem>>, %arg7: memref<2x384x384xbf16, #tpu.memory_space<vmem>>, %arg8: memref<2x128x384xbf16, #tpu.memory_space<vmem>>, %arg9: memref<2x1x384xf32, #tpu.memory_space<vmem>>, %arg10: memref<2x1x384xf32, #tpu.memory_space<vmem>>, %arg11: memref<2x1x384xf32, #tpu.memory_space<vmem>>, %arg12: memref<2x384x128xbf16, #tpu.memory_space<vmem>>, %arg13: memref<2x1x128xf32, #tpu.memory_space<vmem>>, %arg14: memref<2x128x384xbf16, #tpu.memory_space<vmem>>, %arg15: memref<2x1x384xf32, #tpu.memory_space<vmem>>, %arg16: memref<1x384xf32, #tpu.memory_space<vmem>>, %arg17: memref<1x384xf32, #tpu.memory_space<vmem>>, %arg18: memref<384x384xbf16, #tpu.memory_space<vmem>>, %arg19: memref<1x384xf32, #tpu.memory_space<vmem>>, %arg20: memref<2x384xf32, #tpu.memory_space<vmem>>) attributes {dimension_semantics = [#tpu.dimension_semantics<parallel>], iteration_bounds = array<i64: 1>, scalar_prefetch = 0 : i64, scratch_operands = 0 : i64, tpu.core_type = #tpu.core_type<tc>, window_params = [{transform_indices = @transform_0, window_bounds = array<i64: 32, 512>}, {pipeline_mode = #tpu.pipeline_mode<synchronous>, transform_indices = @transform_1, window_bounds = array<i64: 24, 384>}, {pipeline_mode = #tpu.pipeline_mode<synchronous>, transform_indices = @transform_2, window_bounds = array<i64: 512, 384>}, {pipeline_mode = #tpu.pipeline_mode<synchronous>, transform_indices = @transform_3, window_bounds = array<i64: 1, 384>}, {pipeline_mode = #tpu.pipeline_mode<synchronous>, transform_indices = @transform_4, window_bounds = array<i64: 2, 1, 384>}, {pipeline_mode = #tpu.pipeline_mode<synchronous>, transform_indices = @transform_5, window_bounds = array<i64: 2, 1, 384>}, {pipeline_mode = #tpu.pipeline_mode<synchronous>, transform_indices = @transform_6, window_bounds = array<i64: 2, 384, 384>}, {pipeline_mode = #tpu.pipeline_mode<synchronous>, transform_indices = @transform_7, window_bounds = array<i64: 2, 128, 384>}, {pipeline_mode = #tpu.pipeline_mode<synchronous>, transform_indices = @transform_8, window_bounds = array<i64: 2, 1, 384>}, {pipeline_mode = #tpu.pipeline_mode<synchronous>, transform_indices = @transform_9, window_bounds = array<i64: 2, 1, 384>}, {pipeline_mode = #tpu.pipeline_mode<synchronous>, transform_indices = @transform_10, window_bounds = array<i64: 2, 1, 384>}, {pipeline_mode = #tpu.pipeline_mode<synchronous>, transform_indices = @transform_11, window_bounds = array<i64: 2, 384, 128>}, {pipeline_mode = #tpu.pipeline_mode<synchronous>, transform_indices = @transform_12, window_bounds = array<i64: 2, 1, 128>}, {pipeline_mode = #tpu.pipeline_mode<synchronous>, transform_indices = @transform_13, window_bounds = array<i64: 2, 128, 384>}, {pipeline_mode = #tpu.pipeline_mode<synchronous>, transform_indices = @transform_14, window_bounds = array<i64: 2, 1, 384>}, {pipeline_mode = #tpu.pipeline_mode<synchronous>, transform_indices = @transform_15, window_bounds = array<i64: 1, 384>}, {pipeline_mode = #tpu.pipeline_mode<synchronous>, transform_indices = @transform_16, window_bounds = array<i64: 1, 384>}, {pipeline_mode = #tpu.pipeline_mode<synchronous>, transform_indices = @transform_17, window_bounds = array<i64: 384, 384>}, {pipeline_mode = #tpu.pipeline_mode<synchronous>, transform_indices = @transform_18, window_bounds = array<i64: 1, 384>}, {transform_indices = @transform_19, window_bounds = array<i64: 2, 384>}]} {
    %0 = tpu.iota {dimensions = array<i32: 1>} : vector<1x384xi32>
    %c361_i32 = arith.constant 361 : i32
    %1 = vector.broadcast %c361_i32 : i32 to vector<1x384xi32>
    %2 = arith.cmpi slt, %0, %1 : vector<1x384xi32>
    %3 = tpu.iota {dimensions = array<i32: 1>} : vector<24x24xi32>
    %c17_i32 = arith.constant 17 : i32
    %4 = vector.broadcast %c17_i32 : i32 to vector<24x24xi32>
    %5 = arith.cmpi slt, %3, %4 : vector<24x24xi32>
    %c0 = arith.constant 0 : index
    %c0_0 = arith.constant 0 : index
    %6 = vector.load %arg1[%c0, %c0_0] : memref<32x512xbf16, #tpu.memory_space<vmem>>, vector<32x512xbf16>
    %c0_1 = arith.constant 0 : index
    %c0_2 = arith.constant 0 : index
    %7 = vector.load %arg3[%c0_1, %c0_2] : memref<512x384xbf16, #tpu.memory_space<vmem>>, vector<512x384xbf16>
    %cst = arith.constant dense<0.000000e+00> : vector<32x384xf32>
    %8 = tpu.matmul %6, %7, %cst {dimension_numbers = #tpu.dot_dimension_numbers<[1], [0], [0], [1], [0, 0, 1, 1], [], []>} : vector<32x512xbf16>, vector<512x384xbf16>, vector<32x384xf32> -> vector<32x384xf32>
    %c0_3 = arith.constant 0 : index
    %c0_4 = arith.constant 0 : index
    %9 = vector.load %arg4[%c0_3, %c0_4] : memref<1x384xf32, #tpu.memory_space<vmem>>, vector<1x384xf32>
    %10 = vector.broadcast %9 : vector<1x384xf32> to vector<32x384xf32>
    %11 = arith.addf %8, %10 : vector<32x384xf32>
    %c0_5 = arith.constant 0 : index
    %c0_6 = arith.constant 0 : index
    %12 = vector.load %arg2[%c0_5, %c0_6] : memref<24x384xf32, #tpu.memory_space<vmem>>, vector<16x384xf32>
    %c16 = arith.constant 16 : index
    %c0_7 = arith.constant 0 : index
    %13 = vector.load %arg2[%c16, %c0_7] : memref<24x384xf32, #tpu.memory_space<vmem>>, vector<8x384xf32>
    %14 = vector.extract_strided_slice %11 {offsets = [0, 0], sizes = [16, 384], strides = [1, 1]} : vector<32x384xf32> to vector<16x384xf32>
    %15 = arith.addf %14, %12 : vector<16x384xf32>
    %16 = vector.extract_strided_slice %11 {offsets = [16, 0], sizes = [16, 384], strides = [1, 1]} : vector<32x384xf32> to vector<16x384xf32>
    %17 = arith.addf %16, %12 : vector<16x384xf32>
    %18 = tpu.concatenate %15, %13, %17, %13 in 0 : vector<16x384xf32>, vector<8x384xf32>, vector<16x384xf32>, vector<8x384xf32> -> vector<48x384xf32>
    %c0_8 = arith.constant 0 : index
    %c0_9 = arith.constant 0 : index
    %c0_10 = arith.constant 0 : index
    %19 = vector.load %arg5[%c0_8, %c0_9, %c0_10] : memref<2x1x384xf32, #tpu.memory_space<vmem>>, vector<1x1x384xf32>
    %20 = vector.shape_cast %19 : vector<1x1x384xf32> to vector<1x384xf32>
    %c0_11 = arith.constant 0 : index
    %c0_12 = arith.constant 0 : index
    %c0_13 = arith.constant 0 : index
    %21 = vector.load %arg6[%c0_11, %c0_12, %c0_13] : memref<2x1x384xf32, #tpu.memory_space<vmem>>, vector<1x1x384xf32>
    %22 = vector.shape_cast %21 : vector<1x1x384xf32> to vector<1x384xf32>
    %cst_14 = arith.constant dense<0.000000e+00> : vector<48xf32>
    %23 = vector.multi_reduction <add>, %18, %cst_14 [1] : vector<48x384xf32> to vector<48xf32>
    %24 = vector.shape_cast %23 : vector<48xf32> to vector<48x1xf32>
    %cst_15 = arith.constant 0.00277008303 : f32
    %25 = vector.broadcast %cst_15 : f32 to vector<48x1xf32>
    %26 = arith.mulf %24, %25 : vector<48x1xf32>
    %27 = vector.broadcast %26 : vector<48x1xf32> to vector<48x384xf32>
    %28 = arith.subf %18, %27 : vector<48x384xf32>
    %cst_16 = arith.constant 0.000000e+00 : f32
    %29 = vector.shape_cast %2 : vector<1x384xi1> to vector<1x384xi1>
    %30 = vector.broadcast %29 : vector<1x384xi1> to vector<48x384xi1>
    %31 = vector.broadcast %cst_16 : f32 to vector<48x384xf32>
    %32 = arith.select %30, %28, %31 : vector<48x384xi1>, vector<48x384xf32>
    %33 = arith.mulf %32, %32 : vector<48x384xf32>
    %cst_17 = arith.constant dense<0.000000e+00> : vector<48xf32>
    %34 = vector.multi_reduction <add>, %33, %cst_17 [1] : vector<48x384xf32> to vector<48xf32>
    %35 = vector.shape_cast %34 : vector<48xf32> to vector<48x1xf32>
    %cst_18 = arith.constant 0.00277008303 : f32
    %36 = vector.broadcast %cst_18 : f32 to vector<48x1xf32>
    %37 = arith.mulf %35, %36 : vector<48x1xf32>
    %cst_19 = arith.constant 9.99999974E-6 : f32
    %38 = vector.broadcast %cst_19 : f32 to vector<48x1xf32>
    %39 = arith.addf %37, %38 : vector<48x1xf32>
    %40 = math.rsqrt %39 : vector<48x1xf32>
    %41 = vector.broadcast %40 : vector<48x1xf32> to vector<48x384xf32>
    %42 = arith.mulf %32, %41 : vector<48x384xf32>
    %43 = vector.broadcast %20 : vector<1x384xf32> to vector<48x384xf32>
    %44 = arith.mulf %42, %43 : vector<48x384xf32>
    %45 = vector.broadcast %22 : vector<1x384xf32> to vector<48x384xf32>
    %46 = arith.addf %44, %45 : vector<48x384xf32>
    %c0_20 = arith.constant 0 : index
    %c0_21 = arith.constant 0 : index
    %c0_22 = arith.constant 0 : index
    %47 = vector.load %arg7[%c0_20, %c0_21, %c0_22] : memref<2x384x384xbf16, #tpu.memory_space<vmem>>, vector<1x384x384xbf16>
    %48 = vector.shape_cast %47 : vector<1x384x384xbf16> to vector<384x384xbf16>
    %49 = arith.truncf %46 : vector<48x384xf32> to vector<48x384xbf16>
    %cst_23 = arith.constant dense<0.000000e+00> : vector<48x384xf32>
    %50 = tpu.matmul %49, %48, %cst_23 {dimension_numbers = #tpu.dot_dimension_numbers<[1], [0], [0], [1], [0, 0, 1, 1], [], []>} : vector<48x384xbf16>, vector<384x384xbf16>, vector<48x384xf32> -> vector<48x384xf32>
    %51 = vector.extract_strided_slice %50 {offsets = [0, 0], sizes = [24, 384], strides = [1, 1]} : vector<48x384xf32> to vector<24x384xf32>
    %52 = arith.truncf %51 : vector<24x384xf32> to vector<24x384xbf16>
    %53 = vector.extract_strided_slice %52 {offsets = [0, 0], sizes = [24, 32], strides = [1, 1]} : vector<24x384xbf16> to vector<24x32xbf16>
    %54 = vector.extract_strided_slice %52 {offsets = [0, 128], sizes = [24, 32], strides = [1, 1]} : vector<24x384xbf16> to vector<24x32xbf16>
    %55 = vector.extract_strided_slice %52 {offsets = [0, 256], sizes = [24, 32], strides = [1, 1]} : vector<24x384xbf16> to vector<24x32xbf16>
    %cst_24 = arith.constant dense<0.000000e+00> : vector<24x24xf32>
    %56 = tpu.matmul %53, %54, %cst_24 {dimension_numbers = #tpu.dot_dimension_numbers<[1], [1], [0], [0], [0, 0, 1, 0], [], []>} : vector<24x32xbf16>, vector<24x32xbf16>, vector<24x24xf32> -> vector<24x24xf32>
    %cst_25 = arith.constant 0.176776692 : f32
    %57 = vector.broadcast %cst_25 : f32 to vector<24x24xf32>
    %58 = arith.mulf %56, %57 : vector<24x24xf32>
    %cst_26 = arith.constant -1.000000e+30 : f32
    %59 = vector.broadcast %cst_26 : f32 to vector<24x24xf32>
    %60 = arith.select %5, %58, %59 : vector<24x24xi1>, vector<24x24xf32>
    %cst_27 = arith.constant dense<0xFF800000> : vector<24xf32>
    %61 = vector.multi_reduction <maximumf>, %60, %cst_27 [1] : vector<24x24xf32> to vector<24xf32>
    %62 = vector.shape_cast %61 : vector<24xf32> to vector<24x1xf32>
    %63 = vector.broadcast %62 : vector<24x1xf32> to vector<24x24xf32>
    %64 = arith.subf %60, %63 : vector<24x24xf32>
    %65 = math.exp %64 : vector<24x24xf32>
    %cst_28 = arith.constant dense<0.000000e+00> : vector<24xf32>
    %66 = vector.multi_reduction <add>, %65, %cst_28 [1] : vector<24x24xf32> to vector<24xf32>
    %67 = vector.shape_cast %66 : vector<24xf32> to vector<24x1xf32>
    %68 = tpu.reciprocal %67 {approx = true} : vector<24x1xf32> -> vector<24x1xf32>
    %69 = vector.broadcast %68 : vector<24x1xf32> to vector<24x24xf32>
    %70 = arith.mulf %65, %69 : vector<24x24xf32>
    %71 = arith.truncf %70 : vector<24x24xf32> to vector<24x24xbf16>
    %cst_29 = arith.constant dense<0.000000e+00> : vector<24x32xf32>
    %72 = tpu.matmul %71, %55, %cst_29 {dimension_numbers = #tpu.dot_dimension_numbers<[1], [0], [0], [1], [0, 0, 1, 1], [], []>} : vector<24x24xbf16>, vector<24x32xbf16>, vector<24x32xf32> -> vector<24x32xf32>
    %73 = vector.extract_strided_slice %52 {offsets = [0, 32], sizes = [24, 32], strides = [1, 1]} : vector<24x384xbf16> to vector<24x32xbf16>
    %74 = vector.extract_strided_slice %52 {offsets = [0, 160], sizes = [24, 32], strides = [1, 1]} : vector<24x384xbf16> to vector<24x32xbf16>
    %75 = vector.extract_strided_slice %52 {offsets = [0, 288], sizes = [24, 32], strides = [1, 1]} : vector<24x384xbf16> to vector<24x32xbf16>
    %cst_30 = arith.constant dense<0.000000e+00> : vector<24x24xf32>
    %76 = tpu.matmul %73, %74, %cst_30 {dimension_numbers = #tpu.dot_dimension_numbers<[1], [1], [0], [0], [0, 0, 1, 0], [], []>} : vector<24x32xbf16>, vector<24x32xbf16>, vector<24x24xf32> -> vector<24x24xf32>
    %cst_31 = arith.constant 0.176776692 : f32
    %77 = vector.broadcast %cst_31 : f32 to vector<24x24xf32>
    %78 = arith.mulf %76, %77 : vector<24x24xf32>
    %cst_32 = arith.constant -1.000000e+30 : f32
    %79 = vector.broadcast %cst_32 : f32 to vector<24x24xf32>
    %80 = arith.select %5, %78, %79 : vector<24x24xi1>, vector<24x24xf32>
    %cst_33 = arith.constant dense<0xFF800000> : vector<24xf32>
    %81 = vector.multi_reduction <maximumf>, %80, %cst_33 [1] : vector<24x24xf32> to vector<24xf32>
    %82 = vector.shape_cast %81 : vector<24xf32> to vector<24x1xf32>
    %83 = vector.broadcast %82 : vector<24x1xf32> to vector<24x24xf32>
    %84 = arith.subf %80, %83 : vector<24x24xf32>
    %85 = math.exp %84 : vector<24x24xf32>
    %cst_34 = arith.constant dense<0.000000e+00> : vector<24xf32>
    %86 = vector.multi_reduction <add>, %85, %cst_34 [1] : vector<24x24xf32> to vector<24xf32>
    %87 = vector.shape_cast %86 : vector<24xf32> to vector<24x1xf32>
    %88 = tpu.reciprocal %87 {approx = true} : vector<24x1xf32> -> vector<24x1xf32>
    %89 = vector.broadcast %88 : vector<24x1xf32> to vector<24x24xf32>
    %90 = arith.mulf %85, %89 : vector<24x24xf32>
    %91 = arith.truncf %90 : vector<24x24xf32> to vector<24x24xbf16>
    %cst_35 = arith.constant dense<0.000000e+00> : vector<24x32xf32>
    %92 = tpu.matmul %91, %75, %cst_35 {dimension_numbers = #tpu.dot_dimension_numbers<[1], [0], [0], [1], [0, 0, 1, 1], [], []>} : vector<24x24xbf16>, vector<24x32xbf16>, vector<24x32xf32> -> vector<24x32xf32>
    %93 = vector.extract_strided_slice %52 {offsets = [0, 64], sizes = [24, 32], strides = [1, 1]} : vector<24x384xbf16> to vector<24x32xbf16>
    %94 = vector.extract_strided_slice %52 {offsets = [0, 192], sizes = [24, 32], strides = [1, 1]} : vector<24x384xbf16> to vector<24x32xbf16>
    %95 = vector.extract_strided_slice %52 {offsets = [0, 320], sizes = [24, 32], strides = [1, 1]} : vector<24x384xbf16> to vector<24x32xbf16>
    %cst_36 = arith.constant dense<0.000000e+00> : vector<24x24xf32>
    %96 = tpu.matmul %93, %94, %cst_36 {dimension_numbers = #tpu.dot_dimension_numbers<[1], [1], [0], [0], [0, 0, 1, 0], [], []>} : vector<24x32xbf16>, vector<24x32xbf16>, vector<24x24xf32> -> vector<24x24xf32>
    %cst_37 = arith.constant 0.176776692 : f32
    %97 = vector.broadcast %cst_37 : f32 to vector<24x24xf32>
    %98 = arith.mulf %96, %97 : vector<24x24xf32>
    %cst_38 = arith.constant -1.000000e+30 : f32
    %99 = vector.broadcast %cst_38 : f32 to vector<24x24xf32>
    %100 = arith.select %5, %98, %99 : vector<24x24xi1>, vector<24x24xf32>
    %cst_39 = arith.constant dense<0xFF800000> : vector<24xf32>
    %101 = vector.multi_reduction <maximumf>, %100, %cst_39 [1] : vector<24x24xf32> to vector<24xf32>
    %102 = vector.shape_cast %101 : vector<24xf32> to vector<24x1xf32>
    %103 = vector.broadcast %102 : vector<24x1xf32> to vector<24x24xf32>
    %104 = arith.subf %100, %103 : vector<24x24xf32>
    %105 = math.exp %104 : vector<24x24xf32>
    %cst_40 = arith.constant dense<0.000000e+00> : vector<24xf32>
    %106 = vector.multi_reduction <add>, %105, %cst_40 [1] : vector<24x24xf32> to vector<24xf32>
    %107 = vector.shape_cast %106 : vector<24xf32> to vector<24x1xf32>
    %108 = tpu.reciprocal %107 {approx = true} : vector<24x1xf32> -> vector<24x1xf32>
    %109 = vector.broadcast %108 : vector<24x1xf32> to vector<24x24xf32>
    %110 = arith.mulf %105, %109 : vector<24x24xf32>
    %111 = arith.truncf %110 : vector<24x24xf32> to vector<24x24xbf16>
    %cst_41 = arith.constant dense<0.000000e+00> : vector<24x32xf32>
    %112 = tpu.matmul %111, %95, %cst_41 {dimension_numbers = #tpu.dot_dimension_numbers<[1], [0], [0], [1], [0, 0, 1, 1], [], []>} : vector<24x24xbf16>, vector<24x32xbf16>, vector<24x32xf32> -> vector<24x32xf32>
    %113 = vector.extract_strided_slice %52 {offsets = [0, 96], sizes = [24, 32], strides = [1, 1]} : vector<24x384xbf16> to vector<24x32xbf16>
    %114 = vector.extract_strided_slice %52 {offsets = [0, 224], sizes = [24, 32], strides = [1, 1]} : vector<24x384xbf16> to vector<24x32xbf16>
    %115 = vector.extract_strided_slice %52 {offsets = [0, 352], sizes = [24, 32], strides = [1, 1]} : vector<24x384xbf16> to vector<24x32xbf16>
    %cst_42 = arith.constant dense<0.000000e+00> : vector<24x24xf32>
    %116 = tpu.matmul %113, %114, %cst_42 {dimension_numbers = #tpu.dot_dimension_numbers<[1], [1], [0], [0], [0, 0, 1, 0], [], []>} : vector<24x32xbf16>, vector<24x32xbf16>, vector<24x24xf32> -> vector<24x24xf32>
    %cst_43 = arith.constant 0.176776692 : f32
    %117 = vector.broadcast %cst_43 : f32 to vector<24x24xf32>
    %118 = arith.mulf %116, %117 : vector<24x24xf32>
    %cst_44 = arith.constant -1.000000e+30 : f32
    %119 = vector.broadcast %cst_44 : f32 to vector<24x24xf32>
    %120 = arith.select %5, %118, %119 : vector<24x24xi1>, vector<24x24xf32>
    %cst_45 = arith.constant dense<0xFF800000> : vector<24xf32>
    %121 = vector.multi_reduction <maximumf>, %120, %cst_45 [1] : vector<24x24xf32> to vector<24xf32>
    %122 = vector.shape_cast %121 : vector<24xf32> to vector<24x1xf32>
    %123 = vector.broadcast %122 : vector<24x1xf32> to vector<24x24xf32>
    %124 = arith.subf %120, %123 : vector<24x24xf32>
    %125 = math.exp %124 : vector<24x24xf32>
    %cst_46 = arith.constant dense<0.000000e+00> : vector<24xf32>
    %126 = vector.multi_reduction <add>, %125, %cst_46 [1] : vector<24x24xf32> to vector<24xf32>
    %127 = vector.shape_cast %126 : vector<24xf32> to vector<24x1xf32>
    %128 = tpu.reciprocal %127 {approx = true} : vector<24x1xf32> -> vector<24x1xf32>
    %129 = vector.broadcast %128 : vector<24x1xf32> to vector<24x24xf32>
    %130 = arith.mulf %125, %129 : vector<24x24xf32>
    %131 = arith.truncf %130 : vector<24x24xf32> to vector<24x24xbf16>
    %cst_47 = arith.constant dense<0.000000e+00> : vector<24x32xf32>
    %132 = tpu.matmul %131, %115, %cst_47 {dimension_numbers = #tpu.dot_dimension_numbers<[1], [0], [0], [1], [0, 0, 1, 1], [], []>} : vector<24x24xbf16>, vector<24x32xbf16>, vector<24x32xf32> -> vector<24x32xf32>
    %133 = tpu.concatenate %72, %92, %112, %132 in 1 : vector<24x32xf32>, vector<24x32xf32>, vector<24x32xf32>, vector<24x32xf32> -> vector<24x128xf32>
    %134 = vector.extract_strided_slice %50 {offsets = [24, 0], sizes = [24, 384], strides = [1, 1]} : vector<48x384xf32> to vector<24x384xf32>
    %135 = arith.truncf %134 : vector<24x384xf32> to vector<24x384xbf16>
    %136 = vector.extract_strided_slice %135 {offsets = [0, 0], sizes = [24, 32], strides = [1, 1]} : vector<24x384xbf16> to vector<24x32xbf16>
    %137 = vector.extract_strided_slice %135 {offsets = [0, 128], sizes = [24, 32], strides = [1, 1]} : vector<24x384xbf16> to vector<24x32xbf16>
    %138 = vector.extract_strided_slice %135 {offsets = [0, 256], sizes = [24, 32], strides = [1, 1]} : vector<24x384xbf16> to vector<24x32xbf16>
    %cst_48 = arith.constant dense<0.000000e+00> : vector<24x24xf32>
    %139 = tpu.matmul %136, %137, %cst_48 {dimension_numbers = #tpu.dot_dimension_numbers<[1], [1], [0], [0], [0, 0, 1, 0], [], []>} : vector<24x32xbf16>, vector<24x32xbf16>, vector<24x24xf32> -> vector<24x24xf32>
    %cst_49 = arith.constant 0.176776692 : f32
    %140 = vector.broadcast %cst_49 : f32 to vector<24x24xf32>
    %141 = arith.mulf %139, %140 : vector<24x24xf32>
    %cst_50 = arith.constant -1.000000e+30 : f32
    %142 = vector.broadcast %cst_50 : f32 to vector<24x24xf32>
    %143 = arith.select %5, %141, %142 : vector<24x24xi1>, vector<24x24xf32>
    %cst_51 = arith.constant dense<0xFF800000> : vector<24xf32>
    %144 = vector.multi_reduction <maximumf>, %143, %cst_51 [1] : vector<24x24xf32> to vector<24xf32>
    %145 = vector.shape_cast %144 : vector<24xf32> to vector<24x1xf32>
    %146 = vector.broadcast %145 : vector<24x1xf32> to vector<24x24xf32>
    %147 = arith.subf %143, %146 : vector<24x24xf32>
    %148 = math.exp %147 : vector<24x24xf32>
    %cst_52 = arith.constant dense<0.000000e+00> : vector<24xf32>
    %149 = vector.multi_reduction <add>, %148, %cst_52 [1] : vector<24x24xf32> to vector<24xf32>
    %150 = vector.shape_cast %149 : vector<24xf32> to vector<24x1xf32>
    %151 = tpu.reciprocal %150 {approx = true} : vector<24x1xf32> -> vector<24x1xf32>
    %152 = vector.broadcast %151 : vector<24x1xf32> to vector<24x24xf32>
    %153 = arith.mulf %148, %152 : vector<24x24xf32>
    %154 = arith.truncf %153 : vector<24x24xf32> to vector<24x24xbf16>
    %cst_53 = arith.constant dense<0.000000e+00> : vector<24x32xf32>
    %155 = tpu.matmul %154, %138, %cst_53 {dimension_numbers = #tpu.dot_dimension_numbers<[1], [0], [0], [1], [0, 0, 1, 1], [], []>} : vector<24x24xbf16>, vector<24x32xbf16>, vector<24x32xf32> -> vector<24x32xf32>
    %156 = vector.extract_strided_slice %135 {offsets = [0, 32], sizes = [24, 32], strides = [1, 1]} : vector<24x384xbf16> to vector<24x32xbf16>
    %157 = vector.extract_strided_slice %135 {offsets = [0, 160], sizes = [24, 32], strides = [1, 1]} : vector<24x384xbf16> to vector<24x32xbf16>
    %158 = vector.extract_strided_slice %135 {offsets = [0, 288], sizes = [24, 32], strides = [1, 1]} : vector<24x384xbf16> to vector<24x32xbf16>
    %cst_54 = arith.constant dense<0.000000e+00> : vector<24x24xf32>
    %159 = tpu.matmul %156, %157, %cst_54 {dimension_numbers = #tpu.dot_dimension_numbers<[1], [1], [0], [0], [0, 0, 1, 0], [], []>} : vector<24x32xbf16>, vector<24x32xbf16>, vector<24x24xf32> -> vector<24x24xf32>
    %cst_55 = arith.constant 0.176776692 : f32
    %160 = vector.broadcast %cst_55 : f32 to vector<24x24xf32>
    %161 = arith.mulf %159, %160 : vector<24x24xf32>
    %cst_56 = arith.constant -1.000000e+30 : f32
    %162 = vector.broadcast %cst_56 : f32 to vector<24x24xf32>
    %163 = arith.select %5, %161, %162 : vector<24x24xi1>, vector<24x24xf32>
    %cst_57 = arith.constant dense<0xFF800000> : vector<24xf32>
    %164 = vector.multi_reduction <maximumf>, %163, %cst_57 [1] : vector<24x24xf32> to vector<24xf32>
    %165 = vector.shape_cast %164 : vector<24xf32> to vector<24x1xf32>
    %166 = vector.broadcast %165 : vector<24x1xf32> to vector<24x24xf32>
    %167 = arith.subf %163, %166 : vector<24x24xf32>
    %168 = math.exp %167 : vector<24x24xf32>
    %cst_58 = arith.constant dense<0.000000e+00> : vector<24xf32>
    %169 = vector.multi_reduction <add>, %168, %cst_58 [1] : vector<24x24xf32> to vector<24xf32>
    %170 = vector.shape_cast %169 : vector<24xf32> to vector<24x1xf32>
    %171 = tpu.reciprocal %170 {approx = true} : vector<24x1xf32> -> vector<24x1xf32>
    %172 = vector.broadcast %171 : vector<24x1xf32> to vector<24x24xf32>
    %173 = arith.mulf %168, %172 : vector<24x24xf32>
    %174 = arith.truncf %173 : vector<24x24xf32> to vector<24x24xbf16>
    %cst_59 = arith.constant dense<0.000000e+00> : vector<24x32xf32>
    %175 = tpu.matmul %174, %158, %cst_59 {dimension_numbers = #tpu.dot_dimension_numbers<[1], [0], [0], [1], [0, 0, 1, 1], [], []>} : vector<24x24xbf16>, vector<24x32xbf16>, vector<24x32xf32> -> vector<24x32xf32>
    %176 = vector.extract_strided_slice %135 {offsets = [0, 64], sizes = [24, 32], strides = [1, 1]} : vector<24x384xbf16> to vector<24x32xbf16>
    %177 = vector.extract_strided_slice %135 {offsets = [0, 192], sizes = [24, 32], strides = [1, 1]} : vector<24x384xbf16> to vector<24x32xbf16>
    %178 = vector.extract_strided_slice %135 {offsets = [0, 320], sizes = [24, 32], strides = [1, 1]} : vector<24x384xbf16> to vector<24x32xbf16>
    %cst_60 = arith.constant dense<0.000000e+00> : vector<24x24xf32>
    %179 = tpu.matmul %176, %177, %cst_60 {dimension_numbers = #tpu.dot_dimension_numbers<[1], [1], [0], [0], [0, 0, 1, 0], [], []>} : vector<24x32xbf16>, vector<24x32xbf16>, vector<24x24xf32> -> vector<24x24xf32>
    %cst_61 = arith.constant 0.176776692 : f32
    %180 = vector.broadcast %cst_61 : f32 to vector<24x24xf32>
    %181 = arith.mulf %179, %180 : vector<24x24xf32>
    %cst_62 = arith.constant -1.000000e+30 : f32
    %182 = vector.broadcast %cst_62 : f32 to vector<24x24xf32>
    %183 = arith.select %5, %181, %182 : vector<24x24xi1>, vector<24x24xf32>
    %cst_63 = arith.constant dense<0xFF800000> : vector<24xf32>
    %184 = vector.multi_reduction <maximumf>, %183, %cst_63 [1] : vector<24x24xf32> to vector<24xf32>
    %185 = vector.shape_cast %184 : vector<24xf32> to vector<24x1xf32>
    %186 = vector.broadcast %185 : vector<24x1xf32> to vector<24x24xf32>
    %187 = arith.subf %183, %186 : vector<24x24xf32>
    %188 = math.exp %187 : vector<24x24xf32>
    %cst_64 = arith.constant dense<0.000000e+00> : vector<24xf32>
    %189 = vector.multi_reduction <add>, %188, %cst_64 [1] : vector<24x24xf32> to vector<24xf32>
    %190 = vector.shape_cast %189 : vector<24xf32> to vector<24x1xf32>
    %191 = tpu.reciprocal %190 {approx = true} : vector<24x1xf32> -> vector<24x1xf32>
    %192 = vector.broadcast %191 : vector<24x1xf32> to vector<24x24xf32>
    %193 = arith.mulf %188, %192 : vector<24x24xf32>
    %194 = arith.truncf %193 : vector<24x24xf32> to vector<24x24xbf16>
    %cst_65 = arith.constant dense<0.000000e+00> : vector<24x32xf32>
    %195 = tpu.matmul %194, %178, %cst_65 {dimension_numbers = #tpu.dot_dimension_numbers<[1], [0], [0], [1], [0, 0, 1, 1], [], []>} : vector<24x24xbf16>, vector<24x32xbf16>, vector<24x32xf32> -> vector<24x32xf32>
    %196 = vector.extract_strided_slice %135 {offsets = [0, 96], sizes = [24, 32], strides = [1, 1]} : vector<24x384xbf16> to vector<24x32xbf16>
    %197 = vector.extract_strided_slice %135 {offsets = [0, 224], sizes = [24, 32], strides = [1, 1]} : vector<24x384xbf16> to vector<24x32xbf16>
    %198 = vector.extract_strided_slice %135 {offsets = [0, 352], sizes = [24, 32], strides = [1, 1]} : vector<24x384xbf16> to vector<24x32xbf16>
    %cst_66 = arith.constant dense<0.000000e+00> : vector<24x24xf32>
    %199 = tpu.matmul %196, %197, %cst_66 {dimension_numbers = #tpu.dot_dimension_numbers<[1], [1], [0], [0], [0, 0, 1, 0], [], []>} : vector<24x32xbf16>, vector<24x32xbf16>, vector<24x24xf32> -> vector<24x24xf32>
    %cst_67 = arith.constant 0.176776692 : f32
    %200 = vector.broadcast %cst_67 : f32 to vector<24x24xf32>
    %201 = arith.mulf %199, %200 : vector<24x24xf32>
    %cst_68 = arith.constant -1.000000e+30 : f32
    %202 = vector.broadcast %cst_68 : f32 to vector<24x24xf32>
    %203 = arith.select %5, %201, %202 : vector<24x24xi1>, vector<24x24xf32>
    %cst_69 = arith.constant dense<0xFF800000> : vector<24xf32>
    %204 = vector.multi_reduction <maximumf>, %203, %cst_69 [1] : vector<24x24xf32> to vector<24xf32>
    %205 = vector.shape_cast %204 : vector<24xf32> to vector<24x1xf32>
    %206 = vector.broadcast %205 : vector<24x1xf32> to vector<24x24xf32>
    %207 = arith.subf %203, %206 : vector<24x24xf32>
    %208 = math.exp %207 : vector<24x24xf32>
    %cst_70 = arith.constant dense<0.000000e+00> : vector<24xf32>
    %209 = vector.multi_reduction <add>, %208, %cst_70 [1] : vector<24x24xf32> to vector<24xf32>
    %210 = vector.shape_cast %209 : vector<24xf32> to vector<24x1xf32>
    %211 = tpu.reciprocal %210 {approx = true} : vector<24x1xf32> -> vector<24x1xf32>
    %212 = vector.broadcast %211 : vector<24x1xf32> to vector<24x24xf32>
    %213 = arith.mulf %208, %212 : vector<24x24xf32>
    %214 = arith.truncf %213 : vector<24x24xf32> to vector<24x24xbf16>
    %cst_71 = arith.constant dense<0.000000e+00> : vector<24x32xf32>
    %215 = tpu.matmul %214, %198, %cst_71 {dimension_numbers = #tpu.dot_dimension_numbers<[1], [0], [0], [1], [0, 0, 1, 1], [], []>} : vector<24x24xbf16>, vector<24x32xbf16>, vector<24x32xf32> -> vector<24x32xf32>
    %216 = tpu.concatenate %155, %175, %195, %215 in 1 : vector<24x32xf32>, vector<24x32xf32>, vector<24x32xf32>, vector<24x32xf32> -> vector<24x128xf32>
    %217 = tpu.concatenate %133, %216 in 0 : vector<24x128xf32>, vector<24x128xf32> -> vector<48x128xf32>
    %c0_72 = arith.constant 0 : index
    %c0_73 = arith.constant 0 : index
    %c0_74 = arith.constant 0 : index
    %218 = vector.load %arg8[%c0_72, %c0_73, %c0_74] : memref<2x128x384xbf16, #tpu.memory_space<vmem>>, vector<1x128x384xbf16>
    %219 = vector.shape_cast %218 : vector<1x128x384xbf16> to vector<128x384xbf16>
    %220 = arith.truncf %217 : vector<48x128xf32> to vector<48x128xbf16>
    %cst_75 = arith.constant dense<0.000000e+00> : vector<48x384xf32>
    %221 = tpu.matmul %220, %219, %cst_75 {dimension_numbers = #tpu.dot_dimension_numbers<[1], [0], [0], [1], [0, 0, 1, 1], [], []>} : vector<48x128xbf16>, vector<128x384xbf16>, vector<48x384xf32> -> vector<48x384xf32>
    %222 = arith.addf %18, %221 : vector<48x384xf32>
    %c0_76 = arith.constant 0 : index
    %c0_77 = arith.constant 0 : index
    %c0_78 = arith.constant 0 : index
    %223 = vector.load %arg9[%c0_76, %c0_77, %c0_78] : memref<2x1x384xf32, #tpu.memory_space<vmem>>, vector<1x1x384xf32>
    %224 = vector.shape_cast %223 : vector<1x1x384xf32> to vector<1x384xf32>
    %225 = vector.broadcast %224 : vector<1x384xf32> to vector<48x384xf32>
    %226 = arith.addf %222, %225 : vector<48x384xf32>
    %c0_79 = arith.constant 0 : index
    %c0_80 = arith.constant 0 : index
    %c0_81 = arith.constant 0 : index
    %227 = vector.load %arg10[%c0_79, %c0_80, %c0_81] : memref<2x1x384xf32, #tpu.memory_space<vmem>>, vector<1x1x384xf32>
    %228 = vector.shape_cast %227 : vector<1x1x384xf32> to vector<1x384xf32>
    %c0_82 = arith.constant 0 : index
    %c0_83 = arith.constant 0 : index
    %c0_84 = arith.constant 0 : index
    %229 = vector.load %arg11[%c0_82, %c0_83, %c0_84] : memref<2x1x384xf32, #tpu.memory_space<vmem>>, vector<1x1x384xf32>
    %230 = vector.shape_cast %229 : vector<1x1x384xf32> to vector<1x384xf32>
    %cst_85 = arith.constant dense<0.000000e+00> : vector<48xf32>
    %231 = vector.multi_reduction <add>, %226, %cst_85 [1] : vector<48x384xf32> to vector<48xf32>
    %232 = vector.shape_cast %231 : vector<48xf32> to vector<48x1xf32>
    %cst_86 = arith.constant 0.00277008303 : f32
    %233 = vector.broadcast %cst_86 : f32 to vector<48x1xf32>
    %234 = arith.mulf %232, %233 : vector<48x1xf32>
    %235 = vector.broadcast %234 : vector<48x1xf32> to vector<48x384xf32>
    %236 = arith.subf %226, %235 : vector<48x384xf32>
    %cst_87 = arith.constant 0.000000e+00 : f32
    %237 = vector.shape_cast %2 : vector<1x384xi1> to vector<1x384xi1>
    %238 = vector.broadcast %237 : vector<1x384xi1> to vector<48x384xi1>
    %239 = vector.broadcast %cst_87 : f32 to vector<48x384xf32>
    %240 = arith.select %238, %236, %239 : vector<48x384xi1>, vector<48x384xf32>
    %241 = arith.mulf %240, %240 : vector<48x384xf32>
    %cst_88 = arith.constant dense<0.000000e+00> : vector<48xf32>
    %242 = vector.multi_reduction <add>, %241, %cst_88 [1] : vector<48x384xf32> to vector<48xf32>
    %243 = vector.shape_cast %242 : vector<48xf32> to vector<48x1xf32>
    %cst_89 = arith.constant 0.00277008303 : f32
    %244 = vector.broadcast %cst_89 : f32 to vector<48x1xf32>
    %245 = arith.mulf %243, %244 : vector<48x1xf32>
    %cst_90 = arith.constant 9.99999974E-6 : f32
    %246 = vector.broadcast %cst_90 : f32 to vector<48x1xf32>
    %247 = arith.addf %245, %246 : vector<48x1xf32>
    %248 = math.rsqrt %247 : vector<48x1xf32>
    %249 = vector.broadcast %248 : vector<48x1xf32> to vector<48x384xf32>
    %250 = arith.mulf %240, %249 : vector<48x384xf32>
    %251 = vector.broadcast %228 : vector<1x384xf32> to vector<48x384xf32>
    %252 = arith.mulf %250, %251 : vector<48x384xf32>
    %253 = vector.broadcast %230 : vector<1x384xf32> to vector<48x384xf32>
    %254 = arith.addf %252, %253 : vector<48x384xf32>
    %c0_91 = arith.constant 0 : index
    %c0_92 = arith.constant 0 : index
    %c0_93 = arith.constant 0 : index
    %255 = vector.load %arg12[%c0_91, %c0_92, %c0_93] : memref<2x384x128xbf16, #tpu.memory_space<vmem>>, vector<1x384x128xbf16>
    %256 = vector.shape_cast %255 : vector<1x384x128xbf16> to vector<384x128xbf16>
    %257 = arith.truncf %254 : vector<48x384xf32> to vector<48x384xbf16>
    %cst_94 = arith.constant dense<0.000000e+00> : vector<48x128xf32>
    %258 = tpu.matmul %257, %256, %cst_94 {dimension_numbers = #tpu.dot_dimension_numbers<[1], [0], [0], [1], [0, 0, 1, 1], [], []>} : vector<48x384xbf16>, vector<384x128xbf16>, vector<48x128xf32> -> vector<48x128xf32>
    %c0_95 = arith.constant 0 : index
    %c0_96 = arith.constant 0 : index
    %c0_97 = arith.constant 0 : index
    %259 = vector.load %arg13[%c0_95, %c0_96, %c0_97] : memref<2x1x128xf32, #tpu.memory_space<vmem>>, vector<1x1x128xf32>
    %260 = vector.shape_cast %259 : vector<1x1x128xf32> to vector<1x128xf32>
    %261 = vector.broadcast %260 : vector<1x128xf32> to vector<48x128xf32>
    %262 = arith.addf %258, %261 : vector<48x128xf32>
    %cst_98 = arith.constant 5.000000e-01 : f32
    %263 = vector.broadcast %cst_98 : f32 to vector<48x128xf32>
    %264 = arith.mulf %263, %262 : vector<48x128xf32>
    %cst_99 = arith.constant 0.707106769 : f32
    %265 = vector.broadcast %cst_99 : f32 to vector<48x128xf32>
    %266 = arith.mulf %262, %265 : vector<48x128xf32>
    %cst_100 = arith.constant 0.000000e+00 : f32
    %267 = vector.broadcast %cst_100 : f32 to vector<48x128xf32>
    %268 = arith.cmpf oge, %266, %267 : vector<48x128xf32>
    %cst_101 = arith.constant 1.000000e+00 : f32
    %cst_102 = arith.constant -1.000000e+00 : f32
    %269 = vector.broadcast %cst_101 : f32 to vector<48x128xf32>
    %270 = vector.broadcast %cst_102 : f32 to vector<48x128xf32>
    %271 = arith.select %268, %269, %270 : vector<48x128xi1>, vector<48x128xf32>
    %272 = math.absf %266 : vector<48x128xf32>
    %cst_103 = arith.constant 0.327591091 : f32
    %273 = vector.broadcast %cst_103 : f32 to vector<48x128xf32>
    %274 = arith.mulf %273, %272 : vector<48x128xf32>
    %cst_104 = arith.constant 1.000000e+00 : f32
    %275 = vector.broadcast %cst_104 : f32 to vector<48x128xf32>
    %276 = arith.addf %275, %274 : vector<48x128xf32>
    %cst_105 = arith.constant 1.000000e+00 : f32
    %277 = vector.broadcast %cst_105 : f32 to vector<48x128xf32>
    %278 = arith.divf %277, %276 : vector<48x128xf32>
    %cst_106 = arith.constant 1.06140542 : f32
    %279 = vector.broadcast %cst_106 : f32 to vector<48x128xf32>
    %280 = arith.mulf %279, %278 : vector<48x128xf32>
    %cst_107 = arith.constant -1.45315206 : f32
    %281 = vector.broadcast %cst_107 : f32 to vector<48x128xf32>
    %282 = arith.addf %280, %281 : vector<48x128xf32>
    %283 = arith.mulf %282, %278 : vector<48x128xf32>
    %cst_108 = arith.constant 1.42141378 : f32
    %284 = vector.broadcast %cst_108 : f32 to vector<48x128xf32>
    %285 = arith.addf %283, %284 : vector<48x128xf32>
    %286 = arith.mulf %285, %278 : vector<48x128xf32>
    %cst_109 = arith.constant -0.284496725 : f32
    %287 = vector.broadcast %cst_109 : f32 to vector<48x128xf32>
    %288 = arith.addf %286, %287 : vector<48x128xf32>
    %289 = arith.mulf %288, %278 : vector<48x128xf32>
    %cst_110 = arith.constant 0.254829586 : f32
    %290 = vector.broadcast %cst_110 : f32 to vector<48x128xf32>
    %291 = arith.addf %289, %290 : vector<48x128xf32>
    %292 = arith.mulf %291, %278 : vector<48x128xf32>
    %cst_111 = arith.constant 0.000000e+00 : f32
    %293 = vector.broadcast %cst_111 : f32 to vector<48x128xf32>
    %294 = arith.subf %293, %272 : vector<48x128xf32>
    %295 = arith.mulf %294, %272 : vector<48x128xf32>
    %296 = math.exp %295 : vector<48x128xf32>
    %297 = arith.mulf %292, %296 : vector<48x128xf32>
    %cst_112 = arith.constant 1.000000e+00 : f32
    %298 = vector.broadcast %cst_112 : f32 to vector<48x128xf32>
    %299 = arith.subf %298, %297 : vector<48x128xf32>
    %300 = arith.mulf %271, %299 : vector<48x128xf32>
    %cst_113 = arith.constant 1.000000e+00 : f32
    %301 = vector.broadcast %cst_113 : f32 to vector<48x128xf32>
    %302 = arith.addf %301, %300 : vector<48x128xf32>
    %303 = arith.mulf %264, %302 : vector<48x128xf32>
    %c0_114 = arith.constant 0 : index
    %c0_115 = arith.constant 0 : index
    %c0_116 = arith.constant 0 : index
    %304 = vector.load %arg14[%c0_114, %c0_115, %c0_116] : memref<2x128x384xbf16, #tpu.memory_space<vmem>>, vector<1x128x384xbf16>
    %305 = vector.shape_cast %304 : vector<1x128x384xbf16> to vector<128x384xbf16>
    %306 = arith.truncf %303 : vector<48x128xf32> to vector<48x128xbf16>
    %cst_117 = arith.constant dense<0.000000e+00> : vector<48x384xf32>
    %307 = tpu.matmul %306, %305, %cst_117 {dimension_numbers = #tpu.dot_dimension_numbers<[1], [0], [0], [1], [0, 0, 1, 1], [], []>} : vector<48x128xbf16>, vector<128x384xbf16>, vector<48x384xf32> -> vector<48x384xf32>
    %308 = arith.addf %226, %307 : vector<48x384xf32>
    %c0_118 = arith.constant 0 : index
    %c0_119 = arith.constant 0 : index
    %c0_120 = arith.constant 0 : index
    %309 = vector.load %arg15[%c0_118, %c0_119, %c0_120] : memref<2x1x384xf32, #tpu.memory_space<vmem>>, vector<1x1x384xf32>
    %310 = vector.shape_cast %309 : vector<1x1x384xf32> to vector<1x384xf32>
    %311 = vector.broadcast %310 : vector<1x384xf32> to vector<48x384xf32>
    %312 = arith.addf %308, %311 : vector<48x384xf32>
    %c1 = arith.constant 1 : index
    %c0_121 = arith.constant 0 : index
    %c0_122 = arith.constant 0 : index
    %313 = vector.load %arg5[%c1, %c0_121, %c0_122] : memref<2x1x384xf32, #tpu.memory_space<vmem>>, vector<1x1x384xf32>
    %314 = vector.shape_cast %313 : vector<1x1x384xf32> to vector<1x384xf32>
    %c1_123 = arith.constant 1 : index
    %c0_124 = arith.constant 0 : index
    %c0_125 = arith.constant 0 : index
    %315 = vector.load %arg6[%c1_123, %c0_124, %c0_125] : memref<2x1x384xf32, #tpu.memory_space<vmem>>, vector<1x1x384xf32>
    %316 = vector.shape_cast %315 : vector<1x1x384xf32> to vector<1x384xf32>
    %cst_126 = arith.constant dense<0.000000e+00> : vector<48xf32>
    %317 = vector.multi_reduction <add>, %312, %cst_126 [1] : vector<48x384xf32> to vector<48xf32>
    %318 = vector.shape_cast %317 : vector<48xf32> to vector<48x1xf32>
    %cst_127 = arith.constant 0.00277008303 : f32
    %319 = vector.broadcast %cst_127 : f32 to vector<48x1xf32>
    %320 = arith.mulf %318, %319 : vector<48x1xf32>
    %321 = vector.broadcast %320 : vector<48x1xf32> to vector<48x384xf32>
    %322 = arith.subf %312, %321 : vector<48x384xf32>
    %cst_128 = arith.constant 0.000000e+00 : f32
    %323 = vector.shape_cast %2 : vector<1x384xi1> to vector<1x384xi1>
    %324 = vector.broadcast %323 : vector<1x384xi1> to vector<48x384xi1>
    %325 = vector.broadcast %cst_128 : f32 to vector<48x384xf32>
    %326 = arith.select %324, %322, %325 : vector<48x384xi1>, vector<48x384xf32>
    %327 = arith.mulf %326, %326 : vector<48x384xf32>
    %cst_129 = arith.constant dense<0.000000e+00> : vector<48xf32>
    %328 = vector.multi_reduction <add>, %327, %cst_129 [1] : vector<48x384xf32> to vector<48xf32>
    %329 = vector.shape_cast %328 : vector<48xf32> to vector<48x1xf32>
    %cst_130 = arith.constant 0.00277008303 : f32
    %330 = vector.broadcast %cst_130 : f32 to vector<48x1xf32>
    %331 = arith.mulf %329, %330 : vector<48x1xf32>
    %cst_131 = arith.constant 9.99999974E-6 : f32
    %332 = vector.broadcast %cst_131 : f32 to vector<48x1xf32>
    %333 = arith.addf %331, %332 : vector<48x1xf32>
    %334 = math.rsqrt %333 : vector<48x1xf32>
    %335 = vector.broadcast %334 : vector<48x1xf32> to vector<48x384xf32>
    %336 = arith.mulf %326, %335 : vector<48x384xf32>
    %337 = vector.broadcast %314 : vector<1x384xf32> to vector<48x384xf32>
    %338 = arith.mulf %336, %337 : vector<48x384xf32>
    %339 = vector.broadcast %316 : vector<1x384xf32> to vector<48x384xf32>
    %340 = arith.addf %338, %339 : vector<48x384xf32>
    %c1_132 = arith.constant 1 : index
    %c0_133 = arith.constant 0 : index
    %c0_134 = arith.constant 0 : index
    %341 = vector.load %arg7[%c1_132, %c0_133, %c0_134] : memref<2x384x384xbf16, #tpu.memory_space<vmem>>, vector<1x384x384xbf16>
    %342 = vector.shape_cast %341 : vector<1x384x384xbf16> to vector<384x384xbf16>
    %343 = arith.truncf %340 : vector<48x384xf32> to vector<48x384xbf16>
    %cst_135 = arith.constant dense<0.000000e+00> : vector<48x384xf32>
    %344 = tpu.matmul %343, %342, %cst_135 {dimension_numbers = #tpu.dot_dimension_numbers<[1], [0], [0], [1], [0, 0, 1, 1], [], []>} : vector<48x384xbf16>, vector<384x384xbf16>, vector<48x384xf32> -> vector<48x384xf32>
    %345 = vector.extract_strided_slice %344 {offsets = [0, 0], sizes = [24, 384], strides = [1, 1]} : vector<48x384xf32> to vector<24x384xf32>
    %346 = arith.truncf %345 : vector<24x384xf32> to vector<24x384xbf16>
    %347 = vector.extract_strided_slice %346 {offsets = [0, 0], sizes = [24, 32], strides = [1, 1]} : vector<24x384xbf16> to vector<24x32xbf16>
    %348 = vector.extract_strided_slice %346 {offsets = [0, 128], sizes = [24, 32], strides = [1, 1]} : vector<24x384xbf16> to vector<24x32xbf16>
    %349 = vector.extract_strided_slice %346 {offsets = [0, 256], sizes = [24, 32], strides = [1, 1]} : vector<24x384xbf16> to vector<24x32xbf16>
    %cst_136 = arith.constant dense<0.000000e+00> : vector<24x24xf32>
    %350 = tpu.matmul %347, %348, %cst_136 {dimension_numbers = #tpu.dot_dimension_numbers<[1], [1], [0], [0], [0, 0, 1, 0], [], []>} : vector<24x32xbf16>, vector<24x32xbf16>, vector<24x24xf32> -> vector<24x24xf32>
    %cst_137 = arith.constant 0.176776692 : f32
    %351 = vector.broadcast %cst_137 : f32 to vector<24x24xf32>
    %352 = arith.mulf %350, %351 : vector<24x24xf32>
    %cst_138 = arith.constant -1.000000e+30 : f32
    %353 = vector.broadcast %cst_138 : f32 to vector<24x24xf32>
    %354 = arith.select %5, %352, %353 : vector<24x24xi1>, vector<24x24xf32>
    %cst_139 = arith.constant dense<0xFF800000> : vector<24xf32>
    %355 = vector.multi_reduction <maximumf>, %354, %cst_139 [1] : vector<24x24xf32> to vector<24xf32>
    %356 = vector.shape_cast %355 : vector<24xf32> to vector<24x1xf32>
    %357 = vector.broadcast %356 : vector<24x1xf32> to vector<24x24xf32>
    %358 = arith.subf %354, %357 : vector<24x24xf32>
    %359 = math.exp %358 : vector<24x24xf32>
    %cst_140 = arith.constant dense<0.000000e+00> : vector<24xf32>
    %360 = vector.multi_reduction <add>, %359, %cst_140 [1] : vector<24x24xf32> to vector<24xf32>
    %361 = vector.shape_cast %360 : vector<24xf32> to vector<24x1xf32>
    %362 = tpu.reciprocal %361 {approx = true} : vector<24x1xf32> -> vector<24x1xf32>
    %363 = vector.broadcast %362 : vector<24x1xf32> to vector<24x24xf32>
    %364 = arith.mulf %359, %363 : vector<24x24xf32>
    %365 = arith.truncf %364 : vector<24x24xf32> to vector<24x24xbf16>
    %cst_141 = arith.constant dense<0.000000e+00> : vector<24x32xf32>
    %366 = tpu.matmul %365, %349, %cst_141 {dimension_numbers = #tpu.dot_dimension_numbers<[1], [0], [0], [1], [0, 0, 1, 1], [], []>} : vector<24x24xbf16>, vector<24x32xbf16>, vector<24x32xf32> -> vector<24x32xf32>
    %367 = vector.extract_strided_slice %346 {offsets = [0, 32], sizes = [24, 32], strides = [1, 1]} : vector<24x384xbf16> to vector<24x32xbf16>
    %368 = vector.extract_strided_slice %346 {offsets = [0, 160], sizes = [24, 32], strides = [1, 1]} : vector<24x384xbf16> to vector<24x32xbf16>
    %369 = vector.extract_strided_slice %346 {offsets = [0, 288], sizes = [24, 32], strides = [1, 1]} : vector<24x384xbf16> to vector<24x32xbf16>
    %cst_142 = arith.constant dense<0.000000e+00> : vector<24x24xf32>
    %370 = tpu.matmul %367, %368, %cst_142 {dimension_numbers = #tpu.dot_dimension_numbers<[1], [1], [0], [0], [0, 0, 1, 0], [], []>} : vector<24x32xbf16>, vector<24x32xbf16>, vector<24x24xf32> -> vector<24x24xf32>
    %cst_143 = arith.constant 0.176776692 : f32
    %371 = vector.broadcast %cst_143 : f32 to vector<24x24xf32>
    %372 = arith.mulf %370, %371 : vector<24x24xf32>
    %cst_144 = arith.constant -1.000000e+30 : f32
    %373 = vector.broadcast %cst_144 : f32 to vector<24x24xf32>
    %374 = arith.select %5, %372, %373 : vector<24x24xi1>, vector<24x24xf32>
    %cst_145 = arith.constant dense<0xFF800000> : vector<24xf32>
    %375 = vector.multi_reduction <maximumf>, %374, %cst_145 [1] : vector<24x24xf32> to vector<24xf32>
    %376 = vector.shape_cast %375 : vector<24xf32> to vector<24x1xf32>
    %377 = vector.broadcast %376 : vector<24x1xf32> to vector<24x24xf32>
    %378 = arith.subf %374, %377 : vector<24x24xf32>
    %379 = math.exp %378 : vector<24x24xf32>
    %cst_146 = arith.constant dense<0.000000e+00> : vector<24xf32>
    %380 = vector.multi_reduction <add>, %379, %cst_146 [1] : vector<24x24xf32> to vector<24xf32>
    %381 = vector.shape_cast %380 : vector<24xf32> to vector<24x1xf32>
    %382 = tpu.reciprocal %381 {approx = true} : vector<24x1xf32> -> vector<24x1xf32>
    %383 = vector.broadcast %382 : vector<24x1xf32> to vector<24x24xf32>
    %384 = arith.mulf %379, %383 : vector<24x24xf32>
    %385 = arith.truncf %384 : vector<24x24xf32> to vector<24x24xbf16>
    %cst_147 = arith.constant dense<0.000000e+00> : vector<24x32xf32>
    %386 = tpu.matmul %385, %369, %cst_147 {dimension_numbers = #tpu.dot_dimension_numbers<[1], [0], [0], [1], [0, 0, 1, 1], [], []>} : vector<24x24xbf16>, vector<24x32xbf16>, vector<24x32xf32> -> vector<24x32xf32>
    %387 = vector.extract_strided_slice %346 {offsets = [0, 64], sizes = [24, 32], strides = [1, 1]} : vector<24x384xbf16> to vector<24x32xbf16>
    %388 = vector.extract_strided_slice %346 {offsets = [0, 192], sizes = [24, 32], strides = [1, 1]} : vector<24x384xbf16> to vector<24x32xbf16>
    %389 = vector.extract_strided_slice %346 {offsets = [0, 320], sizes = [24, 32], strides = [1, 1]} : vector<24x384xbf16> to vector<24x32xbf16>
    %cst_148 = arith.constant dense<0.000000e+00> : vector<24x24xf32>
    %390 = tpu.matmul %387, %388, %cst_148 {dimension_numbers = #tpu.dot_dimension_numbers<[1], [1], [0], [0], [0, 0, 1, 0], [], []>} : vector<24x32xbf16>, vector<24x32xbf16>, vector<24x24xf32> -> vector<24x24xf32>
    %cst_149 = arith.constant 0.176776692 : f32
    %391 = vector.broadcast %cst_149 : f32 to vector<24x24xf32>
    %392 = arith.mulf %390, %391 : vector<24x24xf32>
    %cst_150 = arith.constant -1.000000e+30 : f32
    %393 = vector.broadcast %cst_150 : f32 to vector<24x24xf32>
    %394 = arith.select %5, %392, %393 : vector<24x24xi1>, vector<24x24xf32>
    %cst_151 = arith.constant dense<0xFF800000> : vector<24xf32>
    %395 = vector.multi_reduction <maximumf>, %394, %cst_151 [1] : vector<24x24xf32> to vector<24xf32>
    %396 = vector.shape_cast %395 : vector<24xf32> to vector<24x1xf32>
    %397 = vector.broadcast %396 : vector<24x1xf32> to vector<24x24xf32>
    %398 = arith.subf %394, %397 : vector<24x24xf32>
    %399 = math.exp %398 : vector<24x24xf32>
    %cst_152 = arith.constant dense<0.000000e+00> : vector<24xf32>
    %400 = vector.multi_reduction <add>, %399, %cst_152 [1] : vector<24x24xf32> to vector<24xf32>
    %401 = vector.shape_cast %400 : vector<24xf32> to vector<24x1xf32>
    %402 = tpu.reciprocal %401 {approx = true} : vector<24x1xf32> -> vector<24x1xf32>
    %403 = vector.broadcast %402 : vector<24x1xf32> to vector<24x24xf32>
    %404 = arith.mulf %399, %403 : vector<24x24xf32>
    %405 = arith.truncf %404 : vector<24x24xf32> to vector<24x24xbf16>
    %cst_153 = arith.constant dense<0.000000e+00> : vector<24x32xf32>
    %406 = tpu.matmul %405, %389, %cst_153 {dimension_numbers = #tpu.dot_dimension_numbers<[1], [0], [0], [1], [0, 0, 1, 1], [], []>} : vector<24x24xbf16>, vector<24x32xbf16>, vector<24x32xf32> -> vector<24x32xf32>
    %407 = vector.extract_strided_slice %346 {offsets = [0, 96], sizes = [24, 32], strides = [1, 1]} : vector<24x384xbf16> to vector<24x32xbf16>
    %408 = vector.extract_strided_slice %346 {offsets = [0, 224], sizes = [24, 32], strides = [1, 1]} : vector<24x384xbf16> to vector<24x32xbf16>
    %409 = vector.extract_strided_slice %346 {offsets = [0, 352], sizes = [24, 32], strides = [1, 1]} : vector<24x384xbf16> to vector<24x32xbf16>
    %cst_154 = arith.constant dense<0.000000e+00> : vector<24x24xf32>
    %410 = tpu.matmul %407, %408, %cst_154 {dimension_numbers = #tpu.dot_dimension_numbers<[1], [1], [0], [0], [0, 0, 1, 0], [], []>} : vector<24x32xbf16>, vector<24x32xbf16>, vector<24x24xf32> -> vector<24x24xf32>
    %cst_155 = arith.constant 0.176776692 : f32
    %411 = vector.broadcast %cst_155 : f32 to vector<24x24xf32>
    %412 = arith.mulf %410, %411 : vector<24x24xf32>
    %cst_156 = arith.constant -1.000000e+30 : f32
    %413 = vector.broadcast %cst_156 : f32 to vector<24x24xf32>
    %414 = arith.select %5, %412, %413 : vector<24x24xi1>, vector<24x24xf32>
    %cst_157 = arith.constant dense<0xFF800000> : vector<24xf32>
    %415 = vector.multi_reduction <maximumf>, %414, %cst_157 [1] : vector<24x24xf32> to vector<24xf32>
    %416 = vector.shape_cast %415 : vector<24xf32> to vector<24x1xf32>
    %417 = vector.broadcast %416 : vector<24x1xf32> to vector<24x24xf32>
    %418 = arith.subf %414, %417 : vector<24x24xf32>
    %419 = math.exp %418 : vector<24x24xf32>
    %cst_158 = arith.constant dense<0.000000e+00> : vector<24xf32>
    %420 = vector.multi_reduction <add>, %419, %cst_158 [1] : vector<24x24xf32> to vector<24xf32>
    %421 = vector.shape_cast %420 : vector<24xf32> to vector<24x1xf32>
    %422 = tpu.reciprocal %421 {approx = true} : vector<24x1xf32> -> vector<24x1xf32>
    %423 = vector.broadcast %422 : vector<24x1xf32> to vector<24x24xf32>
    %424 = arith.mulf %419, %423 : vector<24x24xf32>
    %425 = arith.truncf %424 : vector<24x24xf32> to vector<24x24xbf16>
    %cst_159 = arith.constant dense<0.000000e+00> : vector<24x32xf32>
    %426 = tpu.matmul %425, %409, %cst_159 {dimension_numbers = #tpu.dot_dimension_numbers<[1], [0], [0], [1], [0, 0, 1, 1], [], []>} : vector<24x24xbf16>, vector<24x32xbf16>, vector<24x32xf32> -> vector<24x32xf32>
    %427 = tpu.concatenate %366, %386, %406, %426 in 1 : vector<24x32xf32>, vector<24x32xf32>, vector<24x32xf32>, vector<24x32xf32> -> vector<24x128xf32>
    %428 = vector.extract_strided_slice %344 {offsets = [24, 0], sizes = [24, 384], strides = [1, 1]} : vector<48x384xf32> to vector<24x384xf32>
    %429 = arith.truncf %428 : vector<24x384xf32> to vector<24x384xbf16>
    %430 = vector.extract_strided_slice %429 {offsets = [0, 0], sizes = [24, 32], strides = [1, 1]} : vector<24x384xbf16> to vector<24x32xbf16>
    %431 = vector.extract_strided_slice %429 {offsets = [0, 128], sizes = [24, 32], strides = [1, 1]} : vector<24x384xbf16> to vector<24x32xbf16>
    %432 = vector.extract_strided_slice %429 {offsets = [0, 256], sizes = [24, 32], strides = [1, 1]} : vector<24x384xbf16> to vector<24x32xbf16>
    %cst_160 = arith.constant dense<0.000000e+00> : vector<24x24xf32>
    %433 = tpu.matmul %430, %431, %cst_160 {dimension_numbers = #tpu.dot_dimension_numbers<[1], [1], [0], [0], [0, 0, 1, 0], [], []>} : vector<24x32xbf16>, vector<24x32xbf16>, vector<24x24xf32> -> vector<24x24xf32>
    %cst_161 = arith.constant 0.176776692 : f32
    %434 = vector.broadcast %cst_161 : f32 to vector<24x24xf32>
    %435 = arith.mulf %433, %434 : vector<24x24xf32>
    %cst_162 = arith.constant -1.000000e+30 : f32
    %436 = vector.broadcast %cst_162 : f32 to vector<24x24xf32>
    %437 = arith.select %5, %435, %436 : vector<24x24xi1>, vector<24x24xf32>
    %cst_163 = arith.constant dense<0xFF800000> : vector<24xf32>
    %438 = vector.multi_reduction <maximumf>, %437, %cst_163 [1] : vector<24x24xf32> to vector<24xf32>
    %439 = vector.shape_cast %438 : vector<24xf32> to vector<24x1xf32>
    %440 = vector.broadcast %439 : vector<24x1xf32> to vector<24x24xf32>
    %441 = arith.subf %437, %440 : vector<24x24xf32>
    %442 = math.exp %441 : vector<24x24xf32>
    %cst_164 = arith.constant dense<0.000000e+00> : vector<24xf32>
    %443 = vector.multi_reduction <add>, %442, %cst_164 [1] : vector<24x24xf32> to vector<24xf32>
    %444 = vector.shape_cast %443 : vector<24xf32> to vector<24x1xf32>
    %445 = tpu.reciprocal %444 {approx = true} : vector<24x1xf32> -> vector<24x1xf32>
    %446 = vector.broadcast %445 : vector<24x1xf32> to vector<24x24xf32>
    %447 = arith.mulf %442, %446 : vector<24x24xf32>
    %448 = arith.truncf %447 : vector<24x24xf32> to vector<24x24xbf16>
    %cst_165 = arith.constant dense<0.000000e+00> : vector<24x32xf32>
    %449 = tpu.matmul %448, %432, %cst_165 {dimension_numbers = #tpu.dot_dimension_numbers<[1], [0], [0], [1], [0, 0, 1, 1], [], []>} : vector<24x24xbf16>, vector<24x32xbf16>, vector<24x32xf32> -> vector<24x32xf32>
    %450 = vector.extract_strided_slice %429 {offsets = [0, 32], sizes = [24, 32], strides = [1, 1]} : vector<24x384xbf16> to vector<24x32xbf16>
    %451 = vector.extract_strided_slice %429 {offsets = [0, 160], sizes = [24, 32], strides = [1, 1]} : vector<24x384xbf16> to vector<24x32xbf16>
    %452 = vector.extract_strided_slice %429 {offsets = [0, 288], sizes = [24, 32], strides = [1, 1]} : vector<24x384xbf16> to vector<24x32xbf16>
    %cst_166 = arith.constant dense<0.000000e+00> : vector<24x24xf32>
    %453 = tpu.matmul %450, %451, %cst_166 {dimension_numbers = #tpu.dot_dimension_numbers<[1], [1], [0], [0], [0, 0, 1, 0], [], []>} : vector<24x32xbf16>, vector<24x32xbf16>, vector<24x24xf32> -> vector<24x24xf32>
    %cst_167 = arith.constant 0.176776692 : f32
    %454 = vector.broadcast %cst_167 : f32 to vector<24x24xf32>
    %455 = arith.mulf %453, %454 : vector<24x24xf32>
    %cst_168 = arith.constant -1.000000e+30 : f32
    %456 = vector.broadcast %cst_168 : f32 to vector<24x24xf32>
    %457 = arith.select %5, %455, %456 : vector<24x24xi1>, vector<24x24xf32>
    %cst_169 = arith.constant dense<0xFF800000> : vector<24xf32>
    %458 = vector.multi_reduction <maximumf>, %457, %cst_169 [1] : vector<24x24xf32> to vector<24xf32>
    %459 = vector.shape_cast %458 : vector<24xf32> to vector<24x1xf32>
    %460 = vector.broadcast %459 : vector<24x1xf32> to vector<24x24xf32>
    %461 = arith.subf %457, %460 : vector<24x24xf32>
    %462 = math.exp %461 : vector<24x24xf32>
    %cst_170 = arith.constant dense<0.000000e+00> : vector<24xf32>
    %463 = vector.multi_reduction <add>, %462, %cst_170 [1] : vector<24x24xf32> to vector<24xf32>
    %464 = vector.shape_cast %463 : vector<24xf32> to vector<24x1xf32>
    %465 = tpu.reciprocal %464 {approx = true} : vector<24x1xf32> -> vector<24x1xf32>
    %466 = vector.broadcast %465 : vector<24x1xf32> to vector<24x24xf32>
    %467 = arith.mulf %462, %466 : vector<24x24xf32>
    %468 = arith.truncf %467 : vector<24x24xf32> to vector<24x24xbf16>
    %cst_171 = arith.constant dense<0.000000e+00> : vector<24x32xf32>
    %469 = tpu.matmul %468, %452, %cst_171 {dimension_numbers = #tpu.dot_dimension_numbers<[1], [0], [0], [1], [0, 0, 1, 1], [], []>} : vector<24x24xbf16>, vector<24x32xbf16>, vector<24x32xf32> -> vector<24x32xf32>
    %470 = vector.extract_strided_slice %429 {offsets = [0, 64], sizes = [24, 32], strides = [1, 1]} : vector<24x384xbf16> to vector<24x32xbf16>
    %471 = vector.extract_strided_slice %429 {offsets = [0, 192], sizes = [24, 32], strides = [1, 1]} : vector<24x384xbf16> to vector<24x32xbf16>
    %472 = vector.extract_strided_slice %429 {offsets = [0, 320], sizes = [24, 32], strides = [1, 1]} : vector<24x384xbf16> to vector<24x32xbf16>
    %cst_172 = arith.constant dense<0.000000e+00> : vector<24x24xf32>
    %473 = tpu.matmul %470, %471, %cst_172 {dimension_numbers = #tpu.dot_dimension_numbers<[1], [1], [0], [0], [0, 0, 1, 0], [], []>} : vector<24x32xbf16>, vector<24x32xbf16>, vector<24x24xf32> -> vector<24x24xf32>
    %cst_173 = arith.constant 0.176776692 : f32
    %474 = vector.broadcast %cst_173 : f32 to vector<24x24xf32>
    %475 = arith.mulf %473, %474 : vector<24x24xf32>
    %cst_174 = arith.constant -1.000000e+30 : f32
    %476 = vector.broadcast %cst_174 : f32 to vector<24x24xf32>
    %477 = arith.select %5, %475, %476 : vector<24x24xi1>, vector<24x24xf32>
    %cst_175 = arith.constant dense<0xFF800000> : vector<24xf32>
    %478 = vector.multi_reduction <maximumf>, %477, %cst_175 [1] : vector<24x24xf32> to vector<24xf32>
    %479 = vector.shape_cast %478 : vector<24xf32> to vector<24x1xf32>
    %480 = vector.broadcast %479 : vector<24x1xf32> to vector<24x24xf32>
    %481 = arith.subf %477, %480 : vector<24x24xf32>
    %482 = math.exp %481 : vector<24x24xf32>
    %cst_176 = arith.constant dense<0.000000e+00> : vector<24xf32>
    %483 = vector.multi_reduction <add>, %482, %cst_176 [1] : vector<24x24xf32> to vector<24xf32>
    %484 = vector.shape_cast %483 : vector<24xf32> to vector<24x1xf32>
    %485 = tpu.reciprocal %484 {approx = true} : vector<24x1xf32> -> vector<24x1xf32>
    %486 = vector.broadcast %485 : vector<24x1xf32> to vector<24x24xf32>
    %487 = arith.mulf %482, %486 : vector<24x24xf32>
    %488 = arith.truncf %487 : vector<24x24xf32> to vector<24x24xbf16>
    %cst_177 = arith.constant dense<0.000000e+00> : vector<24x32xf32>
    %489 = tpu.matmul %488, %472, %cst_177 {dimension_numbers = #tpu.dot_dimension_numbers<[1], [0], [0], [1], [0, 0, 1, 1], [], []>} : vector<24x24xbf16>, vector<24x32xbf16>, vector<24x32xf32> -> vector<24x32xf32>
    %490 = vector.extract_strided_slice %429 {offsets = [0, 96], sizes = [24, 32], strides = [1, 1]} : vector<24x384xbf16> to vector<24x32xbf16>
    %491 = vector.extract_strided_slice %429 {offsets = [0, 224], sizes = [24, 32], strides = [1, 1]} : vector<24x384xbf16> to vector<24x32xbf16>
    %492 = vector.extract_strided_slice %429 {offsets = [0, 352], sizes = [24, 32], strides = [1, 1]} : vector<24x384xbf16> to vector<24x32xbf16>
    %cst_178 = arith.constant dense<0.000000e+00> : vector<24x24xf32>
    %493 = tpu.matmul %490, %491, %cst_178 {dimension_numbers = #tpu.dot_dimension_numbers<[1], [1], [0], [0], [0, 0, 1, 0], [], []>} : vector<24x32xbf16>, vector<24x32xbf16>, vector<24x24xf32> -> vector<24x24xf32>
    %cst_179 = arith.constant 0.176776692 : f32
    %494 = vector.broadcast %cst_179 : f32 to vector<24x24xf32>
    %495 = arith.mulf %493, %494 : vector<24x24xf32>
    %cst_180 = arith.constant -1.000000e+30 : f32
    %496 = vector.broadcast %cst_180 : f32 to vector<24x24xf32>
    %497 = arith.select %5, %495, %496 : vector<24x24xi1>, vector<24x24xf32>
    %cst_181 = arith.constant dense<0xFF800000> : vector<24xf32>
    %498 = vector.multi_reduction <maximumf>, %497, %cst_181 [1] : vector<24x24xf32> to vector<24xf32>
    %499 = vector.shape_cast %498 : vector<24xf32> to vector<24x1xf32>
    %500 = vector.broadcast %499 : vector<24x1xf32> to vector<24x24xf32>
    %501 = arith.subf %497, %500 : vector<24x24xf32>
    %502 = math.exp %501 : vector<24x24xf32>
    %cst_182 = arith.constant dense<0.000000e+00> : vector<24xf32>
    %503 = vector.multi_reduction <add>, %502, %cst_182 [1] : vector<24x24xf32> to vector<24xf32>
    %504 = vector.shape_cast %503 : vector<24xf32> to vector<24x1xf32>
    %505 = tpu.reciprocal %504 {approx = true} : vector<24x1xf32> -> vector<24x1xf32>
    %506 = vector.broadcast %505 : vector<24x1xf32> to vector<24x24xf32>
    %507 = arith.mulf %502, %506 : vector<24x24xf32>
    %508 = arith.truncf %507 : vector<24x24xf32> to vector<24x24xbf16>
    %cst_183 = arith.constant dense<0.000000e+00> : vector<24x32xf32>
    %509 = tpu.matmul %508, %492, %cst_183 {dimension_numbers = #tpu.dot_dimension_numbers<[1], [0], [0], [1], [0, 0, 1, 1], [], []>} : vector<24x24xbf16>, vector<24x32xbf16>, vector<24x32xf32> -> vector<24x32xf32>
    %510 = tpu.concatenate %449, %469, %489, %509 in 1 : vector<24x32xf32>, vector<24x32xf32>, vector<24x32xf32>, vector<24x32xf32> -> vector<24x128xf32>
    %511 = tpu.concatenate %427, %510 in 0 : vector<24x128xf32>, vector<24x128xf32> -> vector<48x128xf32>
    %c1_184 = arith.constant 1 : index
    %c0_185 = arith.constant 0 : index
    %c0_186 = arith.constant 0 : index
    %512 = vector.load %arg8[%c1_184, %c0_185, %c0_186] : memref<2x128x384xbf16, #tpu.memory_space<vmem>>, vector<1x128x384xbf16>
    %513 = vector.shape_cast %512 : vector<1x128x384xbf16> to vector<128x384xbf16>
    %514 = arith.truncf %511 : vector<48x128xf32> to vector<48x128xbf16>
    %cst_187 = arith.constant dense<0.000000e+00> : vector<48x384xf32>
    %515 = tpu.matmul %514, %513, %cst_187 {dimension_numbers = #tpu.dot_dimension_numbers<[1], [0], [0], [1], [0, 0, 1, 1], [], []>} : vector<48x128xbf16>, vector<128x384xbf16>, vector<48x384xf32> -> vector<48x384xf32>
    %516 = arith.addf %312, %515 : vector<48x384xf32>
    %c1_188 = arith.constant 1 : index
    %c0_189 = arith.constant 0 : index
    %c0_190 = arith.constant 0 : index
    %517 = vector.load %arg9[%c1_188, %c0_189, %c0_190] : memref<2x1x384xf32, #tpu.memory_space<vmem>>, vector<1x1x384xf32>
    %518 = vector.shape_cast %517 : vector<1x1x384xf32> to vector<1x384xf32>
    %519 = vector.broadcast %518 : vector<1x384xf32> to vector<48x384xf32>
    %520 = arith.addf %516, %519 : vector<48x384xf32>
    %c1_191 = arith.constant 1 : index
    %c0_192 = arith.constant 0 : index
    %c0_193 = arith.constant 0 : index
    %521 = vector.load %arg10[%c1_191, %c0_192, %c0_193] : memref<2x1x384xf32, #tpu.memory_space<vmem>>, vector<1x1x384xf32>
    %522 = vector.shape_cast %521 : vector<1x1x384xf32> to vector<1x384xf32>
    %c1_194 = arith.constant 1 : index
    %c0_195 = arith.constant 0 : index
    %c0_196 = arith.constant 0 : index
    %523 = vector.load %arg11[%c1_194, %c0_195, %c0_196] : memref<2x1x384xf32, #tpu.memory_space<vmem>>, vector<1x1x384xf32>
    %524 = vector.shape_cast %523 : vector<1x1x384xf32> to vector<1x384xf32>
    %cst_197 = arith.constant dense<0.000000e+00> : vector<48xf32>
    %525 = vector.multi_reduction <add>, %520, %cst_197 [1] : vector<48x384xf32> to vector<48xf32>
    %526 = vector.shape_cast %525 : vector<48xf32> to vector<48x1xf32>
    %cst_198 = arith.constant 0.00277008303 : f32
    %527 = vector.broadcast %cst_198 : f32 to vector<48x1xf32>
    %528 = arith.mulf %526, %527 : vector<48x1xf32>
    %529 = vector.broadcast %528 : vector<48x1xf32> to vector<48x384xf32>
    %530 = arith.subf %520, %529 : vector<48x384xf32>
    %cst_199 = arith.constant 0.000000e+00 : f32
    %531 = vector.shape_cast %2 : vector<1x384xi1> to vector<1x384xi1>
    %532 = vector.broadcast %531 : vector<1x384xi1> to vector<48x384xi1>
    %533 = vector.broadcast %cst_199 : f32 to vector<48x384xf32>
    %534 = arith.select %532, %530, %533 : vector<48x384xi1>, vector<48x384xf32>
    %535 = arith.mulf %534, %534 : vector<48x384xf32>
    %cst_200 = arith.constant dense<0.000000e+00> : vector<48xf32>
    %536 = vector.multi_reduction <add>, %535, %cst_200 [1] : vector<48x384xf32> to vector<48xf32>
    %537 = vector.shape_cast %536 : vector<48xf32> to vector<48x1xf32>
    %cst_201 = arith.constant 0.00277008303 : f32
    %538 = vector.broadcast %cst_201 : f32 to vector<48x1xf32>
    %539 = arith.mulf %537, %538 : vector<48x1xf32>
    %cst_202 = arith.constant 9.99999974E-6 : f32
    %540 = vector.broadcast %cst_202 : f32 to vector<48x1xf32>
    %541 = arith.addf %539, %540 : vector<48x1xf32>
    %542 = math.rsqrt %541 : vector<48x1xf32>
    %543 = vector.broadcast %542 : vector<48x1xf32> to vector<48x384xf32>
    %544 = arith.mulf %534, %543 : vector<48x384xf32>
    %545 = vector.broadcast %522 : vector<1x384xf32> to vector<48x384xf32>
    %546 = arith.mulf %544, %545 : vector<48x384xf32>
    %547 = vector.broadcast %524 : vector<1x384xf32> to vector<48x384xf32>
    %548 = arith.addf %546, %547 : vector<48x384xf32>
    %c1_203 = arith.constant 1 : index
    %c0_204 = arith.constant 0 : index
    %c0_205 = arith.constant 0 : index
    %549 = vector.load %arg12[%c1_203, %c0_204, %c0_205] : memref<2x384x128xbf16, #tpu.memory_space<vmem>>, vector<1x384x128xbf16>
    %550 = vector.shape_cast %549 : vector<1x384x128xbf16> to vector<384x128xbf16>
    %551 = arith.truncf %548 : vector<48x384xf32> to vector<48x384xbf16>
    %cst_206 = arith.constant dense<0.000000e+00> : vector<48x128xf32>
    %552 = tpu.matmul %551, %550, %cst_206 {dimension_numbers = #tpu.dot_dimension_numbers<[1], [0], [0], [1], [0, 0, 1, 1], [], []>} : vector<48x384xbf16>, vector<384x128xbf16>, vector<48x128xf32> -> vector<48x128xf32>
    %c1_207 = arith.constant 1 : index
    %c0_208 = arith.constant 0 : index
    %c0_209 = arith.constant 0 : index
    %553 = vector.load %arg13[%c1_207, %c0_208, %c0_209] : memref<2x1x128xf32, #tpu.memory_space<vmem>>, vector<1x1x128xf32>
    %554 = vector.shape_cast %553 : vector<1x1x128xf32> to vector<1x128xf32>
    %555 = vector.broadcast %554 : vector<1x128xf32> to vector<48x128xf32>
    %556 = arith.addf %552, %555 : vector<48x128xf32>
    %cst_210 = arith.constant 5.000000e-01 : f32
    %557 = vector.broadcast %cst_210 : f32 to vector<48x128xf32>
    %558 = arith.mulf %557, %556 : vector<48x128xf32>
    %cst_211 = arith.constant 0.707106769 : f32
    %559 = vector.broadcast %cst_211 : f32 to vector<48x128xf32>
    %560 = arith.mulf %556, %559 : vector<48x128xf32>
    %cst_212 = arith.constant 0.000000e+00 : f32
    %561 = vector.broadcast %cst_212 : f32 to vector<48x128xf32>
    %562 = arith.cmpf oge, %560, %561 : vector<48x128xf32>
    %cst_213 = arith.constant 1.000000e+00 : f32
    %cst_214 = arith.constant -1.000000e+00 : f32
    %563 = vector.broadcast %cst_213 : f32 to vector<48x128xf32>
    %564 = vector.broadcast %cst_214 : f32 to vector<48x128xf32>
    %565 = arith.select %562, %563, %564 : vector<48x128xi1>, vector<48x128xf32>
    %566 = math.absf %560 : vector<48x128xf32>
    %cst_215 = arith.constant 0.327591091 : f32
    %567 = vector.broadcast %cst_215 : f32 to vector<48x128xf32>
    %568 = arith.mulf %567, %566 : vector<48x128xf32>
    %cst_216 = arith.constant 1.000000e+00 : f32
    %569 = vector.broadcast %cst_216 : f32 to vector<48x128xf32>
    %570 = arith.addf %569, %568 : vector<48x128xf32>
    %cst_217 = arith.constant 1.000000e+00 : f32
    %571 = vector.broadcast %cst_217 : f32 to vector<48x128xf32>
    %572 = arith.divf %571, %570 : vector<48x128xf32>
    %cst_218 = arith.constant 1.06140542 : f32
    %573 = vector.broadcast %cst_218 : f32 to vector<48x128xf32>
    %574 = arith.mulf %573, %572 : vector<48x128xf32>
    %cst_219 = arith.constant -1.45315206 : f32
    %575 = vector.broadcast %cst_219 : f32 to vector<48x128xf32>
    %576 = arith.addf %574, %575 : vector<48x128xf32>
    %577 = arith.mulf %576, %572 : vector<48x128xf32>
    %cst_220 = arith.constant 1.42141378 : f32
    %578 = vector.broadcast %cst_220 : f32 to vector<48x128xf32>
    %579 = arith.addf %577, %578 : vector<48x128xf32>
    %580 = arith.mulf %579, %572 : vector<48x128xf32>
    %cst_221 = arith.constant -0.284496725 : f32
    %581 = vector.broadcast %cst_221 : f32 to vector<48x128xf32>
    %582 = arith.addf %580, %581 : vector<48x128xf32>
    %583 = arith.mulf %582, %572 : vector<48x128xf32>
    %cst_222 = arith.constant 0.254829586 : f32
    %584 = vector.broadcast %cst_222 : f32 to vector<48x128xf32>
    %585 = arith.addf %583, %584 : vector<48x128xf32>
    %586 = arith.mulf %585, %572 : vector<48x128xf32>
    %cst_223 = arith.constant 0.000000e+00 : f32
    %587 = vector.broadcast %cst_223 : f32 to vector<48x128xf32>
    %588 = arith.subf %587, %566 : vector<48x128xf32>
    %589 = arith.mulf %588, %566 : vector<48x128xf32>
    %590 = math.exp %589 : vector<48x128xf32>
    %591 = arith.mulf %586, %590 : vector<48x128xf32>
    %cst_224 = arith.constant 1.000000e+00 : f32
    %592 = vector.broadcast %cst_224 : f32 to vector<48x128xf32>
    %593 = arith.subf %592, %591 : vector<48x128xf32>
    %594 = arith.mulf %565, %593 : vector<48x128xf32>
    %cst_225 = arith.constant 1.000000e+00 : f32
    %595 = vector.broadcast %cst_225 : f32 to vector<48x128xf32>
    %596 = arith.addf %595, %594 : vector<48x128xf32>
    %597 = arith.mulf %558, %596 : vector<48x128xf32>
    %c1_226 = arith.constant 1 : index
    %c0_227 = arith.constant 0 : index
    %c0_228 = arith.constant 0 : index
    %598 = vector.load %arg14[%c1_226, %c0_227, %c0_228] : memref<2x128x384xbf16, #tpu.memory_space<vmem>>, vector<1x128x384xbf16>
    %599 = vector.shape_cast %598 : vector<1x128x384xbf16> to vector<128x384xbf16>
    %600 = arith.truncf %597 : vector<48x128xf32> to vector<48x128xbf16>
    %cst_229 = arith.constant dense<0.000000e+00> : vector<48x384xf32>
    %601 = tpu.matmul %600, %599, %cst_229 {dimension_numbers = #tpu.dot_dimension_numbers<[1], [0], [0], [1], [0, 0, 1, 1], [], []>} : vector<48x128xbf16>, vector<128x384xbf16>, vector<48x384xf32> -> vector<48x384xf32>
    %602 = arith.addf %520, %601 : vector<48x384xf32>
    %c1_230 = arith.constant 1 : index
    %c0_231 = arith.constant 0 : index
    %c0_232 = arith.constant 0 : index
    %603 = vector.load %arg15[%c1_230, %c0_231, %c0_232] : memref<2x1x384xf32, #tpu.memory_space<vmem>>, vector<1x1x384xf32>
    %604 = vector.shape_cast %603 : vector<1x1x384xf32> to vector<1x384xf32>
    %605 = vector.broadcast %604 : vector<1x384xf32> to vector<48x384xf32>
    %606 = arith.addf %602, %605 : vector<48x384xf32>
    %607 = vector.extract_strided_slice %606 {offsets = [16, 0], sizes = [1, 384], strides = [1, 1]} : vector<48x384xf32> to vector<1x384xf32>
    %608 = vector.extract_strided_slice %606 {offsets = [40, 0], sizes = [1, 384], strides = [1, 1]} : vector<48x384xf32> to vector<1x384xf32>
    %609 = tpu.concatenate %607, %608 in 0 : vector<1x384xf32>, vector<1x384xf32> -> vector<2x384xf32>
    %c0_233 = arith.constant 0 : index
    %c0_234 = arith.constant 0 : index
    %610 = vector.load %arg16[%c0_233, %c0_234] : memref<1x384xf32, #tpu.memory_space<vmem>>, vector<1x384xf32>
    %c0_235 = arith.constant 0 : index
    %c0_236 = arith.constant 0 : index
    %611 = vector.load %arg17[%c0_235, %c0_236] : memref<1x384xf32, #tpu.memory_space<vmem>>, vector<1x384xf32>
    %cst_237 = arith.constant dense<0.000000e+00> : vector<2xf32>
    %612 = vector.multi_reduction <add>, %609, %cst_237 [1] : vector<2x384xf32> to vector<2xf32>
    %613 = vector.shape_cast %612 : vector<2xf32> to vector<2x1xf32>
    %cst_238 = arith.constant 0.00277008303 : f32
    %614 = vector.broadcast %cst_238 : f32 to vector<2x1xf32>
    %615 = arith.mulf %613, %614 : vector<2x1xf32>
    %616 = vector.broadcast %615 : vector<2x1xf32> to vector<2x384xf32>
    %617 = arith.subf %609, %616 : vector<2x384xf32>
    %cst_239 = arith.constant 0.000000e+00 : f32
    %618 = vector.shape_cast %2 : vector<1x384xi1> to vector<1x384xi1>
    %619 = vector.broadcast %618 : vector<1x384xi1> to vector<2x384xi1>
    %620 = vector.broadcast %cst_239 : f32 to vector<2x384xf32>
    %621 = arith.select %619, %617, %620 : vector<2x384xi1>, vector<2x384xf32>
    %622 = arith.mulf %621, %621 : vector<2x384xf32>
    %cst_240 = arith.constant dense<0.000000e+00> : vector<2xf32>
    %623 = vector.multi_reduction <add>, %622, %cst_240 [1] : vector<2x384xf32> to vector<2xf32>
    %624 = vector.shape_cast %623 : vector<2xf32> to vector<2x1xf32>
    %cst_241 = arith.constant 0.00277008303 : f32
    %625 = vector.broadcast %cst_241 : f32 to vector<2x1xf32>
    %626 = arith.mulf %624, %625 : vector<2x1xf32>
    %cst_242 = arith.constant 9.99999974E-6 : f32
    %627 = vector.broadcast %cst_242 : f32 to vector<2x1xf32>
    %628 = arith.addf %626, %627 : vector<2x1xf32>
    %629 = math.rsqrt %628 : vector<2x1xf32>
    %630 = vector.broadcast %629 : vector<2x1xf32> to vector<2x384xf32>
    %631 = arith.mulf %621, %630 : vector<2x384xf32>
    %632 = vector.broadcast %610 : vector<1x384xf32> to vector<2x384xf32>
    %633 = arith.mulf %631, %632 : vector<2x384xf32>
    %634 = vector.broadcast %611 : vector<1x384xf32> to vector<2x384xf32>
    %635 = arith.addf %633, %634 : vector<2x384xf32>
    %c0_243 = arith.constant 0 : index
    %c0_244 = arith.constant 0 : index
    %636 = vector.load %arg18[%c0_243, %c0_244] : memref<384x384xbf16, #tpu.memory_space<vmem>>, vector<384x384xbf16>
    %637 = arith.truncf %635 : vector<2x384xf32> to vector<2x384xbf16>
    %cst_245 = arith.constant dense<0.000000e+00> : vector<2x384xf32>
    %638 = tpu.matmul %637, %636, %cst_245 {dimension_numbers = #tpu.dot_dimension_numbers<[1], [0], [0], [1], [0, 0, 1, 1], [], []>} : vector<2x384xbf16>, vector<384x384xbf16>, vector<2x384xf32> -> vector<2x384xf32>
    %c0_246 = arith.constant 0 : index
    %c0_247 = arith.constant 0 : index
    %639 = vector.load %arg19[%c0_246, %c0_247] : memref<1x384xf32, #tpu.memory_space<vmem>>, vector<1x384xf32>
    %640 = vector.broadcast %639 : vector<1x384xf32> to vector<2x384xf32>
    %641 = arith.addf %638, %640 : vector<2x384xf32>
    %c0_248 = arith.constant 0 : index
    %c0_249 = arith.constant 0 : index
    %642 = vector.load %arg20[%c0_248, %c0_249] : memref<2x384xf32, #tpu.memory_space<vmem>>, vector<2x384xf32>
    tpu.vector_store %arg20[%c0_248, %c0_249], %641 {strides = array<i32>} : memref<2x384xf32, #tpu.memory_space<vmem>>, vector<2x384xf32>,
    return
  }
  func.func @transform_0(%arg0: i32) -> (i32, i32) {
    %c0_i32 = arith.constant 0 : i32
    %c0_i32_0 = arith.constant 0 : i32
    return %arg0, %c0_i32 : i32, i32
  }
  func.func @transform_1(%arg0: i32) -> (i32, i32) {
    %c0_i32 = arith.constant 0 : i32
    %c0_i32_0 = arith.constant 0 : i32
    %c0_i32_1 = arith.constant 0 : i32
    return %c0_i32, %c0_i32_0 : i32, i32
  }
  func.func @transform_2(%arg0: i32) -> (i32, i32) {
    %c0_i32 = arith.constant 0 : i32
    %c0_i32_0 = arith.constant 0 : i32
    %c0_i32_1 = arith.constant 0 : i32
    return %c0_i32, %c0_i32_0 : i32, i32
  }
  func.func @transform_3(%arg0: i32) -> (i32, i32) {
    %c0_i32 = arith.constant 0 : i32
    %c0_i32_0 = arith.constant 0 : i32
    %c0_i32_1 = arith.constant 0 : i32
    return %c0_i32, %c0_i32_0 : i32, i32
  }
  func.func @transform_4(%arg0: i32) -> (i32, i32, i32) {
    %c0_i32 = arith.constant 0 : i32
    %c0_i32_0 = arith.constant 0 : i32
    %c0_i32_1 = arith.constant 0 : i32
    %c0_i32_2 = arith.constant 0 : i32
    return %c0_i32, %c0_i32_0, %c0_i32_1 : i32, i32, i32
  }
  func.func @transform_5(%arg0: i32) -> (i32, i32, i32) {
    %c0_i32 = arith.constant 0 : i32
    %c0_i32_0 = arith.constant 0 : i32
    %c0_i32_1 = arith.constant 0 : i32
    %c0_i32_2 = arith.constant 0 : i32
    return %c0_i32, %c0_i32_0, %c0_i32_1 : i32, i32, i32
  }
  func.func @transform_6(%arg0: i32) -> (i32, i32, i32) {
    %c0_i32 = arith.constant 0 : i32
    %c0_i32_0 = arith.constant 0 : i32
    %c0_i32_1 = arith.constant 0 : i32
    %c0_i32_2 = arith.constant 0 : i32
    return %c0_i32, %c0_i32_0, %c0_i32_1 : i32, i32, i32
  }
  func.func @transform_7(%arg0: i32) -> (i32, i32, i32) {
    %c0_i32 = arith.constant 0 : i32
    %c0_i32_0 = arith.constant 0 : i32
    %c0_i32_1 = arith.constant 0 : i32
    %c0_i32_2 = arith.constant 0 : i32
    return %c0_i32, %c0_i32_0, %c0_i32_1 : i32, i32, i32
  }
  func.func @transform_8(%arg0: i32) -> (i32, i32, i32) {
    %c0_i32 = arith.constant 0 : i32
    %c0_i32_0 = arith.constant 0 : i32
    %c0_i32_1 = arith.constant 0 : i32
    %c0_i32_2 = arith.constant 0 : i32
    return %c0_i32, %c0_i32_0, %c0_i32_1 : i32, i32, i32
  }
  func.func @transform_9(%arg0: i32) -> (i32, i32, i32) {
    %c0_i32 = arith.constant 0 : i32
    %c0_i32_0 = arith.constant 0 : i32
    %c0_i32_1 = arith.constant 0 : i32
    %c0_i32_2 = arith.constant 0 : i32
    return %c0_i32, %c0_i32_0, %c0_i32_1 : i32, i32, i32
  }
  func.func @transform_10(%arg0: i32) -> (i32, i32, i32) {
    %c0_i32 = arith.constant 0 : i32
    %c0_i32_0 = arith.constant 0 : i32
    %c0_i32_1 = arith.constant 0 : i32
    %c0_i32_2 = arith.constant 0 : i32
    return %c0_i32, %c0_i32_0, %c0_i32_1 : i32, i32, i32
  }
  func.func @transform_11(%arg0: i32) -> (i32, i32, i32) {
    %c0_i32 = arith.constant 0 : i32
    %c0_i32_0 = arith.constant 0 : i32
    %c0_i32_1 = arith.constant 0 : i32
    %c0_i32_2 = arith.constant 0 : i32
    return %c0_i32, %c0_i32_0, %c0_i32_1 : i32, i32, i32
  }
  func.func @transform_12(%arg0: i32) -> (i32, i32, i32) {
    %c0_i32 = arith.constant 0 : i32
    %c0_i32_0 = arith.constant 0 : i32
    %c0_i32_1 = arith.constant 0 : i32
    %c0_i32_2 = arith.constant 0 : i32
    return %c0_i32, %c0_i32_0, %c0_i32_1 : i32, i32, i32
  }
  func.func @transform_13(%arg0: i32) -> (i32, i32, i32) {
    %c0_i32 = arith.constant 0 : i32
    %c0_i32_0 = arith.constant 0 : i32
    %c0_i32_1 = arith.constant 0 : i32
    %c0_i32_2 = arith.constant 0 : i32
    return %c0_i32, %c0_i32_0, %c0_i32_1 : i32, i32, i32
  }
  func.func @transform_14(%arg0: i32) -> (i32, i32, i32) {
    %c0_i32 = arith.constant 0 : i32
    %c0_i32_0 = arith.constant 0 : i32
    %c0_i32_1 = arith.constant 0 : i32
    %c0_i32_2 = arith.constant 0 : i32
    return %c0_i32, %c0_i32_0, %c0_i32_1 : i32, i32, i32
  }
  func.func @transform_15(%arg0: i32) -> (i32, i32) {
    %c0_i32 = arith.constant 0 : i32
    %c0_i32_0 = arith.constant 0 : i32
    %c0_i32_1 = arith.constant 0 : i32
    return %c0_i32, %c0_i32_0 : i32, i32
  }
  func.func @transform_16(%arg0: i32) -> (i32, i32) {
    %c0_i32 = arith.constant 0 : i32
    %c0_i32_0 = arith.constant 0 : i32
    %c0_i32_1 = arith.constant 0 : i32
    return %c0_i32, %c0_i32_0 : i32, i32
  }
  func.func @transform_17(%arg0: i32) -> (i32, i32) {
    %c0_i32 = arith.constant 0 : i32
    %c0_i32_0 = arith.constant 0 : i32
    %c0_i32_1 = arith.constant 0 : i32
    return %c0_i32, %c0_i32_0 : i32, i32
  }
  func.func @transform_18(%arg0: i32) -> (i32, i32) {
    %c0_i32 = arith.constant 0 : i32
    %c0_i32_0 = arith.constant 0 : i32
    %c0_i32_1 = arith.constant 0 : i32
    return %c0_i32, %c0_i32_0 : i32, i32
  }
  func.func @transform_19(%arg0: i32) -> (i32, i32) {
    %c0_i32 = arith.constant 0 : i32
    %c0_i32_0 = arith.constant 0 : i32
    return %arg0, %c0_i32 : i32, i32
  }
}

module attributes {stable_mosaic.version = 11 : i64} {
  func.func @_convlstm_kernel(%arg0: i32, %arg1: memref<2x1x384xf32, #tpu.memory_space<vmem>>, %arg2: memref<1x384xf32, #tpu.memory_space<vmem>>, %arg3: memref<1x384xf32, #tpu.memory_space<vmem>>, %arg4: memref<72xf32, #tpu.memory_space<smem>>, %arg5: memref<4xf32, #tpu.memory_space<smem>>, %arg6: memref<2x1x384xf32, #tpu.memory_space<vmem>>) attributes {dimension_semantics = [#tpu.dimension_semantics<arbitrary>], iteration_bounds = array<i64: 1>, scalar_prefetch = 0 : i64, scratch_operands = 0 : i64, tpu.core_type = #tpu.core_type<tc>, window_params = [{pipeline_mode = #tpu.pipeline_mode<synchronous>, transform_indices = @transform_0, window_bounds = array<i64: 2, 1, 384>}, {pipeline_mode = #tpu.pipeline_mode<synchronous>, transform_indices = @transform_1, window_bounds = array<i64: 1, 384>}, {pipeline_mode = #tpu.pipeline_mode<synchronous>, transform_indices = @transform_2, window_bounds = array<i64: 1, 384>}, {transform_indices = @transform_3, window_bounds = array<i64: 72>}, {transform_indices = @transform_4, window_bounds = array<i64: 4>}, {pipeline_mode = #tpu.pipeline_mode<synchronous>, transform_indices = @transform_5, window_bounds = array<i64: 2, 1, 384>}]} {
    %0 = tpu.iota {dimensions = array<i32: 1>} : vector<1x384xi32>
    %c19_i32 = arith.constant 19 : i32
    %c0_i32 = arith.constant 0 : i32
    %1 = arith.cmpi eq, %c19_i32, %c0_i32 : i32
    %c1_i32 = arith.constant 1 : i32
    %2 = arith.select %1, %c1_i32, %c19_i32 : i32
    %3 = vector.broadcast %2 : i32 to vector<1x384xi32>
    %4 = arith.remsi %0, %3 : vector<1x384xi32>
    %c0_i32_0 = arith.constant 0 : i32
    %5 = vector.broadcast %c0_i32_0 : i32 to vector<1x384xi32>
    %6 = arith.cmpi ne, %4, %5 : vector<1x384xi32>
    %c0_i32_1 = arith.constant 0 : i32
    %7 = vector.broadcast %c0_i32_1 : i32 to vector<1x384xi32>
    %8 = arith.cmpi slt, %4, %7 : vector<1x384xi32>
    %c0_i32_2 = arith.constant 0 : i32
    %9 = arith.cmpi slt, %2, %c0_i32_2 : i32
    %10 = vector.broadcast %9 : i1 to vector<1x384xi1>
    %11 = vector.broadcast %10 : vector<1x384xi1> to vector<1x384xi1>
    %12 = arith.xori %8, %11 : vector<1x384xi1>
    %13 = arith.andi %12, %6 : vector<1x384xi1>
    %14 = vector.broadcast %2 : i32 to vector<1x384xi32>
    %15 = arith.addi %4, %14 : vector<1x384xi32>
    %16 = arith.select %13, %15, %4 : vector<1x384xi1>, vector<1x384xi32>
    %c361_i32 = arith.constant 361 : i32
    %17 = vector.broadcast %c361_i32 : i32 to vector<1x384xi32>
    %18 = arith.cmpi slt, %0, %17 : vector<1x384xi32>
    %c0_i32_3 = arith.constant 0 : i32
    %19 = vector.broadcast %c0_i32_3 : i32 to vector<1x384xi32>
    %20 = arith.cmpi ne, %16, %19 : vector<1x384xi32>
    %c18_i32 = arith.constant 18 : i32
    %21 = vector.broadcast %c18_i32 : i32 to vector<1x384xi32>
    %22 = arith.cmpi ne, %16, %21 : vector<1x384xi32>
    %c0 = arith.constant 0 : index
    %23 = memref.load %arg4[%c0] : memref<72xf32, #tpu.memory_space<smem>>
    %c1 = arith.constant 1 : index
    %24 = memref.load %arg4[%c1] : memref<72xf32, #tpu.memory_space<smem>>
    %c2 = arith.constant 2 : index
    %25 = memref.load %arg4[%c2] : memref<72xf32, #tpu.memory_space<smem>>
    %c3 = arith.constant 3 : index
    %26 = memref.load %arg4[%c3] : memref<72xf32, #tpu.memory_space<smem>>
    %c4 = arith.constant 4 : index
    %27 = memref.load %arg4[%c4] : memref<72xf32, #tpu.memory_space<smem>>
    %c5 = arith.constant 5 : index
    %28 = memref.load %arg4[%c5] : memref<72xf32, #tpu.memory_space<smem>>
    %c6 = arith.constant 6 : index
    %29 = memref.load %arg4[%c6] : memref<72xf32, #tpu.memory_space<smem>>
    %c7 = arith.constant 7 : index
    %30 = memref.load %arg4[%c7] : memref<72xf32, #tpu.memory_space<smem>>
    %c8 = arith.constant 8 : index
    %31 = memref.load %arg4[%c8] : memref<72xf32, #tpu.memory_space<smem>>
    %c18 = arith.constant 18 : index
    %32 = memref.load %arg4[%c18] : memref<72xf32, #tpu.memory_space<smem>>
    %c19 = arith.constant 19 : index
    %33 = memref.load %arg4[%c19] : memref<72xf32, #tpu.memory_space<smem>>
    %c20 = arith.constant 20 : index
    %34 = memref.load %arg4[%c20] : memref<72xf32, #tpu.memory_space<smem>>
    %c21 = arith.constant 21 : index
    %35 = memref.load %arg4[%c21] : memref<72xf32, #tpu.memory_space<smem>>
    %c22 = arith.constant 22 : index
    %36 = memref.load %arg4[%c22] : memref<72xf32, #tpu.memory_space<smem>>
    %c23 = arith.constant 23 : index
    %37 = memref.load %arg4[%c23] : memref<72xf32, #tpu.memory_space<smem>>
    %c24 = arith.constant 24 : index
    %38 = memref.load %arg4[%c24] : memref<72xf32, #tpu.memory_space<smem>>
    %c25 = arith.constant 25 : index
    %39 = memref.load %arg4[%c25] : memref<72xf32, #tpu.memory_space<smem>>
    %c26 = arith.constant 26 : index
    %40 = memref.load %arg4[%c26] : memref<72xf32, #tpu.memory_space<smem>>
    %c36 = arith.constant 36 : index
    %41 = memref.load %arg4[%c36] : memref<72xf32, #tpu.memory_space<smem>>
    %c37 = arith.constant 37 : index
    %42 = memref.load %arg4[%c37] : memref<72xf32, #tpu.memory_space<smem>>
    %c38 = arith.constant 38 : index
    %43 = memref.load %arg4[%c38] : memref<72xf32, #tpu.memory_space<smem>>
    %c39 = arith.constant 39 : index
    %44 = memref.load %arg4[%c39] : memref<72xf32, #tpu.memory_space<smem>>
    %c40 = arith.constant 40 : index
    %45 = memref.load %arg4[%c40] : memref<72xf32, #tpu.memory_space<smem>>
    %c41 = arith.constant 41 : index
    %46 = memref.load %arg4[%c41] : memref<72xf32, #tpu.memory_space<smem>>
    %c42 = arith.constant 42 : index
    %47 = memref.load %arg4[%c42] : memref<72xf32, #tpu.memory_space<smem>>
    %c43 = arith.constant 43 : index
    %48 = memref.load %arg4[%c43] : memref<72xf32, #tpu.memory_space<smem>>
    %c44 = arith.constant 44 : index
    %49 = memref.load %arg4[%c44] : memref<72xf32, #tpu.memory_space<smem>>
    %c54 = arith.constant 54 : index
    %50 = memref.load %arg4[%c54] : memref<72xf32, #tpu.memory_space<smem>>
    %c55 = arith.constant 55 : index
    %51 = memref.load %arg4[%c55] : memref<72xf32, #tpu.memory_space<smem>>
    %c56 = arith.constant 56 : index
    %52 = memref.load %arg4[%c56] : memref<72xf32, #tpu.memory_space<smem>>
    %c57 = arith.constant 57 : index
    %53 = memref.load %arg4[%c57] : memref<72xf32, #tpu.memory_space<smem>>
    %c58 = arith.constant 58 : index
    %54 = memref.load %arg4[%c58] : memref<72xf32, #tpu.memory_space<smem>>
    %c59 = arith.constant 59 : index
    %55 = memref.load %arg4[%c59] : memref<72xf32, #tpu.memory_space<smem>>
    %c60 = arith.constant 60 : index
    %56 = memref.load %arg4[%c60] : memref<72xf32, #tpu.memory_space<smem>>
    %c61 = arith.constant 61 : index
    %57 = memref.load %arg4[%c61] : memref<72xf32, #tpu.memory_space<smem>>
    %c62 = arith.constant 62 : index
    %58 = memref.load %arg4[%c62] : memref<72xf32, #tpu.memory_space<smem>>
    %c9 = arith.constant 9 : index
    %59 = memref.load %arg4[%c9] : memref<72xf32, #tpu.memory_space<smem>>
    %c10 = arith.constant 10 : index
    %60 = memref.load %arg4[%c10] : memref<72xf32, #tpu.memory_space<smem>>
    %c11 = arith.constant 11 : index
    %61 = memref.load %arg4[%c11] : memref<72xf32, #tpu.memory_space<smem>>
    %c12 = arith.constant 12 : index
    %62 = memref.load %arg4[%c12] : memref<72xf32, #tpu.memory_space<smem>>
    %c13 = arith.constant 13 : index
    %63 = memref.load %arg4[%c13] : memref<72xf32, #tpu.memory_space<smem>>
    %c14 = arith.constant 14 : index
    %64 = memref.load %arg4[%c14] : memref<72xf32, #tpu.memory_space<smem>>
    %c15 = arith.constant 15 : index
    %65 = memref.load %arg4[%c15] : memref<72xf32, #tpu.memory_space<smem>>
    %c16 = arith.constant 16 : index
    %66 = memref.load %arg4[%c16] : memref<72xf32, #tpu.memory_space<smem>>
    %c17 = arith.constant 17 : index
    %67 = memref.load %arg4[%c17] : memref<72xf32, #tpu.memory_space<smem>>
    %c27 = arith.constant 27 : index
    %68 = memref.load %arg4[%c27] : memref<72xf32, #tpu.memory_space<smem>>
    %c28 = arith.constant 28 : index
    %69 = memref.load %arg4[%c28] : memref<72xf32, #tpu.memory_space<smem>>
    %c29 = arith.constant 29 : index
    %70 = memref.load %arg4[%c29] : memref<72xf32, #tpu.memory_space<smem>>
    %c30 = arith.constant 30 : index
    %71 = memref.load %arg4[%c30] : memref<72xf32, #tpu.memory_space<smem>>
    %c31 = arith.constant 31 : index
    %72 = memref.load %arg4[%c31] : memref<72xf32, #tpu.memory_space<smem>>
    %c32 = arith.constant 32 : index
    %73 = memref.load %arg4[%c32] : memref<72xf32, #tpu.memory_space<smem>>
    %c33 = arith.constant 33 : index
    %74 = memref.load %arg4[%c33] : memref<72xf32, #tpu.memory_space<smem>>
    %c34 = arith.constant 34 : index
    %75 = memref.load %arg4[%c34] : memref<72xf32, #tpu.memory_space<smem>>
    %c35 = arith.constant 35 : index
    %76 = memref.load %arg4[%c35] : memref<72xf32, #tpu.memory_space<smem>>
    %c45 = arith.constant 45 : index
    %77 = memref.load %arg4[%c45] : memref<72xf32, #tpu.memory_space<smem>>
    %c46 = arith.constant 46 : index
    %78 = memref.load %arg4[%c46] : memref<72xf32, #tpu.memory_space<smem>>
    %c47 = arith.constant 47 : index
    %79 = memref.load %arg4[%c47] : memref<72xf32, #tpu.memory_space<smem>>
    %c48 = arith.constant 48 : index
    %80 = memref.load %arg4[%c48] : memref<72xf32, #tpu.memory_space<smem>>
    %c49 = arith.constant 49 : index
    %81 = memref.load %arg4[%c49] : memref<72xf32, #tpu.memory_space<smem>>
    %c50 = arith.constant 50 : index
    %82 = memref.load %arg4[%c50] : memref<72xf32, #tpu.memory_space<smem>>
    %c51 = arith.constant 51 : index
    %83 = memref.load %arg4[%c51] : memref<72xf32, #tpu.memory_space<smem>>
    %c52 = arith.constant 52 : index
    %84 = memref.load %arg4[%c52] : memref<72xf32, #tpu.memory_space<smem>>
    %c53 = arith.constant 53 : index
    %85 = memref.load %arg4[%c53] : memref<72xf32, #tpu.memory_space<smem>>
    %c63 = arith.constant 63 : index
    %86 = memref.load %arg4[%c63] : memref<72xf32, #tpu.memory_space<smem>>
    %c64 = arith.constant 64 : index
    %87 = memref.load %arg4[%c64] : memref<72xf32, #tpu.memory_space<smem>>
    %c65 = arith.constant 65 : index
    %88 = memref.load %arg4[%c65] : memref<72xf32, #tpu.memory_space<smem>>
    %c66 = arith.constant 66 : index
    %89 = memref.load %arg4[%c66] : memref<72xf32, #tpu.memory_space<smem>>
    %c67 = arith.constant 67 : index
    %90 = memref.load %arg4[%c67] : memref<72xf32, #tpu.memory_space<smem>>
    %c68 = arith.constant 68 : index
    %91 = memref.load %arg4[%c68] : memref<72xf32, #tpu.memory_space<smem>>
    %c69 = arith.constant 69 : index
    %92 = memref.load %arg4[%c69] : memref<72xf32, #tpu.memory_space<smem>>
    %c70 = arith.constant 70 : index
    %93 = memref.load %arg4[%c70] : memref<72xf32, #tpu.memory_space<smem>>
    %c71 = arith.constant 71 : index
    %94 = memref.load %arg4[%c71] : memref<72xf32, #tpu.memory_space<smem>>
    %c0_4 = arith.constant 0 : index
    %95 = memref.load %arg5[%c0_4] : memref<4xf32, #tpu.memory_space<smem>>
    %c1_5 = arith.constant 1 : index
    %96 = memref.load %arg5[%c1_5] : memref<4xf32, #tpu.memory_space<smem>>
    %c2_6 = arith.constant 2 : index
    %97 = memref.load %arg5[%c2_6] : memref<4xf32, #tpu.memory_space<smem>>
    %c3_7 = arith.constant 3 : index
    %98 = memref.load %arg5[%c3_7] : memref<4xf32, #tpu.memory_space<smem>>
    %c0_8 = arith.constant 0 : index
    %c0_9 = arith.constant 0 : index
    %99 = vector.load %arg2[%c0_8, %c0_9] : memref<1x384xf32, #tpu.memory_space<vmem>>, vector<1x384xf32>
    %c0_10 = arith.constant 0 : index
    %c0_11 = arith.constant 0 : index
    %100 = vector.load %arg3[%c0_10, %c0_11] : memref<1x384xf32, #tpu.memory_space<vmem>>, vector<1x384xf32>
    %c0_i32_12 = arith.constant 0 : i32
    %c2_i32 = arith.constant 2 : i32
    %101 = arith.addi %c0_i32_12, %c2_i32 : i32
    %c1_i32_13 = arith.constant 1 : i32
    %102:2 = scf.for %arg7 = %c0_i32_12 to %101 step %c1_i32_13 iter_args(%arg8 = %99, %arg9 = %100) -> (vector<1x384xf32>, vector<1x384xf32>)  : i32 {
      %103 = arith.index_cast %arg7 : i32 to index
      %c0_15 = arith.constant 0 : index
      %c0_16 = arith.constant 0 : index
      %104 = vector.load %arg1[%103, %c0_15, %c0_16] : memref<2x1x384xf32, #tpu.memory_space<vmem>>, vector<1x1x384xf32>
      %105 = vector.shape_cast %104 : vector<1x1x384xf32> to vector<1x384xf32>
      %c20_i32 = arith.constant 20 : i32
      %106 = tpu.dynamic_rotate %105 by %c20_i32 dim 1 : vector<1x384xf32>, i32 -> vector<1x384xf32>
      %cst = arith.constant 0.000000e+00 : f32
      %107 = vector.broadcast %cst : f32 to vector<1x384xf32>
      %108 = arith.select %20, %106, %107 : vector<1x384xi1>, vector<1x384xf32>
      %c19_i32_17 = arith.constant 19 : i32
      %109 = tpu.dynamic_rotate %105 by %c19_i32_17 dim 1 : vector<1x384xf32>, i32 -> vector<1x384xf32>
      %c18_i32_18 = arith.constant 18 : i32
      %110 = tpu.dynamic_rotate %105 by %c18_i32_18 dim 1 : vector<1x384xf32>, i32 -> vector<1x384xf32>
      %cst_19 = arith.constant 0.000000e+00 : f32
      %111 = vector.broadcast %cst_19 : f32 to vector<1x384xf32>
      %112 = arith.select %22, %110, %111 : vector<1x384xi1>, vector<1x384xf32>
      %c1_i32_20 = arith.constant 1 : i32
      %113 = tpu.dynamic_rotate %105 by %c1_i32_20 dim 1 : vector<1x384xf32>, i32 -> vector<1x384xf32>
      %cst_21 = arith.constant 0.000000e+00 : f32
      %114 = vector.broadcast %cst_21 : f32 to vector<1x384xf32>
      %115 = arith.select %20, %113, %114 : vector<1x384xi1>, vector<1x384xf32>
      %c383_i32 = arith.constant 383 : i32
      %116 = tpu.dynamic_rotate %105 by %c383_i32 dim 1 : vector<1x384xf32>, i32 -> vector<1x384xf32>
      %cst_22 = arith.constant 0.000000e+00 : f32
      %117 = vector.broadcast %cst_22 : f32 to vector<1x384xf32>
      %118 = arith.select %22, %116, %117 : vector<1x384xi1>, vector<1x384xf32>
      %c366_i32 = arith.constant 366 : i32
      %119 = tpu.dynamic_rotate %105 by %c366_i32 dim 1 : vector<1x384xf32>, i32 -> vector<1x384xf32>
      %cst_23 = arith.constant 0.000000e+00 : f32
      %120 = vector.broadcast %cst_23 : f32 to vector<1x384xf32>
      %121 = arith.select %20, %119, %120 : vector<1x384xi1>, vector<1x384xf32>
      %c365_i32 = arith.constant 365 : i32
      %122 = tpu.dynamic_rotate %105 by %c365_i32 dim 1 : vector<1x384xf32>, i32 -> vector<1x384xf32>
      %c364_i32 = arith.constant 364 : i32
      %123 = tpu.dynamic_rotate %105 by %c364_i32 dim 1 : vector<1x384xf32>, i32 -> vector<1x384xf32>
      %cst_24 = arith.constant 0.000000e+00 : f32
      %124 = vector.broadcast %cst_24 : f32 to vector<1x384xf32>
      %125 = arith.select %22, %123, %124 : vector<1x384xi1>, vector<1x384xf32>
      %c20_i32_25 = arith.constant 20 : i32
      %126 = tpu.dynamic_rotate %arg8 by %c20_i32_25 dim 1 : vector<1x384xf32>, i32 -> vector<1x384xf32>
      %cst_26 = arith.constant 0.000000e+00 : f32
      %127 = vector.broadcast %cst_26 : f32 to vector<1x384xf32>
      %128 = arith.select %20, %126, %127 : vector<1x384xi1>, vector<1x384xf32>
      %c19_i32_27 = arith.constant 19 : i32
      %129 = tpu.dynamic_rotate %arg8 by %c19_i32_27 dim 1 : vector<1x384xf32>, i32 -> vector<1x384xf32>
      %c18_i32_28 = arith.constant 18 : i32
      %130 = tpu.dynamic_rotate %arg8 by %c18_i32_28 dim 1 : vector<1x384xf32>, i32 -> vector<1x384xf32>
      %cst_29 = arith.constant 0.000000e+00 : f32
      %131 = vector.broadcast %cst_29 : f32 to vector<1x384xf32>
      %132 = arith.select %22, %130, %131 : vector<1x384xi1>, vector<1x384xf32>
      %c1_i32_30 = arith.constant 1 : i32
      %133 = tpu.dynamic_rotate %arg8 by %c1_i32_30 dim 1 : vector<1x384xf32>, i32 -> vector<1x384xf32>
      %cst_31 = arith.constant 0.000000e+00 : f32
      %134 = vector.broadcast %cst_31 : f32 to vector<1x384xf32>
      %135 = arith.select %20, %133, %134 : vector<1x384xi1>, vector<1x384xf32>
      %c383_i32_32 = arith.constant 383 : i32
      %136 = tpu.dynamic_rotate %arg8 by %c383_i32_32 dim 1 : vector<1x384xf32>, i32 -> vector<1x384xf32>
      %cst_33 = arith.constant 0.000000e+00 : f32
      %137 = vector.broadcast %cst_33 : f32 to vector<1x384xf32>
      %138 = arith.select %22, %136, %137 : vector<1x384xi1>, vector<1x384xf32>
      %c366_i32_34 = arith.constant 366 : i32
      %139 = tpu.dynamic_rotate %arg8 by %c366_i32_34 dim 1 : vector<1x384xf32>, i32 -> vector<1x384xf32>
      %cst_35 = arith.constant 0.000000e+00 : f32
      %140 = vector.broadcast %cst_35 : f32 to vector<1x384xf32>
      %141 = arith.select %20, %139, %140 : vector<1x384xi1>, vector<1x384xf32>
      %c365_i32_36 = arith.constant 365 : i32
      %142 = tpu.dynamic_rotate %arg8 by %c365_i32_36 dim 1 : vector<1x384xf32>, i32 -> vector<1x384xf32>
      %c364_i32_37 = arith.constant 364 : i32
      %143 = tpu.dynamic_rotate %arg8 by %c364_i32_37 dim 1 : vector<1x384xf32>, i32 -> vector<1x384xf32>
      %cst_38 = arith.constant 0.000000e+00 : f32
      %144 = vector.broadcast %cst_38 : f32 to vector<1x384xf32>
      %145 = arith.select %22, %143, %144 : vector<1x384xi1>, vector<1x384xf32>
      %146 = vector.broadcast %95 : f32 to vector<1x384xf32>
      %147 = vector.broadcast %23 : f32 to vector<1x384xf32>
      %148 = arith.mulf %147, %108 : vector<1x384xf32>
      %149 = arith.addf %146, %148 : vector<1x384xf32>
      %150 = vector.broadcast %59 : f32 to vector<1x384xf32>
      %151 = arith.mulf %150, %128 : vector<1x384xf32>
      %152 = arith.addf %149, %151 : vector<1x384xf32>
      %153 = vector.broadcast %24 : f32 to vector<1x384xf32>
      %154 = arith.mulf %153, %109 : vector<1x384xf32>
      %155 = arith.addf %152, %154 : vector<1x384xf32>
      %156 = vector.broadcast %60 : f32 to vector<1x384xf32>
      %157 = arith.mulf %156, %129 : vector<1x384xf32>
      %158 = arith.addf %155, %157 : vector<1x384xf32>
      %159 = vector.broadcast %25 : f32 to vector<1x384xf32>
      %160 = arith.mulf %159, %112 : vector<1x384xf32>
      %161 = arith.addf %158, %160 : vector<1x384xf32>
      %162 = vector.broadcast %61 : f32 to vector<1x384xf32>
      %163 = arith.mulf %162, %132 : vector<1x384xf32>
      %164 = arith.addf %161, %163 : vector<1x384xf32>
      %165 = vector.broadcast %26 : f32 to vector<1x384xf32>
      %166 = arith.mulf %165, %115 : vector<1x384xf32>
      %167 = arith.addf %164, %166 : vector<1x384xf32>
      %168 = vector.broadcast %62 : f32 to vector<1x384xf32>
      %169 = arith.mulf %168, %135 : vector<1x384xf32>
      %170 = arith.addf %167, %169 : vector<1x384xf32>
      %171 = vector.broadcast %27 : f32 to vector<1x384xf32>
      %172 = arith.mulf %171, %105 : vector<1x384xf32>
      %173 = arith.addf %170, %172 : vector<1x384xf32>
      %174 = vector.broadcast %63 : f32 to vector<1x384xf32>
      %175 = arith.mulf %174, %arg8 : vector<1x384xf32>
      %176 = arith.addf %173, %175 : vector<1x384xf32>
      %177 = vector.broadcast %28 : f32 to vector<1x384xf32>
      %178 = arith.mulf %177, %118 : vector<1x384xf32>
      %179 = arith.addf %176, %178 : vector<1x384xf32>
      %180 = vector.broadcast %64 : f32 to vector<1x384xf32>
      %181 = arith.mulf %180, %138 : vector<1x384xf32>
      %182 = arith.addf %179, %181 : vector<1x384xf32>
      %183 = vector.broadcast %29 : f32 to vector<1x384xf32>
      %184 = arith.mulf %183, %121 : vector<1x384xf32>
      %185 = arith.addf %182, %184 : vector<1x384xf32>
      %186 = vector.broadcast %65 : f32 to vector<1x384xf32>
      %187 = arith.mulf %186, %141 : vector<1x384xf32>
      %188 = arith.addf %185, %187 : vector<1x384xf32>
      %189 = vector.broadcast %30 : f32 to vector<1x384xf32>
      %190 = arith.mulf %189, %122 : vector<1x384xf32>
      %191 = arith.addf %188, %190 : vector<1x384xf32>
      %192 = vector.broadcast %66 : f32 to vector<1x384xf32>
      %193 = arith.mulf %192, %142 : vector<1x384xf32>
      %194 = arith.addf %191, %193 : vector<1x384xf32>
      %195 = vector.broadcast %31 : f32 to vector<1x384xf32>
      %196 = arith.mulf %195, %125 : vector<1x384xf32>
      %197 = arith.addf %194, %196 : vector<1x384xf32>
      %198 = vector.broadcast %67 : f32 to vector<1x384xf32>
      %199 = arith.mulf %198, %145 : vector<1x384xf32>
      %200 = arith.addf %197, %199 : vector<1x384xf32>
      %201 = vector.broadcast %96 : f32 to vector<1x384xf32>
      %202 = vector.broadcast %32 : f32 to vector<1x384xf32>
      %203 = arith.mulf %202, %108 : vector<1x384xf32>
      %204 = arith.addf %201, %203 : vector<1x384xf32>
      %205 = vector.broadcast %68 : f32 to vector<1x384xf32>
      %206 = arith.mulf %205, %128 : vector<1x384xf32>
      %207 = arith.addf %204, %206 : vector<1x384xf32>
      %208 = vector.broadcast %33 : f32 to vector<1x384xf32>
      %209 = arith.mulf %208, %109 : vector<1x384xf32>
      %210 = arith.addf %207, %209 : vector<1x384xf32>
      %211 = vector.broadcast %69 : f32 to vector<1x384xf32>
      %212 = arith.mulf %211, %129 : vector<1x384xf32>
      %213 = arith.addf %210, %212 : vector<1x384xf32>
      %214 = vector.broadcast %34 : f32 to vector<1x384xf32>
      %215 = arith.mulf %214, %112 : vector<1x384xf32>
      %216 = arith.addf %213, %215 : vector<1x384xf32>
      %217 = vector.broadcast %70 : f32 to vector<1x384xf32>
      %218 = arith.mulf %217, %132 : vector<1x384xf32>
      %219 = arith.addf %216, %218 : vector<1x384xf32>
      %220 = vector.broadcast %35 : f32 to vector<1x384xf32>
      %221 = arith.mulf %220, %115 : vector<1x384xf32>
      %222 = arith.addf %219, %221 : vector<1x384xf32>
      %223 = vector.broadcast %71 : f32 to vector<1x384xf32>
      %224 = arith.mulf %223, %135 : vector<1x384xf32>
      %225 = arith.addf %222, %224 : vector<1x384xf32>
      %226 = vector.broadcast %36 : f32 to vector<1x384xf32>
      %227 = arith.mulf %226, %105 : vector<1x384xf32>
      %228 = arith.addf %225, %227 : vector<1x384xf32>
      %229 = vector.broadcast %72 : f32 to vector<1x384xf32>
      %230 = arith.mulf %229, %arg8 : vector<1x384xf32>
      %231 = arith.addf %228, %230 : vector<1x384xf32>
      %232 = vector.broadcast %37 : f32 to vector<1x384xf32>
      %233 = arith.mulf %232, %118 : vector<1x384xf32>
      %234 = arith.addf %231, %233 : vector<1x384xf32>
      %235 = vector.broadcast %73 : f32 to vector<1x384xf32>
      %236 = arith.mulf %235, %138 : vector<1x384xf32>
      %237 = arith.addf %234, %236 : vector<1x384xf32>
      %238 = vector.broadcast %38 : f32 to vector<1x384xf32>
      %239 = arith.mulf %238, %121 : vector<1x384xf32>
      %240 = arith.addf %237, %239 : vector<1x384xf32>
      %241 = vector.broadcast %74 : f32 to vector<1x384xf32>
      %242 = arith.mulf %241, %141 : vector<1x384xf32>
      %243 = arith.addf %240, %242 : vector<1x384xf32>
      %244 = vector.broadcast %39 : f32 to vector<1x384xf32>
      %245 = arith.mulf %244, %122 : vector<1x384xf32>
      %246 = arith.addf %243, %245 : vector<1x384xf32>
      %247 = vector.broadcast %75 : f32 to vector<1x384xf32>
      %248 = arith.mulf %247, %142 : vector<1x384xf32>
      %249 = arith.addf %246, %248 : vector<1x384xf32>
      %250 = vector.broadcast %40 : f32 to vector<1x384xf32>
      %251 = arith.mulf %250, %125 : vector<1x384xf32>
      %252 = arith.addf %249, %251 : vector<1x384xf32>
      %253 = vector.broadcast %76 : f32 to vector<1x384xf32>
      %254 = arith.mulf %253, %145 : vector<1x384xf32>
      %255 = arith.addf %252, %254 : vector<1x384xf32>
      %256 = vector.broadcast %97 : f32 to vector<1x384xf32>
      %257 = vector.broadcast %41 : f32 to vector<1x384xf32>
      %258 = arith.mulf %257, %108 : vector<1x384xf32>
      %259 = arith.addf %256, %258 : vector<1x384xf32>
      %260 = vector.broadcast %77 : f32 to vector<1x384xf32>
      %261 = arith.mulf %260, %128 : vector<1x384xf32>
      %262 = arith.addf %259, %261 : vector<1x384xf32>
      %263 = vector.broadcast %42 : f32 to vector<1x384xf32>
      %264 = arith.mulf %263, %109 : vector<1x384xf32>
      %265 = arith.addf %262, %264 : vector<1x384xf32>
      %266 = vector.broadcast %78 : f32 to vector<1x384xf32>
      %267 = arith.mulf %266, %129 : vector<1x384xf32>
      %268 = arith.addf %265, %267 : vector<1x384xf32>
      %269 = vector.broadcast %43 : f32 to vector<1x384xf32>
      %270 = arith.mulf %269, %112 : vector<1x384xf32>
      %271 = arith.addf %268, %270 : vector<1x384xf32>
      %272 = vector.broadcast %79 : f32 to vector<1x384xf32>
      %273 = arith.mulf %272, %132 : vector<1x384xf32>
      %274 = arith.addf %271, %273 : vector<1x384xf32>
      %275 = vector.broadcast %44 : f32 to vector<1x384xf32>
      %276 = arith.mulf %275, %115 : vector<1x384xf32>
      %277 = arith.addf %274, %276 : vector<1x384xf32>
      %278 = vector.broadcast %80 : f32 to vector<1x384xf32>
      %279 = arith.mulf %278, %135 : vector<1x384xf32>
      %280 = arith.addf %277, %279 : vector<1x384xf32>
      %281 = vector.broadcast %45 : f32 to vector<1x384xf32>
      %282 = arith.mulf %281, %105 : vector<1x384xf32>
      %283 = arith.addf %280, %282 : vector<1x384xf32>
      %284 = vector.broadcast %81 : f32 to vector<1x384xf32>
      %285 = arith.mulf %284, %arg8 : vector<1x384xf32>
      %286 = arith.addf %283, %285 : vector<1x384xf32>
      %287 = vector.broadcast %46 : f32 to vector<1x384xf32>
      %288 = arith.mulf %287, %118 : vector<1x384xf32>
      %289 = arith.addf %286, %288 : vector<1x384xf32>
      %290 = vector.broadcast %82 : f32 to vector<1x384xf32>
      %291 = arith.mulf %290, %138 : vector<1x384xf32>
      %292 = arith.addf %289, %291 : vector<1x384xf32>
      %293 = vector.broadcast %47 : f32 to vector<1x384xf32>
      %294 = arith.mulf %293, %121 : vector<1x384xf32>
      %295 = arith.addf %292, %294 : vector<1x384xf32>
      %296 = vector.broadcast %83 : f32 to vector<1x384xf32>
      %297 = arith.mulf %296, %141 : vector<1x384xf32>
      %298 = arith.addf %295, %297 : vector<1x384xf32>
      %299 = vector.broadcast %48 : f32 to vector<1x384xf32>
      %300 = arith.mulf %299, %122 : vector<1x384xf32>
      %301 = arith.addf %298, %300 : vector<1x384xf32>
      %302 = vector.broadcast %84 : f32 to vector<1x384xf32>
      %303 = arith.mulf %302, %142 : vector<1x384xf32>
      %304 = arith.addf %301, %303 : vector<1x384xf32>
      %305 = vector.broadcast %49 : f32 to vector<1x384xf32>
      %306 = arith.mulf %305, %125 : vector<1x384xf32>
      %307 = arith.addf %304, %306 : vector<1x384xf32>
      %308 = vector.broadcast %85 : f32 to vector<1x384xf32>
      %309 = arith.mulf %308, %145 : vector<1x384xf32>
      %310 = arith.addf %307, %309 : vector<1x384xf32>
      %311 = vector.broadcast %98 : f32 to vector<1x384xf32>
      %312 = vector.broadcast %50 : f32 to vector<1x384xf32>
      %313 = arith.mulf %312, %108 : vector<1x384xf32>
      %314 = arith.addf %311, %313 : vector<1x384xf32>
      %315 = vector.broadcast %86 : f32 to vector<1x384xf32>
      %316 = arith.mulf %315, %128 : vector<1x384xf32>
      %317 = arith.addf %314, %316 : vector<1x384xf32>
      %318 = vector.broadcast %51 : f32 to vector<1x384xf32>
      %319 = arith.mulf %318, %109 : vector<1x384xf32>
      %320 = arith.addf %317, %319 : vector<1x384xf32>
      %321 = vector.broadcast %87 : f32 to vector<1x384xf32>
      %322 = arith.mulf %321, %129 : vector<1x384xf32>
      %323 = arith.addf %320, %322 : vector<1x384xf32>
      %324 = vector.broadcast %52 : f32 to vector<1x384xf32>
      %325 = arith.mulf %324, %112 : vector<1x384xf32>
      %326 = arith.addf %323, %325 : vector<1x384xf32>
      %327 = vector.broadcast %88 : f32 to vector<1x384xf32>
      %328 = arith.mulf %327, %132 : vector<1x384xf32>
      %329 = arith.addf %326, %328 : vector<1x384xf32>
      %330 = vector.broadcast %53 : f32 to vector<1x384xf32>
      %331 = arith.mulf %330, %115 : vector<1x384xf32>
      %332 = arith.addf %329, %331 : vector<1x384xf32>
      %333 = vector.broadcast %89 : f32 to vector<1x384xf32>
      %334 = arith.mulf %333, %135 : vector<1x384xf32>
      %335 = arith.addf %332, %334 : vector<1x384xf32>
      %336 = vector.broadcast %54 : f32 to vector<1x384xf32>
      %337 = arith.mulf %336, %105 : vector<1x384xf32>
      %338 = arith.addf %335, %337 : vector<1x384xf32>
      %339 = vector.broadcast %90 : f32 to vector<1x384xf32>
      %340 = arith.mulf %339, %arg8 : vector<1x384xf32>
      %341 = arith.addf %338, %340 : vector<1x384xf32>
      %342 = vector.broadcast %55 : f32 to vector<1x384xf32>
      %343 = arith.mulf %342, %118 : vector<1x384xf32>
      %344 = arith.addf %341, %343 : vector<1x384xf32>
      %345 = vector.broadcast %91 : f32 to vector<1x384xf32>
      %346 = arith.mulf %345, %138 : vector<1x384xf32>
      %347 = arith.addf %344, %346 : vector<1x384xf32>
      %348 = vector.broadcast %56 : f32 to vector<1x384xf32>
      %349 = arith.mulf %348, %121 : vector<1x384xf32>
      %350 = arith.addf %347, %349 : vector<1x384xf32>
      %351 = vector.broadcast %92 : f32 to vector<1x384xf32>
      %352 = arith.mulf %351, %141 : vector<1x384xf32>
      %353 = arith.addf %350, %352 : vector<1x384xf32>
      %354 = vector.broadcast %57 : f32 to vector<1x384xf32>
      %355 = arith.mulf %354, %122 : vector<1x384xf32>
      %356 = arith.addf %353, %355 : vector<1x384xf32>
      %357 = vector.broadcast %93 : f32 to vector<1x384xf32>
      %358 = arith.mulf %357, %142 : vector<1x384xf32>
      %359 = arith.addf %356, %358 : vector<1x384xf32>
      %360 = vector.broadcast %58 : f32 to vector<1x384xf32>
      %361 = arith.mulf %360, %125 : vector<1x384xf32>
      %362 = arith.addf %359, %361 : vector<1x384xf32>
      %363 = vector.broadcast %94 : f32 to vector<1x384xf32>
      %364 = arith.mulf %363, %145 : vector<1x384xf32>
      %365 = arith.addf %362, %364 : vector<1x384xf32>
      %366 = arith.negf %200 : vector<1x384xf32>
      %367 = math.exp %366 : vector<1x384xf32>
      %cst_39 = arith.constant 1.000000e+00 : f32
      %368 = vector.broadcast %cst_39 : f32 to vector<1x384xf32>
      %369 = arith.addf %368, %367 : vector<1x384xf32>
      %370 = arith.divf %368, %369 : vector<1x384xf32>
      %371 = arith.negf %255 : vector<1x384xf32>
      %372 = math.exp %371 : vector<1x384xf32>
      %cst_40 = arith.constant 1.000000e+00 : f32
      %373 = vector.broadcast %cst_40 : f32 to vector<1x384xf32>
      %374 = arith.addf %373, %372 : vector<1x384xf32>
      %375 = arith.divf %373, %374 : vector<1x384xf32>
      %376 = arith.negf %310 : vector<1x384xf32>
      %377 = math.exp %376 : vector<1x384xf32>
      %cst_41 = arith.constant 1.000000e+00 : f32
      %378 = vector.broadcast %cst_41 : f32 to vector<1x384xf32>
      %379 = arith.addf %378, %377 : vector<1x384xf32>
      %380 = arith.divf %378, %379 : vector<1x384xf32>
      %381 = math.tanh %365 : vector<1x384xf32>
      %382 = arith.mulf %375, %arg9 : vector<1x384xf32>
      %383 = arith.mulf %370, %381 : vector<1x384xf32>
      %384 = arith.addf %382, %383 : vector<1x384xf32>
      %385 = math.tanh %384 : vector<1x384xf32>
      %386 = arith.mulf %380, %385 : vector<1x384xf32>
      %cst_42 = arith.constant 0.000000e+00 : f32
      %387 = vector.broadcast %cst_42 : f32 to vector<1x384xf32>
      %388 = arith.select %18, %386, %387 : vector<1x384xi1>, vector<1x384xf32>
      %cst_43 = arith.constant 0.000000e+00 : f32
      %389 = vector.broadcast %cst_43 : f32 to vector<1x384xf32>
      %390 = arith.select %18, %384, %389 : vector<1x384xi1>, vector<1x384xf32>
      %391 = arith.index_cast %arg7 : i32 to index
      %c0_44 = arith.constant 0 : index
      %c0_45 = arith.constant 0 : index
      %392 = vector.load %arg6[%391, %c0_44, %c0_45] : memref<2x1x384xf32, #tpu.memory_space<vmem>>, vector<1x1x384xf32>
      %393 = vector.shape_cast %392 : vector<1x1x384xf32> to vector<1x384xf32>
      %394 = vector.shape_cast %388 : vector<1x384xf32> to vector<1x1x384xf32>
      tpu.vector_store %arg6[%391, %c0_44, %c0_45], %394 {strides = array<i32>} : memref<2x1x384xf32, #tpu.memory_space<vmem>>, vector<1x1x384xf32>,
      scf.yield %388, %390 : vector<1x384xf32>, vector<1x384xf32>
    }
    %c2_i32_14 = arith.constant 2 : i32
    return
  }
  func.func @transform_0(%arg0: i32) -> (i32, i32, i32) {
    %c0_i32 = arith.constant 0 : i32
    %c0_i32_0 = arith.constant 0 : i32
    %c0_i32_1 = arith.constant 0 : i32
    %c0_i32_2 = arith.constant 0 : i32
    return %c0_i32, %c0_i32_0, %c0_i32_1 : i32, i32, i32
  }
  func.func @transform_1(%arg0: i32) -> (i32, i32) {
    %c0_i32 = arith.constant 0 : i32
    %c0_i32_0 = arith.constant 0 : i32
    %c0_i32_1 = arith.constant 0 : i32
    return %c0_i32, %c0_i32_0 : i32, i32
  }
  func.func @transform_2(%arg0: i32) -> (i32, i32) {
    %c0_i32 = arith.constant 0 : i32
    %c0_i32_0 = arith.constant 0 : i32
    %c0_i32_1 = arith.constant 0 : i32
    return %c0_i32, %c0_i32_0 : i32, i32
  }
  func.func @transform_3(%arg0: i32) -> i32 {
    %c0_i32 = arith.constant 0 : i32
    %c0_i32_0 = arith.constant 0 : i32
    return %c0_i32 : i32
  }
  func.func @transform_4(%arg0: i32) -> i32 {
    %c0_i32 = arith.constant 0 : i32
    %c0_i32_0 = arith.constant 0 : i32
    return %c0_i32 : i32
  }
  func.func @transform_5(%arg0: i32) -> (i32, i32, i32) {
    %c0_i32 = arith.constant 0 : i32
    %c0_i32_0 = arith.constant 0 : i32
    %c0_i32_1 = arith.constant 0 : i32
    %c0_i32_2 = arith.constant 0 : i32
    return %c0_i32, %c0_i32_0, %c0_i32_1 : i32, i32, i32
  }
}

</mosaic_0001>

<llo_original>
// kernel: squeeze.0
$region0: #{squeeze.0}
  %s0 = inlined_call_operand.vmem [shape: f32[2,361], index: 0, kind: input, shape index: {}]
  %s1 = inlined_call_operand.hbm [shape: f32[2,1,19,19], index: 1, kind: output, shape index: {}]
  $region1: #{squeeze.0} parent=0
    #allocation0 [shape = 'u8[19456]{0}', space=vmem, size = 0x4c00, scoped, tag = 'operand span for operand 1']
    #allocation1 [shape = 's32[1]{0}', space=sflag, size = 0x4, scoped, tag = 'scoped memory for squeeze.0']
    #allocation2 [shape = 'u8[155648]{0}', space=vmem, size = 0x26000, scoped, tag = 'scoped mem for output reshape']
    #allocation3 [shape = 'u8[12288]{0}', space=vmem, size = 0x3000, scoped, tag = 'scoped mem for input reshape']
    %2 = vsyncpa [#allocation1], 0
    %s4 = sshllo.u32 0, 2
    %s5 = smul.addr 2, 2
    %s6 = scalar_lea.vmem %s0, %s5
    %v7 = vld [vmem:[%s6] sm:%s4]
    %s8 = scalar_lea.vmem [#allocation3], 16
    %9 = vst [vmem:[%s8] sm:%s4] %v7
    %s10 = scalar_lea.vmem %s0, 2
    %v11 = vld [vmem:[%s10] sm:%s4]
    %s12 = scalar_lea.vmem [#allocation3], 8
    %13 = vst [vmem:[%s12] sm:%s4] %v11
    %v14 = vld [vmem:[%s0] sm:%s4]
    %15 = vst [vmem:[#allocation3] sm:%s4] %v14
    %v16 = vld [vmem:[#allocation3] sm:$0x3]
    %vm17 = vcmask 154624
    %18 = vst.msk [vmem:[#allocation2] ss:$152 sm:$0x3] %vm17, %v16
    %s19 = scalar_lea.vmem [#allocation3], 9
    %s20 = smov 3
    %v21 = vld [vmem:[%s19] ss:$-1 sm:%s20]
    %22 = vrot.lane.b32.xlu0 %v21, 123
    %v23 = vpop.permute.xlu0 %22
    %vm24 = vcmask 154624
    %s25 = scalar_lea.vmem [#allocation2], 208
    %26 = vst.msk [vmem:[%s25] ss:$-152 sm:$0x3] %vm24, %v23
    %s27 = scalar_lea.vmem [#allocation3], 17
    %s28 = smov 3
    %v29 = vld [vmem:[%s27] ss:$-1 sm:%s28]
    %30 = vrot.lane.b32.xlu0 %v29, 118
    %v31 = vpop.permute.xlu0 %30
    %vm32 = vcmask 154624
    %s33 = scalar_lea.vmem [#allocation2], 264
    %34 = vst.msk [vmem:[%s33] ss:$-152 sm:$0x3] %vm32, %v31
    %s35 = scalar_lea.vmem [#allocation3], 1
    %s36 = smov 3
    %v37 = vld [vmem:[%s35] ss:$-1 sm:%s36]
    %38 = vrot.lane.b32.xlu0 %v37, 109
    %v39 = vpop.permute.xlu0 %38
    %vm40 = vcmask 154624
    %s41 = scalar_lea.vmem [#allocation2], 160
    %42 = vst.msk [vmem:[%s41] ss:$-152 sm:$0x3] %vm40, %v39
    %s43 = scalar_lea.vmem [#allocation3], 8
    %v44 = vld [vmem:[%s43] sm:$0x3]
    %45 = vrot.lane.b32.xlu0 %v44, 104
    %v46 = vpop.permute.xlu0 %45
    %vm47 = vcmask 154624
    %s48 = scalar_lea.vmem [#allocation2], 64
    %49 = vst.msk [vmem:[%s48] ss:$152 sm:$0x3] %vm47, %v46
    %s50 = scalar_lea.vmem [#allocation3], 17
    %s51 = smov 3
    %v52 = vld [vmem:[%s50] ss:$-1 sm:%s51]
    %53 = vrot.lane.b32.xlu0 %v52, 99
    %v54 = vpop.permute.xlu0 %53
    %vm55 = vcmask 154624
    %s56 = scalar_lea.vmem [#allocation2], 272
    %57 = vst.msk [vmem:[%s56] ss:$-152 sm:$0x3] %vm55, %v54
    %s58 = scalar_lea.vmem [#allocation3], 1
    %s59 = smov 3
    %v60 = vld [vmem:[%s58] ss:$-1 sm:%s59]
    %61 = vrot.lane.b32.xlu0 %v60, 90
    %v62 = vpop.permute.xlu0 %61
    %vm63 = vcmask 154624
    %s64 = scalar_lea.vmem [#allocation2], 168
    %65 = vst.msk [vmem:[%s64] ss:$-152 sm:$0x3] %vm63, %v62
    %s66 = scalar_lea.vmem [#allocation3], 9
    %s67 = smov 3
    %v68 = vld [vmem:[%s66] ss:$-1 sm:%s67]
    %69 = vrot.lane.b32.xlu0 %v68, 85
    %v70 = vpop.permute.xlu0 %69
    %vm71 = vcmask 154624
    %s72 = scalar_lea.vmem [#allocation2], 224
    %73 = vst.msk [vmem:[%s72] ss:$-152 sm:$0x3] %vm71, %v70
    %s74 = scalar_lea.vmem [#allocation3], 16
    %v75 = vld [vmem:[%s74] sm:$0x3]
    %76 = vrot.lane.b32.xlu0 %v75, 80
    %v77 = vpop.permute.xlu0 %76
    %vm78 = vcmask 154624
    %s79 = scalar_lea.vmem [#allocation2], 128
    %80 = vst.msk [vmem:[%s79] ss:$152 sm:$0x3] %vm78, %v77
    %s81 = scalar_lea.vmem [#allocation3], 1
    %s82 = smov 3
    %v83 = vld [vmem:[%s81] ss:$-1 sm:%s82]
    %84 = vrot.lane.b32.xlu0 %v83, 71
    %v85 = vpop.permute.xlu0 %84
    %vm86 = vcmask 154624
    %s87 = scalar_lea.vmem [#allocation2], 176
    %88 = vst.msk [vmem:[%s87] ss:$-152 sm:$0x3] %vm86, %v85
    %s89 = scalar_lea.vmem [#allocation3], 9
    %s90 = smov 3
    %v91 = vld [vmem:[%s89] ss:$-1 sm:%s90]
    %92 = vrot.lane.b32.xlu0 %v91, 66
    %v93 = vpop.permute.xlu0 %92
    %vm94 = vcmask 154624
    %s95 = scalar_lea.vmem [#allocation2], 232
    %96 = vst.msk [vmem:[%s95] ss:$-152 sm:$0x3] %vm94, %v93
    %s97 = scalar_lea.vmem [#allocation3], 17
    %s98 = smov 3
    %v99 = vld [vmem:[%s97] ss:$-1 sm:%s98]
    %100 = vrot.lane.b32.xlu0 %v99, 61
    %v101 = vpop.permute.xlu0 %100
    %vm102 = vcmask 154624
    %s103 = scalar_lea.vmem [#allocation2], 288
    %104 = vst.msk [vmem:[%s103] ss:$-152 sm:$0x3] %vm102, %v101
    %v105 = vld [vmem:[#allocation3] sm:$0x3]
    %106 = vrot.lane.b32.xlu0 %v105, 52
    %v107 = vpop.permute.xlu0 %106
    %vm108 = vcmask 154624
    %s109 = scalar_lea.vmem [#allocation2], 32
    %110 = vst.msk [vmem:[%s109] ss:$152 sm:$0x3] %vm108, %v107
    %s111 = scalar_lea.vmem [#allocation3], 9
    %s112 = smov 3
    %v113 = vld [vmem:[%s111] ss:$-1 sm:%s112]
    %114 = vrot.lane.b32.xlu0 %v113, 47
    %v115 = vpop.permute.xlu0 %114
    %vm116 = vcmask 154624
    %s117 = scalar_lea.vmem [#allocation2], 240
    %118 = vst.msk [vmem:[%s117] ss:$-152 sm:$0x3] %vm116, %v115
    %s119 = scalar_lea.vmem [#allocation3], 17
    %s120 = smov 3
    %v121 = vld [vmem:[%s119] ss:$-1 sm:%s120]
    %122 = vrot.lane.b32.xlu0 %v121, 42
    %v123 = vpop.permute.xlu0 %122
    %vm124 = vcmask 154624
    %s125 = scalar_lea.vmem [#allocation2], 296
    %126 = vst.msk [vmem:[%s125] ss:$-152 sm:$0x3] %vm124, %v123
    %s127 = scalar_lea.vmem [#allocation3], 1
    %s128 = smov 3
    %v129 = vld [vmem:[%s127] ss:$-1 sm:%s128]
    %130 = vrot.lane.b32.xlu0 %v129, 33
    %v131 = vpop.permute.xlu0 %130
    %vm132 = vcmask 154624
    %s133 = scalar_lea.vmem [#allocation2], 192
    %134 = vst.msk [vmem:[%s133] ss:$-152 sm:$0x3] %vm132, %v131
    %s135 = scalar_lea.vmem [#allocation3], 8
    %v136 = vld [vmem:[%s135] sm:$0x3]
    %137 = vrot.lane.b32.xlu0 %v136, 28
    %v138 = vpop.permute.xlu0 %137
    %vm139 = vcmask 154624
    %s140 = scalar_lea.vmem [#allocation2], 96
    %141 = vst.msk [vmem:[%s140] ss:$152 sm:$0x3] %vm139, %v138
    %s142 = scalar_lea.vmem [#allocation3], 1
    %s143 = smov 3
    %v144 = vld [vmem:[%s142] ss:$-1 sm:%s143]
    %s145 = scalar_lea.vmem [#allocation3], 9
    %s146 = smov 3
    %v147 = vld [vmem:[%s145] ss:$-1 sm:%s146]
    %vm148 = vcmask 932864
    %v149 = vsel %vm148, %v147, %v144
    %150 = vrot.lane.b32.xlu0 %v149, 14
    %v151 = vpop.permute.xlu0 %150
    %vm152 = vcmask 113664
    %s153 = scalar_lea.vmem [#allocation2], 200
    %154 = vst.msk [vmem:[%s153] ss:$-152 sm:$0x3] %vm152, %v151
    %vm155 = vcmask 154736
    %s156 = scalar_lea.vmem [#allocation2], 200
    %157 = vst.msk [vmem:[%s156] ss:$-152 sm:$0x3] %vm155, %v151
    %s158 = scalar_lea.vmem [#allocation3], 9
    %s159 = smov 3
    %v160 = vld [vmem:[%s158] ss:$-1 sm:%s159]
    %s161 = scalar_lea.vmem [#allocation3], 17
    %s162 = smov 3
    %v163 = vld [vmem:[%s161] ss:$-1 sm:%s162]
    %vm164 = vcmask 973824
    %v165 = vsel %vm164, %v163, %v160
    %166 = vrot.lane.b32.xlu0 %v165, 9
    %v167 = vpop.permute.xlu0 %166
    %vm168 = vcmask 72704
    %s169 = scalar_lea.vmem [#allocation2], 256
    %170 = vst.msk [vmem:[%s169] ss:$-152 sm:$0x3] %vm168, %v167
    %vm171 = vcmask 154696
    %s172 = scalar_lea.vmem [#allocation2], 256
    %173 = vst.msk [vmem:[%s172] ss:$-152 sm:$0x3] %vm171, %v167
    %s175 = sshllo.u32 0, 1
    %v177 = vld [vmem:[#allocation2] sm:%s175]
    %s178 = sshllo.u32 0, 1
    %179 = vst [vmem:[#allocation0] sm:%s178] %v177
    %s180 = scalar_lea.vmem [#allocation2], 8
    %v181 = vld [vmem:[%s180] sm:%s175]
    %s182 = sshllo.u32 0, 1
    %s183 = scalar_lea.vmem [#allocation0], 1
    %184 = vst [vmem:[%s183] sm:%s182] %v181
    %s185 = scalar_lea.vmem [#allocation2], 16
    %v186 = vld [vmem:[%s185] sm:%s175]
    %s187 = sshllo.u32 0, 1
    %s188 = smul.addr 1, 2
    %s189 = scalar_lea.vmem [#allocation0], %s188
    %190 = vst [vmem:[%s189] sm:%s187] %v186
    %s191 = scalar_lea.vmem [#allocation2], 24
    %v192 = vld [vmem:[%s191] sm:%s175]
    %s193 = sshllo.u32 0, 1
    %s194 = smul.addr 1, 3
    %s195 = scalar_lea.vmem [#allocation0], %s194
    %196 = vst [vmem:[%s195] sm:%s193] %v192
    %s197 = scalar_lea.vmem [#allocation2], 32
    %v198 = vld [vmem:[%s197] sm:%s175]
    %s199 = sshllo.u32 0, 1
    %s200 = smul.addr 1, 4
    %s201 = scalar_lea.vmem [#allocation0], %s200
    %202 = vst [vmem:[%s201] sm:%s199] %v198
    %s203 = scalar_lea.vmem [#allocation2], 40
    %v204 = vld [vmem:[%s203] sm:%s175]
    %s205 = sshllo.u32 0, 1
    %s206 = smul.addr 1, 5
    %s207 = scalar_lea.vmem [#allocation0], %s206
    %208 = vst [vmem:[%s207] sm:%s205] %v204
    %s209 = scalar_lea.vmem [#allocation2], 48
    %v210 = vld [vmem:[%s209] sm:%s175]
    %s211 = sshllo.u32 0, 1
    %s212 = smul.addr 1, 6
    %s213 = scalar_lea.vmem [#allocation0], %s212
    %214 = vst [vmem:[%s213] sm:%s211] %v210
    %s215 = scalar_lea.vmem [#allocation2], 56
    %v216 = vld [vmem:[%s215] sm:%s175]
    %s217 = sshllo.u32 0, 1
    %s218 = smul.addr 1, 7
    %s219 = scalar_lea.vmem [#allocation0], %s218
    %220 = vst [vmem:[%s219] sm:%s217] %v216
    %s221 = scalar_lea.vmem [#allocation2], 64
    %v222 = vld [vmem:[%s221] sm:%s175]
    %s223 = sshllo.u32 0, 1
    %s224 = smul.addr 1, 8
    %s225 = scalar_lea.vmem [#allocation0], %s224
    %226 = vst [vmem:[%s225] sm:%s223] %v222
    %s227 = scalar_lea.vmem [#allocation2], 72
    %v228 = vld [vmem:[%s227] sm:%s175]
    %s229 = sshllo.u32 0, 1
    %s230 = smul.addr 1, 9
    %s231 = scalar_lea.vmem [#allocation0], %s230
    %232 = vst [vmem:[%s231] sm:%s229] %v228
    %s233 = scalar_lea.vmem [#allocation2], 80
    %v234 = vld [vmem:[%s233] sm:%s175]
    %s235 = sshllo.u32 0, 1
    %s236 = smul.addr 1, 10
    %s237 = scalar_lea.vmem [#allocation0], %s236
    %238 = vst [vmem:[%s237] sm:%s235] %v234
    %s239 = scalar_lea.vmem [#allocation2], 88
    %v240 = vld [vmem:[%s239] sm:%s175]
    %s241 = sshllo.u32 0, 1
    %s242 = smul.addr 1, 11
    %s243 = scalar_lea.vmem [#allocation0], %s242
    %244 = vst [vmem:[%s243] sm:%s241] %v240
    %s245 = scalar_lea.vmem [#allocation2], 96
    %v246 = vld [vmem:[%s245] sm:%s175]
    %s247 = sshllo.u32 0, 1
    %s248 = smul.addr 1, 12
    %s249 = scalar_lea.vmem [#allocation0], %s248
    %250 = vst [vmem:[%s249] sm:%s247] %v246
    %s251 = scalar_lea.vmem [#allocation2], 104
    %v252 = vld [vmem:[%s251] sm:%s175]
    %s253 = sshllo.u32 0, 1
    %s254 = smul.addr 1, 13
    %s255 = scalar_lea.vmem [#allocation0], %s254
    %256 = vst [vmem:[%s255] sm:%s253] %v252
    %s257 = scalar_lea.vmem [#allocation2], 112
    %v258 = vld [vmem:[%s257] sm:%s175]
    %s259 = sshllo.u32 0, 1
    %s260 = smul.addr 1, 14
    %s261 = scalar_lea.vmem [#allocation0], %s260
    %262 = vst [vmem:[%s261] sm:%s259] %v258
    %s263 = scalar_lea.vmem [#allocation2], 120
    %v264 = vld [vmem:[%s263] sm:%s175]
    %s265 = sshllo.u32 0, 1
    %s266 = smul.addr 1, 15
    %s267 = scalar_lea.vmem [#allocation0], %s266
    %268 = vst [vmem:[%s267] sm:%s265] %v264
    %s269 = scalar_lea.vmem [#allocation2], 128
    %v270 = vld [vmem:[%s269] sm:%s175]
    %s271 = sshllo.u32 0, 1
    %s272 = smul.addr 1, 16
    %s273 = scalar_lea.vmem [#allocation0], %s272
    %274 = vst [vmem:[%s273] sm:%s271] %v270
    %s275 = scalar_lea.vmem [#allocation2], 136
    %v276 = vld [vmem:[%s275] sm:%s175]
    %s277 = sshllo.u32 0, 1
    %s278 = smul.addr 1, 17
    %s279 = scalar_lea.vmem [#allocation0], %s278
    %280 = vst [vmem:[%s279] sm:%s277] %v276
    %s281 = scalar_lea.vmem [#allocation2], 144
    %v282 = vld [vmem:[%s281] sm:%s175]
    %s283 = sshllo.u32 0, 1
    %s284 = smul.addr 1, 18
    %s285 = scalar_lea.vmem [#allocation0], %s284
    %286 = vst [vmem:[%s285] sm:%s283] %v282
    %s287 = scalar_lea.vmem [#allocation2], 152
    %v288 = vld [vmem:[%s287] sm:%s175]
    %s289 = sshllo.u32 0, 1
    %s290 = smul.addr 1, 19
    %s291 = scalar_lea.vmem [#allocation0], %s290
    %292 = vst [vmem:[%s291] sm:%s289] %v288
    %s293 = scalar_lea.vmem [#allocation2], 160
    %v294 = vld [vmem:[%s293] sm:%s175]
    %s295 = sshllo.u32 0, 1
    %s296 = smul.addr 1, 20
    %s297 = scalar_lea.vmem [#allocation0], %s296
    %298 = vst [vmem:[%s297] sm:%s295] %v294
    %s299 = scalar_lea.vmem [#allocation2], 168
    %v300 = vld [vmem:[%s299] sm:%s175]
    %s301 = sshllo.u32 0, 1
    %s302 = smul.addr 1, 21
    %s303 = scalar_lea.vmem [#allocation0], %s302
    %304 = vst [vmem:[%s303] sm:%s301] %v300
    %s305 = scalar_lea.vmem [#allocation2], 176
    %v306 = vld [vmem:[%s305] sm:%s175]
    %s307 = sshllo.u32 0, 1
    %s308 = smul.addr 1, 22
    %s309 = scalar_lea.vmem [#allocation0], %s308
    %310 = vst [vmem:[%s309] sm:%s307] %v306
    %s311 = scalar_lea.vmem [#allocation2], 184
    %v312 = vld [vmem:[%s311] sm:%s175]
    %s313 = sshllo.u32 0, 1
    %s314 = smul.addr 1, 23
    %s315 = scalar_lea.vmem [#allocation0], %s314
    %316 = vst [vmem:[%s315] sm:%s313] %v312
    %s317 = scalar_lea.vmem [#allocation2], 192
    %v318 = vld [vmem:[%s317] sm:%s175]
    %s319 = sshllo.u32 0, 1
    %s320 = smul.addr 1, 24
    %s321 = scalar_lea.vmem [#allocation0], %s320
    %322 = vst [vmem:[%s321] sm:%s319] %v318
    %s323 = scalar_lea.vmem [#allocation2], 200
    %v324 = vld [vmem:[%s323] sm:%s175]
    %s325 = sshllo.u32 0, 1
    %s326 = smul.addr 1, 25
    %s327 = scalar_lea.vmem [#allocation0], %s326
    %328 = vst [vmem:[%s327] sm:%s325] %v324
    %s329 = scalar_lea.vmem [#allocation2], 208
    %v330 = vld [vmem:[%s329] sm:%s175]
    %s331 = sshllo.u32 0, 1
    %s332 = smul.addr 1, 26
    %s333 = scalar_lea.vmem [#allocation0], %s332
    %334 = vst [vmem:[%s333] sm:%s331] %v330
    %s335 = scalar_lea.vmem [#allocation2], 216
    %v336 = vld [vmem:[%s335] sm:%s175]
    %s337 = sshllo.u32 0, 1
    %s338 = smul.addr 1, 27
    %s339 = scalar_lea.vmem [#allocation0], %s338
    %340 = vst [vmem:[%s339] sm:%s337] %v336
    %s341 = scalar_lea.vmem [#allocation2], 224
    %v342 = vld [vmem:[%s341] sm:%s175]
    %s343 = sshllo.u32 0, 1
    %s344 = smul.addr 1, 28
    %s345 = scalar_lea.vmem [#allocation0], %s344
    %346 = vst [vmem:[%s345] sm:%s343] %v342
    %s347 = scalar_lea.vmem [#allocation2], 232
    %v348 = vld [vmem:[%s347] sm:%s175]
    %s349 = sshllo.u32 0, 1
    %s350 = smul.addr 1, 29
    %s351 = scalar_lea.vmem [#allocation0], %s350
    %352 = vst [vmem:[%s351] sm:%s349] %v348
    %s353 = scalar_lea.vmem [#allocation2], 240
    %v354 = vld [vmem:[%s353] sm:%s175]
    %s355 = sshllo.u32 0, 1
    %s356 = smul.addr 1, 30
    %s357 = scalar_lea.vmem [#allocation0], %s356
    %358 = vst [vmem:[%s357] sm:%s355] %v354
    %s359 = scalar_lea.vmem [#allocation2], 248
    %v360 = vld [vmem:[%s359] sm:%s175]
    %s361 = sshllo.u32 0, 1
    %s362 = smul.addr 1, 31
    %s363 = scalar_lea.vmem [#allocation0], %s362
    %364 = vst [vmem:[%s363] sm:%s361] %v360
    %s365 = scalar_lea.vmem [#allocation2], 256
    %v366 = vld [vmem:[%s365] sm:%s175]
    %s367 = sshllo.u32 0, 1
    %s368 = smul.addr 1, 32
    %s369 = scalar_lea.vmem [#allocation0], %s368
    %370 = vst [vmem:[%s369] sm:%s367] %v366
    %s371 = scalar_lea.vmem [#allocation2], 264
    %v372 = vld [vmem:[%s371] sm:%s175]
    %s373 = sshllo.u32 0, 1
    %s374 = smul.addr 1, 33
    %s375 = scalar_lea.vmem [#allocation0], %s374
    %376 = vst [vmem:[%s375] sm:%s373] %v372
    %s377 = scalar_lea.vmem [#allocation2], 272
    %v378 = vld [vmem:[%s377] sm:%s175]
    %s379 = sshllo.u32 0, 1
    %s380 = smul.addr 1, 34
    %s381 = scalar_lea.vmem [#allocation0], %s380
    %382 = vst [vmem:[%s381] sm:%s379] %v378
    %s383 = scalar_lea.vmem [#allocation2], 280
    %v384 = vld [vmem:[%s383] sm:%s175]
    %s385 = sshllo.u32 0, 1
    %s386 = smul.addr 1, 35
    %s387 = scalar_lea.vmem [#allocation0], %s386
    %388 = vst [vmem:[%s387] sm:%s385] %v384
    %s389 = scalar_lea.vmem [#allocation2], 288
    %v390 = vld [vmem:[%s389] sm:%s175]
    %s391 = sshllo.u32 0, 1
    %s392 = smul.addr 1, 36
    %s393 = scalar_lea.vmem [#allocation0], %s392
    %394 = vst [vmem:[%s393] sm:%s391] %v390
    %s395 = scalar_lea.vmem [#allocation2], 296
    %v396 = vld [vmem:[%s395] sm:%s175]
    %s397 = sshllo.u32 0, 1
    %s398 = smul.addr 1, 37
    %s399 = scalar_lea.vmem [#allocation0], %s398
    %400 = vst [vmem:[%s399] sm:%s397] %v396
    %s402 = ssub.s32 608, 608
    %403 = vsyncadd [#allocation1], %s402
    %s405 = sshll.u32 [#allocation0], 4
    %s406 = int_to_ptr.vmem [resolvable:$true] %s405
    %408 = dma.vmem_to_hbm [thread:$0]  %s406, 608, %s1, [#allocation1]
    %409 = dma.done [#allocation1], 608
    %410 = vsyncpa [#allocation1], 1

// kernel: vit_lstm_forward.3
$region0: #{vit_lstm_forward.3}
  #allocation0 [shape = 'u32[]', space=smem, size = 0x4, offset = 0x4, fixed_abs, tag = 'smem constant byte address 0x4 - core index']
  #allocation1 [shape = 'u32[144,128]{1,0:T(1,128)}', space=vmem, size = 0x12000, scoped, tag = 'internal scratch']
  %s0 = inlined_call_operand.vmem [shape: f32[2,1,384], index: 0, kind: input, shape index: {}]
  %s1 = inlined_call_operand.vmem [shape: f32[1,384], index: 1, kind: input, shape index: {}]
  %s2 = inlined_call_operand.vmem [shape: f32[1,384], index: 2, kind: input, shape index: {}]
  %s3 = inlined_call_operand.vmem [shape: f32[72], index: 3, kind: input, shape index: {}]
  %s4 = inlined_call_operand.vmem [shape: f32[4], index: 4, kind: input, shape index: {}]
  %s5 = inlined_call_operand.vmem [shape: f32[2,1,384], index: 5, kind: output, shape index: {}]
  %s6 = sld [smem:[#allocation0]]
  $region45: #{vit_lstm_forward.3} parent=0
    _
  %s8 = ssub.s32 1, %s6
  %s9 = scalar_select 0, %s8, %s6
  $region1: #{vit_lstm_forward.3} parent=0
    #allocation2 [shape = 'u8[512]{0}', space=smem, size = 0x200, scoped, tag = 'input window, operand 3, single buffered']
    #allocation3 [shape = 's32[1]{0}', space=sflag, size = 0x4, scoped, tag = 'scoped memory for vit_lstm_forward.3']
    #allocation4 [shape = 'u8[512]{0}', space=smem, size = 0x200, scoped, tag = 'input window, operand 4, single buffered']
    #allocation5 [shape = 's32[1]{0}', space=sflag, size = 0x4, scoped, tag = 'scoped memory for vit_lstm_forward.3']
    %10 = vsyncpa [#allocation3], 0
    %11 = vsyncpa [#allocation5], 0
    // Predicated region
    $region2: #{vit_lstm_forward.3} parent=1 // pred_check
      _
    $region3: #{vit_lstm_forward.3} parent=1 // pred_check_branch
      %13 = sbr.rel (0) target = $region5
    $region4: #{vit_lstm_forward.3} parent=1 // pred_region
      _
    $region5: #{vit_lstm_forward.3} parent=1 // pred_fallthru
      _
    // Predicated region
    $region6: #{vit_lstm_forward.3} parent=1 // pred_check
      _
    $region7: #{vit_lstm_forward.3} parent=1 // pred_check_branch
      %15 = sbr.rel (0) target = $region9
    $region8: #{vit_lstm_forward.3} parent=1 // pred_region
      _
    $region9: #{vit_lstm_forward.3} parent=1 // pred_fallthru
      _
    // Predicated region
    $region10: #{vit_lstm_forward.3} parent=1 // pred_check
      _
    $region11: #{vit_lstm_forward.3} parent=1 // pred_check_branch
      %17 = sbr.rel (0) target = $region13
    $region12: #{vit_lstm_forward.3} parent=1 // pred_region
      _
    $region13: #{vit_lstm_forward.3} parent=1 // pred_fallthru
      _
    // Predicated region
    $region14: #{vit_lstm_forward.3} parent=1 // pred_check
      _
    $region15: #{vit_lstm_forward.3} parent=1 // pred_check_branch
      %19 = sbr.rel (0) target = $region17
    $region16: #{vit_lstm_forward.3} parent=1 // pred_region
      %s21 = ssub.s32 16, 16
      %22 = vsyncadd [#allocation3], %s21
      %s24 = sshll.u32 %s3, 4
      %s25 = int_to_ptr.vmem [resolvable:$true] %s24
      %27 = dma.vmem_to_smem %s25, 16, [#allocation2], [#allocation3]
    $region17: #{vit_lstm_forward.3} parent=1 // pred_fallthru
      _
    // Predicated region
    $region18: #{vit_lstm_forward.3} parent=1 // pred_check
      _
    $region19: #{vit_lstm_forward.3} parent=1 // pred_check_branch
      %29 = sbr.rel (0) target = $region21
    $region20: #{vit_lstm_forward.3} parent=1 // pred_region
      %s31 = ssub.s32 16, 16
      %32 = vsyncadd [#allocation5], %s31
      %s34 = sshll.u32 %s4, 4
      %s35 = int_to_ptr.vmem [resolvable:$true] %s34
      %37 = dma.vmem_to_smem %s35, 16, [#allocation4], [#allocation5]
    $region21: #{vit_lstm_forward.3} parent=1 // pred_fallthru
      _
    // Predicated region
    $region22: #{vit_lstm_forward.3} parent=1 // pred_check
      _
    $region23: #{vit_lstm_forward.3} parent=1 // pred_check_branch
      %39 = sbr.rel (0) target = $region25
    $region24: #{vit_lstm_forward.3} parent=1 // pred_region
      %40 = dma.done [#allocation3], 16
    $region25: #{vit_lstm_forward.3} parent=1 // pred_fallthru
      _
    // Predicated region
    $region26: #{vit_lstm_forward.3} parent=1 // pred_check
      _
    $region27: #{vit_lstm_forward.3} parent=1 // pred_check_branch
      %42 = sbr.rel (0) target = $region29
    $region28: #{vit_lstm_forward.3} parent=1 // pred_region
      %43 = dma.done [#allocation5], 16
    $region29: #{vit_lstm_forward.3} parent=1 // pred_fallthru
      _
    %44 = sfence
    %v45 = vlaneseq
    %v46 = vand.u32 %v45, 127
    %v47 = vadd.s32 %v46, 128
    %v48 = vadd.s32 %v46, 256
    %vm49 = vcmp.lt.s32.totalorder %v46, 0
    %v50 = vsub.s32 0, %v46
    %v51 = vsel %vm49, %v50, %v46
    %v52 = vmul.u32.u64.compose %v51, 3616814565
    %v53 = vextract.low.u32 %v52
    %v54 = vextract.high.u32 %v52
    %vm55 = vc.u32 %v53, 3616814565
    %v56 = vsel %vm55, 1, 0
    %v57 = vadd.s32 %v54, %v56
    %v58 = vshrl.u32 %v57, 4
    %v59 = vmul.u32 %v58, 19
    %v60 = vsub.s32 %v51, %v59
    %v61 = vsub.s32 0, %v60
    %v62 = vsel %vm49, %v61, %v60
    %vm63 = vcmp.lt.s32.totalorder %v47, 0
    %v64 = vsub.s32 0, %v47
    %v65 = vsel %vm63, %v64, %v47
    %v66 = vmul.u32.u64.compose %v65, 3616814565
    %v67 = vextract.low.u32 %v66
    %v68 = vextract.high.u32 %v66
    %vm69 = vc.u32 %v67, 3616814565
    %v70 = vsel %vm69, 1, 0
    %v71 = vadd.s32 %v68, %v70
    %v72 = vshrl.u32 %v71, 4
    %v73 = vmul.u32 %v72, 19
    %v74 = vsub.s32 %v65, %v73
    %v75 = vsub.s32 0, %v74
    %v76 = vsel %vm63, %v75, %v74
    %vm77 = vcmp.lt.s32.totalorder %v48, 0
    %v78 = vsub.s32 0, %v48
    %v79 = vsel %vm77, %v78, %v48
    %v80 = vmul.u32.u64.compose %v79, 3616814565
    %v81 = vextract.low.u32 %v80
    %v82 = vextract.high.u32 %v80
    %vm83 = vc.u32 %v81, 3616814565
    %v84 = vsel %vm83, 1, 0
    %v85 = vadd.s32 %v82, %v84
    %v86 = vshrl.u32 %v85, 4
    %v87 = vmul.u32 %v86, 19
    %v88 = vsub.s32 %v79, %v87
    %v89 = vsub.s32 0, %v88
    %v90 = vsel %vm77, %v89, %v88
    %vm91 = vcmp.ne.s32.totalorder %v62, 0
    %vm92 = vcmp.ne.s32.totalorder %v76, 0
    %vm93 = vcmp.ne.s32.totalorder %v90, 0
    %vm94 = vcmp.lt.s32.totalorder %v62, 0
    %vm95 = vcmp.lt.s32.totalorder %v76, 0
    %vm96 = vcmp.lt.s32.totalorder %v90, 0
    %vm97 = vmand %vm94, %vm91
    %vm98 = vmand %vm95, %vm92
    %vm99 = vmand %vm96, %vm93
    %v100 = vadd.s32 %v62, 19
    %v101 = vadd.s32 %v76, 19
    %v102 = vadd.s32 %v90, 19
    %v103 = vsel %vm97, %v100, %v62
    %v104 = vsel %vm98, %v101, %v76
    %v105 = vsel %vm99, %v102, %v90
    %vm106 = vcmp.lt.s32.totalorder %v46, 361
    %vm107 = vcmp.lt.s32.totalorder %v47, 361
    %vm108 = vcmp.lt.s32.totalorder %v48, 361
    %vm109 = vcmp.ne.s32.totalorder %v103, 0
    %vm110 = vcmp.ne.s32.totalorder %v104, 0
    %vm111 = vcmp.ne.s32.totalorder %v105, 0
    %vm112 = vcmp.ne.s32.totalorder %v103, 18
    %vm113 = vcmp.ne.s32.totalorder %v104, 18
    %vm114 = vcmp.ne.s32.totalorder %v105, 18
    %s115 = sld [smem:[#allocation2]]
    %s116 = sld [smem:[#allocation2 + $0x1]]
    %s117 = sld [smem:[#allocation2 + $0x2]]
    %s118 = sld [smem:[#allocation2 + $0x3]]
    %s119 = sld [smem:[#allocation2 + $0x4]]
    %s120 = sld [smem:[#allocation2 + $0x5]]
    %s121 = sld [smem:[#allocation2 + $0x6]]
    %s122 = sld [smem:[#allocation2 + $0x7]]
    %s123 = sld [smem:[#allocation2 + $0x8]]
    %s124 = sld [smem:[#allocation2 + $0x12]]
    %s125 = sld [smem:[#allocation2 + $0x13]]
    %s126 = sld [smem:[#allocation2 + $0x14]]
    %s127 = sld [smem:[#allocation2 + $0x15]]
    %s128 = sld [smem:[#allocation2 + $0x16]]
    %s129 = sld [smem:[#allocation2 + $0x17]]
    %s130 = sld [smem:[#allocation2 + $0x18]]
    %s131 = sld [smem:[#allocation2 + $0x19]]
    %s132 = sld [smem:[#allocation2 + $0x1a]]
    %s133 = sld [smem:[#allocation2 + $0x24]]
    %s134 = sld [smem:[#allocation2 + $0x25]]
    %s135 = sld [smem:[#allocation2 + $0x26]]
    %s136 = sld [smem:[#allocation2 + $0x27]]
    %s137 = sld [smem:[#allocation2 + $0x28]]
    %s138 = sld [smem:[#allocation2 + $0x29]]
    %s139 = sld [smem:[#allocation2 + $0x2a]]
    %s140 = sld [smem:[#allocation2 + $0x2b]]
    %s141 = sld [smem:[#allocation2 + $0x2c]]
    %s142 = sld [smem:[#allocation2 + $0x36]]
    %s143 = sld [smem:[#allocation2 + $0x37]]
    %s144 = sld [smem:[#allocation2 + $0x38]]
    %s145 = sld [smem:[#allocation2 + $0x39]]
    %s146 = sld [smem:[#allocation2 + $0x3a]]
    %s147 = sld [smem:[#allocation2 + $0x3b]]
    %s148 = sld [smem:[#allocation2 + $0x3c]]
    %s149 = sld [smem:[#allocation2 + $0x3d]]
    %s150 = sld [smem:[#allocation2 + $0x3e]]
    %s151 = sld [smem:[#allocation2 + $0x9]]
    %s152 = sld [smem:[#allocation2 + $0xa]]
    %s153 = sld [smem:[#allocation2 + $0xb]]
    %s154 = sld [smem:[#allocation2 + $0xc]]
    %s155 = sld [smem:[#allocation2 + $0xd]]
    %s156 = sld [smem:[#allocation2 + $0xe]]
    %s157 = sld [smem:[#allocation2 + $0xf]]
    %s158 = sld [smem:[#allocation2 + $0x10]]
    %s159 = sld [smem:[#allocation2 + $0x11]]
    %s160 = sld [smem:[#allocation2 + $0x1b]]
    %s161 = sld [smem:[#allocation2 + $0x1c]]
    %s162 = sld [smem:[#allocation2 + $0x1d]]
    %s163 = sld [smem:[#allocation2 + $0x1e]]
    %s164 = sld [smem:[#allocation2 + $0x1f]]
    %s165 = sld [smem:[#allocation2 + $0x20]]
    %s166 = sld [smem:[#allocation2 + $0x21]]
    %s167 = sld [smem:[#allocation2 + $0x22]]
    %s168 = sld [smem:[#allocation2 + $0x23]]
    %s169 = sld [smem:[#allocation2 + $0x2d]]
    %s170 = sld [smem:[#allocation2 + $0x2e]]
    %s171 = sld [smem:[#allocation2 + $0x2f]]
    %s172 = sld [smem:[#allocation2 + $0x30]]
    %s173 = sld [smem:[#allocation2 + $0x31]]
    %s174 = sld [smem:[#allocation2 + $0x32]]
    %s175 = sld [smem:[#allocation2 + $0x33]]
    %s176 = sld [smem:[#allocation2 + $0x34]]
    %s177 = sld [smem:[#allocation2 + $0x35]]
    %s178 = sld [smem:[#allocation2 + $0x3f]]
    %s179 = sld [smem:[#allocation2 + $0x40]]
    %s180 = sld [smem:[#allocation2 + $0x41]]
    %s181 = sld [smem:[#allocation2 + $0x42]]
    %s182 = sld [smem:[#allocation2 + $0x43]]
    %s183 = sld [smem:[#allocation2 + $0x44]]
    %s184 = sld [smem:[#allocation2 + $0x45]]
    %s185 = sld [smem:[#allocation2 + $0x46]]
    %s186 = sld [smem:[#allocation2 + $0x47]]
    %s187 = sld [smem:[#allocation4]]
    %s188 = sld [smem:[#allocation4 + $0x1]]
    %s189 = sld [smem:[#allocation4 + $0x2]]
    %s190 = sld [smem:[#allocation4 + $0x3]]
    %v191 = vld [vmem:[%s1] sm:$0x7]
    %v192 = vld [vmem:[%s2] sm:$0x7]
    %v194 = vlaneseq
    %v195 = vshrl.u32 %v194, 7
    %v196 = vsub.s32 0, %v195
    %v197 = vrot.slane %v191, %v196
    %v198 = vlaneseq
    %v199 = vshrl.u32 %v198, 7
    %v200 = vsub.s32 1, %v199
    %v201 = vrot.slane %v191, %v200
    %v202 = vlaneseq
    %v203 = vshrl.u32 %v202, 7
    %v204 = vsub.s32 2, %v203
    %v205 = vrot.slane %v191, %v204
    %v210 = vlaneseq
    %v211 = vshrl.u32 %v210, 7
    %v212 = vsub.s32 0, %v211
    %v213 = vrot.slane %v192, %v212
    %v214 = vlaneseq
    %v215 = vshrl.u32 %v214, 7
    %v216 = vsub.s32 1, %v215
    %v217 = vrot.slane %v192, %v216
    %v218 = vlaneseq
    %v219 = vshrl.u32 %v218, 7
    %v220 = vsub.s32 2, %v219
    %v221 = vrot.slane %v192, %v220
    loop: start=0, step=1, limit=2
    $region30: #{vit_lstm_forward.3} parent=1 // loop_pre_header
      _
    $region31: #{vit_lstm_forward.3} parent=1 // loop_header
      %s226 = sphi 0, %s230
      %p227 = scmp.ge.s32.totalorder %s226, 2
      %v231 = vphi %v197, %v1080
      %v232 = vphi %v201, %v1081
      %v233 = vphi %v205, %v1082
      %v234 = vphi %v213, %v1083
      %v235 = vphi %v217, %v1084
      %v236 = vphi %v221, %v1085
    $region32: #{vit_lstm_forward.3} parent=1 // loop_header_branch
      %229 = sbr.rel (%p227) target = $region36
    $region33: #{vit_lstm_forward.3} parent=1 // loop_body
      %s237 = smul.u32 %s226, 3
      %s238 = scalar_lea.vmem %s0, %s237
      %v239 = vld [vmem:[%s238] sm:$0x7]
      %v241 = vlaneseq
      %v242 = vshrl.u32 %v241, 7
      %v243 = vsub.s32 0, %v242
      %v244 = vrot.slane %v239, %v243
      %v245 = vlaneseq
      %v246 = vshrl.u32 %v245, 7
      %v247 = vsub.s32 1, %v246
      %v248 = vrot.slane %v239, %v247
      %v249 = vlaneseq
      %v250 = vshrl.u32 %v249, 7
      %v251 = vsub.s32 2, %v250
      %v252 = vrot.slane %v239, %v251
      %256 = vrot.lane.b32.xlu0 %v244, 20
      %v257 = vpop.permute.xlu0 %256
      %258 = vrot.lane.b32.xlu0 %v248, 20
      %v259 = vpop.permute.xlu0 %258
      %260 = vrot.lane.b32.xlu0 %v252, 20
      %v261 = vpop.permute.xlu0 %260
      %vm262 = vcmp.lt.s32.totalorder %v46, 20
      %v263 = vsel %vm262, %v259, %v261
      %v264 = vsel %vm262, %v257, %v259
      %v265 = vsel %vm262, %v261, %v257
      %v266 = vsel %vm109, %v265, 0.0
      %v267 = vsel %vm110, %v264, 0.0
      %v268 = vsel %vm111, %v263, 0.0
      %269 = vrot.lane.b32.xlu0 %v244, 19
      %v270 = vpop.permute.xlu0 %269
      %271 = vrot.lane.b32.xlu0 %v248, 19
      %v272 = vpop.permute.xlu0 %271
      %273 = vrot.lane.b32.xlu0 %v252, 19
      %v274 = vpop.permute.xlu0 %273
      %vm275 = vcmp.lt.s32.totalorder %v46, 19
      %v276 = vsel %vm275, %v272, %v274
      %v277 = vsel %vm275, %v270, %v272
      %v278 = vsel %vm275, %v274, %v270
      %279 = vrot.lane.b32.xlu0 %v244, 18
      %v280 = vpop.permute.xlu0 %279
      %281 = vrot.lane.b32.xlu0 %v248, 18
      %v282 = vpop.permute.xlu0 %281
      %283 = vrot.lane.b32.xlu0 %v252, 18
      %v284 = vpop.permute.xlu0 %283
      %vm285 = vcmp.lt.s32.totalorder %v46, 18
      %v286 = vsel %vm285, %v282, %v284
      %v287 = vsel %vm285, %v280, %v282
      %v288 = vsel %vm285, %v284, %v280
      %v289 = vsel %vm112, %v288, 0.0
      %v290 = vsel %vm113, %v287, 0.0
      %v291 = vsel %vm114, %v286, 0.0
      %292 = vrot.lane.b32.xlu0 %v244, 1
      %v293 = vpop.permute.xlu0 %292
      %294 = vrot.lane.b32.xlu0 %v248, 1
      %v295 = vpop.permute.xlu0 %294
      %296 = vrot.lane.b32.xlu0 %v252, 1
      %v297 = vpop.permute.xlu0 %296
      %vm298 = vcmp.lt.s32.totalorder %v46, 1
      %v299 = vsel %vm298, %v295, %v297
      %v300 = vsel %vm298, %v293, %v295
      %v301 = vsel %vm298, %v297, %v293
      %v302 = vsel %vm109, %v301, 0.0
      %v303 = vsel %vm110, %v300, 0.0
      %v304 = vsel %vm111, %v299, 0.0
      %305 = vrot.lane.b32.xlu0 %v244, 127
      %v306 = vpop.permute.xlu0 %305
      %307 = vrot.lane.b32.xlu0 %v248, 127
      %v308 = vpop.permute.xlu0 %307
      %309 = vrot.lane.b32.xlu0 %v252, 127
      %v310 = vpop.permute.xlu0 %309
      %vm311 = vcmp.lt.s32.totalorder %v46, 127
      %v312 = vsel %vm311, %v308, %v310
      %v313 = vsel %vm311, %v306, %v308
      %v314 = vsel %vm311, %v310, %v306
      %v315 = vsel %vm112, %v313, 0.0
      %v316 = vsel %vm113, %v312, 0.0
      %v317 = vsel %vm114, %v314, 0.0
      %318 = vrot.lane.b32.xlu0 %v244, 110
      %v319 = vpop.permute.xlu0 %318
      %320 = vrot.lane.b32.xlu0 %v248, 110
      %v321 = vpop.permute.xlu0 %320
      %322 = vrot.lane.b32.xlu0 %v252, 110
      %v323 = vpop.permute.xlu0 %322
      %vm324 = vcmp.lt.s32.totalorder %v46, 110
      %v325 = vsel %vm324, %v321, %v323
      %v326 = vsel %vm324, %v319, %v321
      %v327 = vsel %vm324, %v323, %v319
      %v328 = vsel %vm109, %v326, 0.0
      %v329 = vsel %vm110, %v325, 0.0
      %v330 = vsel %vm111, %v327, 0.0
      %331 = vrot.lane.b32.xlu0 %v244, 109
      %v332 = vpop.permute.xlu0 %331
      %333 = vrot.lane.b32.xlu0 %v248, 109
      %v334 = vpop.permute.xlu0 %333
      %335 = vrot.lane.b32.xlu0 %v252, 109
      %v336 = vpop.permute.xlu0 %335
      %vm337 = vcmp.lt.s32.totalorder %v46, 109
      %v338 = vsel %vm337, %v334, %v336
      %v339 = vsel %vm337, %v332, %v334
      %v340 = vsel %vm337, %v336, %v332
      %341 = vrot.lane.b32.xlu0 %v244, 108
      %v342 = vpop.permute.xlu0 %341
      %343 = vrot.lane.b32.xlu0 %v248, 108
      %v344 = vpop.permute.xlu0 %343
      %345 = vrot.lane.b32.xlu0 %v252, 108
      %v346 = vpop.permute.xlu0 %345
      %vm347 = vcmp.lt.s32.totalorder %v46, 108
      %v348 = vsel %vm347, %v344, %v346
      %v349 = vsel %vm347, %v342, %v344
      %v350 = vsel %vm347, %v346, %v342
      %v351 = vsel %vm112, %v349, 0.0
      %v352 = vsel %vm113, %v348, 0.0
      %v353 = vsel %vm114, %v350, 0.0
      %354 = vrot.lane.b32.xlu0 %v231, 20
      %v355 = vpop.permute.xlu0 %354
      %356 = vrot.lane.b32.xlu0 %v232, 20
      %v357 = vpop.permute.xlu0 %356
      %358 = vrot.lane.b32.xlu0 %v233, 20
      %v359 = vpop.permute.xlu0 %358
      %v360 = vsel %vm262, %v357, %v359
      %v361 = vsel %vm262, %v355, %v357
      %v362 = vsel %vm262, %v359, %v355
      %v363 = vsel %vm109, %v362, 0.0
      %v364 = vsel %vm110, %v361, 0.0
      %v365 = vsel %vm111, %v360, 0.0
      %366 = vrot.lane.b32.xlu0 %v231, 19
      %v367 = vpop.permute.xlu0 %366
      %368 = vrot.lane.b32.xlu0 %v232, 19
      %v369 = vpop.permute.xlu0 %368
      %370 = vrot.lane.b32.xlu0 %v233, 19
      %v371 = vpop.permute.xlu0 %370
      %v372 = vsel %vm275, %v369, %v371
      %v373 = vsel %vm275, %v367, %v369
      %v374 = vsel %vm275, %v371, %v367
      %375 = vrot.lane.b32.xlu0 %v231, 18
      %v376 = vpop.permute.xlu0 %375
      %377 = vrot.lane.b32.xlu0 %v232, 18
      %v378 = vpop.permute.xlu0 %377
      %379 = vrot.lane.b32.xlu0 %v233, 18
      %v380 = vpop.permute.xlu0 %379
      %v381 = vsel %vm285, %v378, %v380
      %v382 = vsel %vm285, %v376, %v378
      %v383 = vsel %vm285, %v380, %v376
      %v384 = vsel %vm112, %v383, 0.0
      %v385 = vsel %vm113, %v382, 0.0
      %v386 = vsel %vm114, %v381, 0.0
      %387 = vrot.lane.b32.xlu0 %v231, 1
      %v388 = vpop.permute.xlu0 %387
      %389 = vrot.lane.b32.xlu0 %v232, 1
      %v390 = vpop.permute.xlu0 %389
      %391 = vrot.lane.b32.xlu0 %v233, 1
      %v392 = vpop.permute.xlu0 %391
      %v393 = vsel %vm298, %v390, %v392
      %v394 = vsel %vm298, %v388, %v390
      %v395 = vsel %vm298, %v392, %v388
      %v396 = vsel %vm109, %v395, 0.0
      %v397 = vsel %vm110, %v394, 0.0
      %v398 = vsel %vm111, %v393, 0.0
      %399 = vrot.lane.b32.xlu0 %v231, 127
      %v400 = vpop.permute.xlu0 %399
      %401 = vrot.lane.b32.xlu0 %v232, 127
      %v402 = vpop.permute.xlu0 %401
      %403 = vrot.lane.b32.xlu0 %v233, 127
      %v404 = vpop.permute.xlu0 %403
      %v405 = vsel %vm311, %v402, %v404
      %v406 = vsel %vm311, %v400, %v402
      %v407 = vsel %vm311, %v404, %v400
      %v408 = vsel %vm112, %v406, 0.0
      %v409 = vsel %vm113, %v405, 0.0
      %v410 = vsel %vm114, %v407, 0.0
      %411 = vrot.lane.b32.xlu0 %v231, 110
      %v412 = vpop.permute.xlu0 %411
      %413 = vrot.lane.b32.xlu0 %v232, 110
      %v414 = vpop.permute.xlu0 %413
      %415 = vrot.lane.b32.xlu0 %v233, 110
      %v416 = vpop.permute.xlu0 %415
      %v417 = vsel %vm324, %v414, %v416
      %v418 = vsel %vm324, %v412, %v414
      %v419 = vsel %vm324, %v416, %v412
      %v420 = vsel %vm109, %v418, 0.0
      %v421 = vsel %vm110, %v417, 0.0
      %v422 = vsel %vm111, %v419, 0.0
      %423 = vrot.lane.b32.xlu0 %v231, 109
      %v424 = vpop.permute.xlu0 %423
      %425 = vrot.lane.b32.xlu0 %v232, 109
      %v426 = vpop.permute.xlu0 %425
      %427 = vrot.lane.b32.xlu0 %v233, 109
      %v428 = vpop.permute.xlu0 %427
      %v429 = vsel %vm337, %v426, %v428
      %v430 = vsel %vm337, %v424, %v426
      %v431 = vsel %vm337, %v428, %v424
      %432 = vrot.lane.b32.xlu0 %v231, 108
      %v433 = vpop.permute.xlu0 %432
      %434 = vrot.lane.b32.xlu0 %v232, 108
      %v435 = vpop.permute.xlu0 %434
      %436 = vrot.lane.b32.xlu0 %v233, 108
      %v437 = vpop.permute.xlu0 %436
      %v438 = vsel %vm347, %v435, %v437
      %v439 = vsel %vm347, %v433, %v435
      %v440 = vsel %vm347, %v437, %v433
      %v441 = vsel %vm112, %v439, 0.0
      %v442 = vsel %vm113, %v438, 0.0
      %v443 = vsel %vm114, %v440, 0.0
      %v444 = vstv %s187
      %v445 = vstv %s115
      %v446 = vmul.f32 %v445, %v266
      %v447 = vmul.f32 %v445, %v267
      %v448 = vmul.f32 %v445, %v268
      %v449 = vadd.f32 %v444, %v446
      %v450 = vadd.f32 %v444, %v447
      %v451 = vadd.f32 %v444, %v448
      %v452 = vstv %s151
      %v453 = vmul.f32 %v452, %v363
      %v454 = vmul.f32 %v452, %v364
      %v455 = vmul.f32 %v452, %v365
      %v456 = vadd.f32 %v449, %v453
      %v457 = vadd.f32 %v450, %v454
      %v458 = vadd.f32 %v451, %v455
      %v459 = vstv %s116
      %v460 = vmul.f32 %v459, %v278
      %v461 = vmul.f32 %v459, %v277
      %v462 = vmul.f32 %v459, %v276
      %v463 = vadd.f32 %v456, %v460
      %v464 = vadd.f32 %v457, %v461
      %v465 = vadd.f32 %v458, %v462
      %v466 = vstv %s152
      %v467 = vmul.f32 %v466, %v374
      %v468 = vmul.f32 %v466, %v373
      %v469 = vmul.f32 %v466, %v372
      %v470 = vadd.f32 %v463, %v467
      %v471 = vadd.f32 %v464, %v468
      %v472 = vadd.f32 %v465, %v469
      %v473 = vstv %s117
      %v474 = vmul.f32 %v473, %v289
      %v475 = vmul.f32 %v473, %v290
      %v476 = vmul.f32 %v473, %v291
      %v477 = vadd.f32 %v470, %v474
      %v478 = vadd.f32 %v471, %v475
      %v479 = vadd.f32 %v472, %v476
      %v480 = vstv %s153
      %v481 = vmul.f32 %v480, %v384
      %v482 = vmul.f32 %v480, %v385
      %v483 = vmul.f32 %v480, %v386
      %v484 = vadd.f32 %v477, %v481
      %v485 = vadd.f32 %v478, %v482
      %v486 = vadd.f32 %v479, %v483
      %v487 = vstv %s118
      %v488 = vmul.f32 %v487, %v302
      %v489 = vmul.f32 %v487, %v303
      %v490 = vmul.f32 %v487, %v304
      %v491 = vadd.f32 %v484, %v488
      %v492 = vadd.f32 %v485, %v489
      %v493 = vadd.f32 %v486, %v490
      %v494 = vstv %s154
      %v495 = vmul.f32 %v494, %v396
      %v496 = vmul.f32 %v494, %v397
      %v497 = vmul.f32 %v494, %v398
      %v498 = vadd.f32 %v491, %v495
      %v499 = vadd.f32 %v492, %v496
      %v500 = vadd.f32 %v493, %v497
      %v501 = vstv %s119
      %v502 = vmul.f32 %v501, %v239
      %v504 = vlaneseq
      %v505 = vshrl.u32 %v504, 7
      %v506 = vsub.s32 0, %v505
      %v507 = vrot.slane %v502, %v506
      %v508 = vlaneseq
      %v509 = vshrl.u32 %v508, 7
      %v510 = vsub.s32 1, %v509
      %v511 = vrot.slane %v502, %v510
      %v512 = vlaneseq
      %v513 = vshrl.u32 %v512, 7
      %v514 = vsub.s32 2, %v513
      %v515 = vrot.slane %v502, %v514
      %v519 = vadd.f32 %v498, %v507
      %v520 = vadd.f32 %v499, %v511
      %v521 = vadd.f32 %v500, %v515
      %v522 = vstv %s155
      %v523 = vmul.f32 %v522, %v231
      %v524 = vmul.f32 %v522, %v232
      %v525 = vmul.f32 %v522, %v233
      %v526 = vadd.f32 %v519, %v523
      %v527 = vadd.f32 %v520, %v524
      %v528 = vadd.f32 %v521, %v525
      %v529 = vstv %s120
      %v530 = vmul.f32 %v529, %v315
      %v531 = vmul.f32 %v529, %v316
      %v532 = vmul.f32 %v529, %v317
      %v533 = vadd.f32 %v526, %v530
      %v534 = vadd.f32 %v527, %v531
      %v535 = vadd.f32 %v528, %v532
      %v536 = vstv %s156
      %v537 = vmul.f32 %v536, %v408
      %v538 = vmul.f32 %v536, %v409
      %v539 = vmul.f32 %v536, %v410
      %v540 = vadd.f32 %v533, %v537
      %v541 = vadd.f32 %v534, %v538
      %v542 = vadd.f32 %v535, %v539
      %v543 = vstv %s121
      %v544 = vmul.f32 %v543, %v328
      %v545 = vmul.f32 %v543, %v329
      %v546 = vmul.f32 %v543, %v330
      %v547 = vadd.f32 %v540, %v544
      %v548 = vadd.f32 %v541, %v545
      %v549 = vadd.f32 %v542, %v546
      %v550 = vstv %s157
      %v551 = vmul.f32 %v550, %v420
      %v552 = vmul.f32 %v550, %v421
      %v553 = vmul.f32 %v550, %v422
      %v554 = vadd.f32 %v547, %v551
      %v555 = vadd.f32 %v548, %v552
      %v556 = vadd.f32 %v549, %v553
      %v557 = vstv %s122
      %v558 = vmul.f32 %v557, %v339
      %v559 = vmul.f32 %v557, %v338
      %v560 = vmul.f32 %v557, %v340
      %v561 = vadd.f32 %v554, %v558
      %v562 = vadd.f32 %v555, %v559
      %v563 = vadd.f32 %v556, %v560
      %v564 = vstv %s158
      %v565 = vmul.f32 %v564, %v430
      %v566 = vmul.f32 %v564, %v429
      %v567 = vmul.f32 %v564, %v431
      %v568 = vadd.f32 %v561, %v565
      %v569 = vadd.f32 %v562, %v566
      %v570 = vadd.f32 %v563, %v567
      %v571 = vstv %s123
      %v572 = vmul.f32 %v571, %v351
      %v573 = vmul.f32 %v571, %v352
      %v574 = vmul.f32 %v571, %v353
      %v575 = vadd.f32 %v568, %v572
      %v576 = vadd.f32 %v569, %v573
      %v577 = vadd.f32 %v570, %v574
      %v578 = vstv %s159
      %v579 = vmul.f32 %v578, %v441
      %v580 = vmul.f32 %v578, %v442
      %v581 = vmul.f32 %v578, %v443
      %v582 = vadd.f32 %v575, %v579
      %v583 = vadd.f32 %v576, %v580
      %v584 = vadd.f32 %v577, %v581
      %v585 = vstv %s188
      %v586 = vstv %s124
      %v587 = vmul.f32 %v586, %v266
      %v588 = vmul.f32 %v586, %v267
      %v589 = vmul.f32 %v586, %v268
      %v590 = vadd.f32 %v585, %v587
      %v591 = vadd.f32 %v585, %v588
      %v592 = vadd.f32 %v585, %v589
      %v593 = vstv %s160
      %v594 = vmul.f32 %v593, %v363
      %v595 = vmul.f32 %v593, %v364
      %v596 = vmul.f32 %v593, %v365
      %v597 = vadd.f32 %v590, %v594
      %v598 = vadd.f32 %v591, %v595
      %v599 = vadd.f32 %v592, %v596
      %v600 = vstv %s125
      %v601 = vmul.f32 %v600, %v278
      %v602 = vmul.f32 %v600, %v277
      %v603 = vmul.f32 %v600, %v276
      %v604 = vadd.f32 %v597, %v601
      %v605 = vadd.f32 %v598, %v602
      %v606 = vadd.f32 %v599, %v603
      %v607 = vstv %s161
      %v608 = vmul.f32 %v607, %v374
      %v609 = vmul.f32 %v607, %v373
      %v610 = vmul.f32 %v607, %v372
      %v611 = vadd.f32 %v604, %v608
      %v612 = vadd.f32 %v605, %v609
      %v613 = vadd.f32 %v606, %v610
      %v614 = vstv %s126
      %v615 = vmul.f32 %v614, %v289
      %v616 = vmul.f32 %v614, %v290
      %v617 = vmul.f32 %v614, %v291
      %v618 = vadd.f32 %v611, %v615
      %v619 = vadd.f32 %v612, %v616
      %v620 = vadd.f32 %v613, %v617
      %v621 = vstv %s162
      %v622 = vmul.f32 %v621, %v384
      %v623 = vmul.f32 %v621, %v385
      %v624 = vmul.f32 %v621, %v386
      %v625 = vadd.f32 %v618, %v622
      %v626 = vadd.f32 %v619, %v623
      %v627 = vadd.f32 %v620, %v624
      %v628 = vstv %s127
      %v629 = vmul.f32 %v628, %v302
      %v630 = vmul.f32 %v628, %v303
      %v631 = vmul.f32 %v628, %v304
      %v632 = vadd.f32 %v625, %v629
      %v633 = vadd.f32 %v626, %v630
      %v634 = vadd.f32 %v627, %v631
      %v635 = vstv %s163
      %v636 = vmul.f32 %v635, %v396
      %v637 = vmul.f32 %v635, %v397
      %v638 = vmul.f32 %v635, %v398
      %v639 = vadd.f32 %v632, %v636
      %v640 = vadd.f32 %v633, %v637
      %v641 = vadd.f32 %v634, %v638
      %v642 = vstv %s128
      %v643 = vmul.f32 %v642, %v239
      %v645 = vlaneseq
      %v646 = vshrl.u32 %v645, 7
      %v647 = vsub.s32 0, %v646
      %v648 = vrot.slane %v643, %v647
      %v649 = vlaneseq
      %v650 = vshrl.u32 %v649, 7
      %v651 = vsub.s32 1, %v650
      %v652 = vrot.slane %v643, %v651
      %v653 = vlaneseq
      %v654 = vshrl.u32 %v653, 7
      %v655 = vsub.s32 2, %v654
      %v656 = vrot.slane %v643, %v655
      %v660 = vadd.f32 %v639, %v648
      %v661 = vadd.f32 %v640, %v652
      %v662 = vadd.f32 %v641, %v656
      %v663 = vstv %s164
      %v664 = vmul.f32 %v663, %v231
      %v665 = vmul.f32 %v663, %v232
      %v666 = vmul.f32 %v663, %v233
      %v667 = vadd.f32 %v660, %v664
      %v668 = vadd.f32 %v661, %v665
      %v669 = vadd.f32 %v662, %v666
      %v670 = vstv %s129
      %v671 = vmul.f32 %v670, %v315
      %v672 = vmul.f32 %v670, %v316
      %v673 = vmul.f32 %v670, %v317
      %v674 = vadd.f32 %v667, %v671
      %v675 = vadd.f32 %v668, %v672
      %v676 = vadd.f32 %v669, %v673
      %v677 = vstv %s165
      %v678 = vmul.f32 %v677, %v408
      %v679 = vmul.f32 %v677, %v409
      %v680 = vmul.f32 %v677, %v410
      %v681 = vadd.f32 %v674, %v678
      %v682 = vadd.f32 %v675, %v679
      %v683 = vadd.f32 %v676, %v680
      %v684 = vstv %s130
      %v685 = vmul.f32 %v684, %v328
      %v686 = vmul.f32 %v684, %v329
      %v687 = vmul.f32 %v684, %v330
      %v688 = vadd.f32 %v681, %v685
      %v689 = vadd.f32 %v682, %v686
      %v690 = vadd.f32 %v683, %v687
      %v691 = vstv %s166
      %v692 = vmul.f32 %v691, %v420
      %v693 = vmul.f32 %v691, %v421
      %v694 = vmul.f32 %v691, %v422
      %v695 = vadd.f32 %v688, %v692
      %v696 = vadd.f32 %v689, %v693
      %v697 = vadd.f32 %v690, %v694
      %v698 = vstv %s131
      %v699 = vmul.f32 %v698, %v339
      %v700 = vmul.f32 %v698, %v338
      %v701 = vmul.f32 %v698, %v340
      %v702 = vadd.f32 %v695, %v699
      %v703 = vadd.f32 %v696, %v700
      %v704 = vadd.f32 %v697, %v701
      %v705 = vstv %s167
      %v706 = vmul.f32 %v705, %v430
      %v707 = vmul.f32 %v705, %v429
      %v708 = vmul.f32 %v705, %v431
      %v709 = vadd.f32 %v702, %v706
      %v710 = vadd.f32 %v703, %v707
      %v711 = vadd.f32 %v704, %v708
      %v712 = vstv %s132
      %v713 = vmul.f32 %v712, %v351
      %v714 = vmul.f32 %v712, %v352
      %v715 = vmul.f32 %v712, %v353
      %v716 = vadd.f32 %v709, %v713
      %v717 = vadd.f32 %v710, %v714
      %v718 = vadd.f32 %v711, %v715
      %v719 = vstv %s168
      %v720 = vmul.f32 %v719, %v441
      %v721 = vmul.f32 %v719, %v442
      %v722 = vmul.f32 %v719, %v443
      %v723 = vadd.f32 %v716, %v720
      %v724 = vadd.f32 %v717, %v721
      %v725 = vadd.f32 %v718, %v722
      %v726 = vstv %s189
      %v727 = vstv %s133
      %v728 = vmul.f32 %v727, %v266
      %v729 = vmul.f32 %v727, %v267
      %v730 = vmul.f32 %v727, %v268
      %v731 = vadd.f32 %v726, %v728
      %v732 = vadd.f32 %v726, %v729
      %v733 = vadd.f32 %v726, %v730
      %v734 = vstv %s169
      %v735 = vmul.f32 %v734, %v363
      %v736 = vmul.f32 %v734, %v364
      %v737 = vmul.f32 %v734, %v365
      %v738 = vadd.f32 %v731, %v735
      %v739 = vadd.f32 %v732, %v736
      %v740 = vadd.f32 %v733, %v737
      %v741 = vstv %s134
      %v742 = vmul.f32 %v741, %v278
      %v743 = vmul.f32 %v741, %v277
      %v744 = vmul.f32 %v741, %v276
      %v745 = vadd.f32 %v738, %v742
      %v746 = vadd.f32 %v739, %v743
      %v747 = vadd.f32 %v740, %v744
      %v748 = vstv %s170
      %v749 = vmul.f32 %v748, %v374
      %v750 = vmul.f32 %v748, %v373
      %v751 = vmul.f32 %v748, %v372
      %v752 = vadd.f32 %v745, %v749
      %v753 = vadd.f32 %v746, %v750
      %v754 = vadd.f32 %v747, %v751
      %v755 = vstv %s135
      %v756 = vmul.f32 %v755, %v289
      %v757 = vmul.f32 %v755, %v290
      %v758 = vmul.f32 %v755, %v291
      %v759 = vadd.f32 %v752, %v756
      %v760 = vadd.f32 %v753, %v757
      %v761 = vadd.f32 %v754, %v758
      %v762 = vstv %s171
      %v763 = vmul.f32 %v762, %v384
      %v764 = vmul.f32 %v762, %v385
      %v765 = vmul.f32 %v762, %v386
      %v766 = vadd.f32 %v759, %v763
      %v767 = vadd.f32 %v760, %v764
      %v768 = vadd.f32 %v761, %v765
      %v769 = vstv %s136
      %v770 = vmul.f32 %v769, %v302
      %v771 = vmul.f32 %v769, %v303
      %v772 = vmul.f32 %v769, %v304
      %v773 = vadd.f32 %v766, %v770
      %v774 = vadd.f32 %v767, %v771
      %v775 = vadd.f32 %v768, %v772
      %v776 = vstv %s172
      %v777 = vmul.f32 %v776, %v396
      %v778 = vmul.f32 %v776, %v397
      %v779 = vmul.f32 %v776, %v398
      %v780 = vadd.f32 %v773, %v777
      %v781 = vadd.f32 %v774, %v778
      %v782 = vadd.f32 %v775, %v779
      %v783 = vstv %s137
      %v784 = vmul.f32 %v783, %v239
      %v786 = vlaneseq
      %v787 = vshrl.u32 %v786, 7
      %v788 = vsub.s32 0, %v787
      %v789 = vrot.slane %v784, %v788
      %v790 = vlaneseq
      %v791 = vshrl.u32 %v790, 7
      %v792 = vsub.s32 1, %v791
      %v793 = vrot.slane %v784, %v792
      %v794 = vlaneseq
      %v795 = vshrl.u32 %v794, 7
      %v796 = vsub.s32 2, %v795
      %v797 = vrot.slane %v784, %v796
      %v801 = vadd.f32 %v780, %v789
      %v802 = vadd.f32 %v781, %v793
      %v803 = vadd.f32 %v782, %v797
      %v804 = vstv %s173
      %v805 = vmul.f32 %v804, %v231
      %v806 = vmul.f32 %v804, %v232
      %v807 = vmul.f32 %v804, %v233
      %v808 = vadd.f32 %v801, %v805
      %v809 = vadd.f32 %v802, %v806
      %v810 = vadd.f32 %v803, %v807
      %v811 = vstv %s138
      %v812 = vmul.f32 %v811, %v315
      %v813 = vmul.f32 %v811, %v316
      %v814 = vmul.f32 %v811, %v317
      %v815 = vadd.f32 %v808, %v812
      %v816 = vadd.f32 %v809, %v813
      %v817 = vadd.f32 %v810, %v814
      %v818 = vstv %s174
      %v819 = vmul.f32 %v818, %v408
      %v820 = vmul.f32 %v818, %v409
      %v821 = vmul.f32 %v818, %v410
      %v822 = vadd.f32 %v815, %v819
      %v823 = vadd.f32 %v816, %v820
      %v824 = vadd.f32 %v817, %v821
      %v825 = vstv %s139
      %v826 = vmul.f32 %v825, %v328
      %v827 = vmul.f32 %v825, %v329
      %v828 = vmul.f32 %v825, %v330
      %v829 = vadd.f32 %v822, %v826
      %v830 = vadd.f32 %v823, %v827
      %v831 = vadd.f32 %v824, %v828
      %v832 = vstv %s175
      %v833 = vmul.f32 %v832, %v420
      %v834 = vmul.f32 %v832, %v421
      %v835 = vmul.f32 %v832, %v422
      %v836 = vadd.f32 %v829, %v833
      %v837 = vadd.f32 %v830, %v834
      %v838 = vadd.f32 %v831, %v835
      %v839 = vstv %s140
      %v840 = vmul.f32 %v839, %v339
      %v841 = vmul.f32 %v839, %v338
      %v842 = vmul.f32 %v839, %v340
      %v843 = vadd.f32 %v836, %v840
      %v844 = vadd.f32 %v837, %v841
      %v845 = vadd.f32 %v838, %v842
      %v846 = vstv %s176
      %v847 = vmul.f32 %v846, %v430
      %v848 = vmul.f32 %v846, %v429
      %v849 = vmul.f32 %v846, %v431
      %v850 = vadd.f32 %v843, %v847
      %v851 = vadd.f32 %v844, %v848
      %v852 = vadd.f32 %v845, %v849
      %v853 = vstv %s141
      %v854 = vmul.f32 %v853, %v351
      %v855 = vmul.f32 %v853, %v352
      %v856 = vmul.f32 %v853, %v353
      %v857 = vadd.f32 %v850, %v854
      %v858 = vadd.f32 %v851, %v855
      %v859 = vadd.f32 %v852, %v856
      %v860 = vstv %s177
      %v861 = vmul.f32 %v860, %v441
      %v862 = vmul.f32 %v860, %v442
      %v863 = vmul.f32 %v860, %v443
      %v864 = vadd.f32 %v857, %v861
      %v865 = vadd.f32 %v858, %v862
      %v866 = vadd.f32 %v859, %v863
      %v867 = vstv %s190
      %v868 = vstv %s142
      %v869 = vmul.f32 %v868, %v266
      %v870 = vmul.f32 %v868, %v267
      %v871 = vmul.f32 %v868, %v268
      %v872 = vadd.f32 %v867, %v869
      %v873 = vadd.f32 %v867, %v870
      %v874 = vadd.f32 %v867, %v871
      %v875 = vstv %s178
      %v876 = vmul.f32 %v875, %v363
      %v877 = vmul.f32 %v875, %v364
      %v878 = vmul.f32 %v875, %v365
      %v879 = vadd.f32 %v872, %v876
      %v880 = vadd.f32 %v873, %v877
      %v881 = vadd.f32 %v874, %v878
      %v882 = vstv %s143
      %v883 = vmul.f32 %v882, %v278
      %v884 = vmul.f32 %v882, %v277
      %v885 = vmul.f32 %v882, %v276
      %v886 = vadd.f32 %v879, %v883
      %v887 = vadd.f32 %v880, %v884
      %v888 = vadd.f32 %v881, %v885
      %v889 = vstv %s179
      %v890 = vmul.f32 %v889, %v374
      %v891 = vmul.f32 %v889, %v373
      %v892 = vmul.f32 %v889, %v372
      %v893 = vadd.f32 %v886, %v890
      %v894 = vadd.f32 %v887, %v891
      %v895 = vadd.f32 %v888, %v892
      %v896 = vstv %s144
      %v897 = vmul.f32 %v896, %v289
      %v898 = vmul.f32 %v896, %v290
      %v899 = vmul.f32 %v896, %v291
      %v900 = vadd.f32 %v893, %v897
      %v901 = vadd.f32 %v894, %v898
      %v902 = vadd.f32 %v895, %v899
      %v903 = vstv %s180
      %v904 = vmul.f32 %v903, %v384
      %v905 = vmul.f32 %v903, %v385
      %v906 = vmul.f32 %v903, %v386
      %v907 = vadd.f32 %v900, %v904
      %v908 = vadd.f32 %v901, %v905
      %v909 = vadd.f32 %v902, %v906
      %v910 = vstv %s145
      %v911 = vmul.f32 %v910, %v302
      %v912 = vmul.f32 %v910, %v303
      %v913 = vmul.f32 %v910, %v304
      %v914 = vadd.f32 %v907, %v911
      %v915 = vadd.f32 %v908, %v912
      %v916 = vadd.f32 %v909, %v913
      %v917 = vstv %s181
      %v918 = vmul.f32 %v917, %v396
      %v919 = vmul.f32 %v917, %v397
      %v920 = vmul.f32 %v917, %v398
      %v921 = vadd.f32 %v914, %v918
      %v922 = vadd.f32 %v915, %v919
      %v923 = vadd.f32 %v916, %v920
      %v924 = vstv %s146
      %v925 = vmul.f32 %v924, %v239
      %v927 = vlaneseq
      %v928 = vshrl.u32 %v927, 7
      %v929 = vsub.s32 0, %v928
      %v930 = vrot.slane %v925, %v929
      %v931 = vlaneseq
      %v932 = vshrl.u32 %v931, 7
      %v933 = vsub.s32 1, %v932
      %v934 = vrot.slane %v925, %v933
      %v935 = vlaneseq
      %v936 = vshrl.u32 %v935, 7
      %v937 = vsub.s32 2, %v936
      %v938 = vrot.slane %v925, %v937
      %v942 = vadd.f32 %v921, %v930
      %v943 = vadd.f32 %v922, %v934
      %v944 = vadd.f32 %v923, %v938
      %v945 = vstv %s182
      %v946 = vmul.f32 %v945, %v231
      %v947 = vmul.f32 %v945, %v232
      %v948 = vmul.f32 %v945, %v233
      %v949 = vadd.f32 %v942, %v946
      %v950 = vadd.f32 %v943, %v947
      %v951 = vadd.f32 %v944, %v948
      %v952 = vstv %s147
      %v953 = vmul.f32 %v952, %v315
      %v954 = vmul.f32 %v952, %v316
      %v955 = vmul.f32 %v952, %v317
      %v956 = vadd.f32 %v949, %v953
      %v957 = vadd.f32 %v950, %v954
      %v958 = vadd.f32 %v951, %v955
      %v959 = vstv %s183
      %v960 = vmul.f32 %v959, %v408
      %v961 = vmul.f32 %v959, %v409
      %v962 = vmul.f32 %v959, %v410
      %v963 = vadd.f32 %v956, %v960
      %v964 = vadd.f32 %v957, %v961
      %v965 = vadd.f32 %v958, %v962
      %v966 = vstv %s148
      %v967 = vmul.f32 %v966, %v328
      %v968 = vmul.f32 %v966, %v329
      %v969 = vmul.f32 %v966, %v330
      %v970 = vadd.f32 %v963, %v967
      %v971 = vadd.f32 %v964, %v968
      %v972 = vadd.f32 %v965, %v969
      %v973 = vstv %s184
      %v974 = vmul.f32 %v973, %v420
      %v975 = vmul.f32 %v973, %v421
      %v976 = vmul.f32 %v973, %v422
      %v977 = vadd.f32 %v970, %v974
      %v978 = vadd.f32 %v971, %v975
      %v979 = vadd.f32 %v972, %v976
      %v980 = vstv %s149
      %v981 = vmul.f32 %v980, %v339
      %v982 = vmul.f32 %v980, %v338
      %v983 = vmul.f32 %v980, %v340
      %v984 = vadd.f32 %v977, %v981
      %v985 = vadd.f32 %v978, %v982
      %v986 = vadd.f32 %v979, %v983
      %v987 = vstv %s185
      %v988 = vmul.f32 %v987, %v430
      %v989 = vmul.f32 %v987, %v429
      %v990 = vmul.f32 %v987, %v431
      %v991 = vadd.f32 %v984, %v988
      %v992 = vadd.f32 %v985, %v989
      %v993 = vadd.f32 %v986, %v990
      %v994 = vstv %s150
      %v995 = vmul.f32 %v994, %v351
      %v996 = vmul.f32 %v994, %v352
      %v997 = vmul.f32 %v994, %v353
      %v998 = vadd.f32 %v991, %v995
      %v999 = vadd.f32 %v992, %v996
      %v1000 = vadd.f32 %v993, %v997
      %v1001 = vstv %s186
      %v1002 = vmul.f32 %v1001, %v441
      %v1003 = vmul.f32 %v1001, %v442
      %v1004 = vmul.f32 %v1001, %v443
      %v1005 = vadd.f32 %v998, %v1002
      %v1006 = vadd.f32 %v999, %v1003
      %v1007 = vadd.f32 %v1000, %v1004
      %v1008 = vxor.u32 %v582, 2147483648
      %v1009 = vxor.u32 %v583, 2147483648
      %v1010 = vxor.u32 %v584, 2147483648
      %v1011 = vmul.f32 %v1008, 1.442695
      %v1012 = vpow.pop %v1011
      %v1013 = vmul.f32 %v1009, 1.442695
      %v1014 = vpow.pop %v1013
      %v1015 = vmul.f32 %v1010, 1.442695
      %v1016 = vpow.pop %v1015
      %v1017 = vadd.f32 %v1012, 1.0
      %v1018 = vadd.f32 %v1014, 1.0
      %v1019 = vadd.f32 %v1016, 1.0
      %v1020 = vrcp.pop %v1017
      %v1021 = vmul.f32 1.0, %v1020
      %v1022 = vrcp.pop %v1018
      %v1023 = vmul.f32 1.0, %v1022
      %v1024 = vrcp.pop %v1019
      %v1025 = vmul.f32 1.0, %v1024
      %v1026 = vxor.u32 %v723, 2147483648
      %v1027 = vxor.u32 %v724, 2147483648
      %v1028 = vxor.u32 %v725, 2147483648
      %v1029 = vmul.f32 %v1026, 1.442695
      %v1030 = vpow.pop %v1029
      %v1031 = vmul.f32 %v1027, 1.442695
      %v1032 = vpow.pop %v1031
      %v1033 = vmul.f32 %v1028, 1.442695
      %v1034 = vpow.pop %v1033
      %v1035 = vadd.f32 %v1030, 1.0
      %v1036 = vadd.f32 %v1032, 1.0
      %v1037 = vadd.f32 %v1034, 1.0
      %v1038 = vrcp.pop %v1035
      %v1039 = vmul.f32 1.0, %v1038
      %v1040 = vrcp.pop %v1036
      %v1041 = vmul.f32 1.0, %v1040
      %v1042 = vrcp.pop %v1037
      %v1043 = vmul.f32 1.0, %v1042
      %v1044 = vxor.u32 %v864, 2147483648
      %v1045 = vxor.u32 %v865, 2147483648
      %v1046 = vxor.u32 %v866, 2147483648
      %v1047 = vmul.f32 %v1044, 1.442695
      %v1048 = vpow.pop %v1047
      %v1049 = vmul.f32 %v1045, 1.442695
      %v1050 = vpow.pop %v1049
      %v1051 = vmul.f32 %v1046, 1.442695
      %v1052 = vpow.pop %v1051
      %v1053 = vadd.f32 %v1048, 1.0
      %v1054 = vadd.f32 %v1050, 1.0
      %v1055 = vadd.f32 %v1052, 1.0
      %v1056 = vrcp.pop %v1053
      %v1057 = vmul.f32 1.0, %v1056
      %v1058 = vrcp.pop %v1054
      %v1059 = vmul.f32 1.0, %v1058
      %v1060 = vrcp.pop %v1055
      %v1061 = vmul.f32 1.0, %v1060
      %v1062 = vtanh.pop %v1005
      %v1063 = vtanh.pop %v1006
      %v1064 = vtanh.pop %v1007
      %v1065 = vmul.f32 %v1039, %v234
      %v1066 = vmul.f32 %v1041, %v235
      %v1067 = vmul.f32 %v1043, %v236
      %v1068 = vmul.f32 %v1021, %v1062
      %v1069 = vmul.f32 %v1023, %v1063
      %v1070 = vmul.f32 %v1025, %v1064
      %v1071 = vadd.f32 %v1065, %v1068
      %v1072 = vadd.f32 %v1066, %v1069
      %v1073 = vadd.f32 %v1067, %v1070
      %v1074 = vtanh.pop %v1071
      %v1075 = vtanh.pop %v1072
      %v1076 = vtanh.pop %v1073
      %v1077 = vmul.f32 %v1057, %v1074
      %v1078 = vmul.f32 %v1059, %v1075
      %v1079 = vmul.f32 %v1061, %v1076
      %v1080 = vsel %vm106, %v1077, 0.0
      %v1081 = vsel %vm107, %v1078, 0.0
      %v1082 = vsel %vm108, %v1079, 0.0
      %v1083 = vsel %vm106, %v1071, 0.0
      %v1084 = vsel %vm107, %v1072, 0.0
      %v1085 = vsel %vm108, %v1073, 0.0
      %v1089 = vcombine.low %v1080, %v1081
      %v1091 = vunpack.c.l.s4 1966171168
      %v1092 = vunpack.c.0.s8 %v1091
      %v1093 = vlaneseq
      %v1094 = vshrl.u32 %v1093, 7
      %v1095 = vsub.s32 %v1092, %v1094
      %v1096 = vrot.slane %v1089, %v1095
      %v1098 = vunpack.c.l.s4 1966171168
      %v1099 = vunpack.c.0.s8 %v1098
      %v1100 = vlaneseq
      %v1101 = vshrl.u32 %v1100, 7
      %v1102 = vsub.s32 %v1099, %v1101
      %v1103 = vrot.slane %v1082, %v1102
      %v1104 = vcombine.low %v1096, %v1103
      %v1106 = vunpack.c.l.s4 1966171168
      %v1107 = vunpack.c.0.s8 %v1106
      %v1108 = vlaneseq
      %v1109 = vshrl.u32 %v1108, 7
      %v1110 = vsub.s32 %v1107, %v1109
      %v1111 = vrot.slane %v1104, %v1110
      %s1113 = scalar_lea.vmem %s5, %s237
      %v1114 = vlaneseq
      %vm1115 = vcmp.ge.s32.totalorder %v1114, 0
      %vm1116 = vcmp.lt.s32.totalorder %v1114, 384
      %vm1117 = vmand %vm1115, %vm1116
      %1118 = vst.msk [vmem:[%s1113] sm:$0x7] %vm1117, %v1111
    $region34: #{vit_lstm_forward.3} parent=1 // loop_footer
      %s230 = sadd.s32 1, %s226
    $region35: #{vit_lstm_forward.3} parent=1 // loop_footer_branch
      %225 = sbr.rel target = $region31
    $region36: #{vit_lstm_forward.3} parent=1 // loop_exit
      _
    // Predicated region
    $region37: #{vit_lstm_forward.3} parent=1 // pred_check
      _
    $region38: #{vit_lstm_forward.3} parent=1 // pred_check_branch
      %1120 = sbr.rel (0) target = $region40
    $region39: #{vit_lstm_forward.3} parent=1 // pred_region
      _
    $region40: #{vit_lstm_forward.3} parent=1 // pred_fallthru
      _
    // Predicated region
    $region41: #{vit_lstm_forward.3} parent=1 // pred_check
      _
    $region42: #{vit_lstm_forward.3} parent=1 // pred_check_branch
      %1122 = sbr.rel (0) target = $region44
    $region43: #{vit_lstm_forward.3} parent=1 // pred_region
      _
    $region44: #{vit_lstm_forward.3} parent=1 // pred_fallthru
      _
    %1123 = vsyncpa [#allocation3], 1
    %1124 = vsyncpa [#allocation5], 1

// kernel: vit_lstm_forward.2
$region0: #{vit_lstm_forward.2}
  #allocation0 [shape = 'u32[]', space=smem, size = 0x4, offset = 0x4, fixed_abs, tag = 'smem constant byte address 0x4 - core index']
  #allocation1 [shape = 'u32[144,128]{1,0:T(1,128)}', space=vmem, size = 0x12000, scoped, tag = 'internal scratch']
  %s0 = inlined_call_operand.vmem [shape: bf16[32,512], index: 0, kind: input, shape index: {}]
  %s1 = inlined_call_operand.vmem [shape: f32[24,384], index: 1, kind: input, shape index: {}]
  %s2 = inlined_call_operand.vmem [shape: bf16[512,384], index: 2, kind: input, shape index: {}]
  %s3 = inlined_call_operand.vmem [shape: f32[1,384], index: 3, kind: input, shape index: {}]
  %s4 = inlined_call_operand.vmem [shape: f32[2,1,384], index: 4, kind: input, shape index: {}]
  %s5 = inlined_call_operand.vmem [shape: f32[2,1,384], index: 5, kind: input, shape index: {}]
  %s6 = inlined_call_operand.vmem [shape: bf16[2,384,384], index: 6, kind: input, shape index: {}]
  %s7 = inlined_call_operand.vmem [shape: bf16[2,128,384], index: 7, kind: input, shape index: {}]
  %s8 = inlined_call_operand.vmem [shape: f32[2,1,384], index: 8, kind: input, shape index: {}]
  %s9 = inlined_call_operand.vmem [shape: f32[2,1,384], index: 9, kind: input, shape index: {}]
  %s10 = inlined_call_operand.vmem [shape: f32[2,1,384], index: 10, kind: input, shape index: {}]
  %s11 = inlined_call_operand.vmem [shape: bf16[2,384,128], index: 11, kind: input, shape index: {}]
  %s12 = inlined_call_operand.vmem [shape: f32[2,1,128], index: 12, kind: input, shape index: {}]
  %s13 = inlined_call_operand.vmem [shape: bf16[2,128,384], index: 13, kind: input, shape index: {}]
  %s14 = inlined_call_operand.vmem [shape: f32[2,1,384], index: 14, kind: input, shape index: {}]
  %s15 = inlined_call_operand.vmem [shape: f32[1,384], index: 15, kind: input, shape index: {}]
  %s16 = inlined_call_operand.vmem [shape: f32[1,384], index: 16, kind: input, shape index: {}]
  %s17 = inlined_call_operand.vmem [shape: bf16[384,384], index: 17, kind: input, shape index: {}]
  %s18 = inlined_call_operand.vmem [shape: f32[1,384], index: 18, kind: input, shape index: {}]
  %s19 = inlined_call_operand.vmem [shape: f32[2,384], index: 19, kind: output, shape index: {}]
  %s20 = sld [smem:[#allocation0]]
  $region86: #{vit_lstm_forward.2} parent=0
    _
  %s22 = ssub.s32 1, %s20
  %s23 = scalar_select 0, %s22, %s20
  // Predicated region
  $region2: #{vit_lstm_forward.2} parent=0 // pred_check
    _
  $region3: #{vit_lstm_forward.2} parent=0 // pred_check_branch
    %25 = sbr.rel (0) target = $region5
  $region4: #{vit_lstm_forward.2} parent=0 // pred_region
    _
  $region5: #{vit_lstm_forward.2} parent=0 // pred_fallthru
    _
  // Predicated region
  $region6: #{vit_lstm_forward.2} parent=0 // pred_check
    _
  $region7: #{vit_lstm_forward.2} parent=0 // pred_check_branch
    %27 = sbr.rel (0) target = $region9
  $region8: #{vit_lstm_forward.2} parent=0 // pred_region
    _
  $region9: #{vit_lstm_forward.2} parent=0 // pred_fallthru
    _
  // Predicated region
  $region10: #{vit_lstm_forward.2} parent=0 // pred_check
    _
  $region11: #{vit_lstm_forward.2} parent=0 // pred_check_branch
    %29 = sbr.rel (0) target = $region13
  $region12: #{vit_lstm_forward.2} parent=0 // pred_region
    _
  $region13: #{vit_lstm_forward.2} parent=0 // pred_fallthru
    _
  // Predicated region
  $region14: #{vit_lstm_forward.2} parent=0 // pred_check
    _
  $region15: #{vit_lstm_forward.2} parent=0 // pred_check_branch
    %31 = sbr.rel (0) target = $region17
  $region16: #{vit_lstm_forward.2} parent=0 // pred_region
    _
  $region17: #{vit_lstm_forward.2} parent=0 // pred_fallthru
    _
  // Predicated region
  $region18: #{vit_lstm_forward.2} parent=0 // pred_check
    _
  $region19: #{vit_lstm_forward.2} parent=0 // pred_check_branch
    %33 = sbr.rel (0) target = $region21
  $region20: #{vit_lstm_forward.2} parent=0 // pred_region
    _
  $region21: #{vit_lstm_forward.2} parent=0 // pred_fallthru
    _
  // Predicated region
  $region22: #{vit_lstm_forward.2} parent=0 // pred_check
    _
  $region23: #{vit_lstm_forward.2} parent=0 // pred_check_branch
    %35 = sbr.rel (0) target = $region25
  $region24: #{vit_lstm_forward.2} parent=0 // pred_region
    _
  $region25: #{vit_lstm_forward.2} parent=0 // pred_fallthru
    _
  // Predicated region
  $region26: #{vit_lstm_forward.2} parent=0 // pred_check
    _
  $region27: #{vit_lstm_forward.2} parent=0 // pred_check_branch
    %37 = sbr.rel (0) target = $region29
  $region28: #{vit_lstm_forward.2} parent=0 // pred_region
    _
  $region29: #{vit_lstm_forward.2} parent=0 // pred_fallthru
    _
  // Predicated region
  $region30: #{vit_lstm_forward.2} parent=0 // pred_check
    _
  $region31: #{vit_lstm_forward.2} parent=0 // pred_check_branch
    %39 = sbr.rel (0) target = $region33
  $region32: #{vit_lstm_forward.2} parent=0 // pred_region
    _
  $region33: #{vit_lstm_forward.2} parent=0 // pred_fallthru
    _
  // Predicated region
  $region34: #{vit_lstm_forward.2} parent=0 // pred_check
    _
  $region35: #{vit_lstm_forward.2} parent=0 // pred_check_branch
    %41 = sbr.rel (0) target = $region37
  $region36: #{vit_lstm_forward.2} parent=0 // pred_region
    _
  $region37: #{vit_lstm_forward.2} parent=0 // pred_fallthru
    _
  // Predicated region
  $region38: #{vit_lstm_forward.2} parent=0 // pred_check
    _
  $region39: #{vit_lstm_forward.2} parent=0 // pred_check_branch
    %43 = sbr.rel (0) target = $region41
  $region40: #{vit_lstm_forward.2} parent=0 // pred_region
    _
  $region41: #{vit_lstm_forward.2} parent=0 // pred_fallthru
    _
  // Predicated region
  $region42: #{vit_lstm_forward.2} parent=0 // pred_check
    _
  $region43: #{vit_lstm_forward.2} parent=0 // pred_check_branch
    %45 = sbr.rel (0) target = $region45
  $region44: #{vit_lstm_forward.2} parent=0 // pred_region
    _
  $region45: #{vit_lstm_forward.2} parent=0 // pred_fallthru
    _
  // Predicated region
  $region46: #{vit_lstm_forward.2} parent=0 // pred_check
    _
  $region47: #{vit_lstm_forward.2} parent=0 // pred_check_branch
    %47 = sbr.rel (0) target = $region49
  $region48: #{vit_lstm_forward.2} parent=0 // pred_region
    _
  $region49: #{vit_lstm_forward.2} parent=0 // pred_fallthru
    _
  // Predicated region
  $region50: #{vit_lstm_forward.2} parent=0 // pred_check
    _
  $region51: #{vit_lstm_forward.2} parent=0 // pred_check_branch
    %49 = sbr.rel (0) target = $region53
  $region52: #{vit_lstm_forward.2} parent=0 // pred_region
    _
  $region53: #{vit_lstm_forward.2} parent=0 // pred_fallthru
    _
  // Predicated region
  $region54: #{vit_lstm_forward.2} parent=0 // pred_check
    _
  $region55: #{vit_lstm_forward.2} parent=0 // pred_check_branch
    %51 = sbr.rel (0) target = $region57
  $region56: #{vit_lstm_forward.2} parent=0 // pred_region
    _
  $region57: #{vit_lstm_forward.2} parent=0 // pred_fallthru
    _
  // Predicated region
  $region58: #{vit_lstm_forward.2} parent=0 // pred_check
    _
  $region59: #{vit_lstm_forward.2} parent=0 // pred_check_branch
    %53 = sbr.rel (0) target = $region61
  $region60: #{vit_lstm_forward.2} parent=0 // pred_region
    _
  $region61: #{vit_lstm_forward.2} parent=0 // pred_fallthru
    _
  // Predicated region
  $region62: #{vit_lstm_forward.2} parent=0 // pred_check
    _
  $region63: #{vit_lstm_forward.2} parent=0 // pred_check_branch
    %55 = sbr.rel (0) target = $region65
  $region64: #{vit_lstm_forward.2} parent=0 // pred_region
    _
  $region65: #{vit_lstm_forward.2} parent=0 // pred_fallthru
    _
  // Predicated region
  $region66: #{vit_lstm_forward.2} parent=0 // pred_check
    _
  $region67: #{vit_lstm_forward.2} parent=0 // pred_check_branch
    %57 = sbr.rel (0) target = $region69
  $region68: #{vit_lstm_forward.2} parent=0 // pred_region
    _
  $region69: #{vit_lstm_forward.2} parent=0 // pred_fallthru
    _
  // Predicated region
  $region70: #{vit_lstm_forward.2} parent=0 // pred_check
    _
  $region71: #{vit_lstm_forward.2} parent=0 // pred_check_branch
    %59 = sbr.rel (0) target = $region73
  $region72: #{vit_lstm_forward.2} parent=0 // pred_region
    _
  $region73: #{vit_lstm_forward.2} parent=0 // pred_fallthru
    _
  // Predicated region
  $region74: #{vit_lstm_forward.2} parent=0 // pred_check
    _
  $region75: #{vit_lstm_forward.2} parent=0 // pred_check_branch
    %61 = sbr.rel (0) target = $region77
  $region76: #{vit_lstm_forward.2} parent=0 // pred_region
    _
  $region77: #{vit_lstm_forward.2} parent=0 // pred_fallthru
    _
  %v63 = vlaneseq
  %v64 = vand.u32 %v63, 127
  %v65 = vadd.s32 %v64, 128
  %v66 = vadd.s32 %v64, 256
  %vm67 = vcmp.lt.s32.totalorder %v64, 361
  %vm68 = vcmp.lt.s32.totalorder %v65, 361
  %vm69 = vcmp.lt.s32.totalorder %v66, 361
  %vm70 = vcmp.lt.s32.totalorder %v64, 17
  %v71 = vld [vmem:[%s0] sm:$0xff]
  %v72 = vld [vmem:[%s0 + $0x8] sm:$0xff]
  %v73 = vld [vmem:[%s0 + $0x10] sm:$0xff]
  %v74 = vld [vmem:[%s0 + $0x18] sm:$0xff]
  %v75 = vld [vmem:[%s0 + $0x20] sm:$0xff]
  %v76 = vld [vmem:[%s0 + $0x28] sm:$0xff]
  %v77 = vld [vmem:[%s0 + $0x30] sm:$0xff]
  %v78 = vld [vmem:[%s0 + $0x38] sm:$0xff]
  %v79 = vld [vmem:[%s2] sm:$0xff]
  %v80 = vld [vmem:[%s2 + $0x8] sm:$0xf]
  %v81 = vld [vmem:[%s2 + $0xc] sm:$0xff]
  %v82 = vld [vmem:[%s2 + $0x14] sm:$0xf]
  %v83 = vld [vmem:[%s2 + $0x18] sm:$0xff]
  %v84 = vld [vmem:[%s2 + $0x20] sm:$0xf]
  %v85 = vld [vmem:[%s2 + $0x24] sm:$0xff]
  %v86 = vld [vmem:[%s2 + $0x2c] sm:$0xf]
  %v87 = vld [vmem:[%s2 + $0x30] sm:$0xff]
  %v88 = vld [vmem:[%s2 + $0x38] sm:$0xf]
  %v89 = vld [vmem:[%s2 + $0x3c] sm:$0xff]
  %v90 = vld [vmem:[%s2 + $0x44] sm:$0xf]
  %v91 = vld [vmem:[%s2 + $0x48] sm:$0xff]
  %v92 = vld [vmem:[%s2 + $0x50] sm:$0xf]
  %v93 = vld [vmem:[%s2 + $0x54] sm:$0xff]
  %v94 = vld [vmem:[%s2 + $0x5c] sm:$0xf]
  %v95 = vld [vmem:[%s2 + $0x60] sm:$0xff]
  %v96 = vld [vmem:[%s2 + $0x68] sm:$0xf]
  %v97 = vld [vmem:[%s2 + $0x6c] sm:$0xff]
  %v98 = vld [vmem:[%s2 + $0x74] sm:$0xf]
  %v99 = vld [vmem:[%s2 + $0x78] sm:$0xff]
  %v100 = vld [vmem:[%s2 + $0x80] sm:$0xf]
  %v101 = vld [vmem:[%s2 + $0x84] sm:$0xff]
  %v102 = vld [vmem:[%s2 + $0x8c] sm:$0xf]
  %v103 = vld [vmem:[%s2 + $0x90] sm:$0xff]
  %v104 = vld [vmem:[%s2 + $0x98] sm:$0xf]
  %v105 = vld [vmem:[%s2 + $0x9c] sm:$0xff]
  %v106 = vld [vmem:[%s2 + $0xa4] sm:$0xf]
  %v107 = vld [vmem:[%s2 + $0xa8] sm:$0xff]
  %v108 = vld [vmem:[%s2 + $0xb0] sm:$0xf]
  %v109 = vld [vmem:[%s2 + $0xb4] sm:$0xff]
  %v110 = vld [vmem:[%s2 + $0xbc] sm:$0xf]
  %v111 = vld [vmem:[%s2 + $0xc0] sm:$0xff]
  %v112 = vld [vmem:[%s2 + $0xc8] sm:$0xf]
  %v113 = vld [vmem:[%s2 + $0xcc] sm:$0xff]
  %v114 = vld [vmem:[%s2 + $0xd4] sm:$0xf]
  %v115 = vld [vmem:[%s2 + $0xd8] sm:$0xff]
  %v116 = vld [vmem:[%s2 + $0xe0] sm:$0xf]
  %v117 = vld [vmem:[%s2 + $0xe4] sm:$0xff]
  %v118 = vld [vmem:[%s2 + $0xec] sm:$0xf]
  %v119 = vld [vmem:[%s2 + $0xf0] sm:$0xff]
  %v120 = vld [vmem:[%s2 + $0xf8] sm:$0xf]
  %v121 = vld [vmem:[%s2 + $0xfc] sm:$0xff]
  %v122 = vld [vmem:[%s2 + $0x104] sm:$0xf]
  %v123 = vld [vmem:[%s2 + $0x108] sm:$0xff]
  %v124 = vld [vmem:[%s2 + $0x110] sm:$0xf]
  %v125 = vld [vmem:[%s2 + $0x114] sm:$0xff]
  %v126 = vld [vmem:[%s2 + $0x11c] sm:$0xf]
  %v127 = vld [vmem:[%s2 + $0x120] sm:$0xff]
  %v128 = vld [vmem:[%s2 + $0x128] sm:$0xf]
  %v129 = vld [vmem:[%s2 + $0x12c] sm:$0xff]
  %v130 = vld [vmem:[%s2 + $0x134] sm:$0xf]
  %v131 = vld [vmem:[%s2 + $0x138] sm:$0xff]
  %v132 = vld [vmem:[%s2 + $0x140] sm:$0xf]
  %v133 = vld [vmem:[%s2 + $0x144] sm:$0xff]
  %v134 = vld [vmem:[%s2 + $0x14c] sm:$0xf]
  %v135 = vld [vmem:[%s2 + $0x150] sm:$0xff]
  %v136 = vld [vmem:[%s2 + $0x158] sm:$0xf]
  %v137 = vld [vmem:[%s2 + $0x15c] sm:$0xff]
  %v138 = vld [vmem:[%s2 + $0x164] sm:$0xf]
  %v139 = vld [vmem:[%s2 + $0x168] sm:$0xff]
  %v140 = vld [vmem:[%s2 + $0x170] sm:$0xf]
  %v141 = vld [vmem:[%s2 + $0x174] sm:$0xff]
  %v142 = vld [vmem:[%s2 + $0x17c] sm:$0xf]
  %v143 = vld [vmem:[%s2 + $0x180] sm:$0xff]
  %v144 = vld [vmem:[%s2 + $0x188] sm:$0xf]
  %v145 = vld [vmem:[%s2 + $0x18c] sm:$0xff]
  %v146 = vld [vmem:[%s2 + $0x194] sm:$0xf]
  %v147 = vld [vmem:[%s2 + $0x198] sm:$0xff]
  %v148 = vld [vmem:[%s2 + $0x1a0] sm:$0xf]
  %v149 = vld [vmem:[%s2 + $0x1a4] sm:$0xff]
  %v150 = vld [vmem:[%s2 + $0x1ac] sm:$0xf]
  %v151 = vld [vmem:[%s2 + $0x1b0] sm:$0xff]
  %v152 = vld [vmem:[%s2 + $0x1b8] sm:$0xf]
  %v153 = vld [vmem:[%s2 + $0x1bc] sm:$0xff]
  %v154 = vld [vmem:[%s2 + $0x1c4] sm:$0xf]
  %v155 = vld [vmem:[%s2 + $0x1c8] sm:$0xff]
  %v156 = vld [vmem:[%s2 + $0x1d0] sm:$0xf]
  %v157 = vld [vmem:[%s2 + $0x1d4] sm:$0xff]
  %v158 = vld [vmem:[%s2 + $0x1dc] sm:$0xf]
  %v159 = vld [vmem:[%s2 + $0x1e0] sm:$0xff]
  %v160 = vld [vmem:[%s2 + $0x1e8] sm:$0xf]
  %v161 = vld [vmem:[%s2 + $0x1ec] sm:$0xff]
  %v162 = vld [vmem:[%s2 + $0x1f4] sm:$0xf]
  %v163 = vld [vmem:[%s2 + $0x1f8] sm:$0xff]
  %v164 = vld [vmem:[%s2 + $0x200] sm:$0xf]
  %v165 = vld [vmem:[%s2 + $0x204] sm:$0xff]
  %v166 = vld [vmem:[%s2 + $0x20c] sm:$0xf]
  %v167 = vld [vmem:[%s2 + $0x210] sm:$0xff]
  %v168 = vld [vmem:[%s2 + $0x218] sm:$0xf]
  %v169 = vld [vmem:[%s2 + $0x21c] sm:$0xff]
  %v170 = vld [vmem:[%s2 + $0x224] sm:$0xf]
  %v171 = vld [vmem:[%s2 + $0x228] sm:$0xff]
  %v172 = vld [vmem:[%s2 + $0x230] sm:$0xf]
  %v173 = vld [vmem:[%s2 + $0x234] sm:$0xff]
  %v174 = vld [vmem:[%s2 + $0x23c] sm:$0xf]
  %v175 = vld [vmem:[%s2 + $0x240] sm:$0xff]
  %v176 = vld [vmem:[%s2 + $0x248] sm:$0xf]
  %v177 = vld [vmem:[%s2 + $0x24c] sm:$0xff]
  %v178 = vld [vmem:[%s2 + $0x254] sm:$0xf]
  %v179 = vld [vmem:[%s2 + $0x258] sm:$0xff]
  %v180 = vld [vmem:[%s2 + $0x260] sm:$0xf]
  %v181 = vld [vmem:[%s2 + $0x264] sm:$0xff]
  %v182 = vld [vmem:[%s2 + $0x26c] sm:$0xf]
  %v183 = vld [vmem:[%s2 + $0x270] sm:$0xff]
  %v184 = vld [vmem:[%s2 + $0x278] sm:$0xf]
  %v185 = vld [vmem:[%s2 + $0x27c] sm:$0xff]
  %v186 = vld [vmem:[%s2 + $0x284] sm:$0xf]
  %v187 = vld [vmem:[%s2 + $0x288] sm:$0xff]
  %v188 = vld [vmem:[%s2 + $0x290] sm:$0xf]
  %v189 = vld [vmem:[%s2 + $0x294] sm:$0xff]
  %v190 = vld [vmem:[%s2 + $0x29c] sm:$0xf]
  %v191 = vld [vmem:[%s2 + $0x2a0] sm:$0xff]
  %v192 = vld [vmem:[%s2 + $0x2a8] sm:$0xf]
  %v193 = vld [vmem:[%s2 + $0x2ac] sm:$0xff]
  %v194 = vld [vmem:[%s2 + $0x2b4] sm:$0xf]
  %v195 = vld [vmem:[%s2 + $0x2b8] sm:$0xff]
  %v196 = vld [vmem:[%s2 + $0x2c0] sm:$0xf]
  %v197 = vld [vmem:[%s2 + $0x2c4] sm:$0xff]
  %v198 = vld [vmem:[%s2 + $0x2cc] sm:$0xf]
  %v199 = vld [vmem:[%s2 + $0x2d0] sm:$0xff]
  %v200 = vld [vmem:[%s2 + $0x2d8] sm:$0xf]
  %v201 = vld [vmem:[%s2 + $0x2dc] sm:$0xff]
  %v202 = vld [vmem:[%s2 + $0x2e4] sm:$0xf]
  %v203 = vld [vmem:[%s2 + $0x2e8] sm:$0xff]
  %v204 = vld [vmem:[%s2 + $0x2f0] sm:$0xf]
  %v205 = vld [vmem:[%s2 + $0x2f4] sm:$0xff]
  %v206 = vld [vmem:[%s2 + $0x2fc] sm:$0xf]
  %v207 = vld [vmem:[%s3] sm:$0x7]
  %v209 = vlaneseq
  %v210 = vshrl.u32 %v209, 7
  %v211 = vsub.s32 0, %v210
  %v212 = vrot.slane %v207, %v211
  %v213 = vlaneseq
  %v214 = vshrl.u32 %v213, 7
  %v215 = vsub.s32 1, %v214
  %v216 = vrot.slane %v207, %v215
  %v217 = vlaneseq
  %v218 = vshrl.u32 %v217, 7
  %v219 = vsub.s32 2, %v218
  %v220 = vrot.slane %v207, %v219
  %v232 = vunpack.c.l.b16 %v71
  %v233 = vunpack.c.h.b16 %v71
  %v234 = vunpack.c.l.b16 %v72
  %v235 = vunpack.c.h.b16 %v72
  %v236 = vunpack.c.l.b16 %v73
  %v237 = vunpack.c.h.b16 %v73
  %v238 = vunpack.c.l.b16 %v74
  %v239 = vunpack.c.h.b16 %v74
  %v240 = vunpack.c.l.b16 %v75
  %v241 = vunpack.c.h.b16 %v75
  %v242 = vunpack.c.l.b16 %v76
  %v243 = vunpack.c.h.b16 %v76
  %v244 = vunpack.c.l.b16 %v77
  %v245 = vunpack.c.h.b16 %v77
  %v246 = vunpack.c.l.b16 %v78
  %v247 = vunpack.c.h.b16 %v78
  %v248 = vpack.c.b16 %v236, %v232
  %v249 = vpack.c.b16 %v237, %v233
  %v250 = vpack.c.b16 %v238, %v234
  %v251 = vpack.c.b16 %v239, %v235
  %v252 = vpack.c.b16 %v244, %v240
  %v253 = vpack.c.b16 %v245, %v241
  %v254 = vpack.c.b16 %v246, %v242
  %v255 = vpack.c.b16 %v247, %v243
  %v392 = vunpack.c.l.b16 %v79
  %v393 = vunpack.c.h.b16 %v79
  %v394 = vunpack.c.l.b16 %v80
  %v395 = vunpack.c.l.b16 %v81
  %v396 = vunpack.c.h.b16 %v81
  %v397 = vunpack.c.l.b16 %v82
  %v398 = vunpack.c.l.b16 %v83
  %v399 = vunpack.c.h.b16 %v83
  %v400 = vunpack.c.l.b16 %v84
  %v401 = vunpack.c.l.b16 %v85
  %v402 = vunpack.c.h.b16 %v85
  %v403 = vunpack.c.l.b16 %v86
  %v404 = vunpack.c.l.b16 %v87
  %v405 = vunpack.c.h.b16 %v87
  %v406 = vunpack.c.l.b16 %v88
  %v407 = vunpack.c.l.b16 %v89
  %v408 = vunpack.c.h.b16 %v89
  %v409 = vunpack.c.l.b16 %v90
  %v410 = vunpack.c.l.b16 %v91
  %v411 = vunpack.c.h.b16 %v91
  %v412 = vunpack.c.l.b16 %v92
  %v413 = vunpack.c.l.b16 %v93
  %v414 = vunpack.c.h.b16 %v93
  %v415 = vunpack.c.l.b16 %v94
  %v416 = vunpack.c.l.b16 %v95
  %v417 = vunpack.c.h.b16 %v95
  %v418 = vunpack.c.l.b16 %v96
  %v419 = vunpack.c.l.b16 %v97
  %v420 = vunpack.c.h.b16 %v97
  %v421 = vunpack.c.l.b16 %v98
  %v422 = vunpack.c.l.b16 %v99
  %v423 = vunpack.c.h.b16 %v99
  %v424 = vunpack.c.l.b16 %v100
  %v425 = vunpack.c.l.b16 %v101
  %v426 = vunpack.c.h.b16 %v101
  %v427 = vunpack.c.l.b16 %v102
  %v428 = vunpack.c.l.b16 %v103
  %v429 = vunpack.c.h.b16 %v103
  %v430 = vunpack.c.l.b16 %v104
  %v431 = vunpack.c.l.b16 %v105
  %v432 = vunpack.c.h.b16 %v105
  %v433 = vunpack.c.l.b16 %v106
  %v434 = vunpack.c.l.b16 %v107
  %v435 = vunpack.c.h.b16 %v107
  %v436 = vunpack.c.l.b16 %v108
  %v437 = vunpack.c.l.b16 %v109
  %v438 = vunpack.c.h.b16 %v109
  %v439 = vunpack.c.l.b16 %v110
  %v440 = vunpack.c.l.b16 %v111
  %v441 = vunpack.c.h.b16 %v111
  %v442 = vunpack.c.l.b16 %v112
  %v443 = vunpack.c.l.b16 %v113
  %v444 = vunpack.c.h.b16 %v113
  %v445 = vunpack.c.l.b16 %v114
  %v446 = vunpack.c.l.b16 %v115
  %v447 = vunpack.c.h.b16 %v115
  %v448 = vunpack.c.l.b16 %v116
  %v449 = vunpack.c.l.b16 %v117
  %v450 = vunpack.c.h.b16 %v117
  %v451 = vunpack.c.l.b16 %v118
  %v452 = vunpack.c.l.b16 %v119
  %v453 = vunpack.c.h.b16 %v119
  %v454 = vunpack.c.l.b16 %v120
  %v455 = vunpack.c.l.b16 %v121
  %v456 = vunpack.c.h.b16 %v121
  %v457 = vunpack.c.l.b16 %v122
  %v458 = vunpack.c.l.b16 %v123
  %v459 = vunpack.c.h.b16 %v123
  %v460 = vunpack.c.l.b16 %v124
  %v461 = vunpack.c.l.b16 %v125
  %v462 = vunpack.c.h.b16 %v125
  %v463 = vunpack.c.l.b16 %v126
  %v464 = vunpack.c.l.b16 %v127
  %v465 = vunpack.c.h.b16 %v127
  %v466 = vunpack.c.l.b16 %v128
  %v467 = vunpack.c.l.b16 %v129
  %v468 = vunpack.c.h.b16 %v129
  %v469 = vunpack.c.l.b16 %v130
  %v470 = vunpack.c.l.b16 %v131
  %v471 = vunpack.c.h.b16 %v131
  %v472 = vunpack.c.l.b16 %v132
  %v473 = vunpack.c.l.b16 %v133
  %v474 = vunpack.c.h.b16 %v133
  %v475 = vunpack.c.l.b16 %v134
  %v476 = vunpack.c.l.b16 %v135
  %v477 = vunpack.c.h.b16 %v135
  %v478 = vunpack.c.l.b16 %v136
  %v479 = vunpack.c.l.b16 %v137
  %v480 = vunpack.c.h.b16 %v137
  %v481 = vunpack.c.l.b16 %v138
  %v482 = vunpack.c.l.b16 %v139
  %v483 = vunpack.c.h.b16 %v139
  %v484 = vunpack.c.l.b16 %v140
  %v485 = vunpack.c.l.b16 %v141
  %v486 = vunpack.c.h.b16 %v141
  %v487 = vunpack.c.l.b16 %v142
  %v488 = vunpack.c.l.b16 %v143
  %v489 = vunpack.c.h.b16 %v143
  %v490 = vunpack.c.l.b16 %v144
  %v491 = vunpack.c.l.b16 %v145
  %v492 = vunpack.c.h.b16 %v145
  %v493 = vunpack.c.l.b16 %v146
  %v494 = vunpack.c.l.b16 %v147
  %v495 = vunpack.c.h.b16 %v147
  %v496 = vunpack.c.l.b16 %v148
  %v497 = vunpack.c.l.b16 %v149
  %v498 = vunpack.c.h.b16 %v149
  %v499 = vunpack.c.l.b16 %v150
  %v500 = vunpack.c.l.b16 %v151
  %v501 = vunpack.c.h.b16 %v151
  %v502 = vunpack.c.l.b16 %v152
  %v503 = vunpack.c.l.b16 %v153
  %v504 = vunpack.c.h.b16 %v153
  %v505 = vunpack.c.l.b16 %v154
  %v506 = vunpack.c.l.b16 %v155
  %v507 = vunpack.c.h.b16 %v155
  %v508 = vunpack.c.l.b16 %v156
  %v509 = vunpack.c.l.b16 %v157
  %v510 = vunpack.c.h.b16 %v157
  %v511 = vunpack.c.l.b16 %v158
  %v512 = vunpack.c.l.b16 %v159
  %v513 = vunpack.c.h.b16 %v159
  %v514 = vunpack.c.l.b16 %v160
  %v515 = vunpack.c.l.b16 %v161
  %v516 = vunpack.c.h.b16 %v161
  %v517 = vunpack.c.l.b16 %v162
  %v518 = vunpack.c.l.b16 %v163
  %v519 = vunpack.c.h.b16 %v163
  %v520 = vunpack.c.l.b16 %v164
  %v521 = vunpack.c.l.b16 %v165
  %v522 = vunpack.c.h.b16 %v165
  %v523 = vunpack.c.l.b16 %v166
  %v524 = vunpack.c.l.b16 %v167
  %v525 = vunpack.c.h.b16 %v167
  %v526 = vunpack.c.l.b16 %v168
  %v527 = vunpack.c.l.b16 %v169
  %v528 = vunpack.c.h.b16 %v169
  %v529 = vunpack.c.l.b16 %v170
  %v530 = vunpack.c.l.b16 %v171
  %v531 = vunpack.c.h.b16 %v171
  %v532 = vunpack.c.l.b16 %v172
  %v533 = vunpack.c.l.b16 %v173
  %v534 = vunpack.c.h.b16 %v173
  %v535 = vunpack.c.l.b16 %v174
  %v536 = vunpack.c.l.b16 %v175
  %v537 = vunpack.c.h.b16 %v175
  %v538 = vunpack.c.l.b16 %v176
  %v539 = vunpack.c.l.b16 %v177
  %v540 = vunpack.c.h.b16 %v177
  %v541 = vunpack.c.l.b16 %v178
  %v542 = vunpack.c.l.b16 %v179
  %v543 = vunpack.c.h.b16 %v179
  %v544 = vunpack.c.l.b16 %v180
  %v545 = vunpack.c.l.b16 %v181
  %v546 = vunpack.c.h.b16 %v181
  %v547 = vunpack.c.l.b16 %v182
  %v548 = vunpack.c.l.b16 %v183
  %v549 = vunpack.c.h.b16 %v183
  %v550 = vunpack.c.l.b16 %v184
  %v551 = vunpack.c.l.b16 %v185
  %v552 = vunpack.c.h.b16 %v185
  %v553 = vunpack.c.l.b16 %v186
  %v554 = vunpack.c.l.b16 %v187
  %v555 = vunpack.c.h.b16 %v187
  %v556 = vunpack.c.l.b16 %v188
  %v557 = vunpack.c.l.b16 %v189
  %v558 = vunpack.c.h.b16 %v189
  %v559 = vunpack.c.l.b16 %v190
  %v560 = vunpack.c.l.b16 %v191
  %v561 = vunpack.c.h.b16 %v191
  %v562 = vunpack.c.l.b16 %v192
  %v563 = vunpack.c.l.b16 %v193
  %v564 = vunpack.c.h.b16 %v193
  %v565 = vunpack.c.l.b16 %v194
  %v566 = vunpack.c.l.b16 %v195
  %v567 = vunpack.c.h.b16 %v195
  %v568 = vunpack.c.l.b16 %v196
  %v569 = vunpack.c.l.b16 %v197
  %v570 = vunpack.c.h.b16 %v197
  %v571 = vunpack.c.l.b16 %v198
  %v572 = vunpack.c.l.b16 %v199
  %v573 = vunpack.c.h.b16 %v199
  %v574 = vunpack.c.l.b16 %v200
  %v575 = vunpack.c.l.b16 %v201
  %v576 = vunpack.c.h.b16 %v201
  %v577 = vunpack.c.l.b16 %v202
  %v578 = vunpack.c.l.b16 %v203
  %v579 = vunpack.c.h.b16 %v203
  %v580 = vunpack.c.l.b16 %v204
  %v581 = vunpack.c.l.b16 %v205
  %v582 = vunpack.c.h.b16 %v205
  %v583 = vunpack.c.l.b16 %v206
  %v584 = vpack.c.b16 %v395, %v392
  %v585 = vpack.c.b16 %v396, %v393
  %v586 = vpack.c.b16 %v397, %v394
  %v587 = vpack.c.b16 %v401, %v398
  %v588 = vpack.c.b16 %v402, %v399
  %v589 = vpack.c.b16 %v403, %v400
  %v590 = vpack.c.b16 %v407, %v404
  %v591 = vpack.c.b16 %v408, %v405
  %v592 = vpack.c.b16 %v409, %v406
  %v593 = vpack.c.b16 %v413, %v410
  %v594 = vpack.c.b16 %v414, %v411
  %v595 = vpack.c.b16 %v415, %v412
  %v596 = vpack.c.b16 %v419, %v416
  %v597 = vpack.c.b16 %v420, %v417
  %v598 = vpack.c.b16 %v421, %v418
  %v599 = vpack.c.b16 %v425, %v422
  %v600 = vpack.c.b16 %v426, %v423
  %v601 = vpack.c.b16 %v427, %v424
  %v602 = vpack.c.b16 %v431, %v428
  %v603 = vpack.c.b16 %v432, %v429
  %v604 = vpack.c.b16 %v433, %v430
  %v605 = vpack.c.b16 %v437, %v434
  %v606 = vpack.c.b16 %v438, %v435
  %v607 = vpack.c.b16 %v439, %v436
  %v608 = vpack.c.b16 %v443, %v440
  %v609 = vpack.c.b16 %v444, %v441
  %v610 = vpack.c.b16 %v445, %v442
  %v611 = vpack.c.b16 %v449, %v446
  %v612 = vpack.c.b16 %v450, %v447
  %v613 = vpack.c.b16 %v451, %v448
  %v614 = vpack.c.b16 %v455, %v452
  %v615 = vpack.c.b16 %v456, %v453
  %v616 = vpack.c.b16 %v457, %v454
  %v617 = vpack.c.b16 %v461, %v458
  %v618 = vpack.c.b16 %v462, %v459
  %v619 = vpack.c.b16 %v463, %v460
  %v620 = vpack.c.b16 %v467, %v464
  %v621 = vpack.c.b16 %v468, %v465
  %v622 = vpack.c.b16 %v469, %v466
  %v623 = vpack.c.b16 %v473, %v470
  %v624 = vpack.c.b16 %v474, %v471
  %v625 = vpack.c.b16 %v475, %v472
  %v626 = vpack.c.b16 %v479, %v476
  %v627 = vpack.c.b16 %v480, %v477
  %v628 = vpack.c.b16 %v481, %v478
  %v629 = vpack.c.b16 %v485, %v482
  %v630 = vpack.c.b16 %v486, %v483
  %v631 = vpack.c.b16 %v487, %v484
  %v632 = vpack.c.b16 %v491, %v488
  %v633 = vpack.c.b16 %v492, %v489
  %v634 = vpack.c.b16 %v493, %v490
  %v635 = vpack.c.b16 %v497, %v494
  %v636 = vpack.c.b16 %v498, %v495
  %v637 = vpack.c.b16 %v499, %v496
  %v638 = vpack.c.b16 %v503, %v500
  %v639 = vpack.c.b16 %v504, %v501
  %v640 = vpack.c.b16 %v505, %v502
  %v641 = vpack.c.b16 %v509, %v506
  %v642 = vpack.c.b16 %v510, %v507
  %v643 = vpack.c.b16 %v511, %v508
  %v644 = vpack.c.b16 %v515, %v512
  %v645 = vpack.c.b16 %v516, %v513
  %v646 = vpack.c.b16 %v517, %v514
  %v647 = vpack.c.b16 %v521, %v518
  %v648 = vpack.c.b16 %v522, %v519
  %v649 = vpack.c.b16 %v523, %v520
  %v650 = vpack.c.b16 %v527, %v524
  %v651 = vpack.c.b16 %v528, %v525
  %v652 = vpack.c.b16 %v529, %v526
  %v653 = vpack.c.b16 %v533, %v530
  %v654 = vpack.c.b16 %v534, %v531
  %v655 = vpack.c.b16 %v535, %v532
  %v656 = vpack.c.b16 %v539, %v536
  %v657 = vpack.c.b16 %v540, %v537
  %v658 = vpack.c.b16 %v541, %v538
  %v659 = vpack.c.b16 %v545, %v542
  %v660 = vpack.c.b16 %v546, %v543
  %v661 = vpack.c.b16 %v547, %v544
  %v662 = vpack.c.b16 %v551, %v548
  %v663 = vpack.c.b16 %v552, %v549
  %v664 = vpack.c.b16 %v553, %v550
  %v665 = vpack.c.b16 %v557, %v554
  %v666 = vpack.c.b16 %v558, %v555
  %v667 = vpack.c.b16 %v559, %v556
  %v668 = vpack.c.b16 %v563, %v560
  %v669 = vpack.c.b16 %v564, %v561
  %v670 = vpack.c.b16 %v565, %v562
  %v671 = vpack.c.b16 %v569, %v566
  %v672 = vpack.c.b16 %v570, %v567
  %v673 = vpack.c.b16 %v571, %v568
  %v674 = vpack.c.b16 %v575, %v572
  %v675 = vpack.c.b16 %v576, %v573
  %v676 = vpack.c.b16 %v577, %v574
  %v677 = vpack.c.b16 %v581, %v578
  %v678 = vpack.c.b16 %v582, %v579
  %v679 = vpack.c.b16 %v583, %v580
  %776 = vmatprep.subr.bf16.mxu0 %v585
  %777 = vmatpush1.bf16.msra.mxu0 %v584
  %778 = vmatprep.subr.bf16.mxu0 %v588
  %779 = vmatpush1.bf16.msra.mxu0 %v587
  %780 = vmatprep.subr.bf16.mxu0 %v591
  %781 = vmatpush1.bf16.msra.mxu0 %v590
  %782 = vmatprep.subr.bf16.mxu0 %v594
  %783 = vmatpush1.bf16.msra.mxu0 %v593
  %784 = vmatprep.subr.bf16.mxu0 %v597
  %785 = vmatpush1.bf16.msra.mxu0 %v596
  %786 = vmatprep.subr.bf16.mxu0 %v600
  %787 = vmatpush1.bf16.msra.mxu0 %v599
  %788 = vmatprep.subr.bf16.mxu0 %v603
  %789 = vmatpush1.bf16.msra.mxu0 %v602
  %790 = vmatprep.subr.bf16.mxu0 %v606
  %791 = vmatpush1.bf16.msra.mxu0 %v605
  %792 = vmatprep.subr.bf16.mxu0 %v609
  %793 = vmatpush1.bf16.msra.mxu0 %v608
  %794 = vmatprep.subr.bf16.mxu0 %v612
  %795 = vmatpush1.bf16.msra.mxu0 %v611
  %796 = vmatprep.subr.bf16.mxu0 %v615
  %797 = vmatpush1.bf16.msra.mxu0 %v614
  %798 = vmatprep.subr.bf16.mxu0 %v618
  %799 = vmatpush1.bf16.msra.mxu0 %v617
  %800 = vmatprep.subr.bf16.mxu0 %v621
  %801 = vmatpush1.bf16.msra.mxu0 %v620
  %802 = vmatprep.subr.bf16.mxu0 %v624
  %803 = vmatpush1.bf16.msra.mxu0 %v623
  %804 = vmatprep.subr.bf16.mxu0 %v627
  %805 = vmatpush1.bf16.msra.mxu0 %v626
  %806 = vmatprep.subr.bf16.mxu0 %v630
  %807 = vmatpush1.bf16.msra.mxu0 %v629
  %808 = vmatprep.mubr.bf16.mxu0 %v249
  %809 = vmatmul.mubr.bf16.gmra.mrb[0].mxu0 %v248
  %v810 = vpop.f32.mrb[0].mxu0
  %v811 = vadd.f32 %v212, %v810
  %v812 = vpop.f32.mrb[0].mxu0
  %v813 = vadd.f32 %v216, %v812
  %v814 = vpop.f32.mrb[0].mxu0
  %v815 = vadd.f32 %v212, %v814
  %v816 = vpop.f32.mrb[0].mxu0
  %v817 = vadd.f32 %v216, %v816
  %818 = vmatprep.mubr.bf16.mxu0 %v253
  %819 = vmatmul.mubr.bf16.gmra.mrb[0].mxu0 %v252
  %v820 = vpop.f32.mrb[0].mxu0
  %v821 = vadd.f32 %v212, %v820
  %v822 = vpop.f32.mrb[0].mxu0
  %v823 = vadd.f32 %v216, %v822
  %v824 = vpop.f32.mrb[0].mxu0
  %v825 = vadd.f32 %v212, %v824
  %v826 = vpop.f32.mrb[0].mxu0
  %v827 = vadd.f32 %v216, %v826
  %828 = vdwg.mxu0
  %829 = vmatprep.subr.bf16.mxu0 %v633
  %830 = vmatpush1.bf16.msra.mxu0 %v632
  %831 = vmatprep.subr.bf16.mxu0 %v636
  %832 = vmatpush1.bf16.msra.mxu0 %v635
  %833 = vmatprep.subr.bf16.mxu0 %v639
  %834 = vmatpush1.bf16.msra.mxu0 %v638
  %835 = vmatprep.subr.bf16.mxu0 %v642
  %836 = vmatpush1.bf16.msra.mxu0 %v641
  %837 = vmatprep.subr.bf16.mxu0 %v645
  %838 = vmatpush1.bf16.msra.mxu0 %v644
  %839 = vmatprep.subr.bf16.mxu0 %v648
  %840 = vmatpush1.bf16.msra.mxu0 %v647
  %841 = vmatprep.subr.bf16.mxu0 %v651
  %842 = vmatpush1.bf16.msra.mxu0 %v650
  %843 = vmatprep.subr.bf16.mxu0 %v654
  %844 = vmatpush1.bf16.msra.mxu0 %v653
  %845 = vmatprep.subr.bf16.mxu0 %v657
  %846 = vmatpush1.bf16.msra.mxu0 %v656
  %847 = vmatprep.subr.bf16.mxu0 %v660
  %848 = vmatpush1.bf16.msra.mxu0 %v659
  %849 = vmatprep.subr.bf16.mxu0 %v663
  %850 = vmatpush1.bf16.msra.mxu0 %v662
  %851 = vmatprep.subr.bf16.mxu0 %v666
  %852 = vmatpush1.bf16.msra.mxu0 %v665
  %853 = vmatprep.subr.bf16.mxu0 %v669
  %854 = vmatpush1.bf16.msra.mxu0 %v668
  %855 = vmatprep.subr.bf16.mxu0 %v672
  %856 = vmatpush1.bf16.msra.mxu0 %v671
  %857 = vmatprep.subr.bf16.mxu0 %v675
  %858 = vmatpush1.bf16.msra.mxu0 %v674
  %859 = vmatprep.subr.bf16.mxu0 %v678
  %860 = vmatpush1.bf16.msra.mxu0 %v677
  %861 = vmatprep.mubr.bf16.mxu0 %v251
  %862 = vmatmul.mubr.bf16.gmra.mrb[0].mxu0 %v250
  %v863 = vpop.f32.mrb[0].mxu0
  %v864 = vadd.f32 %v811, %v863
  %v865 = vpop.f32.mrb[0].mxu0
  %v866 = vadd.f32 %v813, %v865
  %v867 = vpop.f32.mrb[0].mxu0
  %v868 = vadd.f32 %v815, %v867
  %v869 = vpop.f32.mrb[0].mxu0
  %v870 = vadd.f32 %v817, %v869
  %871 = vmatprep.mubr.bf16.mxu0 %v255
  %872 = vmatmul.mubr.bf16.gmra.mrb[0].mxu0 %v254
  %v873 = vpop.f32.mrb[0].mxu0
  %v874 = vadd.f32 %v821, %v873
  %v875 = vpop.f32.mrb[0].mxu0
  %v876 = vadd.f32 %v823, %v875
  %v877 = vpop.f32.mrb[0].mxu0
  %v878 = vadd.f32 %v825, %v877
  %v879 = vpop.f32.mrb[0].mxu0
  %v880 = vadd.f32 %v827, %v879
  %881 = vdwg.mxu0
  %882 = vmatprep.subr.bf16.mxu0 0
  %883 = vmatpush1.bf16.msra.mxu0 %v586
  %884 = vmatprep.subr.bf16.mxu0 0
  %885 = vmatpush1.bf16.msra.mxu0 %v589
  %886 = vmatprep.subr.bf16.mxu0 0
  %887 = vmatpush1.bf16.msra.mxu0 %v592
  %888 = vmatprep.subr.bf16.mxu0 0
  %889 = vmatpush1.bf16.msra.mxu0 %v595
  %890 = vmatprep.subr.bf16.mxu0 0
  %891 = vmatpush1.bf16.msra.mxu0 %v598
  %892 = vmatprep.subr.bf16.mxu0 0
  %893 = vmatpush1.bf16.msra.mxu0 %v601
  %894 = vmatprep.subr.bf16.mxu0 0
  %895 = vmatpush1.bf16.msra.mxu0 %v604
  %896 = vmatprep.subr.bf16.mxu0 0
  %897 = vmatpush1.bf16.msra.mxu0 %v607
  %898 = vmatprep.subr.bf16.mxu0 0
  %899 = vmatpush1.bf16.msra.mxu0 %v610
  %900 = vmatprep.subr.bf16.mxu0 0
  %901 = vmatpush1.bf16.msra.mxu0 %v613
  %902 = vmatprep.subr.bf16.mxu0 0
  %903 = vmatpush1.bf16.msra.mxu0 %v616
  %904 = vmatprep.subr.bf16.mxu0 0
  %905 = vmatpush1.bf16.msra.mxu0 %v619
  %906 = vmatprep.subr.bf16.mxu0 0
  %907 = vmatpush1.bf16.msra.mxu0 %v622
  %908 = vmatprep.subr.bf16.mxu0 0
  %909 = vmatpush1.bf16.msra.mxu0 %v625
  %910 = vmatprep.subr.bf16.mxu0 0
  %911 = vmatpush1.bf16.msra.mxu0 %v628
  %912 = vmatprep.subr.bf16.mxu0 0
  %913 = vmatpush1.bf16.msra.mxu0 %v631
  %914 = vmatprep.mubr.bf16.mxu0 %v249
  %915 = vmatmul.mubr.bf16.gmra.mrb[0].mxu0 %v248
  %v916 = vpop.f32.mrb[0].mxu0
  %v917 = vadd.f32 %v220, %v916
  %v918 = vpop.f32.mrb[0].mxu0
  %v919 = vpop.f32.mrb[0].mxu0
  %v920 = vadd.f32 %v220, %v919
  %v921 = vpop.f32.mrb[0].mxu0
  %922 = vmatprep.mubr.bf16.mxu0 %v253
  %923 = vmatmul.mubr.bf16.gmra.mrb[0].mxu0 %v252
  %v924 = vpop.f32.mrb[0].mxu0
  %v925 = vadd.f32 %v220, %v924
  %v926 = vpop.f32.mrb[0].mxu0
  %v927 = vpop.f32.mrb[0].mxu0
  %v928 = vadd.f32 %v220, %v927
  %v929 = vpop.f32.mrb[0].mxu0
  %930 = vdwg.mxu0
  %931 = vmatprep.subr.bf16.mxu0 0
  %932 = vmatpush1.bf16.msra.mxu0 %v634
  %933 = vmatprep.subr.bf16.mxu0 0
  %934 = vmatpush1.bf16.msra.mxu0 %v637
  %935 = vmatprep.subr.bf16.mxu0 0
  %936 = vmatpush1.bf16.msra.mxu0 %v640
  %937 = vmatprep.subr.bf16.mxu0 0
  %938 = vmatpush1.bf16.msra.mxu0 %v643
  %939 = vmatprep.subr.bf16.mxu0 0
  %940 = vmatpush1.bf16.msra.mxu0 %v646
  %941 = vmatprep.subr.bf16.mxu0 0
  %942 = vmatpush1.bf16.msra.mxu0 %v649
  %943 = vmatprep.subr.bf16.mxu0 0
  %944 = vmatpush1.bf16.msra.mxu0 %v652
  %945 = vmatprep.subr.bf16.mxu0 0
  %946 = vmatpush1.bf16.msra.mxu0 %v655
  %947 = vmatprep.subr.bf16.mxu0 0
  %948 = vmatpush1.bf16.msra.mxu0 %v658
  %949 = vmatprep.subr.bf16.mxu0 0
  %950 = vmatpush1.bf16.msra.mxu0 %v661
  %951 = vmatprep.subr.bf16.mxu0 0
  %952 = vmatpush1.bf16.msra.mxu0 %v664
  %953 = vmatprep.subr.bf16.mxu0 0
  %954 = vmatpush1.bf16.msra.mxu0 %v667
  %955 = vmatprep.subr.bf16.mxu0 0
  %956 = vmatpush1.bf16.msra.mxu0 %v670
  %957 = vmatprep.subr.bf16.mxu0 0
  %958 = vmatpush1.bf16.msra.mxu0 %v673
  %959 = vmatprep.subr.bf16.mxu0 0
  %960 = vmatpush1.bf16.msra.mxu0 %v676
  %961 = vmatprep.subr.bf16.mxu0 0
  %962 = vmatpush1.bf16.msra.mxu0 %v679
  %963 = vmatprep.mubr.bf16.mxu0 %v251
  %964 = vmatmul.mubr.bf16.gmra.mrb[0].mxu0 %v250
  %v965 = vpop.f32.mrb[0].mxu0
  %v966 = vadd.f32 %v917, %v965
  %v967 = vpop.f32.mrb[0].mxu0
  %v968 = vpop.f32.mrb[0].mxu0
  %v969 = vadd.f32 %v920, %v968
  %v970 = vpop.f32.mrb[0].mxu0
  %971 = vmatprep.mubr.bf16.mxu0 %v255
  %972 = vmatmul.mubr.bf16.gmra.mrb[0].mxu0 %v254
  %v973 = vpop.f32.mrb[0].mxu0
  %v974 = vadd.f32 %v925, %v973
  %v975 = vpop.f32.mrb[0].mxu0
  %v976 = vpop.f32.mrb[0].mxu0
  %v977 = vadd.f32 %v928, %v976
  %v978 = vpop.f32.mrb[0].mxu0
  %979 = vdwg.mxu0
  %v980 = vld [vmem:[%s1] sm:$0xff]
  %v981 = vld [vmem:[%s1 + $0x8] sm:$0xff]
  %v982 = vld [vmem:[%s1 + $0x10] sm:$0xff]
  %v983 = vld [vmem:[%s1 + $0x18] sm:$0xff]
  %v984 = vld [vmem:[%s1 + $0x20] sm:$0xff]
  %v985 = vld [vmem:[%s1 + $0x28] sm:$0xff]
  %v986 = vld [vmem:[%s1 + $0x30] sm:$0xff]
  %v987 = vld [vmem:[%s1 + $0x38] sm:$0xff]
  %v988 = vld [vmem:[%s1 + $0x40] sm:$0xff]
  %v989 = vadd.f32 %v864, %v980
  %v990 = vadd.f32 %v866, %v981
  %v991 = vadd.f32 %v966, %v982
  %v992 = vadd.f32 %v868, %v983
  %v993 = vadd.f32 %v870, %v984
  %v994 = vadd.f32 %v969, %v985
  %v995 = vadd.f32 %v874, %v980
  %v996 = vadd.f32 %v876, %v981
  %v997 = vadd.f32 %v974, %v982
  %v998 = vadd.f32 %v878, %v983
  %v999 = vadd.f32 %v880, %v984
  %v1000 = vadd.f32 %v977, %v985
  %v1001 = vld [vmem:[%s4] sm:$0x7]
  %v1002 = vld [vmem:[%s5] sm:$0x7]
  %v1003 = vadd.f32 %v989, %v990
  %v1004 = vadd.f32 %v1003, %v991
  %1005 = vadd.xlane.f32.xlu0 %v1004
  %v1006 = vpop.xlane.xlu0 %1005
  %v1007 = vadd.f32 %v992, %v993
  %v1008 = vadd.f32 %v1007, %v994
  %1009 = vadd.xlane.f32.xlu0 %v1008
  %v1010 = vpop.xlane.xlu0 %1009
  %v1011 = vadd.f32 %v986, %v987
  %v1012 = vadd.f32 %v1011, %v988
  %1013 = vadd.xlane.f32.xlu0 %v1012
  %v1014 = vpop.xlane.xlu0 %1013
  %v1015 = vadd.f32 %v995, %v996
  %v1016 = vadd.f32 %v1015, %v997
  %1017 = vadd.xlane.f32.xlu0 %v1016
  %v1018 = vpop.xlane.xlu0 %1017
  %v1019 = vadd.f32 %v998, %v999
  %v1020 = vadd.f32 %v1019, %v1000
  %1021 = vadd.xlane.f32.xlu0 %v1020
  %v1022 = vpop.xlane.xlu0 %1021
  %v1023 = vmul.f32 %v1006, 0.002770083
  %v1024 = vmul.f32 %v1010, 0.002770083
  %v1025 = vmul.f32 %v1014, 0.002770083
  %v1026 = vmul.f32 %v1018, 0.002770083
  %v1027 = vmul.f32 %v1022, 0.002770083
  %v1028 = vsub.f32 %v989, %v1023
  %v1029 = vsub.f32 %v990, %v1023
  %v1030 = vsub.f32 %v991, %v1023
  %v1031 = vsub.f32 %v992, %v1024
  %v1032 = vsub.f32 %v993, %v1024
  %v1033 = vsub.f32 %v994, %v1024
  %v1034 = vsub.f32 %v986, %v1025
  %v1035 = vsub.f32 %v987, %v1025
  %v1036 = vsub.f32 %v988, %v1025
  %v1037 = vsub.f32 %v995, %v1026
  %v1038 = vsub.f32 %v996, %v1026
  %v1039 = vsub.f32 %v997, %v1026
  %v1040 = vsub.f32 %v998, %v1027
  %v1041 = vsub.f32 %v999, %v1027
  %v1042 = vsub.f32 %v1000, %v1027
  %v1043 = vsel %vm67, 1, 0
  %v1044 = vsel %vm68, 1, 0
  %v1045 = vsel %vm69, 1, 0
  %vm1046 = vcmp.eq.s32.totalorder %v1043, 1
  %vm1047 = vcmp.eq.s32.totalorder %v1044, 1
  %vm1048 = vcmp.eq.s32.totalorder %v1045, 1
  %v1049 = vsel %vm1046, %v1028, 0.0
  %v1050 = vsel %vm1047, %v1029, 0.0
  %v1051 = vsel %vm1048, %v1030, 0.0
  %v1052 = vsel %vm1046, %v1031, 0.0
  %v1053 = vsel %vm1047, %v1032, 0.0
  %v1054 = vsel %vm1048, %v1033, 0.0
  %v1055 = vsel %vm1046, %v1034, 0.0
  %v1056 = vsel %vm1047, %v1035, 0.0
  %v1057 = vsel %vm1048, %v1036, 0.0
  %v1058 = vsel %vm1046, %v1037, 0.0
  %v1059 = vsel %vm1047, %v1038, 0.0
  %v1060 = vsel %vm1048, %v1039, 0.0
  %v1061 = vsel %vm1046, %v1040, 0.0
  %v1062 = vsel %vm1047, %v1041, 0.0
  %v1063 = vsel %vm1048, %v1042, 0.0
  %v1064 = vmul.f32 %v1049, %v1049
  %v1065 = vmul.f32 %v1050, %v1050
  %v1066 = vmul.f32 %v1051, %v1051
  %v1067 = vmul.f32 %v1052, %v1052
  %v1068 = vmul.f32 %v1053, %v1053
  %v1069 = vmul.f32 %v1054, %v1054
  %v1070 = vmul.f32 %v1055, %v1055
  %v1071 = vmul.f32 %v1056, %v1056
  %v1072 = vmul.f32 %v1057, %v1057
  %v1073 = vmul.f32 %v1058, %v1058
  %v1074 = vmul.f32 %v1059, %v1059
  %v1075 = vmul.f32 %v1060, %v1060
  %v1076 = vmul.f32 %v1061, %v1061
  %v1077 = vmul.f32 %v1062, %v1062
  %v1078 = vmul.f32 %v1063, %v1063
  %v1079 = vadd.f32 %v1064, %v1065
  %v1080 = vadd.f32 %v1079, %v1066
  %1081 = vadd.xlane.f32.xlu0 %v1080
  %v1082 = vpop.xlane.xlu0 %1081
  %v1083 = vadd.f32 %v1067, %v1068
  %v1084 = vadd.f32 %v1083, %v1069
  %1085 = vadd.xlane.f32.xlu0 %v1084
  %v1086 = vpop.xlane.xlu0 %1085
  %v1087 = vadd.f32 %v1070, %v1071
  %v1088 = vadd.f32 %v1087, %v1072
  %1089 = vadd.xlane.f32.xlu0 %v1088
  %v1090 = vpop.xlane.xlu0 %1089
  %v1091 = vadd.f32 %v1073, %v1074
  %v1092 = vadd.f32 %v1091, %v1075
  %1093 = vadd.xlane.f32.xlu0 %v1092
  %v1094 = vpop.xlane.xlu0 %1093
  %v1095 = vadd.f32 %v1076, %v1077
  %v1096 = vadd.f32 %v1095, %v1078
  %1097 = vadd.xlane.f32.xlu0 %v1096
  %v1098 = vpop.xlane.xlu0 %1097
  %v1099 = vmul.f32 %v1082, 0.002770083
  %v1100 = vmul.f32 %v1086, 0.002770083
  %v1101 = vmul.f32 %v1090, 0.002770083
  %v1102 = vmul.f32 %v1094, 0.002770083
  %v1103 = vmul.f32 %v1098, 0.002770083
  %v1104 = vadd.f32 %v1099, 1e-05
  %v1105 = vadd.f32 %v1100, 1e-05
  %v1106 = vadd.f32 %v1101, 1e-05
  %v1107 = vadd.f32 %v1102, 1e-05
  %v1108 = vadd.f32 %v1103, 1e-05
  %v1109 = vrsqrt.pop %v1104
  %v1110 = vrsqrt.pop %v1105
  %v1111 = vrsqrt.pop %v1106
  %v1112 = vrsqrt.pop %v1107
  %v1113 = vrsqrt.pop %v1108
  %v1114 = vmul.f32 %v1049, %v1109
  %v1115 = vmul.f32 %v1050, %v1109
  %v1116 = vmul.f32 %v1051, %v1109
  %v1117 = vmul.f32 %v1052, %v1110
  %v1118 = vmul.f32 %v1053, %v1110
  %v1119 = vmul.f32 %v1054, %v1110
  %v1120 = vmul.f32 %v1055, %v1111
  %v1121 = vmul.f32 %v1056, %v1111
  %v1122 = vmul.f32 %v1057, %v1111
  %v1123 = vmul.f32 %v1058, %v1112
  %v1124 = vmul.f32 %v1059, %v1112
  %v1125 = vmul.f32 %v1060, %v1112
  %v1126 = vmul.f32 %v1061, %v1113
  %v1127 = vmul.f32 %v1062, %v1113
  %v1128 = vmul.f32 %v1063, %v1113
  %v1130 = vlaneseq
  %v1131 = vshrl.u32 %v1130, 7
  %v1132 = vsub.s32 0, %v1131
  %v1133 = vrot.slane %v1001, %v1132
  %v1134 = vlaneseq
  %v1135 = vshrl.u32 %v1134, 7
  %v1136 = vsub.s32 1, %v1135
  %v1137 = vrot.slane %v1001, %v1136
  %v1138 = vlaneseq
  %v1139 = vshrl.u32 %v1138, 7
  %v1140 = vsub.s32 2, %v1139
  %v1141 = vrot.slane %v1001, %v1140
  %v1145 = vmul.f32 %v1114, %v1133
  %v1146 = vmul.f32 %v1115, %v1137
  %v1147 = vmul.f32 %v1116, %v1141
  %v1148 = vmul.f32 %v1117, %v1133
  %v1149 = vmul.f32 %v1118, %v1137
  %v1150 = vmul.f32 %v1119, %v1141
  %v1151 = vmul.f32 %v1120, %v1133
  %v1152 = vmul.f32 %v1121, %v1137
  %v1153 = vmul.f32 %v1122, %v1141
  %v1154 = vmul.f32 %v1123, %v1133
  %v1155 = vmul.f32 %v1124, %v1137
  %v1156 = vmul.f32 %v1125, %v1141
  %v1157 = vmul.f32 %v1126, %v1133
  %v1158 = vmul.f32 %v1127, %v1137
  %v1159 = vmul.f32 %v1128, %v1141
  %v1161 = vlaneseq
  %v1162 = vshrl.u32 %v1161, 7
  %v1163 = vsub.s32 0, %v1162
  %v1164 = vrot.slane %v1002, %v1163
  %v1165 = vlaneseq
  %v1166 = vshrl.u32 %v1165, 7
  %v1167 = vsub.s32 1, %v1166
  %v1168 = vrot.slane %v1002, %v1167
  %v1169 = vlaneseq
  %v1170 = vshrl.u32 %v1169, 7
  %v1171 = vsub.s32 2, %v1170
  %v1172 = vrot.slane %v1002, %v1171
  %v1176 = vadd.f32 %v1145, %v1164
  %v1177 = vadd.f32 %v1146, %v1168
  %v1178 = vadd.f32 %v1147, %v1172
  %v1179 = vadd.f32 %v1148, %v1164
  %v1180 = vadd.f32 %v1149, %v1168
  %v1181 = vadd.f32 %v1150, %v1172
  %v1182 = vadd.f32 %v1151, %v1164
  %v1183 = vadd.f32 %v1152, %v1168
  %v1184 = vadd.f32 %v1153, %v1172
  %v1185 = vadd.f32 %v1154, %v1164
  %v1186 = vadd.f32 %v1155, %v1168
  %v1187 = vadd.f32 %v1156, %v1172
  %v1188 = vadd.f32 %v1157, %v1164
  %v1189 = vadd.f32 %v1158, %v1168
  %v1190 = vadd.f32 %v1159, %v1172
  %v1191 = vld [vmem:[%s6] sm:$0xff]
  %v1192 = vld [vmem:[%s6 + $0x8] sm:$0xf]
  %v1193 = vld [vmem:[%s6 + $0xc] sm:$0xff]
  %v1194 = vld [vmem:[%s6 + $0x14] sm:$0xf]
  %v1195 = vld [vmem:[%s6 + $0x18] sm:$0xff]
  %v1196 = vld [vmem:[%s6 + $0x20] sm:$0xf]
  %v1197 = vld [vmem:[%s6 + $0x24] sm:$0xff]
  %v1198 = vld [vmem:[%s6 + $0x2c] sm:$0xf]
  %v1199 = vld [vmem:[%s6 + $0x30] sm:$0xff]
  %v1200 = vld [vmem:[%s6 + $0x38] sm:$0xf]
  %v1201 = vld [vmem:[%s6 + $0x3c] sm:$0xff]
  %v1202 = vld [vmem:[%s6 + $0x44] sm:$0xf]
  %v1203 = vld [vmem:[%s6 + $0x48] sm:$0xff]
  %v1204 = vld [vmem:[%s6 + $0x50] sm:$0xf]
  %v1205 = vld [vmem:[%s6 + $0x54] sm:$0xff]
  %v1206 = vld [vmem:[%s6 + $0x5c] sm:$0xf]
  %v1207 = vld [vmem:[%s6 + $0x60] sm:$0xff]
  %v1208 = vld [vmem:[%s6 + $0x68] sm:$0xf]
  %v1209 = vld [vmem:[%s6 + $0x6c] sm:$0xff]
  %v1210 = vld [vmem:[%s6 + $0x74] sm:$0xf]
  %v1211 = vld [vmem:[%s6 + $0x78] sm:$0xff]
  %v1212 = vld [vmem:[%s6 + $0x80] sm:$0xf]
  %v1213 = vld [vmem:[%s6 + $0x84] sm:$0xff]
  %v1214 = vld [vmem:[%s6 + $0x8c] sm:$0xf]
  %v1215 = vld [vmem:[%s6 + $0x90] sm:$0xff]
  %v1216 = vld [vmem:[%s6 + $0x98] sm:$0xf]
  %v1217 = vld [vmem:[%s6 + $0x9c] sm:$0xff]
  %v1218 = vld [vmem:[%s6 + $0xa4] sm:$0xf]
  %v1219 = vld [vmem:[%s6 + $0xa8] sm:$0xff]
  %v1220 = vld [vmem:[%s6 + $0xb0] sm:$0xf]
  %v1221 = vld [vmem:[%s6 + $0xb4] sm:$0xff]
  %v1222 = vld [vmem:[%s6 + $0xbc] sm:$0xf]
  %v1223 = vld [vmem:[%s6 + $0xc0] sm:$0xff]
  %v1224 = vld [vmem:[%s6 + $0xc8] sm:$0xf]
  %v1225 = vld [vmem:[%s6 + $0xcc] sm:$0xff]
  %v1226 = vld [vmem:[%s6 + $0xd4] sm:$0xf]
  %v1227 = vld [vmem:[%s6 + $0xd8] sm:$0xff]
  %v1228 = vld [vmem:[%s6 + $0xe0] sm:$0xf]
  %v1229 = vld [vmem:[%s6 + $0xe4] sm:$0xff]
  %v1230 = vld [vmem:[%s6 + $0xec] sm:$0xf]
  %v1231 = vld [vmem:[%s6 + $0xf0] sm:$0xff]
  %v1232 = vld [vmem:[%s6 + $0xf8] sm:$0xf]
  %v1233 = vld [vmem:[%s6 + $0xfc] sm:$0xff]
  %v1234 = vld [vmem:[%s6 + $0x104] sm:$0xf]
  %v1235 = vld [vmem:[%s6 + $0x108] sm:$0xff]
  %v1236 = vld [vmem:[%s6 + $0x110] sm:$0xf]
  %v1237 = vld [vmem:[%s6 + $0x114] sm:$0xff]
  %v1238 = vld [vmem:[%s6 + $0x11c] sm:$0xf]
  %v1239 = vld [vmem:[%s6 + $0x120] sm:$0xff]
  %v1240 = vld [vmem:[%s6 + $0x128] sm:$0xf]
  %v1241 = vld [vmem:[%s6 + $0x12c] sm:$0xff]
  %v1242 = vld [vmem:[%s6 + $0x134] sm:$0xf]
  %v1243 = vld [vmem:[%s6 + $0x138] sm:$0xff]
  %v1244 = vld [vmem:[%s6 + $0x140] sm:$0xf]
  %v1245 = vld [vmem:[%s6 + $0x144] sm:$0xff]
  %v1246 = vld [vmem:[%s6 + $0x14c] sm:$0xf]
  %v1247 = vld [vmem:[%s6 + $0x150] sm:$0xff]
  %v1248 = vld [vmem:[%s6 + $0x158] sm:$0xf]
  %v1249 = vld [vmem:[%s6 + $0x15c] sm:$0xff]
  %v1250 = vld [vmem:[%s6 + $0x164] sm:$0xf]
  %v1251 = vld [vmem:[%s6 + $0x168] sm:$0xff]
  %v1252 = vld [vmem:[%s6 + $0x170] sm:$0xf]
  %v1253 = vld [vmem:[%s6 + $0x174] sm:$0xff]
  %v1254 = vld [vmem:[%s6 + $0x17c] sm:$0xf]
  %v1255 = vld [vmem:[%s6 + $0x180] sm:$0xff]
  %v1256 = vld [vmem:[%s6 + $0x188] sm:$0xf]
  %v1257 = vld [vmem:[%s6 + $0x18c] sm:$0xff]
  %v1258 = vld [vmem:[%s6 + $0x194] sm:$0xf]
  %v1259 = vld [vmem:[%s6 + $0x198] sm:$0xff]
  %v1260 = vld [vmem:[%s6 + $0x1a0] sm:$0xf]
  %v1261 = vld [vmem:[%s6 + $0x1a4] sm:$0xff]
  %v1262 = vld [vmem:[%s6 + $0x1ac] sm:$0xf]
  %v1263 = vld [vmem:[%s6 + $0x1b0] sm:$0xff]
  %v1264 = vld [vmem:[%s6 + $0x1b8] sm:$0xf]
  %v1265 = vld [vmem:[%s6 + $0x1bc] sm:$0xff]
  %v1266 = vld [vmem:[%s6 + $0x1c4] sm:$0xf]
  %v1267 = vld [vmem:[%s6 + $0x1c8] sm:$0xff]
  %v1268 = vld [vmem:[%s6 + $0x1d0] sm:$0xf]
  %v1269 = vld [vmem:[%s6 + $0x1d4] sm:$0xff]
  %v1270 = vld [vmem:[%s6 + $0x1dc] sm:$0xf]
  %v1271 = vld [vmem:[%s6 + $0x1e0] sm:$0xff]
  %v1272 = vld [vmem:[%s6 + $0x1e8] sm:$0xf]
  %v1273 = vld [vmem:[%s6 + $0x1ec] sm:$0xff]
  %v1274 = vld [vmem:[%s6 + $0x1f4] sm:$0xf]
  %v1275 = vld [vmem:[%s6 + $0x1f8] sm:$0xff]
  %v1276 = vld [vmem:[%s6 + $0x200] sm:$0xf]
  %v1277 = vld [vmem:[%s6 + $0x204] sm:$0xff]
  %v1278 = vld [vmem:[%s6 + $0x20c] sm:$0xf]
  %v1279 = vld [vmem:[%s6 + $0x210] sm:$0xff]
  %v1280 = vld [vmem:[%s6 + $0x218] sm:$0xf]
  %v1281 = vld [vmem:[%s6 + $0x21c] sm:$0xff]
  %v1282 = vld [vmem:[%s6 + $0x224] sm:$0xf]
  %v1283 = vld [vmem:[%s6 + $0x228] sm:$0xff]
  %v1284 = vld [vmem:[%s6 + $0x230] sm:$0xf]
  %v1285 = vld [vmem:[%s6 + $0x234] sm:$0xff]
  %v1286 = vld [vmem:[%s6 + $0x23c] sm:$0xf]
  %v1287 = vpack.c.bf16 %v1179, %v1176
  %v1288 = vpack.c.bf16 %v1180, %v1177
  %v1289 = vpack.c.bf16 %v1181, %v1178
  %v1290 = vpack.c.bf16 %v1185, %v1182
  %v1291 = vpack.c.bf16 %v1186, %v1183
  %v1292 = vpack.c.bf16 %v1187, %v1184
  %v1293 = vpack.c.bf16 %v1182, %v1188
  %v1294 = vpack.c.bf16 %v1183, %v1189
  %v1295 = vpack.c.bf16 %v1184, %v1190
  %v1392 = vunpack.c.l.b16 %v1191
  %v1393 = vunpack.c.h.b16 %v1191
  %v1394 = vunpack.c.l.b16 %v1192
  %v1395 = vunpack.c.l.b16 %v1193
  %v1396 = vunpack.c.h.b16 %v1193
  %v1397 = vunpack.c.l.b16 %v1194
  %v1398 = vunpack.c.l.b16 %v1195
  %v1399 = vunpack.c.h.b16 %v1195
  %v1400 = vunpack.c.l.b16 %v1196
  %v1401 = vunpack.c.l.b16 %v1197
  %v1402 = vunpack.c.h.b16 %v1197
  %v1403 = vunpack.c.l.b16 %v1198
  %v1404 = vunpack.c.l.b16 %v1199
  %v1405 = vunpack.c.h.b16 %v1199
  %v1406 = vunpack.c.l.b16 %v1200
  %v1407 = vunpack.c.l.b16 %v1201
  %v1408 = vunpack.c.h.b16 %v1201
  %v1409 = vunpack.c.l.b16 %v1202
  %v1410 = vunpack.c.l.b16 %v1203
  %v1411 = vunpack.c.h.b16 %v1203
  %v1412 = vunpack.c.l.b16 %v1204
  %v1413 = vunpack.c.l.b16 %v1205
  %v1414 = vunpack.c.h.b16 %v1205
  %v1415 = vunpack.c.l.b16 %v1206
  %v1416 = vunpack.c.l.b16 %v1207
  %v1417 = vunpack.c.h.b16 %v1207
  %v1418 = vunpack.c.l.b16 %v1208
  %v1419 = vunpack.c.l.b16 %v1209
  %v1420 = vunpack.c.h.b16 %v1209
  %v1421 = vunpack.c.l.b16 %v1210
  %v1422 = vunpack.c.l.b16 %v1211
  %v1423 = vunpack.c.h.b16 %v1211
  %v1424 = vunpack.c.l.b16 %v1212
  %v1425 = vunpack.c.l.b16 %v1213
  %v1426 = vunpack.c.h.b16 %v1213
  %v1427 = vunpack.c.l.b16 %v1214
  %v1428 = vunpack.c.l.b16 %v1215
  %v1429 = vunpack.c.h.b16 %v1215
  %v1430 = vunpack.c.l.b16 %v1216
  %v1431 = vunpack.c.l.b16 %v1217
  %v1432 = vunpack.c.h.b16 %v1217
  %v1433 = vunpack.c.l.b16 %v1218
  %v1434 = vunpack.c.l.b16 %v1219
  %v1435 = vunpack.c.h.b16 %v1219
  %v1436 = vunpack.c.l.b16 %v1220
  %v1437 = vunpack.c.l.b16 %v1221
  %v1438 = vunpack.c.h.b16 %v1221
  %v1439 = vunpack.c.l.b16 %v1222
  %v1440 = vunpack.c.l.b16 %v1223
  %v1441 = vunpack.c.h.b16 %v1223
  %v1442 = vunpack.c.l.b16 %v1224
  %v1443 = vunpack.c.l.b16 %v1225
  %v1444 = vunpack.c.h.b16 %v1225
  %v1445 = vunpack.c.l.b16 %v1226
  %v1446 = vunpack.c.l.b16 %v1227
  %v1447 = vunpack.c.h.b16 %v1227
  %v1448 = vunpack.c.l.b16 %v1228
  %v1449 = vunpack.c.l.b16 %v1229
  %v1450 = vunpack.c.h.b16 %v1229
  %v1451 = vunpack.c.l.b16 %v1230
  %v1452 = vunpack.c.l.b16 %v1231
  %v1453 = vunpack.c.h.b16 %v1231
  %v1454 = vunpack.c.l.b16 %v1232
  %v1455 = vunpack.c.l.b16 %v1233
  %v1456 = vunpack.c.h.b16 %v1233
  %v1457 = vunpack.c.l.b16 %v1234
  %v1458 = vunpack.c.l.b16 %v1235
  %v1459 = vunpack.c.h.b16 %v1235
  %v1460 = vunpack.c.l.b16 %v1236
  %v1461 = vunpack.c.l.b16 %v1237
  %v1462 = vunpack.c.h.b16 %v1237
  %v1463 = vunpack.c.l.b16 %v1238
  %v1464 = vunpack.c.l.b16 %v1239
  %v1465 = vunpack.c.h.b16 %v1239
  %v1466 = vunpack.c.l.b16 %v1240
  %v1467 = vunpack.c.l.b16 %v1241
  %v1468 = vunpack.c.h.b16 %v1241
  %v1469 = vunpack.c.l.b16 %v1242
  %v1470 = vunpack.c.l.b16 %v1243
  %v1471 = vunpack.c.h.b16 %v1243
  %v1472 = vunpack.c.l.b16 %v1244
  %v1473 = vunpack.c.l.b16 %v1245
  %v1474 = vunpack.c.h.b16 %v1245
  %v1475 = vunpack.c.l.b16 %v1246
  %v1476 = vunpack.c.l.b16 %v1247
  %v1477 = vunpack.c.h.b16 %v1247
  %v1478 = vunpack.c.l.b16 %v1248
  %v1479 = vunpack.c.l.b16 %v1249
  %v1480 = vunpack.c.h.b16 %v1249
  %v1481 = vunpack.c.l.b16 %v1250
  %v1482 = vunpack.c.l.b16 %v1251
  %v1483 = vunpack.c.h.b16 %v1251
  %v1484 = vunpack.c.l.b16 %v1252
  %v1485 = vunpack.c.l.b16 %v1253
  %v1486 = vunpack.c.h.b16 %v1253
  %v1487 = vunpack.c.l.b16 %v1254
  %v1488 = vunpack.c.l.b16 %v1255
  %v1489 = vunpack.c.h.b16 %v1255
  %v1490 = vunpack.c.l.b16 %v1256
  %v1491 = vunpack.c.l.b16 %v1257
  %v1492 = vunpack.c.h.b16 %v1257
  %v1493 = vunpack.c.l.b16 %v1258
  %v1494 = vunpack.c.l.b16 %v1259
  %v1495 = vunpack.c.h.b16 %v1259
  %v1496 = vunpack.c.l.b16 %v1260
  %v1497 = vunpack.c.l.b16 %v1261
  %v1498 = vunpack.c.h.b16 %v1261
  %v1499 = vunpack.c.l.b16 %v1262
  %v1500 = vunpack.c.l.b16 %v1263
  %v1501 = vunpack.c.h.b16 %v1263
  %v1502 = vunpack.c.l.b16 %v1264
  %v1503 = vunpack.c.l.b16 %v1265
  %v1504 = vunpack.c.h.b16 %v1265
  %v1505 = vunpack.c.l.b16 %v1266
  %v1506 = vunpack.c.l.b16 %v1267
  %v1507 = vunpack.c.h.b16 %v1267
  %v1508 = vunpack.c.l.b16 %v1268
  %v1509 = vunpack.c.l.b16 %v1269
  %v1510 = vunpack.c.h.b16 %v1269
  %v1511 = vunpack.c.l.b16 %v1270
  %v1512 = vunpack.c.l.b16 %v1271
  %v1513 = vunpack.c.h.b16 %v1271
  %v1514 = vunpack.c.l.b16 %v1272
  %v1515 = vunpack.c.l.b16 %v1273
  %v1516 = vunpack.c.h.b16 %v1273
  %v1517 = vunpack.c.l.b16 %v1274
  %v1518 = vunpack.c.l.b16 %v1275
  %v1519 = vunpack.c.h.b16 %v1275
  %v1520 = vunpack.c.l.b16 %v1276
  %v1521 = vunpack.c.l.b16 %v1277
  %v1522 = vunpack.c.h.b16 %v1277
  %v1523 = vunpack.c.l.b16 %v1278
  %v1524 = vunpack.c.l.b16 %v1279
  %v1525 = vunpack.c.h.b16 %v1279
  %v1526 = vunpack.c.l.b16 %v1280
  %v1527 = vunpack.c.l.b16 %v1281
  %v1528 = vunpack.c.h.b16 %v1281
  %v1529 = vunpack.c.l.b16 %v1282
  %v1530 = vunpack.c.l.b16 %v1283
  %v1531 = vunpack.c.h.b16 %v1283
  %v1532 = vunpack.c.l.b16 %v1284
  %v1533 = vunpack.c.l.b16 %v1285
  %v1534 = vunpack.c.h.b16 %v1285
  %v1535 = vunpack.c.l.b16 %v1286
  %v1536 = vpack.c.b16 %v1395, %v1392
  %v1537 = vpack.c.b16 %v1396, %v1393
  %v1538 = vpack.c.b16 %v1397, %v1394
  %v1539 = vpack.c.b16 %v1401, %v1398
  %v1540 = vpack.c.b16 %v1402, %v1399
  %v1541 = vpack.c.b16 %v1403, %v1400
  %v1542 = vpack.c.b16 %v1407, %v1404
  %v1543 = vpack.c.b16 %v1408, %v1405
  %v1544 = vpack.c.b16 %v1409, %v1406
  %v1545 = vpack.c.b16 %v1413, %v1410
  %v1546 = vpack.c.b16 %v1414, %v1411
  %v1547 = vpack.c.b16 %v1415, %v1412
  %v1548 = vpack.c.b16 %v1419, %v1416
  %v1549 = vpack.c.b16 %v1420, %v1417
  %v1550 = vpack.c.b16 %v1421, %v1418
  %v1551 = vpack.c.b16 %v1425, %v1422
  %v1552 = vpack.c.b16 %v1426, %v1423
  %v1553 = vpack.c.b16 %v1427, %v1424
  %v1554 = vpack.c.b16 %v1431, %v1428
  %v1555 = vpack.c.b16 %v1432, %v1429
  %v1556 = vpack.c.b16 %v1433, %v1430
  %v1557 = vpack.c.b16 %v1437, %v1434
  %v1558 = vpack.c.b16 %v1438, %v1435
  %v1559 = vpack.c.b16 %v1439, %v1436
  %v1560 = vpack.c.b16 %v1443, %v1440
  %v1561 = vpack.c.b16 %v1444, %v1441
  %v1562 = vpack.c.b16 %v1445, %v1442
  %v1563 = vpack.c.b16 %v1449, %v1446
  %v1564 = vpack.c.b16 %v1450, %v1447
  %v1565 = vpack.c.b16 %v1451, %v1448
  %v1566 = vpack.c.b16 %v1455, %v1452
  %v1567 = vpack.c.b16 %v1456, %v1453
  %v1568 = vpack.c.b16 %v1457, %v1454
  %v1569 = vpack.c.b16 %v1461, %v1458
  %v1570 = vpack.c.b16 %v1462, %v1459
  %v1571 = vpack.c.b16 %v1463, %v1460
  %v1572 = vpack.c.b16 %v1467, %v1464
  %v1573 = vpack.c.b16 %v1468, %v1465
  %v1574 = vpack.c.b16 %v1469, %v1466
  %v1575 = vpack.c.b16 %v1473, %v1470
  %v1576 = vpack.c.b16 %v1474, %v1471
  %v1577 = vpack.c.b16 %v1475, %v1472
  %v1578 = vpack.c.b16 %v1479, %v1476
  %v1579 = vpack.c.b16 %v1480, %v1477
  %v1580 = vpack.c.b16 %v1481, %v1478
  %v1581 = vpack.c.b16 %v1485, %v1482
  %v1582 = vpack.c.b16 %v1486, %v1483
  %v1583 = vpack.c.b16 %v1487, %v1484
  %v1584 = vpack.c.b16 %v1491, %v1488
  %v1585 = vpack.c.b16 %v1492, %v1489
  %v1586 = vpack.c.b16 %v1493, %v1490
  %v1587 = vpack.c.b16 %v1497, %v1494
  %v1588 = vpack.c.b16 %v1498, %v1495
  %v1589 = vpack.c.b16 %v1499, %v1496
  %v1590 = vpack.c.b16 %v1503, %v1500
  %v1591 = vpack.c.b16 %v1504, %v1501
  %v1592 = vpack.c.b16 %v1505, %v1502
  %v1593 = vpack.c.b16 %v1509, %v1506
  %v1594 = vpack.c.b16 %v1510, %v1507
  %v1595 = vpack.c.b16 %v1511, %v1508
  %v1596 = vpack.c.b16 %v1515, %v1512
  %v1597 = vpack.c.b16 %v1516, %v1513
  %v1598 = vpack.c.b16 %v1517, %v1514
  %v1599 = vpack.c.b16 %v1521, %v1518
  %v1600 = vpack.c.b16 %v1522, %v1519
  %v1601 = vpack.c.b16 %v1523, %v1520
  %v1602 = vpack.c.b16 %v1527, %v1524
  %v1603 = vpack.c.b16 %v1528, %v1525
  %v1604 = vpack.c.b16 %v1529, %v1526
  %v1605 = vpack.c.b16 %v1533, %v1530
  %v1606 = vpack.c.b16 %v1534, %v1531
  %v1607 = vpack.c.b16 %v1535, %v1532
  %1680 = vmatprep.subr.bf16.mxu0 %v1537
  %1681 = vmatpush1.bf16.msra.mxu0 %v1536
  %1682 = vmatprep.subr.bf16.mxu0 %v1540
  %1683 = vmatpush1.bf16.msra.mxu0 %v1539
  %1684 = vmatprep.subr.bf16.mxu0 %v1543
  %1685 = vmatpush1.bf16.msra.mxu0 %v1542
  %1686 = vmatprep.subr.bf16.mxu0 %v1546
  %1687 = vmatpush1.bf16.msra.mxu0 %v1545
  %1688 = vmatprep.subr.bf16.mxu0 %v1549
  %1689 = vmatpush1.bf16.msra.mxu0 %v1548
  %1690 = vmatprep.subr.bf16.mxu0 %v1552
  %1691 = vmatpush1.bf16.msra.mxu0 %v1551
  %1692 = vmatprep.subr.bf16.mxu0 %v1555
  %1693 = vmatpush1.bf16.msra.mxu0 %v1554
  %1694 = vmatprep.subr.bf16.mxu0 %v1558
  %1695 = vmatpush1.bf16.msra.mxu0 %v1557
  %1696 = vmatprep.subr.bf16.mxu0 %v1561
  %1697 = vmatpush1.bf16.msra.mxu0 %v1560
  %1698 = vmatprep.subr.bf16.mxu0 %v1564
  %1699 = vmatpush1.bf16.msra.mxu0 %v1563
  %1700 = vmatprep.subr.bf16.mxu0 %v1567
  %1701 = vmatpush1.bf16.msra.mxu0 %v1566
  %1702 = vmatprep.subr.bf16.mxu0 %v1570
  %1703 = vmatpush1.bf16.msra.mxu0 %v1569
  %1704 = vmatprep.subr.bf16.mxu0 %v1573
  %1705 = vmatpush1.bf16.msra.mxu0 %v1572
  %1706 = vmatprep.subr.bf16.mxu0 %v1576
  %1707 = vmatpush1.bf16.msra.mxu0 %v1575
  %1708 = vmatprep.subr.bf16.mxu0 %v1579
  %1709 = vmatpush1.bf16.msra.mxu0 %v1578
  %1710 = vmatprep.subr.bf16.mxu0 %v1582
  %1711 = vmatpush1.bf16.msra.mxu0 %v1581
  %1712 = vmatprep.mubr.bf16.mxu0 %v1288
  %1713 = vmatmul.mubr.bf16.gmra.mrb[0].mxu0 %v1287
  %v1714 = vpop.f32.mrb[0].mxu0
  %v1715 = vadd.f32 0.0, %v1714
  %v1716 = vpop.f32.mrb[0].mxu0
  %v1717 = vadd.f32 0.0, %v1716
  %v1718 = vpop.f32.mrb[0].mxu0
  %v1719 = vadd.f32 0.0, %v1718
  %v1720 = vpop.f32.mrb[0].mxu0
  %v1721 = vadd.f32 0.0, %v1720
  %1722 = vmatprep.mubr.bf16.mxu0 %v1291
  %1723 = vmatmul.mubr.bf16.gmra.mrb[0].mxu0 %v1290
  %v1724 = vpop.f32.mrb[0].mxu0
  %v1725 = vadd.f32 0.0, %v1724
  %v1726 = vpop.f32.mrb[0].mxu0
  %v1727 = vadd.f32 0.0, %v1726
  %v1728 = vpop.f32.mrb[0].mxu0
  %v1729 = vadd.f32 0.0, %v1728
  %v1730 = vpop.f32.mrb[0].mxu0
  %v1731 = vadd.f32 0.0, %v1730
  %1732 = vmatprep.mubr.bf16.mxu0 %v1294
  %1733 = vmatmul.mubr.bf16.gmra.mrb[0].mxu0 %v1293
  %v1734 = vpop.f32.mrb[0].mxu0
  %v1735 = vadd.f32 0.0, %v1734
  %v1736 = vpop.f32.mrb[0].mxu0
  %v1737 = vadd.f32 0.0, %v1736
  %v1738 = vpop.f32.mrb[0].mxu0
  %v1739 = vadd.f32 0.0, %v1738
  %v1740 = vpop.f32.mrb[0].mxu0
  %v1741 = vadd.f32 0.0, %v1740
  %1742 = vdwg.mxu0
  %1743 = vmatprep.subr.bf16.mxu0 %v1585
  %1744 = vmatpush1.bf16.msra.mxu0 %v1584
  %1745 = vmatprep.subr.bf16.mxu0 %v1588
  %1746 = vmatpush1.bf16.msra.mxu0 %v1587
  %1747 = vmatprep.subr.bf16.mxu0 %v1591
  %1748 = vmatpush1.bf16.msra.mxu0 %v1590
  %1749 = vmatprep.subr.bf16.mxu0 %v1594
  %1750 = vmatpush1.bf16.msra.mxu0 %v1593
  %1751 = vmatprep.subr.bf16.mxu0 %v1597
  %1752 = vmatpush1.bf16.msra.mxu0 %v1596
  %1753 = vmatprep.subr.bf16.mxu0 %v1600
  %1754 = vmatpush1.bf16.msra.mxu0 %v1599
  %1755 = vmatprep.subr.bf16.mxu0 %v1603
  %1756 = vmatpush1.bf16.msra.mxu0 %v1602
  %1757 = vmatprep.subr.bf16.mxu0 %v1606
  %1758 = vmatpush1.bf16.msra.mxu0 %v1605
  %1759 = vmatprep.subr.bf16.mxu0 0
  %1760 = vmatpush1.bf16.msra.mxu0 0
  %1761 = vmatprep.subr.bf16.mxu0 0
  %1762 = vmatpush1.bf16.msra.mxu0 0
  %1763 = vmatprep.subr.bf16.mxu0 0
  %1764 = vmatpush1.bf16.msra.mxu0 0
  %1765 = vmatprep.subr.bf16.mxu0 0
  %1766 = vmatpush1.bf16.msra.mxu0 0
  %1767 = vmatprep.subr.bf16.mxu0 0
  %1768 = vmatpush1.bf16.msra.mxu0 0
  %1769 = vmatprep.subr.bf16.mxu0 0
  %1770 = vmatpush1.bf16.msra.mxu0 0
  %1771 = vmatprep.subr.bf16.mxu0 0
  %1772 = vmatpush1.bf16.msra.mxu0 0
  %1773 = vmatprep.subr.bf16.mxu0 0
  %1774 = vmatpush1.bf16.msra.mxu0 0
  %1775 = vmatprep.mubr.bf16.mxu0 0
  %1776 = vmatmul.mubr.bf16.gmra.mrb[0].mxu0 %v1289
  %v1777 = vpop.f32.mrb[0].mxu0
  %v1778 = vadd.f32 %v1715, %v1777
  %v1779 = vpop.f32.mrb[0].mxu0
  %v1780 = vadd.f32 %v1717, %v1779
  %v1781 = vpop.f32.mrb[0].mxu0
  %v1782 = vadd.f32 %v1719, %v1781
  %v1783 = vpop.f32.mrb[0].mxu0
  %v1784 = vadd.f32 %v1721, %v1783
  %1785 = vmatprep.mubr.bf16.mxu0 0
  %1786 = vmatmul.mubr.bf16.gmra.mrb[0].mxu0 %v1292
  %v1787 = vpop.f32.mrb[0].mxu0
  %v1788 = vadd.f32 %v1725, %v1787
  %v1789 = vpop.f32.mrb[0].mxu0
  %v1790 = vadd.f32 %v1727, %v1789
  %v1791 = vpop.f32.mrb[0].mxu0
  %v1792 = vadd.f32 %v1729, %v1791
  %v1793 = vpop.f32.mrb[0].mxu0
  %v1794 = vadd.f32 %v1731, %v1793
  %1795 = vmatprep.mubr.bf16.mxu0 0
  %1796 = vmatmul.mubr.bf16.gmra.mrb[0].mxu0 %v1295
  %v1797 = vpop.f32.mrb[0].mxu0
  %v1798 = vadd.f32 %v1735, %v1797
  %v1799 = vpop.f32.mrb[0].mxu0
  %v1800 = vadd.f32 %v1737, %v1799
  %v1801 = vpop.f32.mrb[0].mxu0
  %v1802 = vadd.f32 %v1739, %v1801
  %v1803 = vpop.f32.mrb[0].mxu0
  %v1804 = vadd.f32 %v1741, %v1803
  %1805 = vdwg.mxu0
  %1806 = vmatprep.subr.bf16.mxu0 0
  %1807 = vmatpush1.bf16.msra.mxu0 %v1538
  %1808 = vmatprep.subr.bf16.mxu0 0
  %1809 = vmatpush1.bf16.msra.mxu0 %v1541
  %1810 = vmatprep.subr.bf16.mxu0 0
  %1811 = vmatpush1.bf16.msra.mxu0 %v1544
  %1812 = vmatprep.subr.bf16.mxu0 0
  %1813 = vmatpush1.bf16.msra.mxu0 %v1547
  %1814 = vmatprep.subr.bf16.mxu0 0
  %1815 = vmatpush1.bf16.msra.mxu0 %v1550
  %1816 = vmatprep.subr.bf16.mxu0 0
  %1817 = vmatpush1.bf16.msra.mxu0 %v1553
  %1818 = vmatprep.subr.bf16.mxu0 0
  %1819 = vmatpush1.bf16.msra.mxu0 %v1556
  %1820 = vmatprep.subr.bf16.mxu0 0
  %1821 = vmatpush1.bf16.msra.mxu0 %v1559
  %1822 = vmatprep.subr.bf16.mxu0 0
  %1823 = vmatpush1.bf16.msra.mxu0 %v1562
  %1824 = vmatprep.subr.bf16.mxu0 0
  %1825 = vmatpush1.bf16.msra.mxu0 %v1565
  %1826 = vmatprep.subr.bf16.mxu0 0
  %1827 = vmatpush1.bf16.msra.mxu0 %v1568
  %1828 = vmatprep.subr.bf16.mxu0 0
  %1829 = vmatpush1.bf16.msra.mxu0 %v1571
  %1830 = vmatprep.subr.bf16.mxu0 0
  %1831 = vmatpush1.bf16.msra.mxu0 %v1574
  %1832 = vmatprep.subr.bf16.mxu0 0
  %1833 = vmatpush1.bf16.msra.mxu0 %v1577
  %1834 = vmatprep.subr.bf16.mxu0 0
  %1835 = vmatpush1.bf16.msra.mxu0 %v1580
  %1836 = vmatprep.subr.bf16.mxu0 0
  %1837 = vmatpush1.bf16.msra.mxu0 %v1583
  %1838 = vmatprep.mubr.bf16.mxu0 %v1288
  %1839 = vmatmul.mubr.bf16.gmra.mrb[0].mxu0 %v1287
  %v1840 = vpop.f32.mrb[0].mxu0
  %v1841 = vadd.f32 0.0, %v1840
  %v1842 = vpop.f32.mrb[0].mxu0
  %v1843 = vpop.f32.mrb[0].mxu0
  %v1844 = vadd.f32 0.0, %v1843
  %v1845 = vpop.f32.mrb[0].mxu0
  %1846 = vmatprep.mubr.bf16.mxu0 %v1291
  %1847 = vmatmul.mubr.bf16.gmra.mrb[0].mxu0 %v1290
  %v1848 = vpop.f32.mrb[0].mxu0
  %v1849 = vadd.f32 0.0, %v1848
  %v1850 = vpop.f32.mrb[0].mxu0
  %v1851 = vpop.f32.mrb[0].mxu0
  %v1852 = vadd.f32 0.0, %v1851
  %v1853 = vpop.f32.mrb[0].mxu0
  %1854 = vmatprep.mubr.bf16.mxu0 %v1294
  %1855 = vmatmul.mubr.bf16.gmra.mrb[0].mxu0 %v1293
  %v1856 = vpop.f32.mrb[0].mxu0
  %v1857 = vadd.f32 0.0, %v1856
  %v1858 = vpop.f32.mrb[0].mxu0
  %v1859 = vpop.f32.mrb[0].mxu0
  %v1860 = vadd.f32 0.0, %v1859
  %v1861 = vpop.f32.mrb[0].mxu0
  %1862 = vdwg.mxu0
  %1863 = vmatprep.subr.bf16.mxu0 0
  %1864 = vmatpush1.bf16.msra.mxu0 %v1586
  %1865 = vmatprep.subr.bf16.mxu0 0
  %1866 = vmatpush1.bf16.msra.mxu0 %v1589
  %1867 = vmatprep.subr.bf16.mxu0 0
  %1868 = vmatpush1.bf16.msra.mxu0 %v1592
  %1869 = vmatprep.subr.bf16.mxu0 0
  %1870 = vmatpush1.bf16.msra.mxu0 %v1595
  %1871 = vmatprep.subr.bf16.mxu0 0
  %1872 = vmatpush1.bf16.msra.mxu0 %v1598
  %1873 = vmatprep.subr.bf16.mxu0 0
  %1874 = vmatpush1.bf16.msra.mxu0 %v1601
  %1875 = vmatprep.subr.bf16.mxu0 0
  %1876 = vmatpush1.bf16.msra.mxu0 %v1604
  %1877 = vmatprep.subr.bf16.mxu0 0
  %1878 = vmatpush1.bf16.msra.mxu0 %v1607
  %1879 = vmatprep.subr.bf16.mxu0 0
  %1880 = vmatpush1.bf16.msra.mxu0 0
  %1881 = vmatprep.subr.bf16.mxu0 0
  %1882 = vmatpush1.bf16.msra.mxu0 0
  %1883 = vmatprep.subr.bf16.mxu0 0
  %1884 = vmatpush1.bf16.msra.mxu0 0
  %1885 = vmatprep.subr.bf16.mxu0 0
  %1886 = vmatpush1.bf16.msra.mxu0 0
  %1887 = vmatprep.subr.bf16.mxu0 0
  %1888 = vmatpush1.bf16.msra.mxu0 0
  %1889 = vmatprep.subr.bf16.mxu0 0
  %1890 = vmatpush1.bf16.msra.mxu0 0
  %1891 = vmatprep.subr.bf16.mxu0 0
  %1892 = vmatpush1.bf16.msra.mxu0 0
  %1893 = vmatprep.subr.bf16.mxu0 0
  %1894 = vmatpush1.bf16.msra.mxu0 0
  %1895 = vmatprep.mubr.bf16.mxu0 0
  %1896 = vmatmul.mubr.bf16.gmra.mrb[0].mxu0 %v1289
  %v1897 = vpop.f32.mrb[0].mxu0
  %v1898 = vadd.f32 %v1841, %v1897
  %v1899 = vpop.f32.mrb[0].mxu0
  %v1900 = vpop.f32.mrb[0].mxu0
  %v1901 = vadd.f32 %v1844, %v1900
  %v1902 = vpop.f32.mrb[0].mxu0
  %1903 = vmatprep.mubr.bf16.mxu0 0
  %1904 = vmatmul.mubr.bf16.gmra.mrb[0].mxu0 %v1292
  %v1905 = vpop.f32.mrb[0].mxu0
  %v1906 = vadd.f32 %v1849, %v1905
  %v1907 = vpop.f32.mrb[0].mxu0
  %v1908 = vpop.f32.mrb[0].mxu0
  %v1909 = vadd.f32 %v1852, %v1908
  %v1910 = vpop.f32.mrb[0].mxu0
  %1911 = vmatprep.mubr.bf16.mxu0 0
  %1912 = vmatmul.mubr.bf16.gmra.mrb[0].mxu0 %v1295
  %v1913 = vpop.f32.mrb[0].mxu0
  %v1914 = vadd.f32 %v1857, %v1913
  %v1915 = vpop.f32.mrb[0].mxu0
  %v1916 = vpop.f32.mrb[0].mxu0
  %v1917 = vadd.f32 %v1860, %v1916
  %v1918 = vpop.f32.mrb[0].mxu0
  %1919 = vdwg.mxu0
  %v1920 = vpack.c.bf16 %v1782, %v1778
  %v1921 = vpack.c.bf16 %v1784, %v1780
  %v1922 = vpack.c.bf16 %v1901, %v1898
  %v1923 = vpack.c.bf16 %v1788, %v1788
  %v1924 = vpack.c.bf16 %v1790, %v1790
  %v1925 = vpack.c.bf16 %v1906, %v1906
  %vm1926 = vcmask 261120
  %v1928 = vsel %vm1926, %v1920, 0
  %v1931 = vsel %vm1926, %v1923, 0
  %v1934 = vsel %vm1926, %v1921, 0
  %v1937 = vsel %vm1926, %v1924, 0
  %1939 = vmatprep.subr.bf16.mxu0 0
  %1940 = vmatpush1.bf16.xpose.msra.mxu0 %v1934
  %1941 = vmatprep.subr.bf16.mxu0 0
  %1942 = vmatpush1.bf16.xpose.msra.mxu0 %v1937
  %1943 = vmatprep.subr.bf16.mxu0 0
  %1944 = vmatpush1.bf16.xpose.msra.mxu0 0
  %1945 = vmatprep.subr.bf16.mxu0 0
  %1946 = vmatpush1.bf16.xpose.msra.mxu0 0
  %1947 = vmatprep.subr.bf16.mxu0 0
  %1948 = vmatpush1.bf16.xpose.msra.mxu0 0
  %1949 = vmatprep.subr.bf16.mxu0 0
  %1950 = vmatpush1.bf16.xpose.msra.mxu0 0
  %1951 = vmatprep.subr.bf16.mxu0 0
  %1952 = vmatpush1.bf16.xpose.msra.mxu0 0
  %1953 = vmatprep.subr.bf16.mxu0 0
  %1954 = vmatpush1.bf16.xpose.msra.mxu0 0
  %1955 = vmatprep.subr.bf16.mxu0 0
  %1956 = vmatpush1.bf16.xpose.msra.mxu0 0
  %1957 = vmatprep.subr.bf16.mxu0 0
  %1958 = vmatpush1.bf16.xpose.msra.mxu0 0
  %1959 = vmatprep.subr.bf16.mxu0 0
  %1960 = vmatpush1.bf16.xpose.msra.mxu0 0
  %1961 = vmatprep.subr.bf16.mxu0 0
  %1962 = vmatpush1.bf16.xpose.msra.mxu0 0
  %1963 = vmatprep.subr.bf16.mxu0 0
  %1964 = vmatpush1.bf16.xpose.msra.mxu0 0
  %1965 = vmatprep.subr.bf16.mxu0 0
  %1966 = vmatpush1.bf16.xpose.msra.mxu0 0
  %1967 = vmatprep.subr.bf16.mxu0 0
  %1968 = vmatpush1.bf16.xpose.msra.mxu0 0
  %1969 = vmatprep.subr.bf16.mxu0 0
  %1970 = vmatpush1.bf16.xpose.msra.mxu0 0
  %1971 = vmatprep.mubr.bf16.mxu0 0
  %1972 = vmatmul.mubr.bf16.gmra.mrb[0].mxu0 %v1928
  %v1973 = vpop.f32.mrb[0].mxu0
  %v1974 = vadd.f32 0.0, %v1973
  %v1975 = vpop.f32.mrb[0].mxu0
  %v1976 = vpop.f32.mrb[0].mxu0
  %v1977 = vadd.f32 0.0, %v1976
  %v1978 = vpop.f32.mrb[0].mxu0
  %1979 = vmatprep.mubr.bf16.mxu0 0
  %1980 = vmatmul.mubr.bf16.gmra.mrb[0].mxu0 %v1931
  %v1981 = vpop.f32.mrb[0].mxu0
  %v1982 = vadd.f32 0.0, %v1981
  %v1983 = vpop.f32.mrb[0].mxu0
  %v1984 = vpop.f32.mrb[0].mxu0
  %v1985 = vpop.f32.mrb[0].mxu0
  %1986 = vdwg.mxu0
  %v1987 = vmul.f32 %v1974, 0.17677669
  %v1988 = vmul.f32 %v1977, 0.17677669
  %v1989 = vmul.f32 %v1982, 0.17677669
  %v1990 = vsel %vm70, %v1987, -1e+30
  %v1991 = vsel %vm70, %v1988, -1e+30
  %v1992 = vsel %vm70, %v1989, -1e+30
  %vm1993 = vcmask 195584
  %v1994 = vsel %vm1993, %v1990, -inf
  %1995 = vmax.xlane.f32.xlu0 %v1994
  %v1996 = vpop.xlane.xlu0 %1995
  %v1997 = vsel %vm1993, %v1991, -inf
  %1998 = vmax.xlane.f32.xlu0 %v1997
  %v1999 = vpop.xlane.xlu0 %1998
  %v2000 = vsel %vm1993, %v1992, -inf
  %2001 = vmax.xlane.f32.xlu0 %v2000
  %v2002 = vpop.xlane.xlu0 %2001
  %v2003 = vsub.f32 %v1990, %v1996
  %v2004 = vsub.f32 %v1991, %v1999
  %v2005 = vsub.f32 %v1992, %v2002
  %v2006 = vmul.f32 %v2003, 1.442695
  %v2007 = vpow.pop %v2006
  %v2008 = vmul.f32 %v2004, 1.442695
  %v2009 = vpow.pop %v2008
  %v2010 = vmul.f32 %v2005, 1.442695
  %v2011 = vpow.pop %v2010
  %v2012 = vsel %vm1993, %v2007, 0.0
  %2013 = vadd.xlane.f32.xlu0 %v2012
  %v2014 = vpop.xlane.xlu0 %2013
  %v2015 = vsel %vm1993, %v2009, 0.0
  %2016 = vadd.xlane.f32.xlu0 %v2015
  %v2017 = vpop.xlane.xlu0 %2016
  %v2018 = vsel %vm1993, %v2011, 0.0
  %2019 = vadd.xlane.f32.xlu0 %v2018
  %v2020 = vpop.xlane.xlu0 %2019
  %v2021 = vrcp.pop %v2014
  %v2022 = vrcp.pop %v2017
  %v2023 = vrcp.pop %v2020
  %v2024 = vmul.f32 %v2007, %v2021
  %v2025 = vmul.f32 %v2009, %v2022
  %v2026 = vmul.f32 %v2011, %v2023
  %v2027 = vpack.c.bf16 %v2025, %v2024
  %v2028 = vpack.c.bf16 %v2026, %v2026
  %v2030 = vsel %vm1993, %v2027, 0
  %v2033 = vsel %vm1993, %v2028, 0
  %vm2035 = vcmask 1043456
  %v2037 = vsel %vm2035, %v1925, 0
  %2039 = vmatprep.subr.bf16.mxu0 0
  %2040 = vmatpush1.bf16.msra.mxu0 %v1922
  %2041 = vmatprep.subr.bf16.mxu0 0
  %2042 = vmatpush1.bf16.msra.mxu0 %v2037
  %2043 = vmatprep.subr.bf16.mxu0 0
  %2044 = vmatpush1.bf16.msra.mxu0 0
  %2045 = vmatprep.subr.bf16.mxu0 0
  %2046 = vmatpush1.bf16.msra.mxu0 0
  %2047 = vmatprep.subr.bf16.mxu0 0
  %2048 = vmatpush1.bf16.msra.mxu0 0
  %2049 = vmatprep.subr.bf16.mxu0 0
  %2050 = vmatpush1.bf16.msra.mxu0 0
  %2051 = vmatprep.subr.bf16.mxu0 0
  %2052 = vmatpush1.bf16.msra.mxu0 0
  %2053 = vmatprep.subr.bf16.mxu0 0
  %2054 = vmatpush1.bf16.msra.mxu0 0
  %2055 = vmatprep.subr.bf16.mxu0 0
  %2056 = vmatpush1.bf16.msra.mxu0 0
  %2057 = vmatprep.subr.bf16.mxu0 0
  %2058 = vmatpush1.bf16.msra.mxu0 0
  %2059 = vmatprep.subr.bf16.mxu0 0
  %2060 = vmatpush1.bf16.msra.mxu0 0
  %2061 = vmatprep.subr.bf16.mxu0 0
  %2062 = vmatpush1.bf16.msra.mxu0 0
  %2063 = vmatprep.subr.bf16.mxu0 0
  %2064 = vmatpush1.bf16.msra.mxu0 0
  %2065 = vmatprep.subr.bf16.mxu0 0
  %2066 = vmatpush1.bf16.msra.mxu0 0
  %2067 = vmatprep.subr.bf16.mxu0 0
  %2068 = vmatpush1.bf16.msra.mxu0 0
  %2069 = vmatprep.subr.bf16.mxu0 0
  %2070 = vmatpush1.bf16.msra.mxu0 0
  %2071 = vmatprep.mubr.bf16.mxu0 0
  %2072 = vmatmul.mubr.bf16.gmra.mrb[0].mxu0 %v2030
  %v2073 = vpop.f32.mrb[0].mxu0
  %v2074 = vadd.f32 0.0, %v2073
  %v2075 = vpop.f32.mrb[0].mxu0
  %v2076 = vpop.f32.mrb[0].mxu0
  %v2077 = vadd.f32 0.0, %v2076
  %v2078 = vpop.f32.mrb[0].mxu0
  %2079 = vmatprep.mubr.bf16.mxu0 0
  %2080 = vmatmul.mubr.bf16.gmra.mrb[0].mxu0 %v2033
  %v2081 = vpop.f32.mrb[0].mxu0
  %v2082 = vadd.f32 0.0, %v2081
  %v2083 = vpop.f32.mrb[0].mxu0
  %v2084 = vpop.f32.mrb[0].mxu0
  %v2085 = vpop.f32.mrb[0].mxu0
  %2086 = vdwg.mxu0
  %2089 = vrot.lane.b32.xlu0 %v1920, 96
  %v2090 = vpop.permute.xlu0 %2089
  %2091 = vrot.lane.b32.xlu0 %v1923, 96
  %v2092 = vpop.permute.xlu0 %2091
  %2095 = vrot.lane.b32.xlu0 %v1921, 96
  %v2096 = vpop.permute.xlu0 %2095
  %2097 = vrot.lane.b32.xlu0 %v1924, 96
  %v2098 = vpop.permute.xlu0 %2097
  %v2100 = vsel %vm1926, %v2090, 0
  %v2103 = vsel %vm1926, %v2092, 0
  %v2106 = vsel %vm1926, %v2096, 0
  %v2109 = vsel %vm1926, %v2098, 0
  %2111 = vmatprep.subr.bf16.mxu0 0
  %2112 = vmatpush1.bf16.xpose.msra.mxu0 %v2106
  %2113 = vmatprep.subr.bf16.mxu0 0
  %2114 = vmatpush1.bf16.xpose.msra.mxu0 %v2109
  %2115 = vmatprep.subr.bf16.mxu0 0
  %2116 = vmatpush1.bf16.xpose.msra.mxu0 0
  %2117 = vmatprep.subr.bf16.mxu0 0
  %2118 = vmatpush1.bf16.xpose.msra.mxu0 0
  %2119 = vmatprep.subr.bf16.mxu0 0
  %2120 = vmatpush1.bf16.xpose.msra.mxu0 0
  %2121 = vmatprep.subr.bf16.mxu0 0
  %2122 = vmatpush1.bf16.xpose.msra.mxu0 0
  %2123 = vmatprep.subr.bf16.mxu0 0
  %2124 = vmatpush1.bf16.xpose.msra.mxu0 0
  %2125 = vmatprep.subr.bf16.mxu0 0
  %2126 = vmatpush1.bf16.xpose.msra.mxu0 0
  %2127 = vmatprep.subr.bf16.mxu0 0
  %2128 = vmatpush1.bf16.xpose.msra.mxu0 0
  %2129 = vmatprep.subr.bf16.mxu0 0
  %2130 = vmatpush1.bf16.xpose.msra.mxu0 0
  %2131 = vmatprep.subr.bf16.mxu0 0
  %2132 = vmatpush1.bf16.xpose.msra.mxu0 0
  %2133 = vmatprep.subr.bf16.mxu0 0
  %2134 = vmatpush1.bf16.xpose.msra.mxu0 0
  %2135 = vmatprep.subr.bf16.mxu0 0
  %2136 = vmatpush1.bf16.xpose.msra.mxu0 0
  %2137 = vmatprep.subr.bf16.mxu0 0
  %2138 = vmatpush1.bf16.xpose.msra.mxu0 0
  %2139 = vmatprep.subr.bf16.mxu0 0
  %2140 = vmatpush1.bf16.xpose.msra.mxu0 0
  %2141 = vmatprep.subr.bf16.mxu0 0
  %2142 = vmatpush1.bf16.xpose.msra.mxu0 0
  %2143 = vmatprep.mubr.bf16.mxu0 0
  %2144 = vmatmul.mubr.bf16.gmra.mrb[0].mxu0 %v2100
  %v2145 = vpop.f32.mrb[0].mxu0
  %v2146 = vadd.f32 0.0, %v2145
  %v2147 = vpop.f32.mrb[0].mxu0
  %v2148 = vpop.f32.mrb[0].mxu0
  %v2149 = vadd.f32 0.0, %v2148
  %v2150 = vpop.f32.mrb[0].mxu0
  %2151 = vmatprep.mubr.bf16.mxu0 0
  %2152 = vmatmul.mubr.bf16.gmra.mrb[0].mxu0 %v2103
  %v2153 = vpop.f32.mrb[0].mxu0
  %v2154 = vadd.f32 0.0, %v2153
  %v2155 = vpop.f32.mrb[0].mxu0
  %v2156 = vpop.f32.mrb[0].mxu0
  %v2157 = vpop.f32.mrb[0].mxu0
  %2158 = vdwg.mxu0
  %v2159 = vmul.f32 %v2146, 0.17677669
  %v2160 = vmul.f32 %v2149, 0.17677669
  %v2161 = vmul.f32 %v2154, 0.17677669
  %v2162 = vsel %vm70, %v2159, -1e+30
  %v2163 = vsel %vm70, %v2160, -1e+30
  %v2164 = vsel %vm70, %v2161, -1e+30
  %v2165 = vsel %vm1993, %v2162, -inf
  %2166 = vmax.xlane.f32.xlu0 %v2165
  %v2167 = vpop.xlane.xlu0 %2166
  %v2168 = vsel %vm1993, %v2163, -inf
  %2169 = vmax.xlane.f32.xlu0 %v2168
  %v2170 = vpop.xlane.xlu0 %2169
  %v2171 = vsel %vm1993, %v2164, -inf
  %2172 = vmax.xlane.f32.xlu0 %v2171
  %v2173 = vpop.xlane.xlu0 %2172
  %v2174 = vsub.f32 %v2162, %v2167
  %v2175 = vsub.f32 %v2163, %v2170
  %v2176 = vsub.f32 %v2164, %v2173
  %v2177 = vmul.f32 %v2174, 1.442695
  %v2178 = vpow.pop %v2177
  %v2179 = vmul.f32 %v2175, 1.442695
  %v2180 = vpow.pop %v2179
  %v2181 = vmul.f32 %v2176, 1.442695
  %v2182 = vpow.pop %v2181
  %v2183 = vsel %vm1993, %v2178, 0.0
  %2184 = vadd.xlane.f32.xlu0 %v2183
  %v2185 = vpop.xlane.xlu0 %2184
  %v2186 = vsel %vm1993, %v2180, 0.0
  %2187 = vadd.xlane.f32.xlu0 %v2186
  %v2188 = vpop.xlane.xlu0 %2187
  %v2189 = vsel %vm1993, %v2182, 0.0
  %2190 = vadd.xlane.f32.xlu0 %v2189
  %v2191 = vpop.xlane.xlu0 %2190
  %v2192 = vrcp.pop %v2185
  %v2193 = vrcp.pop %v2188
  %v2194 = vrcp.pop %v2191
  %v2195 = vmul.f32 %v2178, %v2192
  %v2196 = vmul.f32 %v2180, %v2193
  %v2197 = vmul.f32 %v2182, %v2194
  %v2198 = vpack.c.bf16 %v2196, %v2195
  %v2199 = vpack.c.bf16 %v2197, %v2197
  %2202 = vrot.lane.b32.xlu0 %v1922, 96
  %v2203 = vpop.permute.xlu0 %2202
  %2204 = vrot.lane.b32.xlu0 %v1925, 96
  %v2205 = vpop.permute.xlu0 %2204
  %v2208 = vsel %vm1993, %v2198, 0
  %v2211 = vsel %vm1993, %v2199, 0
  %v2214 = vsel %vm2035, %v2205, 0
  %2216 = vmatprep.subr.bf16.mxu0 0
  %2217 = vmatpush1.bf16.msra.mxu0 %v2203
  %2218 = vmatprep.subr.bf16.mxu0 0
  %2219 = vmatpush1.bf16.msra.mxu0 %v2214
  %2220 = vmatprep.subr.bf16.mxu0 0
  %2221 = vmatpush1.bf16.msra.mxu0 0
  %2222 = vmatprep.subr.bf16.mxu0 0
  %2223 = vmatpush1.bf16.msra.mxu0 0
  %2224 = vmatprep.subr.bf16.mxu0 0
  %2225 = vmatpush1.bf16.msra.mxu0 0
  %2226 = vmatprep.subr.bf16.mxu0 0
  %2227 = vmatpush1.bf16.msra.mxu0 0
  %2228 = vmatprep.subr.bf16.mxu0 0
  %2229 = vmatpush1.bf16.msra.mxu0 0
  %2230 = vmatprep.subr.bf16.mxu0 0
  %2231 = vmatpush1.bf16.msra.mxu0 0
  %2232 = vmatprep.subr.bf16.mxu0 0
  %2233 = vmatpush1.bf16.msra.mxu0 0
  %2234 = vmatprep.subr.bf16.mxu0 0
  %2235 = vmatpush1.bf16.msra.mxu0 0
  %2236 = vmatprep.subr.bf16.mxu0 0
  %2237 = vmatpush1.bf16.msra.mxu0 0
  %2238 = vmatprep.subr.bf16.mxu0 0
  %2239 = vmatpush1.bf16.msra.mxu0 0
  %2240 = vmatprep.subr.bf16.mxu0 0
  %2241 = vmatpush1.bf16.msra.mxu0 0
  %2242 = vmatprep.subr.bf16.mxu0 0
  %2243 = vmatpush1.bf16.msra.mxu0 0
  %2244 = vmatprep.subr.bf16.mxu0 0
  %2245 = vmatpush1.bf16.msra.mxu0 0
  %2246 = vmatprep.subr.bf16.mxu0 0
  %2247 = vmatpush1.bf16.msra.mxu0 0
  %2248 = vmatprep.mubr.bf16.mxu0 0
  %2249 = vmatmul.mubr.bf16.gmra.mrb[0].mxu0 %v2208
  %v2250 = vpop.f32.mrb[0].mxu0
  %v2251 = vadd.f32 0.0, %v2250
  %v2252 = vpop.f32.mrb[0].mxu0
  %v2253 = vpop.f32.mrb[0].mxu0
  %v2254 = vadd.f32 0.0, %v2253
  %v2255 = vpop.f32.mrb[0].mxu0
  %2256 = vmatprep.mubr.bf16.mxu0 0
  %2257 = vmatmul.mubr.bf16.gmra.mrb[0].mxu0 %v2211
  %v2258 = vpop.f32.mrb[0].mxu0
  %v2259 = vadd.f32 0.0, %v2258
  %v2260 = vpop.f32.mrb[0].mxu0
  %v2261 = vpop.f32.mrb[0].mxu0
  %v2262 = vpop.f32.mrb[0].mxu0
  %2263 = vdwg.mxu0
  %2264 = vrot.lane.b32.xlu0 %v1920, 64
  %v2265 = vpop.permute.xlu0 %2264
  %2266 = vrot.lane.b32.xlu0 %v1923, 64
  %v2267 = vpop.permute.xlu0 %2266
  %2268 = vrot.lane.b32.xlu0 %v1921, 64
  %v2269 = vpop.permute.xlu0 %2268
  %2270 = vrot.lane.b32.xlu0 %v1924, 64
  %v2271 = vpop.permute.xlu0 %2270
  %v2273 = vsel %vm1926, %v2265, 0
  %v2276 = vsel %vm1926, %v2267, 0
  %v2279 = vsel %vm1926, %v2269, 0
  %v2282 = vsel %vm1926, %v2271, 0
  %2284 = vmatprep.subr.bf16.mxu0 0
  %2285 = vmatpush1.bf16.xpose.msra.mxu0 %v2279
  %2286 = vmatprep.subr.bf16.mxu0 0
  %2287 = vmatpush1.bf16.xpose.msra.mxu0 %v2282
  %2288 = vmatprep.subr.bf16.mxu0 0
  %2289 = vmatpush1.bf16.xpose.msra.mxu0 0
  %2290 = vmatprep.subr.bf16.mxu0 0
  %2291 = vmatpush1.bf16.xpose.msra.mxu0 0
  %2292 = vmatprep.subr.bf16.mxu0 0
  %2293 = vmatpush1.bf16.xpose.msra.mxu0 0
  %2294 = vmatprep.subr.bf16.mxu0 0
  %2295 = vmatpush1.bf16.xpose.msra.mxu0 0
  %2296 = vmatprep.subr.bf16.mxu0 0
  %2297 = vmatpush1.bf16.xpose.msra.mxu0 0
  %2298 = vmatprep.subr.bf16.mxu0 0
  %2299 = vmatpush1.bf16.xpose.msra.mxu0 0
  %2300 = vmatprep.subr.bf16.mxu0 0
  %2301 = vmatpush1.bf16.xpose.msra.mxu0 0
  %2302 = vmatprep.subr.bf16.mxu0 0
  %2303 = vmatpush1.bf16.xpose.msra.mxu0 0
  %2304 = vmatprep.subr.bf16.mxu0 0
  %2305 = vmatpush1.bf16.xpose.msra.mxu0 0
  %2306 = vmatprep.subr.bf16.mxu0 0
  %2307 = vmatpush1.bf16.xpose.msra.mxu0 0
  %2308 = vmatprep.subr.bf16.mxu0 0
  %2309 = vmatpush1.bf16.xpose.msra.mxu0 0
  %2310 = vmatprep.subr.bf16.mxu0 0
  %2311 = vmatpush1.bf16.xpose.msra.mxu0 0
  %2312 = vmatprep.subr.bf16.mxu0 0
  %2313 = vmatpush1.bf16.xpose.msra.mxu0 0
  %2314 = vmatprep.subr.bf16.mxu0 0
  %2315 = vmatpush1.bf16.xpose.msra.mxu0 0
  %2316 = vmatprep.mubr.bf16.mxu0 0
  %2317 = vmatmul.mubr.bf16.gmra.mrb[0].mxu0 %v2273
  %v2318 = vpop.f32.mrb[0].mxu0
  %v2319 = vadd.f32 0.0, %v2318
  %v2320 = vpop.f32.mrb[0].mxu0
  %v2321 = vpop.f32.mrb[0].mxu0
  %v2322 = vadd.f32 0.0, %v2321
  %v2323 = vpop.f32.mrb[0].mxu0
  %2324 = vmatprep.mubr.bf16.mxu0 0
  %2325 = vmatmul.mubr.bf16.gmra.mrb[0].mxu0 %v2276
  %v2326 = vpop.f32.mrb[0].mxu0
  %v2327 = vadd.f32 0.0, %v2326
  %v2328 = vpop.f32.mrb[0].mxu0
  %v2329 = vpop.f32.mrb[0].mxu0
  %v2330 = vpop.f32.mrb[0].mxu0
  %2331 = vdwg.mxu0
  %v2332 = vmul.f32 %v2319, 0.17677669
  %v2333 = vmul.f32 %v2322, 0.17677669
  %v2334 = vmul.f32 %v2327, 0.17677669
  %v2335 = vsel %vm70, %v2332, -1e+30
  %v2336 = vsel %vm70, %v2333, -1e+30
  %v2337 = vsel %vm70, %v2334, -1e+30
  %v2338 = vsel %vm1993, %v2335, -inf
  %2339 = vmax.xlane.f32.xlu0 %v2338
  %v2340 = vpop.xlane.xlu0 %2339
  %v2341 = vsel %vm1993, %v2336, -inf
  %2342 = vmax.xlane.f32.xlu0 %v2341
  %v2343 = vpop.xlane.xlu0 %2342
  %v2344 = vsel %vm1993, %v2337, -inf
  %2345 = vmax.xlane.f32.xlu0 %v2344
  %v2346 = vpop.xlane.xlu0 %2345
  %v2347 = vsub.f32 %v2335, %v2340
  %v2348 = vsub.f32 %v2336, %v2343
  %v2349 = vsub.f32 %v2337, %v2346
  %v2350 = vmul.f32 %v2347, 1.442695
  %v2351 = vpow.pop %v2350
  %v2352 = vmul.f32 %v2348, 1.442695
  %v2353 = vpow.pop %v2352
  %v2354 = vmul.f32 %v2349, 1.442695
  %v2355 = vpow.pop %v2354
  %v2356 = vsel %vm1993, %v2351, 0.0
  %2357 = vadd.xlane.f32.xlu0 %v2356
  %v2358 = vpop.xlane.xlu0 %2357
  %v2359 = vsel %vm1993, %v2353, 0.0
  %2360 = vadd.xlane.f32.xlu0 %v2359
  %v2361 = vpop.xlane.xlu0 %2360
  %v2362 = vsel %vm1993, %v2355, 0.0
  %2363 = vadd.xlane.f32.xlu0 %v2362
  %v2364 = vpop.xlane.xlu0 %2363
  %v2365 = vrcp.pop %v2358
  %v2366 = vrcp.pop %v2361
  %v2367 = vrcp.pop %v2364
  %v2368 = vmul.f32 %v2351, %v2365
  %v2369 = vmul.f32 %v2353, %v2366
  %v2370 = vmul.f32 %v2355, %v2367
  %v2371 = vpack.c.bf16 %v2369, %v2368
  %v2372 = vpack.c.bf16 %v2370, %v2370
  %2373 = vrot.lane.b32.xlu0 %v1922, 64
  %v2374 = vpop.permute.xlu0 %2373
  %2375 = vrot.lane.b32.xlu0 %v1925, 64
  %v2376 = vpop.permute.xlu0 %2375
  %v2379 = vsel %vm1993, %v2371, 0
  %v2382 = vsel %vm1993, %v2372, 0
  %v2385 = vsel %vm2035, %v2376, 0
  %2387 = vmatprep.subr.bf16.mxu0 0
  %2388 = vmatpush1.bf16.msra.mxu0 %v2374
  %2389 = vmatprep.subr.bf16.mxu0 0
  %2390 = vmatpush1.bf16.msra.mxu0 %v2385
  %2391 = vmatprep.subr.bf16.mxu0 0
  %2392 = vmatpush1.bf16.msra.mxu0 0
  %2393 = vmatprep.subr.bf16.mxu0 0
  %2394 = vmatpush1.bf16.msra.mxu0 0
  %2395 = vmatprep.subr.bf16.mxu0 0
  %2396 = vmatpush1.bf16.msra.mxu0 0
  %2397 = vmatprep.subr.bf16.mxu0 0
  %2398 = vmatpush1.bf16.msra.mxu0 0
  %2399 = vmatprep.subr.bf16.mxu0 0
  %2400 = vmatpush1.bf16.msra.mxu0 0
  %2401 = vmatprep.subr.bf16.mxu0 0
  %2402 = vmatpush1.bf16.msra.mxu0 0
  %2403 = vmatprep.subr.bf16.mxu0 0
  %2404 = vmatpush1.bf16.msra.mxu0 0
  %2405 = vmatprep.subr.bf16.mxu0 0
  %2406 = vmatpush1.bf16.msra.mxu0 0
  %2407 = vmatprep.subr.bf16.mxu0 0
  %2408 = vmatpush1.bf16.msra.mxu0 0
  %2409 = vmatprep.subr.bf16.mxu0 0
  %2410 = vmatpush1.bf16.msra.mxu0 0
  %2411 = vmatprep.subr.bf16.mxu0 0
  %2412 = vmatpush1.bf16.msra.mxu0 0
  %2413 = vmatprep.subr.bf16.mxu0 0
  %2414 = vmatpush1.bf16.msra.mxu0 0
  %2415 = vmatprep.subr.bf16.mxu0 0
  %2416 = vmatpush1.bf16.msra.mxu0 0
  %2417 = vmatprep.subr.bf16.mxu0 0
  %2418 = vmatpush1.bf16.msra.mxu0 0
  %2419 = vmatprep.mubr.bf16.mxu0 0
  %2420 = vmatmul.mubr.bf16.gmra.mrb[0].mxu0 %v2379
  %v2421 = vpop.f32.mrb[0].mxu0
  %v2422 = vadd.f32 0.0, %v2421
  %v2423 = vpop.f32.mrb[0].mxu0
  %v2424 = vpop.f32.mrb[0].mxu0
  %v2425 = vadd.f32 0.0, %v2424
  %v2426 = vpop.f32.mrb[0].mxu0
  %2427 = vmatprep.mubr.bf16.mxu0 0
  %2428 = vmatmul.mubr.bf16.gmra.mrb[0].mxu0 %v2382
  %v2429 = vpop.f32.mrb[0].mxu0
  %v2430 = vadd.f32 0.0, %v2429
  %v2431 = vpop.f32.mrb[0].mxu0
  %v2432 = vpop.f32.mrb[0].mxu0
  %v2433 = vpop.f32.mrb[0].mxu0
  %2434 = vdwg.mxu0
  %2435 = vrot.lane.b32.xlu0 %v1920, 32
  %v2436 = vpop.permute.xlu0 %2435
  %2437 = vrot.lane.b32.xlu0 %v1923, 32
  %v2438 = vpop.permute.xlu0 %2437
  %2439 = vrot.lane.b32.xlu0 %v1921, 32
  %v2440 = vpop.permute.xlu0 %2439
  %2441 = vrot.lane.b32.xlu0 %v1924, 32
  %v2442 = vpop.permute.xlu0 %2441
  %v2444 = vsel %vm1926, %v2436, 0
  %v2447 = vsel %vm1926, %v2438, 0
  %v2450 = vsel %vm1926, %v2440, 0
  %v2453 = vsel %vm1926, %v2442, 0
  %2455 = vmatprep.subr.bf16.mxu0 0
  %2456 = vmatpush1.bf16.xpose.msra.mxu0 %v2450
  %2457 = vmatprep.subr.bf16.mxu0 0
  %2458 = vmatpush1.bf16.xpose.msra.mxu0 %v2453
  %2459 = vmatprep.subr.bf16.mxu0 0
  %2460 = vmatpush1.bf16.xpose.msra.mxu0 0
  %2461 = vmatprep.subr.bf16.mxu0 0
  %2462 = vmatpush1.bf16.xpose.msra.mxu0 0
  %2463 = vmatprep.subr.bf16.mxu0 0
  %2464 = vmatpush1.bf16.xpose.msra.mxu0 0
  %2465 = vmatprep.subr.bf16.mxu0 0
  %2466 = vmatpush1.bf16.xpose.msra.mxu0 0
  %2467 = vmatprep.subr.bf16.mxu0 0
  %2468 = vmatpush1.bf16.xpose.msra.mxu0 0
  %2469 = vmatprep.subr.bf16.mxu0 0
  %2470 = vmatpush1.bf16.xpose.msra.mxu0 0
  %2471 = vmatprep.subr.bf16.mxu0 0
  %2472 = vmatpush1.bf16.xpose.msra.mxu0 0
  %2473 = vmatprep.subr.bf16.mxu0 0
  %2474 = vmatpush1.bf16.xpose.msra.mxu0 0
  %2475 = vmatprep.subr.bf16.mxu0 0
  %2476 = vmatpush1.bf16.xpose.msra.mxu0 0
  %2477 = vmatprep.subr.bf16.mxu0 0
  %2478 = vmatpush1.bf16.xpose.msra.mxu0 0
  %2479 = vmatprep.subr.bf16.mxu0 0
  %2480 = vmatpush1.bf16.xpose.msra.mxu0 0
  %2481 = vmatprep.subr.bf16.mxu0 0
  %2482 = vmatpush1.bf16.xpose.msra.mxu0 0
  %2483 = vmatprep.subr.bf16.mxu0 0
  %2484 = vmatpush1.bf16.xpose.msra.mxu0 0
  %2485 = vmatprep.subr.bf16.mxu0 0
  %2486 = vmatpush1.bf16.xpose.msra.mxu0 0
  %2487 = vmatprep.mubr.bf16.mxu0 0
  %2488 = vmatmul.mubr.bf16.gmra.mrb[0].mxu0 %v2444
  %v2489 = vpop.f32.mrb[0].mxu0
  %v2490 = vadd.f32 0.0, %v2489
  %v2491 = vpop.f32.mrb[0].mxu0
  %v2492 = vpop.f32.mrb[0].mxu0
  %v2493 = vadd.f32 0.0, %v2492
  %v2494 = vpop.f32.mrb[0].mxu0
  %2495 = vmatprep.mubr.bf16.mxu0 0
  %2496 = vmatmul.mubr.bf16.gmra.mrb[0].mxu0 %v2447
  %v2497 = vpop.f32.mrb[0].mxu0
  %v2498 = vadd.f32 0.0, %v2497
  %v2499 = vpop.f32.mrb[0].mxu0
  %v2500 = vpop.f32.mrb[0].mxu0
  %v2501 = vpop.f32.mrb[0].mxu0
  %2502 = vdwg.mxu0
  %v2503 = vmul.f32 %v2490, 0.17677669
  %v2504 = vmul.f32 %v2493, 0.17677669
  %v2505 = vmul.f32 %v2498, 0.17677669
  %v2506 = vsel %vm70, %v2503, -1e+30
  %v2507 = vsel %vm70, %v2504, -1e+30
  %v2508 = vsel %vm70, %v2505, -1e+30
  %v2509 = vsel %vm1993, %v2506, -inf
  %2510 = vmax.xlane.f32.xlu0 %v2509
  %v2511 = vpop.xlane.xlu0 %2510
  %v2512 = vsel %vm1993, %v2507, -inf
  %2513 = vmax.xlane.f32.xlu0 %v2512
  %v2514 = vpop.xlane.xlu0 %2513
  %v2515 = vsel %vm1993, %v2508, -inf
  %2516 = vmax.xlane.f32.xlu0 %v2515
  %v2517 = vpop.xlane.xlu0 %2516
  %v2518 = vsub.f32 %v2506, %v2511
  %v2519 = vsub.f32 %v2507, %v2514
  %v2520 = vsub.f32 %v2508, %v2517
  %v2521 = vmul.f32 %v2518, 1.442695
  %v2522 = vpow.pop %v2521
  %v2523 = vmul.f32 %v2519, 1.442695
  %v2524 = vpow.pop %v2523
  %v2525 = vmul.f32 %v2520, 1.442695
  %v2526 = vpow.pop %v2525
  %v2527 = vsel %vm1993, %v2522, 0.0
  %2528 = vadd.xlane.f32.xlu0 %v2527
  %v2529 = vpop.xlane.xlu0 %2528
  %v2530 = vsel %vm1993, %v2524, 0.0
  %2531 = vadd.xlane.f32.xlu0 %v2530
  %v2532 = vpop.xlane.xlu0 %2531
  %v2533 = vsel %vm1993, %v2526, 0.0
  %2534 = vadd.xlane.f32.xlu0 %v2533
  %v2535 = vpop.xlane.xlu0 %2534
  %v2536 = vrcp.pop %v2529
  %v2537 = vrcp.pop %v2532
  %v2538 = vrcp.pop %v2535
  %v2539 = vmul.f32 %v2522, %v2536
  %v2540 = vmul.f32 %v2524, %v2537
  %v2541 = vmul.f32 %v2526, %v2538
  %v2542 = vpack.c.bf16 %v2540, %v2539
  %v2543 = vpack.c.bf16 %v2541, %v2541
  %2544 = vrot.lane.b32.xlu0 %v1922, 32
  %v2545 = vpop.permute.xlu0 %2544
  %2546 = vrot.lane.b32.xlu0 %v1925, 32
  %v2547 = vpop.permute.xlu0 %2546
  %v2550 = vsel %vm1993, %v2542, 0
  %v2553 = vsel %vm1993, %v2543, 0
  %v2556 = vsel %vm2035, %v2547, 0
  %2558 = vmatprep.subr.bf16.mxu0 0
  %2559 = vmatpush1.bf16.msra.mxu0 %v2545
  %2560 = vmatprep.subr.bf16.mxu0 0
  %2561 = vmatpush1.bf16.msra.mxu0 %v2556
  %2562 = vmatprep.subr.bf16.mxu0 0
  %2563 = vmatpush1.bf16.msra.mxu0 0
  %2564 = vmatprep.subr.bf16.mxu0 0
  %2565 = vmatpush1.bf16.msra.mxu0 0
  %2566 = vmatprep.subr.bf16.mxu0 0
  %2567 = vmatpush1.bf16.msra.mxu0 0
  %2568 = vmatprep.subr.bf16.mxu0 0
  %2569 = vmatpush1.bf16.msra.mxu0 0
  %2570 = vmatprep.subr.bf16.mxu0 0
  %2571 = vmatpush1.bf16.msra.mxu0 0
  %2572 = vmatprep.subr.bf16.mxu0 0
  %2573 = vmatpush1.bf16.msra.mxu0 0
  %2574 = vmatprep.subr.bf16.mxu0 0
  %2575 = vmatpush1.bf16.msra.mxu0 0
  %2576 = vmatprep.subr.bf16.mxu0 0
  %2577 = vmatpush1.bf16.msra.mxu0 0
  %2578 = vmatprep.subr.bf16.mxu0 0
  %2579 = vmatpush1.bf16.msra.mxu0 0
  %2580 = vmatprep.subr.bf16.mxu0 0
  %2581 = vmatpush1.bf16.msra.mxu0 0
  %2582 = vmatprep.subr.bf16.mxu0 0
  %2583 = vmatpush1.bf16.msra.mxu0 0
  %2584 = vmatprep.subr.bf16.mxu0 0
  %2585 = vmatpush1.bf16.msra.mxu0 0
  %2586 = vmatprep.subr.bf16.mxu0 0
  %2587 = vmatpush1.bf16.msra.mxu0 0
  %2588 = vmatprep.subr.bf16.mxu0 0
  %2589 = vmatpush1.bf16.msra.mxu0 0
  %2590 = vmatprep.mubr.bf16.mxu0 0
  %2591 = vmatmul.mubr.bf16.gmra.mrb[0].mxu0 %v2550
  %v2592 = vpop.f32.mrb[0].mxu0
  %v2593 = vadd.f32 0.0, %v2592
  %v2594 = vpop.f32.mrb[0].mxu0
  %v2595 = vpop.f32.mrb[0].mxu0
  %v2596 = vadd.f32 0.0, %v2595
  %v2597 = vpop.f32.mrb[0].mxu0
  %2598 = vmatprep.mubr.bf16.mxu0 0
  %2599 = vmatmul.mubr.bf16.gmra.mrb[0].mxu0 %v2553
  %v2600 = vpop.f32.mrb[0].mxu0
  %v2601 = vadd.f32 0.0, %v2600
  %v2602 = vpop.f32.mrb[0].mxu0
  %v2603 = vpop.f32.mrb[0].mxu0
  %v2604 = vpop.f32.mrb[0].mxu0
  %2605 = vdwg.mxu0
  %2609 = vrot.lane.b32.xlu0 %v2251, 32
  %v2610 = vpop.permute.xlu0 %2609
  %2611 = vrot.lane.b32.xlu0 %v2254, 32
  %v2612 = vpop.permute.xlu0 %2611
  %2613 = vrot.lane.b32.xlu0 %v2259, 32
  %v2614 = vpop.permute.xlu0 %2613
  %2621 = vrot.lane.b32.xlu0 %v2422, 64
  %v2622 = vpop.permute.xlu0 %2621
  %2623 = vrot.lane.b32.xlu0 %v2425, 64
  %v2624 = vpop.permute.xlu0 %2623
  %2625 = vrot.lane.b32.xlu0 %v2430, 64
  %v2626 = vpop.permute.xlu0 %2625
  %2633 = vrot.lane.b32.xlu0 %v2593, 96
  %v2634 = vpop.permute.xlu0 %2633
  %2635 = vrot.lane.b32.xlu0 %v2596, 96
  %v2636 = vpop.permute.xlu0 %2635
  %2637 = vrot.lane.b32.xlu0 %v2601, 96
  %v2638 = vpop.permute.xlu0 %2637
  %v2642 = vsel %vm1926, %v2074, %v2610
  %v2643 = vsel %vm1926, %v2077, %v2612
  %v2644 = vsel %vm1926, %v2082, %v2614
  %vm2645 = vcmask 523264
  %v2646 = vsel %vm2645, %v2642, %v2622
  %v2647 = vsel %vm2645, %v2643, %v2624
  %v2648 = vsel %vm2645, %v2644, %v2626
  %vm2649 = vcmask 785408
  %v2650 = vsel %vm2649, %v2646, %v2634
  %v2651 = vsel %vm2649, %v2647, %v2636
  %v2652 = vsel %vm2649, %v2648, %v2638
  %v2653 = vpack.c.bf16 %v1798, %v1792
  %v2654 = vpack.c.bf16 %v1800, %v1794
  %v2655 = vpack.c.bf16 %v1914, %v1909
  %v2656 = vpack.c.bf16 %v1802, %v1802
  %v2657 = vpack.c.bf16 %v1804, %v1804
  %v2658 = vpack.c.bf16 %v1917, %v1917
  %v2660 = vsel %vm1926, %v2653, 0
  %v2663 = vsel %vm1926, %v2656, 0
  %v2666 = vsel %vm1926, %v2654, 0
  %v2669 = vsel %vm1926, %v2657, 0
  %2671 = vmatprep.subr.bf16.mxu0 0
  %2672 = vmatpush1.bf16.xpose.msra.mxu0 %v2666
  %2673 = vmatprep.subr.bf16.mxu0 0
  %2674 = vmatpush1.bf16.xpose.msra.mxu0 %v2669
  %2675 = vmatprep.subr.bf16.mxu0 0
  %2676 = vmatpush1.bf16.xpose.msra.mxu0 0
  %2677 = vmatprep.subr.bf16.mxu0 0
  %2678 = vmatpush1.bf16.xpose.msra.mxu0 0
  %2679 = vmatprep.subr.bf16.mxu0 0
  %2680 = vmatpush1.bf16.xpose.msra.mxu0 0
  %2681 = vmatprep.subr.bf16.mxu0 0
  %2682 = vmatpush1.bf16.xpose.msra.mxu0 0
  %2683 = vmatprep.subr.bf16.mxu0 0
  %2684 = vmatpush1.bf16.xpose.msra.mxu0 0
  %2685 = vmatprep.subr.bf16.mxu0 0
  %2686 = vmatpush1.bf16.xpose.msra.mxu0 0
  %2687 = vmatprep.subr.bf16.mxu0 0
  %2688 = vmatpush1.bf16.xpose.msra.mxu0 0
  %2689 = vmatprep.subr.bf16.mxu0 0
  %2690 = vmatpush1.bf16.xpose.msra.mxu0 0
  %2691 = vmatprep.subr.bf16.mxu0 0
  %2692 = vmatpush1.bf16.xpose.msra.mxu0 0
  %2693 = vmatprep.subr.bf16.mxu0 0
  %2694 = vmatpush1.bf16.xpose.msra.mxu0 0
  %2695 = vmatprep.subr.bf16.mxu0 0
  %2696 = vmatpush1.bf16.xpose.msra.mxu0 0
  %2697 = vmatprep.subr.bf16.mxu0 0
  %2698 = vmatpush1.bf16.xpose.msra.mxu0 0
  %2699 = vmatprep.subr.bf16.mxu0 0
  %2700 = vmatpush1.bf16.xpose.msra.mxu0 0
  %2701 = vmatprep.subr.bf16.mxu0 0
  %2702 = vmatpush1.bf16.xpose.msra.mxu0 0
  %2703 = vmatprep.mubr.bf16.mxu0 0
  %2704 = vmatmul.mubr.bf16.gmra.mrb[0].mxu0 %v2660
  %v2705 = vpop.f32.mrb[0].mxu0
  %v2706 = vadd.f32 0.0, %v2705
  %v2707 = vpop.f32.mrb[0].mxu0
  %v2708 = vpop.f32.mrb[0].mxu0
  %v2709 = vadd.f32 0.0, %v2708
  %v2710 = vpop.f32.mrb[0].mxu0
  %2711 = vmatprep.mubr.bf16.mxu0 0
  %2712 = vmatmul.mubr.bf16.gmra.mrb[0].mxu0 %v2663
  %v2713 = vpop.f32.mrb[0].mxu0
  %v2714 = vadd.f32 0.0, %v2713
  %v2715 = vpop.f32.mrb[0].mxu0
  %v2716 = vpop.f32.mrb[0].mxu0
  %v2717 = vpop.f32.mrb[0].mxu0
  %2718 = vdwg.mxu0
  %v2719 = vmul.f32 %v2706, 0.17677669
  %v2720 = vmul.f32 %v2709, 0.17677669
  %v2721 = vmul.f32 %v2714, 0.17677669
  %v2722 = vsel %vm70, %v2719, -1e+30
  %v2723 = vsel %vm70, %v2720, -1e+30
  %v2724 = vsel %vm70, %v2721, -1e+30
  %v2725 = vsel %vm1993, %v2722, -inf
  %2726 = vmax.xlane.f32.xlu0 %v2725
  %v2727 = vpop.xlane.xlu0 %2726
  %v2728 = vsel %vm1993, %v2723, -inf
  %2729 = vmax.xlane.f32.xlu0 %v2728
  %v2730 = vpop.xlane.xlu0 %2729
  %v2731 = vsel %vm1993, %v2724, -inf
  %2732 = vmax.xlane.f32.xlu0 %v2731
  %v2733 = vpop.xlane.xlu0 %2732
  %v2734 = vsub.f32 %v2722, %v2727
  %v2735 = vsub.f32 %v2723, %v2730
  %v2736 = vsub.f32 %v2724, %v2733
  %v2737 = vmul.f32 %v2734, 1.442695
  %v2738 = vpow.pop %v2737
  %v2739 = vmul.f32 %v2735, 1.442695
  %v2740 = vpow.pop %v2739
  %v2741 = vmul.f32 %v2736, 1.442695
  %v2742 = vpow.pop %v2741
  %v2743 = vsel %vm1993, %v2738, 0.0
  %2744 = vadd.xlane.f32.xlu0 %v2743
  %v2745 = vpop.xlane.xlu0 %2744
  %v2746 = vsel %vm1993, %v2740, 0.0
  %2747 = vadd.xlane.f32.xlu0 %v2746
  %v2748 = vpop.xlane.xlu0 %2747
  %v2749 = vsel %vm1993, %v2742, 0.0
  %2750 = vadd.xlane.f32.xlu0 %v2749
  %v2751 = vpop.xlane.xlu0 %2750
  %v2752 = vrcp.pop %v2745
  %v2753 = vrcp.pop %v2748
  %v2754 = vrcp.pop %v2751
  %v2755 = vmul.f32 %v2738, %v2752
  %v2756 = vmul.f32 %v2740, %v2753
  %v2757 = vmul.f32 %v2742, %v2754
  %v2758 = vpack.c.bf16 %v2756, %v2755
  %v2759 = vpack.c.bf16 %v2757, %v2757
  %v2761 = vsel %vm1993, %v2758, 0
  %v2764 = vsel %vm1993, %v2759, 0
  %v2767 = vsel %vm2035, %v2658, 0
  %2769 = vmatprep.subr.bf16.mxu0 0
  %2770 = vmatpush1.bf16.msra.mxu0 %v2655
  %2771 = vmatprep.subr.bf16.mxu0 0
  %2772 = vmatpush1.bf16.msra.mxu0 %v2767
  %2773 = vmatprep.subr.bf16.mxu0 0
  %2774 = vmatpush1.bf16.msra.mxu0 0
  %2775 = vmatprep.subr.bf16.mxu0 0
  %2776 = vmatpush1.bf16.msra.mxu0 0
  %2777 = vmatprep.subr.bf16.mxu0 0
  %2778 = vmatpush1.bf16.msra.mxu0 0
  %2779 = vmatprep.subr.bf16.mxu0 0
  %2780 = vmatpush1.bf16.msra.mxu0 0
  %2781 = vmatprep.subr.bf16.mxu0 0
  %2782 = vmatpush1.bf16.msra.mxu0 0
  %2783 = vmatprep.subr.bf16.mxu0 0
  %2784 = vmatpush1.bf16.msra.mxu0 0
  %2785 = vmatprep.subr.bf16.mxu0 0
  %2786 = vmatpush1.bf16.msra.mxu0 0
  %2787 = vmatprep.subr.bf16.mxu0 0
  %2788 = vmatpush1.bf16.msra.mxu0 0
  %2789 = vmatprep.subr.bf16.mxu0 0
  %2790 = vmatpush1.bf16.msra.mxu0 0
  %2791 = vmatprep.subr.bf16.mxu0 0
  %2792 = vmatpush1.bf16.msra.mxu0 0
  %2793 = vmatprep.subr.bf16.mxu0 0
  %2794 = vmatpush1.bf16.msra.mxu0 0
  %2795 = vmatprep.subr.bf16.mxu0 0
  %2796 = vmatpush1.bf16.msra.mxu0 0
  %2797 = vmatprep.subr.bf16.mxu0 0
  %2798 = vmatpush1.bf16.msra.mxu0 0
  %2799 = vmatprep.subr.bf16.mxu0 0
  %2800 = vmatpush1.bf16.msra.mxu0 0
  %2801 = vmatprep.mubr.bf16.mxu0 0
  %2802 = vmatmul.mubr.bf16.gmra.mrb[0].mxu0 %v2761
  %v2803 = vpop.f32.mrb[0].mxu0
  %v2804 = vadd.f32 0.0, %v2803
  %v2805 = vpop.f32.mrb[0].mxu0
  %v2806 = vpop.f32.mrb[0].mxu0
  %v2807 = vadd.f32 0.0, %v2806
  %v2808 = vpop.f32.mrb[0].mxu0
  %2809 = vmatprep.mubr.bf16.mxu0 0
  %2810 = vmatmul.mubr.bf16.gmra.mrb[0].mxu0 %v2764
  %v2811 = vpop.f32.mrb[0].mxu0
  %v2812 = vadd.f32 0.0, %v2811
  %v2813 = vpop.f32.mrb[0].mxu0
  %v2814 = vpop.f32.mrb[0].mxu0
  %v2815 = vpop.f32.mrb[0].mxu0
  %2816 = vdwg.mxu0
  %2819 = vrot.lane.b32.xlu0 %v2653, 96
  %v2820 = vpop.permute.xlu0 %2819
  %2821 = vrot.lane.b32.xlu0 %v2656, 96
  %v2822 = vpop.permute.xlu0 %2821
  %2825 = vrot.lane.b32.xlu0 %v2654, 96
  %v2826 = vpop.permute.xlu0 %2825
  %2827 = vrot.lane.b32.xlu0 %v2657, 96
  %v2828 = vpop.permute.xlu0 %2827
  %v2830 = vsel %vm1926, %v2820, 0
  %v2833 = vsel %vm1926, %v2822, 0
  %v2836 = vsel %vm1926, %v2826, 0
  %v2839 = vsel %vm1926, %v2828, 0
  %2841 = vmatprep.subr.bf16.mxu0 0
  %2842 = vmatpush1.bf16.xpose.msra.mxu0 %v2836
  %2843 = vmatprep.subr.bf16.mxu0 0
  %2844 = vmatpush1.bf16.xpose.msra.mxu0 %v2839
  %2845 = vmatprep.subr.bf16.mxu0 0
  %2846 = vmatpush1.bf16.xpose.msra.mxu0 0
  %2847 = vmatprep.subr.bf16.mxu0 0
  %2848 = vmatpush1.bf16.xpose.msra.mxu0 0
  %2849 = vmatprep.subr.bf16.mxu0 0
  %2850 = vmatpush1.bf16.xpose.msra.mxu0 0
  %2851 = vmatprep.subr.bf16.mxu0 0
  %2852 = vmatpush1.bf16.xpose.msra.mxu0 0
  %2853 = vmatprep.subr.bf16.mxu0 0
  %2854 = vmatpush1.bf16.xpose.msra.mxu0 0
  %2855 = vmatprep.subr.bf16.mxu0 0
  %2856 = vmatpush1.bf16.xpose.msra.mxu0 0
  %2857 = vmatprep.subr.bf16.mxu0 0
  %2858 = vmatpush1.bf16.xpose.msra.mxu0 0
  %2859 = vmatprep.subr.bf16.mxu0 0
  %2860 = vmatpush1.bf16.xpose.msra.mxu0 0
  %2861 = vmatprep.subr.bf16.mxu0 0
  %2862 = vmatpush1.bf16.xpose.msra.mxu0 0
  %2863 = vmatprep.subr.bf16.mxu0 0
  %2864 = vmatpush1.bf16.xpose.msra.mxu0 0
  %2865 = vmatprep.subr.bf16.mxu0 0
  %2866 = vmatpush1.bf16.xpose.msra.mxu0 0
  %2867 = vmatprep.subr.bf16.mxu0 0
  %2868 = vmatpush1.bf16.xpose.msra.mxu0 0
  %2869 = vmatprep.subr.bf16.mxu0 0
  %2870 = vmatpush1.bf16.xpose.msra.mxu0 0
  %2871 = vmatprep.subr.bf16.mxu0 0
  %2872 = vmatpush1.bf16.xpose.msra.mxu0 0
  %2873 = vmatprep.mubr.bf16.mxu0 0
  %2874 = vmatmul.mubr.bf16.gmra.mrb[0].mxu0 %v2830
  %v2875 = vpop.f32.mrb[0].mxu0
  %v2876 = vadd.f32 0.0, %v2875
  %v2877 = vpop.f32.mrb[0].mxu0
  %v2878 = vpop.f32.mrb[0].mxu0
  %v2879 = vadd.f32 0.0, %v2878
  %v2880 = vpop.f32.mrb[0].mxu0
  %2881 = vmatprep.mubr.bf16.mxu0 0
  %2882 = vmatmul.mubr.bf16.gmra.mrb[0].mxu0 %v2833
  %v2883 = vpop.f32.mrb[0].mxu0
  %v2884 = vadd.f32 0.0, %v2883
  %v2885 = vpop.f32.mrb[0].mxu0
  %v2886 = vpop.f32.mrb[0].mxu0
  %v2887 = vpop.f32.mrb[0].mxu0
  %2888 = vdwg.mxu0
  %v2889 = vmul.f32 %v2876, 0.17677669
  %v2890 = vmul.f32 %v2879, 0.17677669
  %v2891 = vmul.f32 %v2884, 0.17677669
  %v2892 = vsel %vm70, %v2889, -1e+30
  %v2893 = vsel %vm70, %v2890, -1e+30
  %v2894 = vsel %vm70, %v2891, -1e+30
  %v2895 = vsel %vm1993, %v2892, -inf
  %2896 = vmax.xlane.f32.xlu0 %v2895
  %v2897 = vpop.xlane.xlu0 %2896
  %v2898 = vsel %vm1993, %v2893, -inf
  %2899 = vmax.xlane.f32.xlu0 %v2898
  %v2900 = vpop.xlane.xlu0 %2899
  %v2901 = vsel %vm1993, %v2894, -inf
  %2902 = vmax.xlane.f32.xlu0 %v2901
  %v2903 = vpop.xlane.xlu0 %2902
  %v2904 = vsub.f32 %v2892, %v2897
  %v2905 = vsub.f32 %v2893, %v2900
  %v2906 = vsub.f32 %v2894, %v2903
  %v2907 = vmul.f32 %v2904, 1.442695
  %v2908 = vpow.pop %v2907
  %v2909 = vmul.f32 %v2905, 1.442695
  %v2910 = vpow.pop %v2909
  %v2911 = vmul.f32 %v2906, 1.442695
  %v2912 = vpow.pop %v2911
  %v2913 = vsel %vm1993, %v2908, 0.0
  %2914 = vadd.xlane.f32.xlu0 %v2913
  %v2915 = vpop.xlane.xlu0 %2914
  %v2916 = vsel %vm1993, %v2910, 0.0
  %2917 = vadd.xlane.f32.xlu0 %v2916
  %v2918 = vpop.xlane.xlu0 %2917
  %v2919 = vsel %vm1993, %v2912, 0.0
  %2920 = vadd.xlane.f32.xlu0 %v2919
  %v2921 = vpop.xlane.xlu0 %2920
  %v2922 = vrcp.pop %v2915
  %v2923 = vrcp.pop %v2918
  %v2924 = vrcp.pop %v2921
  %v2925 = vmul.f32 %v2908, %v2922
  %v2926 = vmul.f32 %v2910, %v2923
  %v2927 = vmul.f32 %v2912, %v2924
  %v2928 = vpack.c.bf16 %v2926, %v2925
  %v2929 = vpack.c.bf16 %v2927, %v2927
  %2932 = vrot.lane.b32.xlu0 %v2655, 96
  %v2933 = vpop.permute.xlu0 %2932
  %2934 = vrot.lane.b32.xlu0 %v2658, 96
  %v2935 = vpop.permute.xlu0 %2934
  %v2938 = vsel %vm1993, %v2928, 0
  %v2941 = vsel %vm1993, %v2929, 0
  %v2944 = vsel %vm2035, %v2935, 0
  %2946 = vmatprep.subr.bf16.mxu0 0
  %2947 = vmatpush1.bf16.msra.mxu0 %v2933
  %2948 = vmatprep.subr.bf16.mxu0 0
  %2949 = vmatpush1.bf16.msra.mxu0 %v2944
  %2950 = vmatprep.subr.bf16.mxu0 0
  %2951 = vmatpush1.bf16.msra.mxu0 0
  %2952 = vmatprep.subr.bf16.mxu0 0
  %2953 = vmatpush1.bf16.msra.mxu0 0
  %2954 = vmatprep.subr.bf16.mxu0 0
  %2955 = vmatpush1.bf16.msra.mxu0 0
  %2956 = vmatprep.subr.bf16.mxu0 0
  %2957 = vmatpush1.bf16.msra.mxu0 0
  %2958 = vmatprep.subr.bf16.mxu0 0
  %2959 = vmatpush1.bf16.msra.mxu0 0
  %2960 = vmatprep.subr.bf16.mxu0 0
  %2961 = vmatpush1.bf16.msra.mxu0 0
  %2962 = vmatprep.subr.bf16.mxu0 0
  %2963 = vmatpush1.bf16.msra.mxu0 0
  %2964 = vmatprep.subr.bf16.mxu0 0
  %2965 = vmatpush1.bf16.msra.mxu0 0
  %2966 = vmatprep.subr.bf16.mxu0 0
  %2967 = vmatpush1.bf16.msra.mxu0 0
  %2968 = vmatprep.subr.bf16.mxu0 0
  %2969 = vmatpush1.bf16.msra.mxu0 0
  %2970 = vmatprep.subr.bf16.mxu0 0
  %2971 = vmatpush1.bf16.msra.mxu0 0
  %2972 = vmatprep.subr.bf16.mxu0 0
  %2973 = vmatpush1.bf16.msra.mxu0 0
  %2974 = vmatprep.subr.bf16.mxu0 0
  %2975 = vmatpush1.bf16.msra.mxu0 0
  %2976 = vmatprep.subr.bf16.mxu0 0
  %2977 = vmatpush1.bf16.msra.mxu0 0
  %2978 = vmatprep.mubr.bf16.mxu0 0
  %2979 = vmatmul.mubr.bf16.gmra.mrb[0].mxu0 %v2938
  %v2980 = vpop.f32.mrb[0].mxu0
  %v2981 = vadd.f32 0.0, %v2980
  %v2982 = vpop.f32.mrb[0].mxu0
  %v2983 = vpop.f32.mrb[0].mxu0
  %v2984 = vadd.f32 0.0, %v2983
  %v2985 = vpop.f32.mrb[0].mxu0
  %2986 = vmatprep.mubr.bf16.mxu0 0
  %2987 = vmatmul.mubr.bf16.gmra.mrb[0].mxu0 %v2941
  %v2988 = vpop.f32.mrb[0].mxu0
  %v2989 = vadd.f32 0.0, %v2988
  %v2990 = vpop.f32.mrb[0].mxu0
  %v2991 = vpop.f32.mrb[0].mxu0
  %v2992 = vpop.f32.mrb[0].mxu0
  %2993 = vdwg.mxu0
  %2994 = vrot.lane.b32.xlu0 %v2653, 64
  %v2995 = vpop.permute.xlu0 %2994
  %2996 = vrot.lane.b32.xlu0 %v2656, 64
  %v2997 = vpop.permute.xlu0 %2996
  %2998 = vrot.lane.b32.xlu0 %v2654, 64
  %v2999 = vpop.permute.xlu0 %2998
  %3000 = vrot.lane.b32.xlu0 %v2657, 64
  %v3001 = vpop.permute.xlu0 %3000
  %v3003 = vsel %vm1926, %v2995, 0
  %v3006 = vsel %vm1926, %v2997, 0
  %v3009 = vsel %vm1926, %v2999, 0
  %v3012 = vsel %vm1926, %v3001, 0
  %3014 = vmatprep.subr.bf16.mxu0 0
  %3015 = vmatpush1.bf16.xpose.msra.mxu0 %v3009
  %3016 = vmatprep.subr.bf16.mxu0 0
  %3017 = vmatpush1.bf16.xpose.msra.mxu0 %v3012
  %3018 = vmatprep.subr.bf16.mxu0 0
  %3019 = vmatpush1.bf16.xpose.msra.mxu0 0
  %3020 = vmatprep.subr.bf16.mxu0 0
  %3021 = vmatpush1.bf16.xpose.msra.mxu0 0
  %3022 = vmatprep.subr.bf16.mxu0 0
  %3023 = vmatpush1.bf16.xpose.msra.mxu0 0
  %3024 = vmatprep.subr.bf16.mxu0 0
  %3025 = vmatpush1.bf16.xpose.msra.mxu0 0
  %3026 = vmatprep.subr.bf16.mxu0 0
  %3027 = vmatpush1.bf16.xpose.msra.mxu0 0
  %3028 = vmatprep.subr.bf16.mxu0 0
  %3029 = vmatpush1.bf16.xpose.msra.mxu0 0
  %3030 = vmatprep.subr.bf16.mxu0 0
  %3031 = vmatpush1.bf16.xpose.msra.mxu0 0
  %3032 = vmatprep.subr.bf16.mxu0 0
  %3033 = vmatpush1.bf16.xpose.msra.mxu0 0
  %3034 = vmatprep.subr.bf16.mxu0 0
  %3035 = vmatpush1.bf16.xpose.msra.mxu0 0
  %3036 = vmatprep.subr.bf16.mxu0 0
  %3037 = vmatpush1.bf16.xpose.msra.mxu0 0
  %3038 = vmatprep.subr.bf16.mxu0 0
  %3039 = vmatpush1.bf16.xpose.msra.mxu0 0
  %3040 = vmatprep.subr.bf16.mxu0 0
  %3041 = vmatpush1.bf16.xpose.msra.mxu0 0
  %3042 = vmatprep.subr.bf16.mxu0 0
  %3043 = vmatpush1.bf16.xpose.msra.mxu0 0
  %3044 = vmatprep.subr.bf16.mxu0 0
  %3045 = vmatpush1.bf16.xpose.msra.mxu0 0
  %3046 = vmatprep.mubr.bf16.mxu0 0
  %3047 = vmatmul.mubr.bf16.gmra.mrb[0].mxu0 %v3003
  %v3048 = vpop.f32.mrb[0].mxu0
  %v3049 = vadd.f32 0.0, %v3048
  %v3050 = vpop.f32.mrb[0].mxu0
  %v3051 = vpop.f32.mrb[0].mxu0
  %v3052 = vadd.f32 0.0, %v3051
  %v3053 = vpop.f32.mrb[0].mxu0
  %3054 = vmatprep.mubr.bf16.mxu0 0
  %3055 = vmatmul.mubr.bf16.gmra.mrb[0].mxu0 %v3006
  %v3056 = vpop.f32.mrb[0].mxu0
  %v3057 = vadd.f32 0.0, %v3056
  %v3058 = vpop.f32.mrb[0].mxu0
  %v3059 = vpop.f32.mrb[0].mxu0
  %v3060 = vpop.f32.mrb[0].mxu0
  %3061 = vdwg.mxu0
  %v3062 = vmul.f32 %v3049, 0.17677669
  %v3063 = vmul.f32 %v3052, 0.17677669
  %v3064 = vmul.f32 %v3057, 0.17677669
  %v3065 = vsel %vm70, %v3062, -1e+30
  %v3066 = vsel %vm70, %v3063, -1e+30
  %v3067 = vsel %vm70, %v3064, -1e+30
  %v3068 = vsel %vm1993, %v3065, -inf
  %3069 = vmax.xlane.f32.xlu0 %v3068
  %v3070 = vpop.xlane.xlu0 %3069
  %v3071 = vsel %vm1993, %v3066, -inf
  %3072 = vmax.xlane.f32.xlu0 %v3071
  %v3073 = vpop.xlane.xlu0 %3072
  %v3074 = vsel %vm1993, %v3067, -inf
  %3075 = vmax.xlane.f32.xlu0 %v3074
  %v3076 = vpop.xlane.xlu0 %3075
  %v3077 = vsub.f32 %v3065, %v3070
  %v3078 = vsub.f32 %v3066, %v3073
  %v3079 = vsub.f32 %v3067, %v3076
  %v3080 = vmul.f32 %v3077, 1.442695
  %v3081 = vpow.pop %v3080
  %v3082 = vmul.f32 %v3078, 1.442695
  %v3083 = vpow.pop %v3082
  %v3084 = vmul.f32 %v3079, 1.442695
  %v3085 = vpow.pop %v3084
  %v3086 = vsel %vm1993, %v3081, 0.0
  %3087 = vadd.xlane.f32.xlu0 %v3086
  %v3088 = vpop.xlane.xlu0 %3087
  %v3089 = vsel %vm1993, %v3083, 0.0
  %3090 = vadd.xlane.f32.xlu0 %v3089
  %v3091 = vpop.xlane.xlu0 %3090
  %v3092 = vsel %vm1993, %v3085, 0.0
  %3093 = vadd.xlane.f32.xlu0 %v3092
  %v3094 = vpop.xlane.xlu0 %3093
  %v3095 = vrcp.pop %v3088
  %v3096 = vrcp.pop %v3091
  %v3097 = vrcp.pop %v3094
  %v3098 = vmul.f32 %v3081, %v3095
  %v3099 = vmul.f32 %v3083, %v3096
  %v3100 = vmul.f32 %v3085, %v3097
  %v3101 = vpack.c.bf16 %v3099, %v3098
  %v3102 = vpack.c.bf16 %v3100, %v3100
  %3103 = vrot.lane.b32.xlu0 %v2655, 64
  %v3104 = vpop.permute.xlu0 %3103
  %3105 = vrot.lane.b32.xlu0 %v2658, 64
  %v3106 = vpop.permute.xlu0 %3105
  %v3109 = vsel %vm1993, %v3101, 0
  %v3112 = vsel %vm1993, %v3102, 0
  %v3115 = vsel %vm2035, %v3106, 0
  %3117 = vmatprep.subr.bf16.mxu0 0
  %3118 = vmatpush1.bf16.msra.mxu0 %v3104
  %3119 = vmatprep.subr.bf16.mxu0 0
  %3120 = vmatpush1.bf16.msra.mxu0 %v3115
  %3121 = vmatprep.subr.bf16.mxu0 0
  %3122 = vmatpush1.bf16.msra.mxu0 0
  %3123 = vmatprep.subr.bf16.mxu0 0
  %3124 = vmatpush1.bf16.msra.mxu0 0
  %3125 = vmatprep.subr.bf16.mxu0 0
  %3126 = vmatpush1.bf16.msra.mxu0 0
  %3127 = vmatprep.subr.bf16.mxu0 0
  %3128 = vmatpush1.bf16.msra.mxu0 0
  %3129 = vmatprep.subr.bf16.mxu0 0
  %3130 = vmatpush1.bf16.msra.mxu0 0
  %3131 = vmatprep.subr.bf16.mxu0 0
  %3132 = vmatpush1.bf16.msra.mxu0 0
  %3133 = vmatprep.subr.bf16.mxu0 0
  %3134 = vmatpush1.bf16.msra.mxu0 0
  %3135 = vmatprep.subr.bf16.mxu0 0
  %3136 = vmatpush1.bf16.msra.mxu0 0
  %3137 = vmatprep.subr.bf16.mxu0 0
  %3138 = vmatpush1.bf16.msra.mxu0 0
  %3139 = vmatprep.subr.bf16.mxu0 0
  %3140 = vmatpush1.bf16.msra.mxu0 0
  %3141 = vmatprep.subr.bf16.mxu0 0
  %3142 = vmatpush1.bf16.msra.mxu0 0
  %3143 = vmatprep.subr.bf16.mxu0 0
  %3144 = vmatpush1.bf16.msra.mxu0 0
  %3145 = vmatprep.subr.bf16.mxu0 0
  %3146 = vmatpush1.bf16.msra.mxu0 0
  %3147 = vmatprep.subr.bf16.mxu0 0
  %3148 = vmatpush1.bf16.msra.mxu0 0
  %3149 = vmatprep.mubr.bf16.mxu0 0
  %3150 = vmatmul.mubr.bf16.gmra.mrb[0].mxu0 %v3109
  %v3151 = vpop.f32.mrb[0].mxu0
  %v3152 = vadd.f32 0.0, %v3151
  %v3153 = vpop.f32.mrb[0].mxu0
  %v3154 = vpop.f32.mrb[0].mxu0
  %v3155 = vadd.f32 0.0, %v3154
  %v3156 = vpop.f32.mrb[0].mxu0
  %3157 = vmatprep.mubr.bf16.mxu0 0
  %3158 = vmatmul.mubr.bf16.gmra.mrb[0].mxu0 %v3112
  %v3159 = vpop.f32.mrb[0].mxu0
  %v3160 = vadd.f32 0.0, %v3159
  %v3161 = vpop.f32.mrb[0].mxu0
  %v3162 = vpop.f32.mrb[0].mxu0
  %v3163 = vpop.f32.mrb[0].mxu0
  %3164 = vdwg.mxu0
  %3165 = vrot.lane.b32.xlu0 %v2653, 32
  %v3166 = vpop.permute.xlu0 %3165
  %3167 = vrot.lane.b32.xlu0 %v2656, 32
  %v3168 = vpop.permute.xlu0 %3167
  %3169 = vrot.lane.b32.xlu0 %v2654, 32
  %v3170 = vpop.permute.xlu0 %3169
  %3171 = vrot.lane.b32.xlu0 %v2657, 32
  %v3172 = vpop.permute.xlu0 %3171
  %v3174 = vsel %vm1926, %v3166, 0
  %v3177 = vsel %vm1926, %v3168, 0
  %v3180 = vsel %vm1926, %v3170, 0
  %v3183 = vsel %vm1926, %v3172, 0
  %3185 = vmatprep.subr.bf16.mxu0 0
  %3186 = vmatpush1.bf16.xpose.msra.mxu0 %v3180
  %3187 = vmatprep.subr.bf16.mxu0 0
  %3188 = vmatpush1.bf16.xpose.msra.mxu0 %v3183
  %3189 = vmatprep.subr.bf16.mxu0 0
  %3190 = vmatpush1.bf16.xpose.msra.mxu0 0
  %3191 = vmatprep.subr.bf16.mxu0 0
  %3192 = vmatpush1.bf16.xpose.msra.mxu0 0
  %3193 = vmatprep.subr.bf16.mxu0 0
  %3194 = vmatpush1.bf16.xpose.msra.mxu0 0
  %3195 = vmatprep.subr.bf16.mxu0 0
  %3196 = vmatpush1.bf16.xpose.msra.mxu0 0
  %3197 = vmatprep.subr.bf16.mxu0 0
  %3198 = vmatpush1.bf16.xpose.msra.mxu0 0
  %3199 = vmatprep.subr.bf16.mxu0 0
  %3200 = vmatpush1.bf16.xpose.msra.mxu0 0
  %3201 = vmatprep.subr.bf16.mxu0 0
  %3202 = vmatpush1.bf16.xpose.msra.mxu0 0
  %3203 = vmatprep.subr.bf16.mxu0 0
  %3204 = vmatpush1.bf16.xpose.msra.mxu0 0
  %3205 = vmatprep.subr.bf16.mxu0 0
  %3206 = vmatpush1.bf16.xpose.msra.mxu0 0
  %3207 = vmatprep.subr.bf16.mxu0 0
  %3208 = vmatpush1.bf16.xpose.msra.mxu0 0
  %3209 = vmatprep.subr.bf16.mxu0 0
  %3210 = vmatpush1.bf16.xpose.msra.mxu0 0
  %3211 = vmatprep.subr.bf16.mxu0 0
  %3212 = vmatpush1.bf16.xpose.msra.mxu0 0
  %3213 = vmatprep.subr.bf16.mxu0 0
  %3214 = vmatpush1.bf16.xpose.msra.mxu0 0
  %3215 = vmatprep.subr.bf16.mxu0 0
  %3216 = vmatpush1.bf16.xpose.msra.mxu0 0
  %3217 = vmatprep.mubr.bf16.mxu0 0
  %3218 = vmatmul.mubr.bf16.gmra.mrb[0].mxu0 %v3174
  %v3219 = vpop.f32.mrb[0].mxu0
  %v3220 = vadd.f32 0.0, %v3219
  %v3221 = vpop.f32.mrb[0].mxu0
  %v3222 = vpop.f32.mrb[0].mxu0
  %v3223 = vadd.f32 0.0, %v3222
  %v3224 = vpop.f32.mrb[0].mxu0
  %3225 = vmatprep.mubr.bf16.mxu0 0
  %3226 = vmatmul.mubr.bf16.gmra.mrb[0].mxu0 %v3177
  %v3227 = vpop.f32.mrb[0].mxu0
  %v3228 = vadd.f32 0.0, %v3227
  %v3229 = vpop.f32.mrb[0].mxu0
  %v3230 = vpop.f32.mrb[0].mxu0
  %v3231 = vpop.f32.mrb[0].mxu0
  %3232 = vdwg.mxu0
  %v3233 = vmul.f32 %v3220, 0.17677669
  %v3234 = vmul.f32 %v3223, 0.17677669
  %v3235 = vmul.f32 %v3228, 0.17677669
  %v3236 = vsel %vm70, %v3233, -1e+30
  %v3237 = vsel %vm70, %v3234, -1e+30
  %v3238 = vsel %vm70, %v3235, -1e+30
  %v3239 = vsel %vm1993, %v3236, -inf
  %3240 = vmax.xlane.f32.xlu0 %v3239
  %v3241 = vpop.xlane.xlu0 %3240
  %v3242 = vsel %vm1993, %v3237, -inf
  %3243 = vmax.xlane.f32.xlu0 %v3242
  %v3244 = vpop.xlane.xlu0 %3243
  %v3245 = vsel %vm1993, %v3238, -inf
  %3246 = vmax.xlane.f32.xlu0 %v3245
  %v3247 = vpop.xlane.xlu0 %3246
  %v3248 = vsub.f32 %v3236, %v3241
  %v3249 = vsub.f32 %v3237, %v3244
  %v3250 = vsub.f32 %v3238, %v3247
  %v3251 = vmul.f32 %v3248, 1.442695
  %v3252 = vpow.pop %v3251
  %v3253 = vmul.f32 %v3249, 1.442695
  %v3254 = vpow.pop %v3253
  %v3255 = vmul.f32 %v3250, 1.442695
  %v3256 = vpow.pop %v3255
  %v3257 = vsel %vm1993, %v3252, 0.0
  %3258 = vadd.xlane.f32.xlu0 %v3257
  %v3259 = vpop.xlane.xlu0 %3258
  %v3260 = vsel %vm1993, %v3254, 0.0
  %3261 = vadd.xlane.f32.xlu0 %v3260
  %v3262 = vpop.xlane.xlu0 %3261
  %v3263 = vsel %vm1993, %v3256, 0.0
  %3264 = vadd.xlane.f32.xlu0 %v3263
  %v3265 = vpop.xlane.xlu0 %3264
  %v3266 = vrcp.pop %v3259
  %v3267 = vrcp.pop %v3262
  %v3268 = vrcp.pop %v3265
  %v3269 = vmul.f32 %v3252, %v3266
  %v3270 = vmul.f32 %v3254, %v3267
  %v3271 = vmul.f32 %v3256, %v3268
  %v3272 = vpack.c.bf16 %v3270, %v3269
  %v3273 = vpack.c.bf16 %v3271, %v3271
  %3274 = vrot.lane.b32.xlu0 %v2655, 32
  %v3275 = vpop.permute.xlu0 %3274
  %3276 = vrot.lane.b32.xlu0 %v2658, 32
  %v3277 = vpop.permute.xlu0 %3276
  %v3280 = vsel %vm1993, %v3272, 0
  %v3283 = vsel %vm1993, %v3273, 0
  %v3286 = vsel %vm2035, %v3277, 0
  %3288 = vmatprep.subr.bf16.mxu0 0
  %3289 = vmatpush1.bf16.msra.mxu0 %v3275
  %3290 = vmatprep.subr.bf16.mxu0 0
  %3291 = vmatpush1.bf16.msra.mxu0 %v3286
  %3292 = vmatprep.subr.bf16.mxu0 0
  %3293 = vmatpush1.bf16.msra.mxu0 0
  %3294 = vmatprep.subr.bf16.mxu0 0
  %3295 = vmatpush1.bf16.msra.mxu0 0
  %3296 = vmatprep.subr.bf16.mxu0 0
  %3297 = vmatpush1.bf16.msra.mxu0 0
  %3298 = vmatprep.subr.bf16.mxu0 0
  %3299 = vmatpush1.bf16.msra.mxu0 0
  %3300 = vmatprep.subr.bf16.mxu0 0
  %3301 = vmatpush1.bf16.msra.mxu0 0
  %3302 = vmatprep.subr.bf16.mxu0 0
  %3303 = vmatpush1.bf16.msra.mxu0 0
  %3304 = vmatprep.subr.bf16.mxu0 0
  %3305 = vmatpush1.bf16.msra.mxu0 0
  %3306 = vmatprep.subr.bf16.mxu0 0
  %3307 = vmatpush1.bf16.msra.mxu0 0
  %3308 = vmatprep.subr.bf16.mxu0 0
  %3309 = vmatpush1.bf16.msra.mxu0 0
  %3310 = vmatprep.subr.bf16.mxu0 0
  %3311 = vmatpush1.bf16.msra.mxu0 0
  %3312 = vmatprep.subr.bf16.mxu0 0
  %3313 = vmatpush1.bf16.msra.mxu0 0
  %3314 = vmatprep.subr.bf16.mxu0 0
  %3315 = vmatpush1.bf16.msra.mxu0 0
  %3316 = vmatprep.subr.bf16.mxu0 0
  %3317 = vmatpush1.bf16.msra.mxu0 0
  %3318 = vmatprep.subr.bf16.mxu0 0
  %3319 = vmatpush1.bf16.msra.mxu0 0
  %3320 = vmatprep.mubr.bf16.mxu0 0
  %3321 = vmatmul.mubr.bf16.gmra.mrb[0].mxu0 %v3280
  %v3322 = vpop.f32.mrb[0].mxu0
  %v3323 = vadd.f32 0.0, %v3322
  %v3324 = vpop.f32.mrb[0].mxu0
  %v3325 = vpop.f32.mrb[0].mxu0
  %v3326 = vadd.f32 0.0, %v3325
  %v3327 = vpop.f32.mrb[0].mxu0
  %3328 = vmatprep.mubr.bf16.mxu0 0
  %3329 = vmatmul.mubr.bf16.gmra.mrb[0].mxu0 %v3283
  %v3330 = vpop.f32.mrb[0].mxu0
  %v3331 = vadd.f32 0.0, %v3330
  %v3332 = vpop.f32.mrb[0].mxu0
  %v3333 = vpop.f32.mrb[0].mxu0
  %v3334 = vpop.f32.mrb[0].mxu0
  %3335 = vdwg.mxu0
  %3339 = vrot.lane.b32.xlu0 %v2981, 32
  %v3340 = vpop.permute.xlu0 %3339
  %3341 = vrot.lane.b32.xlu0 %v2984, 32
  %v3342 = vpop.permute.xlu0 %3341
  %3343 = vrot.lane.b32.xlu0 %v2989, 32
  %v3344 = vpop.permute.xlu0 %3343
  %3351 = vrot.lane.b32.xlu0 %v3152, 64
  %v3352 = vpop.permute.xlu0 %3351
  %3353 = vrot.lane.b32.xlu0 %v3155, 64
  %v3354 = vpop.permute.xlu0 %3353
  %3355 = vrot.lane.b32.xlu0 %v3160, 64
  %v3356 = vpop.permute.xlu0 %3355
  %3363 = vrot.lane.b32.xlu0 %v3323, 96
  %v3364 = vpop.permute.xlu0 %3363
  %3365 = vrot.lane.b32.xlu0 %v3326, 96
  %v3366 = vpop.permute.xlu0 %3365
  %3367 = vrot.lane.b32.xlu0 %v3331, 96
  %v3368 = vpop.permute.xlu0 %3367
  %v3372 = vsel %vm1926, %v2804, %v3340
  %v3373 = vsel %vm1926, %v2807, %v3342
  %v3374 = vsel %vm1926, %v2812, %v3344
  %v3375 = vsel %vm2645, %v3372, %v3352
  %v3376 = vsel %vm2645, %v3373, %v3354
  %v3377 = vsel %vm2645, %v3374, %v3356
  %v3378 = vsel %vm2649, %v3375, %v3364
  %v3379 = vsel %vm2649, %v3376, %v3366
  %v3380 = vsel %vm2649, %v3377, %v3368
  %v3381 = vld [vmem:[%s7] sm:$0xff]
  %v3382 = vld [vmem:[%s7 + $0x8] sm:$0xf]
  %v3383 = vld [vmem:[%s7 + $0xc] sm:$0xff]
  %v3384 = vld [vmem:[%s7 + $0x14] sm:$0xf]
  %v3385 = vld [vmem:[%s7 + $0x18] sm:$0xff]
  %v3386 = vld [vmem:[%s7 + $0x20] sm:$0xf]
  %v3387 = vld [vmem:[%s7 + $0x24] sm:$0xff]
  %v3388 = vld [vmem:[%s7 + $0x2c] sm:$0xf]
  %v3389 = vld [vmem:[%s7 + $0x30] sm:$0xff]
  %v3390 = vld [vmem:[%s7 + $0x38] sm:$0xf]
  %v3391 = vld [vmem:[%s7 + $0x3c] sm:$0xff]
  %v3392 = vld [vmem:[%s7 + $0x44] sm:$0xf]
  %v3393 = vld [vmem:[%s7 + $0x48] sm:$0xff]
  %v3394 = vld [vmem:[%s7 + $0x50] sm:$0xf]
  %v3395 = vld [vmem:[%s7 + $0x54] sm:$0xff]
  %v3396 = vld [vmem:[%s7 + $0x5c] sm:$0xf]
  %v3397 = vld [vmem:[%s7 + $0x60] sm:$0xff]
  %v3398 = vld [vmem:[%s7 + $0x68] sm:$0xf]
  %v3399 = vld [vmem:[%s7 + $0x6c] sm:$0xff]
  %v3400 = vld [vmem:[%s7 + $0x74] sm:$0xf]
  %v3401 = vld [vmem:[%s7 + $0x78] sm:$0xff]
  %v3402 = vld [vmem:[%s7 + $0x80] sm:$0xf]
  %v3403 = vld [vmem:[%s7 + $0x84] sm:$0xff]
  %v3404 = vld [vmem:[%s7 + $0x8c] sm:$0xf]
  %v3405 = vld [vmem:[%s7 + $0x90] sm:$0xff]
  %v3406 = vld [vmem:[%s7 + $0x98] sm:$0xf]
  %v3407 = vld [vmem:[%s7 + $0x9c] sm:$0xff]
  %v3408 = vld [vmem:[%s7 + $0xa4] sm:$0xf]
  %v3409 = vld [vmem:[%s7 + $0xa8] sm:$0xff]
  %v3410 = vld [vmem:[%s7 + $0xb0] sm:$0xf]
  %v3411 = vld [vmem:[%s7 + $0xb4] sm:$0xff]
  %v3412 = vld [vmem:[%s7 + $0xbc] sm:$0xf]
  %v3413 = vpack.c.bf16 %v2651, %v2650
  %v3414 = vpack.c.bf16 %v3378, %v2652
  %v3415 = vpack.c.bf16 %v3380, %v3379
  %v3448 = vunpack.c.l.b16 %v3381
  %v3449 = vunpack.c.h.b16 %v3381
  %v3450 = vunpack.c.l.b16 %v3382
  %v3451 = vunpack.c.l.b16 %v3383
  %v3452 = vunpack.c.h.b16 %v3383
  %v3453 = vunpack.c.l.b16 %v3384
  %v3454 = vunpack.c.l.b16 %v3385
  %v3455 = vunpack.c.h.b16 %v3385
  %v3456 = vunpack.c.l.b16 %v3386
  %v3457 = vunpack.c.l.b16 %v3387
  %v3458 = vunpack.c.h.b16 %v3387
  %v3459 = vunpack.c.l.b16 %v3388
  %v3460 = vunpack.c.l.b16 %v3389
  %v3461 = vunpack.c.h.b16 %v3389
  %v3462 = vunpack.c.l.b16 %v3390
  %v3463 = vunpack.c.l.b16 %v3391
  %v3464 = vunpack.c.h.b16 %v3391
  %v3465 = vunpack.c.l.b16 %v3392
  %v3466 = vunpack.c.l.b16 %v3393
  %v3467 = vunpack.c.h.b16 %v3393
  %v3468 = vunpack.c.l.b16 %v3394
  %v3469 = vunpack.c.l.b16 %v3395
  %v3470 = vunpack.c.h.b16 %v3395
  %v3471 = vunpack.c.l.b16 %v3396
  %v3472 = vunpack.c.l.b16 %v3397
  %v3473 = vunpack.c.h.b16 %v3397
  %v3474 = vunpack.c.l.b16 %v3398
  %v3475 = vunpack.c.l.b16 %v3399
  %v3476 = vunpack.c.h.b16 %v3399
  %v3477 = vunpack.c.l.b16 %v3400
  %v3478 = vunpack.c.l.b16 %v3401
  %v3479 = vunpack.c.h.b16 %v3401
  %v3480 = vunpack.c.l.b16 %v3402
  %v3481 = vunpack.c.l.b16 %v3403
  %v3482 = vunpack.c.h.b16 %v3403
  %v3483 = vunpack.c.l.b16 %v3404
  %v3484 = vunpack.c.l.b16 %v3405
  %v3485 = vunpack.c.h.b16 %v3405
  %v3486 = vunpack.c.l.b16 %v3406
  %v3487 = vunpack.c.l.b16 %v3407
  %v3488 = vunpack.c.h.b16 %v3407
  %v3489 = vunpack.c.l.b16 %v3408
  %v3490 = vunpack.c.l.b16 %v3409
  %v3491 = vunpack.c.h.b16 %v3409
  %v3492 = vunpack.c.l.b16 %v3410
  %v3493 = vunpack.c.l.b16 %v3411
  %v3494 = vunpack.c.h.b16 %v3411
  %v3495 = vunpack.c.l.b16 %v3412
  %v3496 = vpack.c.b16 %v3451, %v3448
  %v3497 = vpack.c.b16 %v3452, %v3449
  %v3498 = vpack.c.b16 %v3453, %v3450
  %v3499 = vpack.c.b16 %v3457, %v3454
  %v3500 = vpack.c.b16 %v3458, %v3455
  %v3501 = vpack.c.b16 %v3459, %v3456
  %v3502 = vpack.c.b16 %v3463, %v3460
  %v3503 = vpack.c.b16 %v3464, %v3461
  %v3504 = vpack.c.b16 %v3465, %v3462
  %v3505 = vpack.c.b16 %v3469, %v3466
  %v3506 = vpack.c.b16 %v3470, %v3467
  %v3507 = vpack.c.b16 %v3471, %v3468
  %v3508 = vpack.c.b16 %v3475, %v3472
  %v3509 = vpack.c.b16 %v3476, %v3473
  %v3510 = vpack.c.b16 %v3477, %v3474
  %v3511 = vpack.c.b16 %v3481, %v3478
  %v3512 = vpack.c.b16 %v3482, %v3479
  %v3513 = vpack.c.b16 %v3483, %v3480
  %v3514 = vpack.c.b16 %v3487, %v3484
  %v3515 = vpack.c.b16 %v3488, %v3485
  %v3516 = vpack.c.b16 %v3489, %v3486
  %v3517 = vpack.c.b16 %v3493, %v3490
  %v3518 = vpack.c.b16 %v3494, %v3491
  %v3519 = vpack.c.b16 %v3495, %v3492
  %3544 = vmatprep.subr.bf16.mxu0 %v3497
  %3545 = vmatpush1.bf16.msra.mxu0 %v3496
  %3546 = vmatprep.subr.bf16.mxu0 %v3500
  %3547 = vmatpush1.bf16.msra.mxu0 %v3499
  %3548 = vmatprep.subr.bf16.mxu0 %v3503
  %3549 = vmatpush1.bf16.msra.mxu0 %v3502
  %3550 = vmatprep.subr.bf16.mxu0 %v3506
  %3551 = vmatpush1.bf16.msra.mxu0 %v3505
  %3552 = vmatprep.subr.bf16.mxu0 %v3509
  %3553 = vmatpush1.bf16.msra.mxu0 %v3508
  %3554 = vmatprep.subr.bf16.mxu0 %v3512
  %3555 = vmatpush1.bf16.msra.mxu0 %v3511
  %3556 = vmatprep.subr.bf16.mxu0 %v3515
  %3557 = vmatpush1.bf16.msra.mxu0 %v3514
  %3558 = vmatprep.subr.bf16.mxu0 %v3518
  %3559 = vmatpush1.bf16.msra.mxu0 %v3517
  %3560 = vmatprep.subr.bf16.mxu0 0
  %3561 = vmatpush1.bf16.msra.mxu0 0
  %3562 = vmatprep.subr.bf16.mxu0 0
  %3563 = vmatpush1.bf16.msra.mxu0 0
  %3564 = vmatprep.subr.bf16.mxu0 0
  %3565 = vmatpush1.bf16.msra.mxu0 0
  %3566 = vmatprep.subr.bf16.mxu0 0
  %3567 = vmatpush1.bf16.msra.mxu0 0
  %3568 = vmatprep.subr.bf16.mxu0 0
  %3569 = vmatpush1.bf16.msra.mxu0 0
  %3570 = vmatprep.subr.bf16.mxu0 0
  %3571 = vmatpush1.bf16.msra.mxu0 0
  %3572 = vmatprep.subr.bf16.mxu0 0
  %3573 = vmatpush1.bf16.msra.mxu0 0
  %3574 = vmatprep.subr.bf16.mxu0 0
  %3575 = vmatpush1.bf16.msra.mxu0 0
  %3576 = vmatprep.mubr.bf16.mxu0 0
  %3577 = vmatmul.mubr.bf16.gmra.mrb[0].mxu0 %v3413
  %v3578 = vpop.f32.mrb[0].mxu0
  %v3579 = vadd.f32 0.0, %v3578
  %v3580 = vpop.f32.mrb[0].mxu0
  %v3581 = vadd.f32 0.0, %v3580
  %v3582 = vpop.f32.mrb[0].mxu0
  %v3583 = vadd.f32 0.0, %v3582
  %v3584 = vpop.f32.mrb[0].mxu0
  %v3585 = vadd.f32 0.0, %v3584
  %3586 = vmatprep.mubr.bf16.mxu0 0
  %3587 = vmatmul.mubr.bf16.gmra.mrb[0].mxu0 %v3414
  %v3588 = vpop.f32.mrb[0].mxu0
  %v3589 = vadd.f32 0.0, %v3588
  %v3590 = vpop.f32.mrb[0].mxu0
  %v3591 = vadd.f32 0.0, %v3590
  %v3592 = vpop.f32.mrb[0].mxu0
  %v3593 = vadd.f32 0.0, %v3592
  %v3594 = vpop.f32.mrb[0].mxu0
  %v3595 = vadd.f32 0.0, %v3594
  %3596 = vmatprep.mubr.bf16.mxu0 0
  %3597 = vmatmul.mubr.bf16.gmra.mrb[0].mxu0 %v3415
  %v3598 = vpop.f32.mrb[0].mxu0
  %v3599 = vadd.f32 0.0, %v3598
  %v3600 = vpop.f32.mrb[0].mxu0
  %v3601 = vadd.f32 0.0, %v3600
  %v3602 = vpop.f32.mrb[0].mxu0
  %v3603 = vadd.f32 0.0, %v3602
  %v3604 = vpop.f32.mrb[0].mxu0
  %v3605 = vadd.f32 0.0, %v3604
  %3606 = vdwg.mxu0
  %3607 = vmatprep.subr.bf16.mxu0 0
  %3608 = vmatpush1.bf16.msra.mxu0 %v3498
  %3609 = vmatprep.subr.bf16.mxu0 0
  %3610 = vmatpush1.bf16.msra.mxu0 %v3501
  %3611 = vmatprep.subr.bf16.mxu0 0
  %3612 = vmatpush1.bf16.msra.mxu0 %v3504
  %3613 = vmatprep.subr.bf16.mxu0 0
  %3614 = vmatpush1.bf16.msra.mxu0 %v3507
  %3615 = vmatprep.subr.bf16.mxu0 0
  %3616 = vmatpush1.bf16.msra.mxu0 %v3510
  %3617 = vmatprep.subr.bf16.mxu0 0
  %3618 = vmatpush1.bf16.msra.mxu0 %v3513
  %3619 = vmatprep.subr.bf16.mxu0 0
  %3620 = vmatpush1.bf16.msra.mxu0 %v3516
  %3621 = vmatprep.subr.bf16.mxu0 0
  %3622 = vmatpush1.bf16.msra.mxu0 %v3519
  %3623 = vmatprep.subr.bf16.mxu0 0
  %3624 = vmatpush1.bf16.msra.mxu0 0
  %3625 = vmatprep.subr.bf16.mxu0 0
  %3626 = vmatpush1.bf16.msra.mxu0 0
  %3627 = vmatprep.subr.bf16.mxu0 0
  %3628 = vmatpush1.bf16.msra.mxu0 0
  %3629 = vmatprep.subr.bf16.mxu0 0
  %3630 = vmatpush1.bf16.msra.mxu0 0
  %3631 = vmatprep.subr.bf16.mxu0 0
  %3632 = vmatpush1.bf16.msra.mxu0 0
  %3633 = vmatprep.subr.bf16.mxu0 0
  %3634 = vmatpush1.bf16.msra.mxu0 0
  %3635 = vmatprep.subr.bf16.mxu0 0
  %3636 = vmatpush1.bf16.msra.mxu0 0
  %3637 = vmatprep.subr.bf16.mxu0 0
  %3638 = vmatpush1.bf16.msra.mxu0 0
  %3639 = vmatprep.mubr.bf16.mxu0 0
  %3640 = vmatmul.mubr.bf16.gmra.mrb[0].mxu0 %v3413
  %v3641 = vpop.f32.mrb[0].mxu0
  %v3642 = vadd.f32 0.0, %v3641
  %v3643 = vpop.f32.mrb[0].mxu0
  %v3644 = vpop.f32.mrb[0].mxu0
  %v3645 = vadd.f32 0.0, %v3644
  %v3646 = vpop.f32.mrb[0].mxu0
  %3647 = vmatprep.mubr.bf16.mxu0 0
  %3648 = vmatmul.mubr.bf16.gmra.mrb[0].mxu0 %v3414
  %v3649 = vpop.f32.mrb[0].mxu0
  %v3650 = vadd.f32 0.0, %v3649
  %v3651 = vpop.f32.mrb[0].mxu0
  %v3652 = vpop.f32.mrb[0].mxu0
  %v3653 = vadd.f32 0.0, %v3652
  %v3654 = vpop.f32.mrb[0].mxu0
  %3655 = vmatprep.mubr.bf16.mxu0 0
  %3656 = vmatmul.mubr.bf16.gmra.mrb[0].mxu0 %v3415
  %v3657 = vpop.f32.mrb[0].mxu0
  %v3658 = vadd.f32 0.0, %v3657
  %v3659 = vpop.f32.mrb[0].mxu0
  %v3660 = vpop.f32.mrb[0].mxu0
  %v3661 = vadd.f32 0.0, %v3660
  %v3662 = vpop.f32.mrb[0].mxu0
  %3663 = vdwg.mxu0
  %v3664 = vadd.f32 %v989, %v3579
  %v3665 = vadd.f32 %v990, %v3581
  %v3666 = vadd.f32 %v991, %v3642
  %v3667 = vadd.f32 %v992, %v3583
  %v3668 = vadd.f32 %v993, %v3585
  %v3669 = vadd.f32 %v994, %v3645
  %v3670 = vadd.f32 %v986, %v3589
  %v3671 = vadd.f32 %v987, %v3591
  %v3672 = vadd.f32 %v988, %v3650
  %v3673 = vadd.f32 %v995, %v3593
  %v3674 = vadd.f32 %v996, %v3595
  %v3675 = vadd.f32 %v997, %v3653
  %v3676 = vadd.f32 %v998, %v3599
  %v3677 = vadd.f32 %v999, %v3601
  %v3678 = vadd.f32 %v1000, %v3658
  %v3679 = vadd.f32 %v986, %v3603
  %v3680 = vadd.f32 %v987, %v3605
  %v3681 = vadd.f32 %v988, %v3661
  %v3682 = vld [vmem:[%s8] sm:$0x7]
  %v3684 = vlaneseq
  %v3685 = vshrl.u32 %v3684, 7
  %v3686 = vsub.s32 0, %v3685
  %v3687 = vrot.slane %v3682, %v3686
  %v3688 = vlaneseq
  %v3689 = vshrl.u32 %v3688, 7
  %v3690 = vsub.s32 1, %v3689
  %v3691 = vrot.slane %v3682, %v3690
  %v3692 = vlaneseq
  %v3693 = vshrl.u32 %v3692, 7
  %v3694 = vsub.s32 2, %v3693
  %v3695 = vrot.slane %v3682, %v3694
  %v3699 = vadd.f32 %v3664, %v3687
  %v3700 = vadd.f32 %v3665, %v3691
  %v3701 = vadd.f32 %v3666, %v3695
  %v3702 = vadd.f32 %v3667, %v3687
  %v3703 = vadd.f32 %v3668, %v3691
  %v3704 = vadd.f32 %v3669, %v3695
  %v3705 = vadd.f32 %v3670, %v3687
  %v3706 = vadd.f32 %v3671, %v3691
  %v3707 = vadd.f32 %v3672, %v3695
  %v3708 = vadd.f32 %v3673, %v3687
  %v3709 = vadd.f32 %v3674, %v3691
  %v3710 = vadd.f32 %v3675, %v3695
  %v3711 = vadd.f32 %v3676, %v3687
  %v3712 = vadd.f32 %v3677, %v3691
  %v3713 = vadd.f32 %v3678, %v3695
  %v3714 = vadd.f32 %v3679, %v3687
  %v3715 = vadd.f32 %v3680, %v3691
  %v3716 = vadd.f32 %v3681, %v3695
  %v3717 = vld [vmem:[%s9] sm:$0x7]
  %v3718 = vld [vmem:[%s10] sm:$0x7]
  %v3719 = vadd.f32 %v3699, %v3700
  %v3720 = vadd.f32 %v3719, %v3701
  %3721 = vadd.xlane.f32.xlu0 %v3720
  %v3722 = vpop.xlane.xlu0 %3721
  %v3723 = vadd.f32 %v3702, %v3703
  %v3724 = vadd.f32 %v3723, %v3704
  %3725 = vadd.xlane.f32.xlu0 %v3724
  %v3726 = vpop.xlane.xlu0 %3725
  %v3727 = vadd.f32 %v3705, %v3706
  %v3728 = vadd.f32 %v3727, %v3707
  %3729 = vadd.xlane.f32.xlu0 %v3728
  %v3730 = vpop.xlane.xlu0 %3729
  %v3731 = vadd.f32 %v3708, %v3709
  %v3732 = vadd.f32 %v3731, %v3710
  %3733 = vadd.xlane.f32.xlu0 %v3732
  %v3734 = vpop.xlane.xlu0 %3733
  %v3735 = vadd.f32 %v3711, %v3712
  %v3736 = vadd.f32 %v3735, %v3713
  %3737 = vadd.xlane.f32.xlu0 %v3736
  %v3738 = vpop.xlane.xlu0 %3737
  %v3739 = vadd.f32 %v3714, %v3715
  %v3740 = vadd.f32 %v3739, %v3716
  %3741 = vadd.xlane.f32.xlu0 %v3740
  %v3742 = vpop.xlane.xlu0 %3741
  %v3743 = vmul.f32 %v3722, 0.002770083
  %v3744 = vmul.f32 %v3726, 0.002770083
  %v3745 = vmul.f32 %v3730, 0.002770083
  %v3746 = vmul.f32 %v3734, 0.002770083
  %v3747 = vmul.f32 %v3738, 0.002770083
  %v3748 = vmul.f32 %v3742, 0.002770083
  %v3749 = vsub.f32 %v3699, %v3743
  %v3750 = vsub.f32 %v3700, %v3743
  %v3751 = vsub.f32 %v3701, %v3743
  %v3752 = vsub.f32 %v3702, %v3744
  %v3753 = vsub.f32 %v3703, %v3744
  %v3754 = vsub.f32 %v3704, %v3744
  %v3755 = vsub.f32 %v3705, %v3745
  %v3756 = vsub.f32 %v3706, %v3745
  %v3757 = vsub.f32 %v3707, %v3745
  %v3758 = vsub.f32 %v3708, %v3746
  %v3759 = vsub.f32 %v3709, %v3746
  %v3760 = vsub.f32 %v3710, %v3746
  %v3761 = vsub.f32 %v3711, %v3747
  %v3762 = vsub.f32 %v3712, %v3747
  %v3763 = vsub.f32 %v3713, %v3747
  %v3764 = vsub.f32 %v3714, %v3748
  %v3765 = vsub.f32 %v3715, %v3748
  %v3766 = vsub.f32 %v3716, %v3748
  %v3767 = vsel %vm1046, %v3749, 0.0
  %v3768 = vsel %vm1047, %v3750, 0.0
  %v3769 = vsel %vm1048, %v3751, 0.0
  %v3770 = vsel %vm1046, %v3752, 0.0
  %v3771 = vsel %vm1047, %v3753, 0.0
  %v3772 = vsel %vm1048, %v3754, 0.0
  %v3773 = vsel %vm1046, %v3755, 0.0
  %v3774 = vsel %vm1047, %v3756, 0.0
  %v3775 = vsel %vm1048, %v3757, 0.0
  %v3776 = vsel %vm1046, %v3758, 0.0
  %v3777 = vsel %vm1047, %v3759, 0.0
  %v3778 = vsel %vm1048, %v3760, 0.0
  %v3779 = vsel %vm1046, %v3761, 0.0
  %v3780 = vsel %vm1047, %v3762, 0.0
  %v3781 = vsel %vm1048, %v3763, 0.0
  %v3782 = vsel %vm1046, %v3764, 0.0
  %v3783 = vsel %vm1047, %v3765, 0.0
  %v3784 = vsel %vm1048, %v3766, 0.0
  %v3785 = vmul.f32 %v3767, %v3767
  %v3786 = vmul.f32 %v3768, %v3768
  %v3787 = vmul.f32 %v3769, %v3769
  %v3788 = vmul.f32 %v3770, %v3770
  %v3789 = vmul.f32 %v3771, %v3771
  %v3790 = vmul.f32 %v3772, %v3772
  %v3791 = vmul.f32 %v3773, %v3773
  %v3792 = vmul.f32 %v3774, %v3774
  %v3793 = vmul.f32 %v3775, %v3775
  %v3794 = vmul.f32 %v3776, %v3776
  %v3795 = vmul.f32 %v3777, %v3777
  %v3796 = vmul.f32 %v3778, %v3778
  %v3797 = vmul.f32 %v3779, %v3779
  %v3798 = vmul.f32 %v3780, %v3780
  %v3799 = vmul.f32 %v3781, %v3781
  %v3800 = vmul.f32 %v3782, %v3782
  %v3801 = vmul.f32 %v3783, %v3783
  %v3802 = vmul.f32 %v3784, %v3784
  %v3803 = vadd.f32 %v3785, %v3786
  %v3804 = vadd.f32 %v3803, %v3787
  %3805 = vadd.xlane.f32.xlu0 %v3804
  %v3806 = vpop.xlane.xlu0 %3805
  %v3807 = vadd.f32 %v3788, %v3789
  %v3808 = vadd.f32 %v3807, %v3790
  %3809 = vadd.xlane.f32.xlu0 %v3808
  %v3810 = vpop.xlane.xlu0 %3809
  %v3811 = vadd.f32 %v3791, %v3792
  %v3812 = vadd.f32 %v3811, %v3793
  %3813 = vadd.xlane.f32.xlu0 %v3812
  %v3814 = vpop.xlane.xlu0 %3813
  %v3815 = vadd.f32 %v3794, %v3795
  %v3816 = vadd.f32 %v3815, %v3796
  %3817 = vadd.xlane.f32.xlu0 %v3816
  %v3818 = vpop.xlane.xlu0 %3817
  %v3819 = vadd.f32 %v3797, %v3798
  %v3820 = vadd.f32 %v3819, %v3799
  %3821 = vadd.xlane.f32.xlu0 %v3820
  %v3822 = vpop.xlane.xlu0 %3821
  %v3823 = vadd.f32 %v3800, %v3801
  %v3824 = vadd.f32 %v3823, %v3802
  %3825 = vadd.xlane.f32.xlu0 %v3824
  %v3826 = vpop.xlane.xlu0 %3825
  %v3827 = vmul.f32 %v3806, 0.002770083
  %v3828 = vmul.f32 %v3810, 0.002770083
  %v3829 = vmul.f32 %v3814, 0.002770083
  %v3830 = vmul.f32 %v3818, 0.002770083
  %v3831 = vmul.f32 %v3822, 0.002770083
  %v3832 = vmul.f32 %v3826, 0.002770083
  %v3833 = vadd.f32 %v3827, 1e-05
  %v3834 = vadd.f32 %v3828, 1e-05
  %v3835 = vadd.f32 %v3829, 1e-05
  %v3836 = vadd.f32 %v3830, 1e-05
  %v3837 = vadd.f32 %v3831, 1e-05
  %v3838 = vadd.f32 %v3832, 1e-05
  %v3839 = vrsqrt.pop %v3833
  %v3840 = vrsqrt.pop %v3834
  %v3841 = vrsqrt.pop %v3835
  %v3842 = vrsqrt.pop %v3836
  %v3843 = vrsqrt.pop %v3837
  %v3844 = vrsqrt.pop %v3838
  %v3845 = vmul.f32 %v3767, %v3839
  %v3846 = vmul.f32 %v3768, %v3839
  %v3847 = vmul.f32 %v3769, %v3839
  %v3848 = vmul.f32 %v3770, %v3840
  %v3849 = vmul.f32 %v3771, %v3840
  %v3850 = vmul.f32 %v3772, %v3840
  %v3851 = vmul.f32 %v3773, %v3841
  %v3852 = vmul.f32 %v3774, %v3841
  %v3853 = vmul.f32 %v3775, %v3841
  %v3854 = vmul.f32 %v3776, %v3842
  %v3855 = vmul.f32 %v3777, %v3842
  %v3856 = vmul.f32 %v3778, %v3842
  %v3857 = vmul.f32 %v3779, %v3843
  %v3858 = vmul.f32 %v3780, %v3843
  %v3859 = vmul.f32 %v3781, %v3843
  %v3860 = vmul.f32 %v3782, %v3844
  %v3861 = vmul.f32 %v3783, %v3844
  %v3862 = vmul.f32 %v3784, %v3844
  %v3864 = vlaneseq
  %v3865 = vshrl.u32 %v3864, 7
  %v3866 = vsub.s32 0, %v3865
  %v3867 = vrot.slane %v3717, %v3866
  %v3868 = vlaneseq
  %v3869 = vshrl.u32 %v3868, 7
  %v3870 = vsub.s32 1, %v3869
  %v3871 = vrot.slane %v3717, %v3870
  %v3872 = vlaneseq
  %v3873 = vshrl.u32 %v3872, 7
  %v3874 = vsub.s32 2, %v3873
  %v3875 = vrot.slane %v3717, %v3874
  %v3879 = vmul.f32 %v3845, %v3867
  %v3880 = vmul.f32 %v3846, %v3871
  %v3881 = vmul.f32 %v3847, %v3875
  %v3882 = vmul.f32 %v3848, %v3867
  %v3883 = vmul.f32 %v3849, %v3871
  %v3884 = vmul.f32 %v3850, %v3875
  %v3885 = vmul.f32 %v3851, %v3867
  %v3886 = vmul.f32 %v3852, %v3871
  %v3887 = vmul.f32 %v3853, %v3875
  %v3888 = vmul.f32 %v3854, %v3867
  %v3889 = vmul.f32 %v3855, %v3871
  %v3890 = vmul.f32 %v3856, %v3875
  %v3891 = vmul.f32 %v3857, %v3867
  %v3892 = vmul.f32 %v3858, %v3871
  %v3893 = vmul.f32 %v3859, %v3875
  %v3894 = vmul.f32 %v3860, %v3867
  %v3895 = vmul.f32 %v3861, %v3871
  %v3896 = vmul.f32 %v3862, %v3875
  %v3898 = vlaneseq
  %v3899 = vshrl.u32 %v3898, 7
  %v3900 = vsub.s32 0, %v3899
  %v3901 = vrot.slane %v3718, %v3900
  %v3902 = vlaneseq
  %v3903 = vshrl.u32 %v3902, 7
  %v3904 = vsub.s32 1, %v3903
  %v3905 = vrot.slane %v3718, %v3904
  %v3906 = vlaneseq
  %v3907 = vshrl.u32 %v3906, 7
  %v3908 = vsub.s32 2, %v3907
  %v3909 = vrot.slane %v3718, %v3908
  %v3913 = vadd.f32 %v3879, %v3901
  %v3914 = vadd.f32 %v3880, %v3905
  %v3915 = vadd.f32 %v3881, %v3909
  %v3916 = vadd.f32 %v3882, %v3901
  %v3917 = vadd.f32 %v3883, %v3905
  %v3918 = vadd.f32 %v3884, %v3909
  %v3919 = vadd.f32 %v3885, %v3901
  %v3920 = vadd.f32 %v3886, %v3905
  %v3921 = vadd.f32 %v3887, %v3909
  %v3922 = vadd.f32 %v3888, %v3901
  %v3923 = vadd.f32 %v3889, %v3905
  %v3924 = vadd.f32 %v3890, %v3909
  %v3925 = vadd.f32 %v3891, %v3901
  %v3926 = vadd.f32 %v3892, %v3905
  %v3927 = vadd.f32 %v3893, %v3909
  %v3928 = vadd.f32 %v3894, %v3901
  %v3929 = vadd.f32 %v3895, %v3905
  %v3930 = vadd.f32 %v3896, %v3909
  %v3931 = vld [vmem:[%s11] sm:$0xf]
  %v3932 = vld [vmem:[%s11 + $0x4] sm:$0xf]
  %v3933 = vld [vmem:[%s11 + $0x8] sm:$0xf]
  %v3934 = vld [vmem:[%s11 + $0xc] sm:$0xf]
  %v3935 = vld [vmem:[%s11 + $0x10] sm:$0xf]
  %v3936 = vld [vmem:[%s11 + $0x14] sm:$0xf]
  %v3937 = vld [vmem:[%s11 + $0x18] sm:$0xf]
  %v3938 = vld [vmem:[%s11 + $0x1c] sm:$0xf]
  %v3939 = vld [vmem:[%s11 + $0x20] sm:$0xf]
  %v3940 = vld [vmem:[%s11 + $0x24] sm:$0xf]
  %v3941 = vld [vmem:[%s11 + $0x28] sm:$0xf]
  %v3942 = vld [vmem:[%s11 + $0x2c] sm:$0xf]
  %v3943 = vld [vmem:[%s11 + $0x30] sm:$0xf]
  %v3944 = vld [vmem:[%s11 + $0x34] sm:$0xf]
  %v3945 = vld [vmem:[%s11 + $0x38] sm:$0xf]
  %v3946 = vld [vmem:[%s11 + $0x3c] sm:$0xf]
  %v3947 = vld [vmem:[%s11 + $0x40] sm:$0xf]
  %v3948 = vld [vmem:[%s11 + $0x44] sm:$0xf]
  %v3949 = vld [vmem:[%s11 + $0x48] sm:$0xf]
  %v3950 = vld [vmem:[%s11 + $0x4c] sm:$0xf]
  %v3951 = vld [vmem:[%s11 + $0x50] sm:$0xf]
  %v3952 = vld [vmem:[%s11 + $0x54] sm:$0xf]
  %v3953 = vld [vmem:[%s11 + $0x58] sm:$0xf]
  %v3954 = vld [vmem:[%s11 + $0x5c] sm:$0xf]
  %v3955 = vld [vmem:[%s11 + $0x60] sm:$0xf]
  %v3956 = vld [vmem:[%s11 + $0x64] sm:$0xf]
  %v3957 = vld [vmem:[%s11 + $0x68] sm:$0xf]
  %v3958 = vld [vmem:[%s11 + $0x6c] sm:$0xf]
  %v3959 = vld [vmem:[%s11 + $0x70] sm:$0xf]
  %v3960 = vld [vmem:[%s11 + $0x74] sm:$0xf]
  %v3961 = vld [vmem:[%s11 + $0x78] sm:$0xf]
  %v3962 = vld [vmem:[%s11 + $0x7c] sm:$0xf]
  %v3963 = vld [vmem:[%s11 + $0x80] sm:$0xf]
  %v3964 = vld [vmem:[%s11 + $0x84] sm:$0xf]
  %v3965 = vld [vmem:[%s11 + $0x88] sm:$0xf]
  %v3966 = vld [vmem:[%s11 + $0x8c] sm:$0xf]
  %v3967 = vld [vmem:[%s11 + $0x90] sm:$0xf]
  %v3968 = vld [vmem:[%s11 + $0x94] sm:$0xf]
  %v3969 = vld [vmem:[%s11 + $0x98] sm:$0xf]
  %v3970 = vld [vmem:[%s11 + $0x9c] sm:$0xf]
  %v3971 = vld [vmem:[%s11 + $0xa0] sm:$0xf]
  %v3972 = vld [vmem:[%s11 + $0xa4] sm:$0xf]
  %v3973 = vld [vmem:[%s11 + $0xa8] sm:$0xf]
  %v3974 = vld [vmem:[%s11 + $0xac] sm:$0xf]
  %v3975 = vld [vmem:[%s11 + $0xb0] sm:$0xf]
  %v3976 = vld [vmem:[%s11 + $0xb4] sm:$0xf]
  %v3977 = vld [vmem:[%s11 + $0xb8] sm:$0xf]
  %v3978 = vld [vmem:[%s11 + $0xbc] sm:$0xf]
  %v3979 = vpack.c.bf16 %v3916, %v3913
  %v3980 = vpack.c.bf16 %v3917, %v3914
  %v3981 = vpack.c.bf16 %v3918, %v3915
  %v3982 = vpack.c.bf16 %v3922, %v3919
  %v3983 = vpack.c.bf16 %v3923, %v3920
  %v3984 = vpack.c.bf16 %v3924, %v3921
  %v3985 = vpack.c.bf16 %v3928, %v3925
  %v3986 = vpack.c.bf16 %v3929, %v3926
  %v3987 = vpack.c.bf16 %v3930, %v3927
  %v3988 = vld [vmem:[%s12] sm:$0x1]
  %v3990 = vlaneseq
  %v3991 = vshrl.u32 %v3990, 7
  %v3992 = vsub.s32 0, %v3991
  %v3993 = vrot.slane %v3988, %v3992
  %v4043 = vunpack.c.l.b16 %v3931
  %v4044 = vunpack.c.l.b16 %v3932
  %v4045 = vunpack.c.l.b16 %v3933
  %v4046 = vunpack.c.l.b16 %v3934
  %v4047 = vunpack.c.l.b16 %v3935
  %v4048 = vunpack.c.l.b16 %v3936
  %v4049 = vunpack.c.l.b16 %v3937
  %v4050 = vunpack.c.l.b16 %v3938
  %v4051 = vunpack.c.l.b16 %v3939
  %v4052 = vunpack.c.l.b16 %v3940
  %v4053 = vunpack.c.l.b16 %v3941
  %v4054 = vunpack.c.l.b16 %v3942
  %v4055 = vunpack.c.l.b16 %v3943
  %v4056 = vunpack.c.l.b16 %v3944
  %v4057 = vunpack.c.l.b16 %v3945
  %v4058 = vunpack.c.l.b16 %v3946
  %v4059 = vunpack.c.l.b16 %v3947
  %v4060 = vunpack.c.l.b16 %v3948
  %v4061 = vunpack.c.l.b16 %v3949
  %v4062 = vunpack.c.l.b16 %v3950
  %v4063 = vunpack.c.l.b16 %v3951
  %v4064 = vunpack.c.l.b16 %v3952
  %v4065 = vunpack.c.l.b16 %v3953
  %v4066 = vunpack.c.l.b16 %v3954
  %v4067 = vunpack.c.l.b16 %v3955
  %v4068 = vunpack.c.l.b16 %v3956
  %v4069 = vunpack.c.l.b16 %v3957
  %v4070 = vunpack.c.l.b16 %v3958
  %v4071 = vunpack.c.l.b16 %v3959
  %v4072 = vunpack.c.l.b16 %v3960
  %v4073 = vunpack.c.l.b16 %v3961
  %v4074 = vunpack.c.l.b16 %v3962
  %v4075 = vunpack.c.l.b16 %v3963
  %v4076 = vunpack.c.l.b16 %v3964
  %v4077 = vunpack.c.l.b16 %v3965
  %v4078 = vunpack.c.l.b16 %v3966
  %v4079 = vunpack.c.l.b16 %v3967
  %v4080 = vunpack.c.l.b16 %v3968
  %v4081 = vunpack.c.l.b16 %v3969
  %v4082 = vunpack.c.l.b16 %v3970
  %v4083 = vunpack.c.l.b16 %v3971
  %v4084 = vunpack.c.l.b16 %v3972
  %v4085 = vunpack.c.l.b16 %v3973
  %v4086 = vunpack.c.l.b16 %v3974
  %v4087 = vunpack.c.l.b16 %v3975
  %v4088 = vunpack.c.l.b16 %v3976
  %v4089 = vunpack.c.l.b16 %v3977
  %v4090 = vunpack.c.l.b16 %v3978
  %v4091 = vpack.c.b16 %v4044, %v4043
  %v4092 = vpack.c.b16 %v4046, %v4045
  %v4093 = vpack.c.b16 %v4048, %v4047
  %v4094 = vpack.c.b16 %v4050, %v4049
  %v4095 = vpack.c.b16 %v4052, %v4051
  %v4096 = vpack.c.b16 %v4054, %v4053
  %v4097 = vpack.c.b16 %v4056, %v4055
  %v4098 = vpack.c.b16 %v4058, %v4057
  %v4099 = vpack.c.b16 %v4060, %v4059
  %v4100 = vpack.c.b16 %v4062, %v4061
  %v4101 = vpack.c.b16 %v4064, %v4063
  %v4102 = vpack.c.b16 %v4066, %v4065
  %v4103 = vpack.c.b16 %v4068, %v4067
  %v4104 = vpack.c.b16 %v4070, %v4069
  %v4105 = vpack.c.b16 %v4072, %v4071
  %v4106 = vpack.c.b16 %v4074, %v4073
  %v4107 = vpack.c.b16 %v4076, %v4075
  %v4108 = vpack.c.b16 %v4078, %v4077
  %v4109 = vpack.c.b16 %v4080, %v4079
  %v4110 = vpack.c.b16 %v4082, %v4081
  %v4111 = vpack.c.b16 %v4084, %v4083
  %v4112 = vpack.c.b16 %v4086, %v4085
  %v4113 = vpack.c.b16 %v4088, %v4087
  %v4114 = vpack.c.b16 %v4090, %v4089
  %4139 = vmatprep.subr.bf16.mxu0 0
  %4140 = vmatpush1.bf16.msra.mxu0 %v4091
  %4141 = vmatprep.subr.bf16.mxu0 0
  %4142 = vmatpush1.bf16.msra.mxu0 %v4092
  %4143 = vmatprep.subr.bf16.mxu0 0
  %4144 = vmatpush1.bf16.msra.mxu0 %v4093
  %4145 = vmatprep.subr.bf16.mxu0 0
  %4146 = vmatpush1.bf16.msra.mxu0 %v4094
  %4147 = vmatprep.subr.bf16.mxu0 0
  %4148 = vmatpush1.bf16.msra.mxu0 %v4095
  %4149 = vmatprep.subr.bf16.mxu0 0
  %4150 = vmatpush1.bf16.msra.mxu0 %v4096
  %4151 = vmatprep.subr.bf16.mxu0 0
  %4152 = vmatpush1.bf16.msra.mxu0 %v4097
  %4153 = vmatprep.subr.bf16.mxu0 0
  %4154 = vmatpush1.bf16.msra.mxu0 %v4098
  %4155 = vmatprep.subr.bf16.mxu0 0
  %4156 = vmatpush1.bf16.msra.mxu0 %v4099
  %4157 = vmatprep.subr.bf16.mxu0 0
  %4158 = vmatpush1.bf16.msra.mxu0 %v4100
  %4159 = vmatprep.subr.bf16.mxu0 0
  %4160 = vmatpush1.bf16.msra.mxu0 %v4101
  %4161 = vmatprep.subr.bf16.mxu0 0
  %4162 = vmatpush1.bf16.msra.mxu0 %v4102
  %4163 = vmatprep.subr.bf16.mxu0 0
  %4164 = vmatpush1.bf16.msra.mxu0 %v4103
  %4165 = vmatprep.subr.bf16.mxu0 0
  %4166 = vmatpush1.bf16.msra.mxu0 %v4104
  %4167 = vmatprep.subr.bf16.mxu0 0
  %4168 = vmatpush1.bf16.msra.mxu0 %v4105
  %4169 = vmatprep.subr.bf16.mxu0 0
  %4170 = vmatpush1.bf16.msra.mxu0 %v4106
  %4171 = vmatprep.mubr.bf16.mxu0 %v3980
  %4172 = vmatmul.mubr.bf16.gmra.mrb[0].mxu0 %v3979
  %v4173 = vpop.f32.mrb[0].mxu0
  %v4174 = vadd.f32 %v3993, %v4173
  %v4175 = vpop.f32.mrb[0].mxu0
  %v4176 = vpop.f32.mrb[0].mxu0
  %v4177 = vadd.f32 %v3993, %v4176
  %v4178 = vpop.f32.mrb[0].mxu0
  %4179 = vmatprep.mubr.bf16.mxu0 %v3983
  %4180 = vmatmul.mubr.bf16.gmra.mrb[0].mxu0 %v3982
  %v4181 = vpop.f32.mrb[0].mxu0
  %v4182 = vadd.f32 %v3993, %v4181
  %v4183 = vpop.f32.mrb[0].mxu0
  %v4184 = vpop.f32.mrb[0].mxu0
  %v4185 = vadd.f32 %v3993, %v4184
  %v4186 = vpop.f32.mrb[0].mxu0
  %4187 = vmatprep.mubr.bf16.mxu0 %v3986
  %4188 = vmatmul.mubr.bf16.gmra.mrb[0].mxu0 %v3985
  %v4189 = vpop.f32.mrb[0].mxu0
  %v4190 = vadd.f32 %v3993, %v4189
  %v4191 = vpop.f32.mrb[0].mxu0
  %v4192 = vpop.f32.mrb[0].mxu0
  %v4193 = vadd.f32 %v3993, %v4192
  %v4194 = vpop.f32.mrb[0].mxu0
  %4195 = vdwg.mxu0
  %4196 = vmatprep.subr.bf16.mxu0 0
  %4197 = vmatpush1.bf16.msra.mxu0 %v4107
  %4198 = vmatprep.subr.bf16.mxu0 0
  %4199 = vmatpush1.bf16.msra.mxu0 %v4108
  %4200 = vmatprep.subr.bf16.mxu0 0
  %4201 = vmatpush1.bf16.msra.mxu0 %v4109
  %4202 = vmatprep.subr.bf16.mxu0 0
  %4203 = vmatpush1.bf16.msra.mxu0 %v4110
  %4204 = vmatprep.subr.bf16.mxu0 0
  %4205 = vmatpush1.bf16.msra.mxu0 %v4111
  %4206 = vmatprep.subr.bf16.mxu0 0
  %4207 = vmatpush1.bf16.msra.mxu0 %v4112
  %4208 = vmatprep.subr.bf16.mxu0 0
  %4209 = vmatpush1.bf16.msra.mxu0 %v4113
  %4210 = vmatprep.subr.bf16.mxu0 0
  %4211 = vmatpush1.bf16.msra.mxu0 %v4114
  %4212 = vmatprep.subr.bf16.mxu0 0
  %4213 = vmatpush1.bf16.msra.mxu0 0
  %4214 = vmatprep.subr.bf16.mxu0 0
  %4215 = vmatpush1.bf16.msra.mxu0 0
  %4216 = vmatprep.subr.bf16.mxu0 0
  %4217 = vmatpush1.bf16.msra.mxu0 0
  %4218 = vmatprep.subr.bf16.mxu0 0
  %4219 = vmatpush1.bf16.msra.mxu0 0
  %4220 = vmatprep.subr.bf16.mxu0 0
  %4221 = vmatpush1.bf16.msra.mxu0 0
  %4222 = vmatprep.subr.bf16.mxu0 0
  %4223 = vmatpush1.bf16.msra.mxu0 0
  %4224 = vmatprep.subr.bf16.mxu0 0
  %4225 = vmatpush1.bf16.msra.mxu0 0
  %4226 = vmatprep.subr.bf16.mxu0 0
  %4227 = vmatpush1.bf16.msra.mxu0 0
  %4228 = vmatprep.mubr.bf16.mxu0 0
  %4229 = vmatmul.mubr.bf16.gmra.mrb[0].mxu0 %v3981
  %v4230 = vpop.f32.mrb[0].mxu0
  %v4231 = vadd.f32 %v4174, %v4230
  %v4232 = vpop.f32.mrb[0].mxu0
  %v4233 = vpop.f32.mrb[0].mxu0
  %v4234 = vadd.f32 %v4177, %v4233
  %v4235 = vpop.f32.mrb[0].mxu0
  %4236 = vmatprep.mubr.bf16.mxu0 0
  %4237 = vmatmul.mubr.bf16.gmra.mrb[0].mxu0 %v3984
  %v4238 = vpop.f32.mrb[0].mxu0
  %v4239 = vadd.f32 %v4182, %v4238
  %v4240 = vpop.f32.mrb[0].mxu0
  %v4241 = vpop.f32.mrb[0].mxu0
  %v4242 = vadd.f32 %v4185, %v4241
  %v4243 = vpop.f32.mrb[0].mxu0
  %4244 = vmatprep.mubr.bf16.mxu0 0
  %4245 = vmatmul.mubr.bf16.gmra.mrb[0].mxu0 %v3987
  %v4246 = vpop.f32.mrb[0].mxu0
  %v4247 = vadd.f32 %v4190, %v4246
  %v4248 = vpop.f32.mrb[0].mxu0
  %v4249 = vpop.f32.mrb[0].mxu0
  %v4250 = vadd.f32 %v4193, %v4249
  %v4251 = vpop.f32.mrb[0].mxu0
  %4252 = vdwg.mxu0
  %v4253 = vmul.f32 %v4231, 0.5
  %v4254 = vmul.f32 %v4234, 0.5
  %v4255 = vmul.f32 %v4239, 0.5
  %v4256 = vmul.f32 %v4242, 0.5
  %v4257 = vmul.f32 %v4247, 0.5
  %v4258 = vmul.f32 %v4250, 0.5
  %v4259 = vmul.f32 %v4231, 0.70710677
  %v4260 = vmul.f32 %v4234, 0.70710677
  %v4261 = vmul.f32 %v4239, 0.70710677
  %v4262 = vmul.f32 %v4242, 0.70710677
  %v4263 = vmul.f32 %v4247, 0.70710677
  %v4264 = vmul.f32 %v4250, 0.70710677
  %vm4265 = vcmp.ge.f32.partialorder %v4259, 0.0
  %vm4266 = vcmp.ge.f32.partialorder %v4260, 0.0
  %vm4267 = vcmp.ge.f32.partialorder %v4261, 0.0
  %vm4268 = vcmp.ge.f32.partialorder %v4262, 0.0
  %vm4269 = vcmp.ge.f32.partialorder %v4263, 0.0
  %vm4270 = vcmp.ge.f32.partialorder %v4264, 0.0
  %v4271 = vsel %vm4265, 1.0, -1.0
  %v4272 = vsel %vm4266, 1.0, -1.0
  %v4273 = vsel %vm4267, 1.0, -1.0
  %v4274 = vsel %vm4268, 1.0, -1.0
  %v4275 = vsel %vm4269, 1.0, -1.0
  %v4276 = vsel %vm4270, 1.0, -1.0
  %v4277 = vand.u32 2147483647, %v4259
  %v4278 = vand.u32 2147483647, %v4260
  %v4279 = vand.u32 2147483647, %v4261
  %v4280 = vand.u32 2147483647, %v4262
  %v4281 = vand.u32 2147483647, %v4263
  %v4282 = vand.u32 2147483647, %v4264
  %v4283 = vmul.f32 %v4277, 0.3275911
  %v4284 = vmul.f32 %v4278, 0.3275911
  %v4285 = vmul.f32 %v4279, 0.3275911
  %v4286 = vmul.f32 %v4280, 0.3275911
  %v4287 = vmul.f32 %v4281, 0.3275911
  %v4288 = vmul.f32 %v4282, 0.3275911
  %v4289 = vadd.f32 %v4283, 1.0
  %v4290 = vadd.f32 %v4284, 1.0
  %v4291 = vadd.f32 %v4285, 1.0
  %v4292 = vadd.f32 %v4286, 1.0
  %v4293 = vadd.f32 %v4287, 1.0
  %v4294 = vadd.f32 %v4288, 1.0
  %v4295 = vrcp.pop %v4289
  %v4296 = vmul.f32 1.0, %v4295
  %v4297 = vrcp.pop %v4290
  %v4298 = vmul.f32 1.0, %v4297
  %v4299 = vrcp.pop %v4291
  %v4300 = vmul.f32 1.0, %v4299
  %v4301 = vrcp.pop %v4292
  %v4302 = vmul.f32 1.0, %v4301
  %v4303 = vrcp.pop %v4293
  %v4304 = vmul.f32 1.0, %v4303
  %v4305 = vrcp.pop %v4294
  %v4306 = vmul.f32 1.0, %v4305
  %v4307 = vmul.f32 %v4296, 1.0614054
  %v4308 = vmul.f32 %v4298, 1.0614054
  %v4309 = vmul.f32 %v4300, 1.0614054
  %v4310 = vmul.f32 %v4302, 1.0614054
  %v4311 = vmul.f32 %v4304, 1.0614054
  %v4312 = vmul.f32 %v4306, 1.0614054
  %v4313 = vadd.f32 %v4307, -1.4531521
  %v4314 = vadd.f32 %v4308, -1.4531521
  %v4315 = vadd.f32 %v4309, -1.4531521
  %v4316 = vadd.f32 %v4310, -1.4531521
  %v4317 = vadd.f32 %v4311, -1.4531521
  %v4318 = vadd.f32 %v4312, -1.4531521
  %v4319 = vmul.f32 %v4313, %v4296
  %v4320 = vmul.f32 %v4314, %v4298
  %v4321 = vmul.f32 %v4315, %v4300
  %v4322 = vmul.f32 %v4316, %v4302
  %v4323 = vmul.f32 %v4317, %v4304
  %v4324 = vmul.f32 %v4318, %v4306
  %v4325 = vadd.f32 %v4319, 1.4214138
  %v4326 = vadd.f32 %v4320, 1.4214138
  %v4327 = vadd.f32 %v4321, 1.4214138
  %v4328 = vadd.f32 %v4322, 1.4214138
  %v4329 = vadd.f32 %v4323, 1.4214138
  %v4330 = vadd.f32 %v4324, 1.4214138
  %v4331 = vmul.f32 %v4325, %v4296
  %v4332 = vmul.f32 %v4326, %v4298
  %v4333 = vmul.f32 %v4327, %v4300
  %v4334 = vmul.f32 %v4328, %v4302
  %v4335 = vmul.f32 %v4329, %v4304
  %v4336 = vmul.f32 %v4330, %v4306
  %v4337 = vadd.f32 %v4331, -0.28449672
  %v4338 = vadd.f32 %v4332, -0.28449672
  %v4339 = vadd.f32 %v4333, -0.28449672
  %v4340 = vadd.f32 %v4334, -0.28449672
  %v4341 = vadd.f32 %v4335, -0.28449672
  %v4342 = vadd.f32 %v4336, -0.28449672
  %v4343 = vmul.f32 %v4337, %v4296
  %v4344 = vmul.f32 %v4338, %v4298
  %v4345 = vmul.f32 %v4339, %v4300
  %v4346 = vmul.f32 %v4340, %v4302
  %v4347 = vmul.f32 %v4341, %v4304
  %v4348 = vmul.f32 %v4342, %v4306
  %v4349 = vadd.f32 %v4343, 0.2548296
  %v4350 = vadd.f32 %v4344, 0.2548296
  %v4351 = vadd.f32 %v4345, 0.2548296
  %v4352 = vadd.f32 %v4346, 0.2548296
  %v4353 = vadd.f32 %v4347, 0.2548296
  %v4354 = vadd.f32 %v4348, 0.2548296
  %v4355 = vmul.f32 %v4349, %v4296
  %v4356 = vmul.f32 %v4350, %v4298
  %v4357 = vmul.f32 %v4351, %v4300
  %v4358 = vmul.f32 %v4352, %v4302
  %v4359 = vmul.f32 %v4353, %v4304
  %v4360 = vmul.f32 %v4354, %v4306
  %v4361 = vsub.f32 0.0, %v4277
  %v4362 = vsub.f32 0.0, %v4278
  %v4363 = vsub.f32 0.0, %v4279
  %v4364 = vsub.f32 0.0, %v4280
  %v4365 = vsub.f32 0.0, %v4281
  %v4366 = vsub.f32 0.0, %v4282
  %v4367 = vmul.f32 %v4361, %v4277
  %v4368 = vmul.f32 %v4362, %v4278
  %v4369 = vmul.f32 %v4363, %v4279
  %v4370 = vmul.f32 %v4364, %v4280
  %v4371 = vmul.f32 %v4365, %v4281
  %v4372 = vmul.f32 %v4366, %v4282
  %v4373 = vmul.f32 %v4367, 1.442695
  %v4374 = vpow.pop %v4373
  %v4375 = vmul.f32 %v4368, 1.442695
  %v4376 = vpow.pop %v4375
  %v4377 = vmul.f32 %v4369, 1.442695
  %v4378 = vpow.pop %v4377
  %v4379 = vmul.f32 %v4370, 1.442695
  %v4380 = vpow.pop %v4379
  %v4381 = vmul.f32 %v4371, 1.442695
  %v4382 = vpow.pop %v4381
  %v4383 = vmul.f32 %v4372, 1.442695
  %v4384 = vpow.pop %v4383
  %v4385 = vmul.f32 %v4355, %v4374
  %v4386 = vmul.f32 %v4356, %v4376
  %v4387 = vmul.f32 %v4357, %v4378
  %v4388 = vmul.f32 %v4358, %v4380
  %v4389 = vmul.f32 %v4359, %v4382
  %v4390 = vmul.f32 %v4360, %v4384
  %v4391 = vsub.f32 1.0, %v4385
  %v4392 = vsub.f32 1.0, %v4386
  %v4393 = vsub.f32 1.0, %v4387
  %v4394 = vsub.f32 1.0, %v4388
  %v4395 = vsub.f32 1.0, %v4389
  %v4396 = vsub.f32 1.0, %v4390
  %v4397 = vmul.f32 %v4271, %v4391
  %v4398 = vmul.f32 %v4272, %v4392
  %v4399 = vmul.f32 %v4273, %v4393
  %v4400 = vmul.f32 %v4274, %v4394
  %v4401 = vmul.f32 %v4275, %v4395
  %v4402 = vmul.f32 %v4276, %v4396
  %v4403 = vadd.f32 %v4397, 1.0
  %v4404 = vadd.f32 %v4398, 1.0
  %v4405 = vadd.f32 %v4399, 1.0
  %v4406 = vadd.f32 %v4400, 1.0
  %v4407 = vadd.f32 %v4401, 1.0
  %v4408 = vadd.f32 %v4402, 1.0
  %v4409 = vmul.f32 %v4253, %v4403
  %v4410 = vmul.f32 %v4254, %v4404
  %v4411 = vmul.f32 %v4255, %v4405
  %v4412 = vmul.f32 %v4256, %v4406
  %v4413 = vmul.f32 %v4257, %v4407
  %v4414 = vmul.f32 %v4258, %v4408
  %v4415 = vld [vmem:[%s13] sm:$0xff]
  %v4416 = vld [vmem:[%s13 + $0x8] sm:$0xf]
  %v4417 = vld [vmem:[%s13 + $0xc] sm:$0xff]
  %v4418 = vld [vmem:[%s13 + $0x14] sm:$0xf]
  %v4419 = vld [vmem:[%s13 + $0x18] sm:$0xff]
  %v4420 = vld [vmem:[%s13 + $0x20] sm:$0xf]
  %v4421 = vld [vmem:[%s13 + $0x24] sm:$0xff]
  %v4422 = vld [vmem:[%s13 + $0x2c] sm:$0xf]
  %v4423 = vld [vmem:[%s13 + $0x30] sm:$0xff]
  %v4424 = vld [vmem:[%s13 + $0x38] sm:$0xf]
  %v4425 = vld [vmem:[%s13 + $0x3c] sm:$0xff]
  %v4426 = vld [vmem:[%s13 + $0x44] sm:$0xf]
  %v4427 = vld [vmem:[%s13 + $0x48] sm:$0xff]
  %v4428 = vld [vmem:[%s13 + $0x50] sm:$0xf]
  %v4429 = vld [vmem:[%s13 + $0x54] sm:$0xff]
  %v4430 = vld [vmem:[%s13 + $0x5c] sm:$0xf]
  %v4431 = vld [vmem:[%s13 + $0x60] sm:$0xff]
  %v4432 = vld [vmem:[%s13 + $0x68] sm:$0xf]
  %v4433 = vld [vmem:[%s13 + $0x6c] sm:$0xff]
  %v4434 = vld [vmem:[%s13 + $0x74] sm:$0xf]
  %v4435 = vld [vmem:[%s13 + $0x78] sm:$0xff]
  %v4436 = vld [vmem:[%s13 + $0x80] sm:$0xf]
  %v4437 = vld [vmem:[%s13 + $0x84] sm:$0xff]
  %v4438 = vld [vmem:[%s13 + $0x8c] sm:$0xf]
  %v4439 = vld [vmem:[%s13 + $0x90] sm:$0xff]
  %v4440 = vld [vmem:[%s13 + $0x98] sm:$0xf]
  %v4441 = vld [vmem:[%s13 + $0x9c] sm:$0xff]
  %v4442 = vld [vmem:[%s13 + $0xa4] sm:$0xf]
  %v4443 = vld [vmem:[%s13 + $0xa8] sm:$0xff]
  %v4444 = vld [vmem:[%s13 + $0xb0] sm:$0xf]
  %v4445 = vld [vmem:[%s13 + $0xb4] sm:$0xff]
  %v4446 = vld [vmem:[%s13 + $0xbc] sm:$0xf]
  %v4447 = vpack.c.bf16 %v4410, %v4409
  %v4448 = vpack.c.bf16 %v4412, %v4411
  %v4449 = vpack.c.bf16 %v4414, %v4413
  %v4482 = vunpack.c.l.b16 %v4415
  %v4483 = vunpack.c.h.b16 %v4415
  %v4484 = vunpack.c.l.b16 %v4416
  %v4485 = vunpack.c.l.b16 %v4417
  %v4486 = vunpack.c.h.b16 %v4417
  %v4487 = vunpack.c.l.b16 %v4418
  %v4488 = vunpack.c.l.b16 %v4419
  %v4489 = vunpack.c.h.b16 %v4419
  %v4490 = vunpack.c.l.b16 %v4420
  %v4491 = vunpack.c.l.b16 %v4421
  %v4492 = vunpack.c.h.b16 %v4421
  %v4493 = vunpack.c.l.b16 %v4422
  %v4494 = vunpack.c.l.b16 %v4423
  %v4495 = vunpack.c.h.b16 %v4423
  %v4496 = vunpack.c.l.b16 %v4424
  %v4497 = vunpack.c.l.b16 %v4425
  %v4498 = vunpack.c.h.b16 %v4425
  %v4499 = vunpack.c.l.b16 %v4426
  %v4500 = vunpack.c.l.b16 %v4427
  %v4501 = vunpack.c.h.b16 %v4427
  %v4502 = vunpack.c.l.b16 %v4428
  %v4503 = vunpack.c.l.b16 %v4429
  %v4504 = vunpack.c.h.b16 %v4429
  %v4505 = vunpack.c.l.b16 %v4430
  %v4506 = vunpack.c.l.b16 %v4431
  %v4507 = vunpack.c.h.b16 %v4431
  %v4508 = vunpack.c.l.b16 %v4432
  %v4509 = vunpack.c.l.b16 %v4433
  %v4510 = vunpack.c.h.b16 %v4433
  %v4511 = vunpack.c.l.b16 %v4434
  %v4512 = vunpack.c.l.b16 %v4435
  %v4513 = vunpack.c.h.b16 %v4435
  %v4514 = vunpack.c.l.b16 %v4436
  %v4515 = vunpack.c.l.b16 %v4437
  %v4516 = vunpack.c.h.b16 %v4437
  %v4517 = vunpack.c.l.b16 %v4438
  %v4518 = vunpack.c.l.b16 %v4439
  %v4519 = vunpack.c.h.b16 %v4439
  %v4520 = vunpack.c.l.b16 %v4440
  %v4521 = vunpack.c.l.b16 %v4441
  %v4522 = vunpack.c.h.b16 %v4441
  %v4523 = vunpack.c.l.b16 %v4442
  %v4524 = vunpack.c.l.b16 %v4443
  %v4525 = vunpack.c.h.b16 %v4443
  %v4526 = vunpack.c.l.b16 %v4444
  %v4527 = vunpack.c.l.b16 %v4445
  %v4528 = vunpack.c.h.b16 %v4445
  %v4529 = vunpack.c.l.b16 %v4446
  %v4530 = vpack.c.b16 %v4485, %v4482
  %v4531 = vpack.c.b16 %v4486, %v4483
  %v4532 = vpack.c.b16 %v4487, %v4484
  %v4533 = vpack.c.b16 %v4491, %v4488
  %v4534 = vpack.c.b16 %v4492, %v4489
  %v4535 = vpack.c.b16 %v4493, %v4490
  %v4536 = vpack.c.b16 %v4497, %v4494
  %v4537 = vpack.c.b16 %v4498, %v4495
  %v4538 = vpack.c.b16 %v4499, %v4496
  %v4539 = vpack.c.b16 %v4503, %v4500
  %v4540 = vpack.c.b16 %v4504, %v4501
  %v4541 = vpack.c.b16 %v4505, %v4502
  %v4542 = vpack.c.b16 %v4509, %v4506
  %v4543 = vpack.c.b16 %v4510, %v4507
  %v4544 = vpack.c.b16 %v4511, %v4508
  %v4545 = vpack.c.b16 %v4515, %v4512
  %v4546 = vpack.c.b16 %v4516, %v4513
  %v4547 = vpack.c.b16 %v4517, %v4514
  %v4548 = vpack.c.b16 %v4521, %v4518
  %v4549 = vpack.c.b16 %v4522, %v4519
  %v4550 = vpack.c.b16 %v4523, %v4520
  %v4551 = vpack.c.b16 %v4527, %v4524
  %v4552 = vpack.c.b16 %v4528, %v4525
  %v4553 = vpack.c.b16 %v4529, %v4526
  %4578 = vmatprep.subr.bf16.mxu0 %v4531
  %4579 = vmatpush1.bf16.msra.mxu0 %v4530
  %4580 = vmatprep.subr.bf16.mxu0 %v4534
  %4581 = vmatpush1.bf16.msra.mxu0 %v4533
  %4582 = vmatprep.subr.bf16.mxu0 %v4537
  %4583 = vmatpush1.bf16.msra.mxu0 %v4536
  %4584 = vmatprep.subr.bf16.mxu0 %v4540
  %4585 = vmatpush1.bf16.msra.mxu0 %v4539
  %4586 = vmatprep.subr.bf16.mxu0 %v4543
  %4587 = vmatpush1.bf16.msra.mxu0 %v4542
  %4588 = vmatprep.subr.bf16.mxu0 %v4546
  %4589 = vmatpush1.bf16.msra.mxu0 %v4545
  %4590 = vmatprep.subr.bf16.mxu0 %v4549
  %4591 = vmatpush1.bf16.msra.mxu0 %v4548
  %4592 = vmatprep.subr.bf16.mxu0 %v4552
  %4593 = vmatpush1.bf16.msra.mxu0 %v4551
  %4594 = vmatprep.subr.bf16.mxu0 0
  %4595 = vmatpush1.bf16.msra.mxu0 0
  %4596 = vmatprep.subr.bf16.mxu0 0
  %4597 = vmatpush1.bf16.msra.mxu0 0
  %4598 = vmatprep.subr.bf16.mxu0 0
  %4599 = vmatpush1.bf16.msra.mxu0 0
  %4600 = vmatprep.subr.bf16.mxu0 0
  %4601 = vmatpush1.bf16.msra.mxu0 0
  %4602 = vmatprep.subr.bf16.mxu0 0
  %4603 = vmatpush1.bf16.msra.mxu0 0
  %4604 = vmatprep.subr.bf16.mxu0 0
  %4605 = vmatpush1.bf16.msra.mxu0 0
  %4606 = vmatprep.subr.bf16.mxu0 0
  %4607 = vmatpush1.bf16.msra.mxu0 0
  %4608 = vmatprep.subr.bf16.mxu0 0
  %4609 = vmatpush1.bf16.msra.mxu0 0
  %4610 = vmatprep.mubr.bf16.mxu0 0
  %4611 = vmatmul.mubr.bf16.gmra.mrb[0].mxu0 %v4447
  %v4612 = vpop.f32.mrb[0].mxu0
  %v4613 = vadd.f32 0.0, %v4612
  %v4614 = vpop.f32.mrb[0].mxu0
  %v4615 = vadd.f32 0.0, %v4614
  %v4616 = vpop.f32.mrb[0].mxu0
  %v4617 = vadd.f32 0.0, %v4616
  %v4618 = vpop.f32.mrb[0].mxu0
  %v4619 = vadd.f32 0.0, %v4618
  %4620 = vmatprep.mubr.bf16.mxu0 0
  %4621 = vmatmul.mubr.bf16.gmra.mrb[0].mxu0 %v4448
  %v4622 = vpop.f32.mrb[0].mxu0
  %v4623 = vadd.f32 0.0, %v4622
  %v4624 = vpop.f32.mrb[0].mxu0
  %v4625 = vadd.f32 0.0, %v4624
  %v4626 = vpop.f32.mrb[0].mxu0
  %v4627 = vadd.f32 0.0, %v4626
  %v4628 = vpop.f32.mrb[0].mxu0
  %v4629 = vadd.f32 0.0, %v4628
  %4630 = vmatprep.mubr.bf16.mxu0 0
  %4631 = vmatmul.mubr.bf16.gmra.mrb[0].mxu0 %v4449
  %v4632 = vpop.f32.mrb[0].mxu0
  %v4633 = vadd.f32 0.0, %v4632
  %v4634 = vpop.f32.mrb[0].mxu0
  %v4635 = vadd.f32 0.0, %v4634
  %v4636 = vpop.f32.mrb[0].mxu0
  %v4637 = vadd.f32 0.0, %v4636
  %v4638 = vpop.f32.mrb[0].mxu0
  %v4639 = vadd.f32 0.0, %v4638
  %4640 = vdwg.mxu0
  %4641 = vmatprep.subr.bf16.mxu0 0
  %4642 = vmatpush1.bf16.msra.mxu0 %v4532
  %4643 = vmatprep.subr.bf16.mxu0 0
  %4644 = vmatpush1.bf16.msra.mxu0 %v4535
  %4645 = vmatprep.subr.bf16.mxu0 0
  %4646 = vmatpush1.bf16.msra.mxu0 %v4538
  %4647 = vmatprep.subr.bf16.mxu0 0
  %4648 = vmatpush1.bf16.msra.mxu0 %v4541
  %4649 = vmatprep.subr.bf16.mxu0 0
  %4650 = vmatpush1.bf16.msra.mxu0 %v4544
  %4651 = vmatprep.subr.bf16.mxu0 0
  %4652 = vmatpush1.bf16.msra.mxu0 %v4547
  %4653 = vmatprep.subr.bf16.mxu0 0
  %4654 = vmatpush1.bf16.msra.mxu0 %v4550
  %4655 = vmatprep.subr.bf16.mxu0 0
  %4656 = vmatpush1.bf16.msra.mxu0 %v4553
  %4657 = vmatprep.subr.bf16.mxu0 0
  %4658 = vmatpush1.bf16.msra.mxu0 0
  %4659 = vmatprep.subr.bf16.mxu0 0
  %4660 = vmatpush1.bf16.msra.mxu0 0
  %4661 = vmatprep.subr.bf16.mxu0 0
  %4662 = vmatpush1.bf16.msra.mxu0 0
  %4663 = vmatprep.subr.bf16.mxu0 0
  %4664 = vmatpush1.bf16.msra.mxu0 0
  %4665 = vmatprep.subr.bf16.mxu0 0
  %4666 = vmatpush1.bf16.msra.mxu0 0
  %4667 = vmatprep.subr.bf16.mxu0 0
  %4668 = vmatpush1.bf16.msra.mxu0 0
  %4669 = vmatprep.subr.bf16.mxu0 0
  %4670 = vmatpush1.bf16.msra.mxu0 0
  %4671 = vmatprep.subr.bf16.mxu0 0
  %4672 = vmatpush1.bf16.msra.mxu0 0
  %4673 = vmatprep.mubr.bf16.mxu0 0
  %4674 = vmatmul.mubr.bf16.gmra.mrb[0].mxu0 %v4447
  %v4675 = vpop.f32.mrb[0].mxu0
  %v4676 = vadd.f32 0.0, %v4675
  %v4677 = vpop.f32.mrb[0].mxu0
  %v4678 = vpop.f32.mrb[0].mxu0
  %v4679 = vadd.f32 0.0, %v4678
  %v4680 = vpop.f32.mrb[0].mxu0
  %4681 = vmatprep.mubr.bf16.mxu0 0
  %4682 = vmatmul.mubr.bf16.gmra.mrb[0].mxu0 %v4448
  %v4683 = vpop.f32.mrb[0].mxu0
  %v4684 = vadd.f32 0.0, %v4683
  %v4685 = vpop.f32.mrb[0].mxu0
  %v4686 = vpop.f32.mrb[0].mxu0
  %v4687 = vadd.f32 0.0, %v4686
  %v4688 = vpop.f32.mrb[0].mxu0
  %4689 = vmatprep.mubr.bf16.mxu0 0
  %4690 = vmatmul.mubr.bf16.gmra.mrb[0].mxu0 %v4449
  %v4691 = vpop.f32.mrb[0].mxu0
  %v4692 = vadd.f32 0.0, %v4691
  %v4693 = vpop.f32.mrb[0].mxu0
  %v4694 = vpop.f32.mrb[0].mxu0
  %v4695 = vadd.f32 0.0, %v4694
  %v4696 = vpop.f32.mrb[0].mxu0
  %4697 = vdwg.mxu0
  %v4698 = vadd.f32 %v3699, %v4613
  %v4699 = vadd.f32 %v3700, %v4615
  %v4700 = vadd.f32 %v3701, %v4676
  %v4701 = vadd.f32 %v3702, %v4617
  %v4702 = vadd.f32 %v3703, %v4619
  %v4703 = vadd.f32 %v3704, %v4679
  %v4704 = vadd.f32 %v3705, %v4623
  %v4705 = vadd.f32 %v3706, %v4625
  %v4706 = vadd.f32 %v3707, %v4684
  %v4707 = vadd.f32 %v3708, %v4627
  %v4708 = vadd.f32 %v3709, %v4629
  %v4709 = vadd.f32 %v3710, %v4687
  %v4710 = vadd.f32 %v3711, %v4633
  %v4711 = vadd.f32 %v3712, %v4635
  %v4712 = vadd.f32 %v3713, %v4692
  %v4713 = vadd.f32 %v3714, %v4637
  %v4714 = vadd.f32 %v3715, %v4639
  %v4715 = vadd.f32 %v3716, %v4695
  %v4716 = vld [vmem:[%s14] sm:$0x7]
  %v4718 = vlaneseq
  %v4719 = vshrl.u32 %v4718, 7
  %v4720 = vsub.s32 0, %v4719
  %v4721 = vrot.slane %v4716, %v4720
  %v4722 = vlaneseq
  %v4723 = vshrl.u32 %v4722, 7
  %v4724 = vsub.s32 1, %v4723
  %v4725 = vrot.slane %v4716, %v4724
  %v4726 = vlaneseq
  %v4727 = vshrl.u32 %v4726, 7
  %v4728 = vsub.s32 2, %v4727
  %v4729 = vrot.slane %v4716, %v4728
  %v4733 = vadd.f32 %v4698, %v4721
  %v4734 = vadd.f32 %v4699, %v4725
  %v4735 = vadd.f32 %v4700, %v4729
  %v4736 = vadd.f32 %v4701, %v4721
  %v4737 = vadd.f32 %v4702, %v4725
  %v4738 = vadd.f32 %v4703, %v4729
  %v4739 = vadd.f32 %v4704, %v4721
  %v4740 = vadd.f32 %v4705, %v4725
  %v4741 = vadd.f32 %v4706, %v4729
  %v4742 = vadd.f32 %v4707, %v4721
  %v4743 = vadd.f32 %v4708, %v4725
  %v4744 = vadd.f32 %v4709, %v4729
  %v4745 = vadd.f32 %v4710, %v4721
  %v4746 = vadd.f32 %v4711, %v4725
  %v4747 = vadd.f32 %v4712, %v4729
  %v4748 = vadd.f32 %v4713, %v4721
  %v4749 = vadd.f32 %v4714, %v4725
  %v4750 = vadd.f32 %v4715, %v4729
  %s4751 = scalar_lea.vmem %s4, 3
  %v4752 = vld [vmem:[%s4751] sm:$0x7]
  %s4753 = scalar_lea.vmem %s5, 3
  %v4754 = vld [vmem:[%s4753] sm:$0x7]
  %v4755 = vadd.f32 %v4733, %v4734
  %v4756 = vadd.f32 %v4755, %v4735
  %4757 = vadd.xlane.f32.xlu0 %v4756
  %v4758 = vpop.xlane.xlu0 %4757
  %v4759 = vadd.f32 %v4736, %v4737
  %v4760 = vadd.f32 %v4759, %v4738
  %4761 = vadd.xlane.f32.xlu0 %v4760
  %v4762 = vpop.xlane.xlu0 %4761
  %v4763 = vadd.f32 %v4739, %v4740
  %v4764 = vadd.f32 %v4763, %v4741
  %4765 = vadd.xlane.f32.xlu0 %v4764
  %v4766 = vpop.xlane.xlu0 %4765
  %v4767 = vadd.f32 %v4742, %v4743
  %v4768 = vadd.f32 %v4767, %v4744
  %4769 = vadd.xlane.f32.xlu0 %v4768
  %v4770 = vpop.xlane.xlu0 %4769
  %v4771 = vadd.f32 %v4745, %v4746
  %v4772 = vadd.f32 %v4771, %v4747
  %4773 = vadd.xlane.f32.xlu0 %v4772
  %v4774 = vpop.xlane.xlu0 %4773
  %v4775 = vadd.f32 %v4748, %v4749
  %v4776 = vadd.f32 %v4775, %v4750
  %4777 = vadd.xlane.f32.xlu0 %v4776
  %v4778 = vpop.xlane.xlu0 %4777
  %v4779 = vmul.f32 %v4758, 0.002770083
  %v4780 = vmul.f32 %v4762, 0.002770083
  %v4781 = vmul.f32 %v4766, 0.002770083
  %v4782 = vmul.f32 %v4770, 0.002770083
  %v4783 = vmul.f32 %v4774, 0.002770083
  %v4784 = vmul.f32 %v4778, 0.002770083
  %v4785 = vsub.f32 %v4733, %v4779
  %v4786 = vsub.f32 %v4734, %v4779
  %v4787 = vsub.f32 %v4735, %v4779
  %v4788 = vsub.f32 %v4736, %v4780
  %v4789 = vsub.f32 %v4737, %v4780
  %v4790 = vsub.f32 %v4738, %v4780
  %v4791 = vsub.f32 %v4739, %v4781
  %v4792 = vsub.f32 %v4740, %v4781
  %v4793 = vsub.f32 %v4741, %v4781
  %v4794 = vsub.f32 %v4742, %v4782
  %v4795 = vsub.f32 %v4743, %v4782
  %v4796 = vsub.f32 %v4744, %v4782
  %v4797 = vsub.f32 %v4745, %v4783
  %v4798 = vsub.f32 %v4746, %v4783
  %v4799 = vsub.f32 %v4747, %v4783
  %v4800 = vsub.f32 %v4748, %v4784
  %v4801 = vsub.f32 %v4749, %v4784
  %v4802 = vsub.f32 %v4750, %v4784
  %v4803 = vsel %vm1046, %v4785, 0.0
  %v4804 = vsel %vm1047, %v4786, 0.0
  %v4805 = vsel %vm1048, %v4787, 0.0
  %v4806 = vsel %vm1046, %v4788, 0.0
  %v4807 = vsel %vm1047, %v4789, 0.0
  %v4808 = vsel %vm1048, %v4790, 0.0
  %v4809 = vsel %vm1046, %v4791, 0.0
  %v4810 = vsel %vm1047, %v4792, 0.0
  %v4811 = vsel %vm1048, %v4793, 0.0
  %v4812 = vsel %vm1046, %v4794, 0.0
  %v4813 = vsel %vm1047, %v4795, 0.0
  %v4814 = vsel %vm1048, %v4796, 0.0
  %v4815 = vsel %vm1046, %v4797, 0.0
  %v4816 = vsel %vm1047, %v4798, 0.0
  %v4817 = vsel %vm1048, %v4799, 0.0
  %v4818 = vsel %vm1046, %v4800, 0.0
  %v4819 = vsel %vm1047, %v4801, 0.0
  %v4820 = vsel %vm1048, %v4802, 0.0
  %v4821 = vmul.f32 %v4803, %v4803
  %v4822 = vmul.f32 %v4804, %v4804
  %v4823 = vmul.f32 %v4805, %v4805
  %v4824 = vmul.f32 %v4806, %v4806
  %v4825 = vmul.f32 %v4807, %v4807
  %v4826 = vmul.f32 %v4808, %v4808
  %v4827 = vmul.f32 %v4809, %v4809
  %v4828 = vmul.f32 %v4810, %v4810
  %v4829 = vmul.f32 %v4811, %v4811
  %v4830 = vmul.f32 %v4812, %v4812
  %v4831 = vmul.f32 %v4813, %v4813
  %v4832 = vmul.f32 %v4814, %v4814
  %v4833 = vmul.f32 %v4815, %v4815
  %v4834 = vmul.f32 %v4816, %v4816
  %v4835 = vmul.f32 %v4817, %v4817
  %v4836 = vmul.f32 %v4818, %v4818
  %v4837 = vmul.f32 %v4819, %v4819
  %v4838 = vmul.f32 %v4820, %v4820
  %v4839 = vadd.f32 %v4821, %v4822
  %v4840 = vadd.f32 %v4839, %v4823
  %4841 = vadd.xlane.f32.xlu0 %v4840
  %v4842 = vpop.xlane.xlu0 %4841
  %v4843 = vadd.f32 %v4824, %v4825
  %v4844 = vadd.f32 %v4843, %v4826
  %4845 = vadd.xlane.f32.xlu0 %v4844
  %v4846 = vpop.xlane.xlu0 %4845
  %v4847 = vadd.f32 %v4827, %v4828
  %v4848 = vadd.f32 %v4847, %v4829
  %4849 = vadd.xlane.f32.xlu0 %v4848
  %v4850 = vpop.xlane.xlu0 %4849
  %v4851 = vadd.f32 %v4830, %v4831
  %v4852 = vadd.f32 %v4851, %v4832
  %4853 = vadd.xlane.f32.xlu0 %v4852
  %v4854 = vpop.xlane.xlu0 %4853
  %v4855 = vadd.f32 %v4833, %v4834
  %v4856 = vadd.f32 %v4855, %v4835
  %4857 = vadd.xlane.f32.xlu0 %v4856
  %v4858 = vpop.xlane.xlu0 %4857
  %v4859 = vadd.f32 %v4836, %v4837
  %v4860 = vadd.f32 %v4859, %v4838
  %4861 = vadd.xlane.f32.xlu0 %v4860
  %v4862 = vpop.xlane.xlu0 %4861
  %v4863 = vmul.f32 %v4842, 0.002770083
  %v4864 = vmul.f32 %v4846, 0.002770083
  %v4865 = vmul.f32 %v4850, 0.002770083
  %v4866 = vmul.f32 %v4854, 0.002770083
  %v4867 = vmul.f32 %v4858, 0.002770083
  %v4868 = vmul.f32 %v4862, 0.002770083
  %v4869 = vadd.f32 %v4863, 1e-05
  %v4870 = vadd.f32 %v4864, 1e-05
  %v4871 = vadd.f32 %v4865, 1e-05
  %v4872 = vadd.f32 %v4866, 1e-05
  %v4873 = vadd.f32 %v4867, 1e-05
  %v4874 = vadd.f32 %v4868, 1e-05
  %v4875 = vrsqrt.pop %v4869
  %v4876 = vrsqrt.pop %v4870
  %v4877 = vrsqrt.pop %v4871
  %v4878 = vrsqrt.pop %v4872
  %v4879 = vrsqrt.pop %v4873
  %v4880 = vrsqrt.pop %v4874
  %v4881 = vmul.f32 %v4803, %v4875
  %v4882 = vmul.f32 %v4804, %v4875
  %v4883 = vmul.f32 %v4805, %v4875
  %v4884 = vmul.f32 %v4806, %v4876
  %v4885 = vmul.f32 %v4807, %v4876
  %v4886 = vmul.f32 %v4808, %v4876
  %v4887 = vmul.f32 %v4809, %v4877
  %v4888 = vmul.f32 %v4810, %v4877
  %v4889 = vmul.f32 %v4811, %v4877
  %v4890 = vmul.f32 %v4812, %v4878
  %v4891 = vmul.f32 %v4813, %v4878
  %v4892 = vmul.f32 %v4814, %v4878
  %v4893 = vmul.f32 %v4815, %v4879
  %v4894 = vmul.f32 %v4816, %v4879
  %v4895 = vmul.f32 %v4817, %v4879
  %v4896 = vmul.f32 %v4818, %v4880
  %v4897 = vmul.f32 %v4819, %v4880
  %v4898 = vmul.f32 %v4820, %v4880
  %v4900 = vlaneseq
  %v4901 = vshrl.u32 %v4900, 7
  %v4902 = vsub.s32 0, %v4901
  %v4903 = vrot.slane %v4752, %v4902
  %v4904 = vlaneseq
  %v4905 = vshrl.u32 %v4904, 7
  %v4906 = vsub.s32 1, %v4905
  %v4907 = vrot.slane %v4752, %v4906
  %v4908 = vlaneseq
  %v4909 = vshrl.u32 %v4908, 7
  %v4910 = vsub.s32 2, %v4909
  %v4911 = vrot.slane %v4752, %v4910
  %v4915 = vmul.f32 %v4881, %v4903
  %v4916 = vmul.f32 %v4882, %v4907
  %v4917 = vmul.f32 %v4883, %v4911
  %v4918 = vmul.f32 %v4884, %v4903
  %v4919 = vmul.f32 %v4885, %v4907
  %v4920 = vmul.f32 %v4886, %v4911
  %v4921 = vmul.f32 %v4887, %v4903
  %v4922 = vmul.f32 %v4888, %v4907
  %v4923 = vmul.f32 %v4889, %v4911
  %v4924 = vmul.f32 %v4890, %v4903
  %v4925 = vmul.f32 %v4891, %v4907
  %v4926 = vmul.f32 %v4892, %v4911
  %v4927 = vmul.f32 %v4893, %v4903
  %v4928 = vmul.f32 %v4894, %v4907
  %v4929 = vmul.f32 %v4895, %v4911
  %v4930 = vmul.f32 %v4896, %v4903
  %v4931 = vmul.f32 %v4897, %v4907
  %v4932 = vmul.f32 %v4898, %v4911
  %v4934 = vlaneseq
  %v4935 = vshrl.u32 %v4934, 7
  %v4936 = vsub.s32 0, %v4935
  %v4937 = vrot.slane %v4754, %v4936
  %v4938 = vlaneseq
  %v4939 = vshrl.u32 %v4938, 7
  %v4940 = vsub.s32 1, %v4939
  %v4941 = vrot.slane %v4754, %v4940
  %v4942 = vlaneseq
  %v4943 = vshrl.u32 %v4942, 7
  %v4944 = vsub.s32 2, %v4943
  %v4945 = vrot.slane %v4754, %v4944
  %v4949 = vadd.f32 %v4915, %v4937
  %v4950 = vadd.f32 %v4916, %v4941
  %v4951 = vadd.f32 %v4917, %v4945
  %v4952 = vadd.f32 %v4918, %v4937
  %v4953 = vadd.f32 %v4919, %v4941
  %v4954 = vadd.f32 %v4920, %v4945
  %v4955 = vadd.f32 %v4921, %v4937
  %v4956 = vadd.f32 %v4922, %v4941
  %v4957 = vadd.f32 %v4923, %v4945
  %v4958 = vadd.f32 %v4924, %v4937
  %v4959 = vadd.f32 %v4925, %v4941
  %v4960 = vadd.f32 %v4926, %v4945
  %v4961 = vadd.f32 %v4927, %v4937
  %v4962 = vadd.f32 %v4928, %v4941
  %v4963 = vadd.f32 %v4929, %v4945
  %v4964 = vadd.f32 %v4930, %v4937
  %v4965 = vadd.f32 %v4931, %v4941
  %v4966 = vadd.f32 %v4932, %v4945
  %s4967 = scalar_lea.vmem %s6, 576
  %v4968 = vld [vmem:[%s4967] sm:$0xff]
  %v4969 = vld [vmem:[%s4967 + $0x8] sm:$0xf]
  %v4970 = vld [vmem:[%s4967 + $0xc] sm:$0xff]
  %v4971 = vld [vmem:[%s4967 + $0x14] sm:$0xf]
  %v4972 = vld [vmem:[%s4967 + $0x18] sm:$0xff]
  %v4973 = vld [vmem:[%s4967 + $0x20] sm:$0xf]
  %v4974 = vld [vmem:[%s4967 + $0x24] sm:$0xff]
  %v4975 = vld [vmem:[%s4967 + $0x2c] sm:$0xf]
  %v4976 = vld [vmem:[%s4967 + $0x30] sm:$0xff]
  %v4977 = vld [vmem:[%s4967 + $0x38] sm:$0xf]
  %v4978 = vld [vmem:[%s4967 + $0x3c] sm:$0xff]
  %v4979 = vld [vmem:[%s4967 + $0x44] sm:$0xf]
  %v4980 = vld [vmem:[%s4967 + $0x48] sm:$0xff]
  %v4981 = vld [vmem:[%s4967 + $0x50] sm:$0xf]
  %v4982 = vld [vmem:[%s4967 + $0x54] sm:$0xff]
  %v4983 = vld [vmem:[%s4967 + $0x5c] sm:$0xf]
  %v4984 = vld [vmem:[%s4967 + $0x60] sm:$0xff]
  %v4985 = vld [vmem:[%s4967 + $0x68] sm:$0xf]
  %v4986 = vld [vmem:[%s4967 + $0x6c] sm:$0xff]
  %v4987 = vld [vmem:[%s4967 + $0x74] sm:$0xf]
  %v4988 = vld [vmem:[%s4967 + $0x78] sm:$0xff]
  %v4989 = vld [vmem:[%s4967 + $0x80] sm:$0xf]
  %v4990 = vld [vmem:[%s4967 + $0x84] sm:$0xff]
  %v4991 = vld [vmem:[%s4967 + $0x8c] sm:$0xf]
  %v4992 = vld [vmem:[%s4967 + $0x90] sm:$0xff]
  %v4993 = vld [vmem:[%s4967 + $0x98] sm:$0xf]
  %v4994 = vld [vmem:[%s4967 + $0x9c] sm:$0xff]
  %v4995 = vld [vmem:[%s4967 + $0xa4] sm:$0xf]
  %v4996 = vld [vmem:[%s4967 + $0xa8] sm:$0xff]
  %v4997 = vld [vmem:[%s4967 + $0xb0] sm:$0xf]
  %v4998 = vld [vmem:[%s4967 + $0xb4] sm:$0xff]
  %v4999 = vld [vmem:[%s4967 + $0xbc] sm:$0xf]
  %v5000 = vld [vmem:[%s4967 + $0xc0] sm:$0xff]
  %v5001 = vld [vmem:[%s4967 + $0xc8] sm:$0xf]
  %v5002 = vld [vmem:[%s4967 + $0xcc] sm:$0xff]
  %v5003 = vld [vmem:[%s4967 + $0xd4] sm:$0xf]
  %v5004 = vld [vmem:[%s4967 + $0xd8] sm:$0xff]
  %v5005 = vld [vmem:[%s4967 + $0xe0] sm:$0xf]
  %v5006 = vld [vmem:[%s4967 + $0xe4] sm:$0xff]
  %v5007 = vld [vmem:[%s4967 + $0xec] sm:$0xf]
  %v5008 = vld [vmem:[%s4967 + $0xf0] sm:$0xff]
  %v5009 = vld [vmem:[%s4967 + $0xf8] sm:$0xf]
  %v5010 = vld [vmem:[%s4967 + $0xfc] sm:$0xff]
  %v5011 = vld [vmem:[%s4967 + $0x104] sm:$0xf]
  %v5012 = vld [vmem:[%s4967 + $0x108] sm:$0xff]
  %v5013 = vld [vmem:[%s4967 + $0x110] sm:$0xf]
  %v5014 = vld [vmem:[%s4967 + $0x114] sm:$0xff]
  %v5015 = vld [vmem:[%s4967 + $0x11c] sm:$0xf]
  %v5016 = vld [vmem:[%s4967 + $0x120] sm:$0xff]
  %v5017 = vld [vmem:[%s4967 + $0x128] sm:$0xf]
  %v5018 = vld [vmem:[%s4967 + $0x12c] sm:$0xff]
  %v5019 = vld [vmem:[%s4967 + $0x134] sm:$0xf]
  %v5020 = vld [vmem:[%s4967 + $0x138] sm:$0xff]
  %v5021 = vld [vmem:[%s4967 + $0x140] sm:$0xf]
  %v5022 = vld [vmem:[%s4967 + $0x144] sm:$0xff]
  %v5023 = vld [vmem:[%s4967 + $0x14c] sm:$0xf]
  %v5024 = vld [vmem:[%s4967 + $0x150] sm:$0xff]
  %v5025 = vld [vmem:[%s4967 + $0x158] sm:$0xf]
  %v5026 = vld [vmem:[%s4967 + $0x15c] sm:$0xff]
  %v5027 = vld [vmem:[%s4967 + $0x164] sm:$0xf]
  %v5028 = vld [vmem:[%s4967 + $0x168] sm:$0xff]
  %v5029 = vld [vmem:[%s4967 + $0x170] sm:$0xf]
  %v5030 = vld [vmem:[%s4967 + $0x174] sm:$0xff]
  %v5031 = vld [vmem:[%s4967 + $0x17c] sm:$0xf]
  %v5032 = vld [vmem:[%s4967 + $0x180] sm:$0xff]
  %v5033 = vld [vmem:[%s4967 + $0x188] sm:$0xf]
  %v5034 = vld [vmem:[%s4967 + $0x18c] sm:$0xff]
  %v5035 = vld [vmem:[%s4967 + $0x194] sm:$0xf]
  %v5036 = vld [vmem:[%s4967 + $0x198] sm:$0xff]
  %v5037 = vld [vmem:[%s4967 + $0x1a0] sm:$0xf]
  %v5038 = vld [vmem:[%s4967 + $0x1a4] sm:$0xff]
  %v5039 = vld [vmem:[%s4967 + $0x1ac] sm:$0xf]
  %v5040 = vld [vmem:[%s4967 + $0x1b0] sm:$0xff]
  %v5041 = vld [vmem:[%s4967 + $0x1b8] sm:$0xf]
  %v5042 = vld [vmem:[%s4967 + $0x1bc] sm:$0xff]
  %v5043 = vld [vmem:[%s4967 + $0x1c4] sm:$0xf]
  %v5044 = vld [vmem:[%s4967 + $0x1c8] sm:$0xff]
  %v5045 = vld [vmem:[%s4967 + $0x1d0] sm:$0xf]
  %v5046 = vld [vmem:[%s4967 + $0x1d4] sm:$0xff]
  %v5047 = vld [vmem:[%s4967 + $0x1dc] sm:$0xf]
  %v5048 = vld [vmem:[%s4967 + $0x1e0] sm:$0xff]
  %v5049 = vld [vmem:[%s4967 + $0x1e8] sm:$0xf]
  %v5050 = vld [vmem:[%s4967 + $0x1ec] sm:$0xff]
  %v5051 = vld [vmem:[%s4967 + $0x1f4] sm:$0xf]
  %v5052 = vld [vmem:[%s4967 + $0x1f8] sm:$0xff]
  %v5053 = vld [vmem:[%s4967 + $0x200] sm:$0xf]
  %v5054 = vld [vmem:[%s4967 + $0x204] sm:$0xff]
  %v5055 = vld [vmem:[%s4967 + $0x20c] sm:$0xf]
  %v5056 = vld [vmem:[%s4967 + $0x210] sm:$0xff]
  %v5057 = vld [vmem:[%s4967 + $0x218] sm:$0xf]
  %v5058 = vld [vmem:[%s4967 + $0x21c] sm:$0xff]
  %v5059 = vld [vmem:[%s4967 + $0x224] sm:$0xf]
  %v5060 = vld [vmem:[%s4967 + $0x228] sm:$0xff]
  %v5061 = vld [vmem:[%s4967 + $0x230] sm:$0xf]
  %v5062 = vld [vmem:[%s4967 + $0x234] sm:$0xff]
  %v5063 = vld [vmem:[%s4967 + $0x23c] sm:$0xf]
  %v5064 = vpack.c.bf16 %v4952, %v4949
  %v5065 = vpack.c.bf16 %v4953, %v4950
  %v5066 = vpack.c.bf16 %v4954, %v4951
  %v5067 = vpack.c.bf16 %v4958, %v4955
  %v5068 = vpack.c.bf16 %v4959, %v4956
  %v5069 = vpack.c.bf16 %v4960, %v4957
  %v5070 = vpack.c.bf16 %v4964, %v4961
  %v5071 = vpack.c.bf16 %v4965, %v4962
  %v5072 = vpack.c.bf16 %v4966, %v4963
  %v5169 = vunpack.c.l.b16 %v4968
  %v5170 = vunpack.c.h.b16 %v4968
  %v5171 = vunpack.c.l.b16 %v4969
  %v5172 = vunpack.c.l.b16 %v4970
  %v5173 = vunpack.c.h.b16 %v4970
  %v5174 = vunpack.c.l.b16 %v4971
  %v5175 = vunpack.c.l.b16 %v4972
  %v5176 = vunpack.c.h.b16 %v4972
  %v5177 = vunpack.c.l.b16 %v4973
  %v5178 = vunpack.c.l.b16 %v4974
  %v5179 = vunpack.c.h.b16 %v4974
  %v5180 = vunpack.c.l.b16 %v4975
  %v5181 = vunpack.c.l.b16 %v4976
  %v5182 = vunpack.c.h.b16 %v4976
  %v5183 = vunpack.c.l.b16 %v4977
  %v5184 = vunpack.c.l.b16 %v4978
  %v5185 = vunpack.c.h.b16 %v4978
  %v5186 = vunpack.c.l.b16 %v4979
  %v5187 = vunpack.c.l.b16 %v4980
  %v5188 = vunpack.c.h.b16 %v4980
  %v5189 = vunpack.c.l.b16 %v4981
  %v5190 = vunpack.c.l.b16 %v4982
  %v5191 = vunpack.c.h.b16 %v4982
  %v5192 = vunpack.c.l.b16 %v4983
  %v5193 = vunpack.c.l.b16 %v4984
  %v5194 = vunpack.c.h.b16 %v4984
  %v5195 = vunpack.c.l.b16 %v4985
  %v5196 = vunpack.c.l.b16 %v4986
  %v5197 = vunpack.c.h.b16 %v4986
  %v5198 = vunpack.c.l.b16 %v4987
  %v5199 = vunpack.c.l.b16 %v4988
  %v5200 = vunpack.c.h.b16 %v4988
  %v5201 = vunpack.c.l.b16 %v4989
  %v5202 = vunpack.c.l.b16 %v4990
  %v5203 = vunpack.c.h.b16 %v4990
  %v5204 = vunpack.c.l.b16 %v4991
  %v5205 = vunpack.c.l.b16 %v4992
  %v5206 = vunpack.c.h.b16 %v4992
  %v5207 = vunpack.c.l.b16 %v4993
  %v5208 = vunpack.c.l.b16 %v4994
  %v5209 = vunpack.c.h.b16 %v4994
  %v5210 = vunpack.c.l.b16 %v4995
  %v5211 = vunpack.c.l.b16 %v4996
  %v5212 = vunpack.c.h.b16 %v4996
  %v5213 = vunpack.c.l.b16 %v4997
  %v5214 = vunpack.c.l.b16 %v4998
  %v5215 = vunpack.c.h.b16 %v4998
  %v5216 = vunpack.c.l.b16 %v4999
  %v5217 = vunpack.c.l.b16 %v5000
  %v5218 = vunpack.c.h.b16 %v5000
  %v5219 = vunpack.c.l.b16 %v5001
  %v5220 = vunpack.c.l.b16 %v5002
  %v5221 = vunpack.c.h.b16 %v5002
  %v5222 = vunpack.c.l.b16 %v5003
  %v5223 = vunpack.c.l.b16 %v5004
  %v5224 = vunpack.c.h.b16 %v5004
  %v5225 = vunpack.c.l.b16 %v5005
  %v5226 = vunpack.c.l.b16 %v5006
  %v5227 = vunpack.c.h.b16 %v5006
  %v5228 = vunpack.c.l.b16 %v5007
  %v5229 = vunpack.c.l.b16 %v5008
  %v5230 = vunpack.c.h.b16 %v5008
  %v5231 = vunpack.c.l.b16 %v5009
  %v5232 = vunpack.c.l.b16 %v5010
  %v5233 = vunpack.c.h.b16 %v5010
  %v5234 = vunpack.c.l.b16 %v5011
  %v5235 = vunpack.c.l.b16 %v5012
  %v5236 = vunpack.c.h.b16 %v5012
  %v5237 = vunpack.c.l.b16 %v5013
  %v5238 = vunpack.c.l.b16 %v5014
  %v5239 = vunpack.c.h.b16 %v5014
  %v5240 = vunpack.c.l.b16 %v5015
  %v5241 = vunpack.c.l.b16 %v5016
  %v5242 = vunpack.c.h.b16 %v5016
  %v5243 = vunpack.c.l.b16 %v5017
  %v5244 = vunpack.c.l.b16 %v5018
  %v5245 = vunpack.c.h.b16 %v5018
  %v5246 = vunpack.c.l.b16 %v5019
  %v5247 = vunpack.c.l.b16 %v5020
  %v5248 = vunpack.c.h.b16 %v5020
  %v5249 = vunpack.c.l.b16 %v5021
  %v5250 = vunpack.c.l.b16 %v5022
  %v5251 = vunpack.c.h.b16 %v5022
  %v5252 = vunpack.c.l.b16 %v5023
  %v5253 = vunpack.c.l.b16 %v5024
  %v5254 = vunpack.c.h.b16 %v5024
  %v5255 = vunpack.c.l.b16 %v5025
  %v5256 = vunpack.c.l.b16 %v5026
  %v5257 = vunpack.c.h.b16 %v5026
  %v5258 = vunpack.c.l.b16 %v5027
  %v5259 = vunpack.c.l.b16 %v5028
  %v5260 = vunpack.c.h.b16 %v5028
  %v5261 = vunpack.c.l.b16 %v5029
  %v5262 = vunpack.c.l.b16 %v5030
  %v5263 = vunpack.c.h.b16 %v5030
  %v5264 = vunpack.c.l.b16 %v5031
  %v5265 = vunpack.c.l.b16 %v5032
  %v5266 = vunpack.c.h.b16 %v5032
  %v5267 = vunpack.c.l.b16 %v5033
  %v5268 = vunpack.c.l.b16 %v5034
  %v5269 = vunpack.c.h.b16 %v5034
  %v5270 = vunpack.c.l.b16 %v5035
  %v5271 = vunpack.c.l.b16 %v5036
  %v5272 = vunpack.c.h.b16 %v5036
  %v5273 = vunpack.c.l.b16 %v5037
  %v5274 = vunpack.c.l.b16 %v5038
  %v5275 = vunpack.c.h.b16 %v5038
  %v5276 = vunpack.c.l.b16 %v5039
  %v5277 = vunpack.c.l.b16 %v5040
  %v5278 = vunpack.c.h.b16 %v5040
  %v5279 = vunpack.c.l.b16 %v5041
  %v5280 = vunpack.c.l.b16 %v5042
  %v5281 = vunpack.c.h.b16 %v5042
  %v5282 = vunpack.c.l.b16 %v5043
  %v5283 = vunpack.c.l.b16 %v5044
  %v5284 = vunpack.c.h.b16 %v5044
  %v5285 = vunpack.c.l.b16 %v5045
  %v5286 = vunpack.c.l.b16 %v5046
  %v5287 = vunpack.c.h.b16 %v5046
  %v5288 = vunpack.c.l.b16 %v5047
  %v5289 = vunpack.c.l.b16 %v5048
  %v5290 = vunpack.c.h.b16 %v5048
  %v5291 = vunpack.c.l.b16 %v5049
  %v5292 = vunpack.c.l.b16 %v5050
  %v5293 = vunpack.c.h.b16 %v5050
  %v5294 = vunpack.c.l.b16 %v5051
  %v5295 = vunpack.c.l.b16 %v5052
  %v5296 = vunpack.c.h.b16 %v5052
  %v5297 = vunpack.c.l.b16 %v5053
  %v5298 = vunpack.c.l.b16 %v5054
  %v5299 = vunpack.c.h.b16 %v5054
  %v5300 = vunpack.c.l.b16 %v5055
  %v5301 = vunpack.c.l.b16 %v5056
  %v5302 = vunpack.c.h.b16 %v5056
  %v5303 = vunpack.c.l.b16 %v5057
  %v5304 = vunpack.c.l.b16 %v5058
  %v5305 = vunpack.c.h.b16 %v5058
  %v5306 = vunpack.c.l.b16 %v5059
  %v5307 = vunpack.c.l.b16 %v5060
  %v5308 = vunpack.c.h.b16 %v5060
  %v5309 = vunpack.c.l.b16 %v5061
  %v5310 = vunpack.c.l.b16 %v5062
  %v5311 = vunpack.c.h.b16 %v5062
  %v5312 = vunpack.c.l.b16 %v5063
  %v5313 = vpack.c.b16 %v5172, %v5169
  %v5314 = vpack.c.b16 %v5173, %v5170
  %v5315 = vpack.c.b16 %v5174, %v5171
  %v5316 = vpack.c.b16 %v5178, %v5175
  %v5317 = vpack.c.b16 %v5179, %v5176
  %v5318 = vpack.c.b16 %v5180, %v5177
  %v5319 = vpack.c.b16 %v5184, %v5181
  %v5320 = vpack.c.b16 %v5185, %v5182
  %v5321 = vpack.c.b16 %v5186, %v5183
  %v5322 = vpack.c.b16 %v5190, %v5187
  %v5323 = vpack.c.b16 %v5191, %v5188
  %v5324 = vpack.c.b16 %v5192, %v5189
  %v5325 = vpack.c.b16 %v5196, %v5193
  %v5326 = vpack.c.b16 %v5197, %v5194
  %v5327 = vpack.c.b16 %v5198, %v5195
  %v5328 = vpack.c.b16 %v5202, %v5199
  %v5329 = vpack.c.b16 %v5203, %v5200
  %v5330 = vpack.c.b16 %v5204, %v5201
  %v5331 = vpack.c.b16 %v5208, %v5205
  %v5332 = vpack.c.b16 %v5209, %v5206
  %v5333 = vpack.c.b16 %v5210, %v5207
  %v5334 = vpack.c.b16 %v5214, %v5211
  %v5335 = vpack.c.b16 %v5215, %v5212
  %v5336 = vpack.c.b16 %v5216, %v5213
  %v5337 = vpack.c.b16 %v5220, %v5217
  %v5338 = vpack.c.b16 %v5221, %v5218
  %v5339 = vpack.c.b16 %v5222, %v5219
  %v5340 = vpack.c.b16 %v5226, %v5223
  %v5341 = vpack.c.b16 %v5227, %v5224
  %v5342 = vpack.c.b16 %v5228, %v5225
  %v5343 = vpack.c.b16 %v5232, %v5229
  %v5344 = vpack.c.b16 %v5233, %v5230
  %v5345 = vpack.c.b16 %v5234, %v5231
  %v5346 = vpack.c.b16 %v5238, %v5235
  %v5347 = vpack.c.b16 %v5239, %v5236
  %v5348 = vpack.c.b16 %v5240, %v5237
  %v5349 = vpack.c.b16 %v5244, %v5241
  %v5350 = vpack.c.b16 %v5245, %v5242
  %v5351 = vpack.c.b16 %v5246, %v5243
  %v5352 = vpack.c.b16 %v5250, %v5247
  %v5353 = vpack.c.b16 %v5251, %v5248
  %v5354 = vpack.c.b16 %v5252, %v5249
  %v5355 = vpack.c.b16 %v5256, %v5253
  %v5356 = vpack.c.b16 %v5257, %v5254
  %v5357 = vpack.c.b16 %v5258, %v5255
  %v5358 = vpack.c.b16 %v5262, %v5259
  %v5359 = vpack.c.b16 %v5263, %v5260
  %v5360 = vpack.c.b16 %v5264, %v5261
  %v5361 = vpack.c.b16 %v5268, %v5265
  %v5362 = vpack.c.b16 %v5269, %v5266
  %v5363 = vpack.c.b16 %v5270, %v5267
  %v5364 = vpack.c.b16 %v5274, %v5271
  %v5365 = vpack.c.b16 %v5275, %v5272
  %v5366 = vpack.c.b16 %v5276, %v5273
  %v5367 = vpack.c.b16 %v5280, %v5277
  %v5368 = vpack.c.b16 %v5281, %v5278
  %v5369 = vpack.c.b16 %v5282, %v5279
  %v5370 = vpack.c.b16 %v5286, %v5283
  %v5371 = vpack.c.b16 %v5287, %v5284
  %v5372 = vpack.c.b16 %v5288, %v5285
  %v5373 = vpack.c.b16 %v5292, %v5289
  %v5374 = vpack.c.b16 %v5293, %v5290
  %v5375 = vpack.c.b16 %v5294, %v5291
  %v5376 = vpack.c.b16 %v5298, %v5295
  %v5377 = vpack.c.b16 %v5299, %v5296
  %v5378 = vpack.c.b16 %v5300, %v5297
  %v5379 = vpack.c.b16 %v5304, %v5301
  %v5380 = vpack.c.b16 %v5305, %v5302
  %v5381 = vpack.c.b16 %v5306, %v5303
  %v5382 = vpack.c.b16 %v5310, %v5307
  %v5383 = vpack.c.b16 %v5311, %v5308
  %v5384 = vpack.c.b16 %v5312, %v5309
  %5457 = vmatprep.subr.bf16.mxu0 %v5314
  %5458 = vmatpush1.bf16.msra.mxu0 %v5313
  %5459 = vmatprep.subr.bf16.mxu0 %v5317
  %5460 = vmatpush1.bf16.msra.mxu0 %v5316
  %5461 = vmatprep.subr.bf16.mxu0 %v5320
  %5462 = vmatpush1.bf16.msra.mxu0 %v5319
  %5463 = vmatprep.subr.bf16.mxu0 %v5323
  %5464 = vmatpush1.bf16.msra.mxu0 %v5322
  %5465 = vmatprep.subr.bf16.mxu0 %v5326
  %5466 = vmatpush1.bf16.msra.mxu0 %v5325
  %5467 = vmatprep.subr.bf16.mxu0 %v5329
  %5468 = vmatpush1.bf16.msra.mxu0 %v5328
  %5469 = vmatprep.subr.bf16.mxu0 %v5332
  %5470 = vmatpush1.bf16.msra.mxu0 %v5331
  %5471 = vmatprep.subr.bf16.mxu0 %v5335
  %5472 = vmatpush1.bf16.msra.mxu0 %v5334
  %5473 = vmatprep.subr.bf16.mxu0 %v5338
  %5474 = vmatpush1.bf16.msra.mxu0 %v5337
  %5475 = vmatprep.subr.bf16.mxu0 %v5341
  %5476 = vmatpush1.bf16.msra.mxu0 %v5340
  %5477 = vmatprep.subr.bf16.mxu0 %v5344
  %5478 = vmatpush1.bf16.msra.mxu0 %v5343
  %5479 = vmatprep.subr.bf16.mxu0 %v5347
  %5480 = vmatpush1.bf16.msra.mxu0 %v5346
  %5481 = vmatprep.subr.bf16.mxu0 %v5350
  %5482 = vmatpush1.bf16.msra.mxu0 %v5349
  %5483 = vmatprep.subr.bf16.mxu0 %v5353
  %5484 = vmatpush1.bf16.msra.mxu0 %v5352
  %5485 = vmatprep.subr.bf16.mxu0 %v5356
  %5486 = vmatpush1.bf16.msra.mxu0 %v5355
  %5487 = vmatprep.subr.bf16.mxu0 %v5359
  %5488 = vmatpush1.bf16.msra.mxu0 %v5358
  %5489 = vmatprep.mubr.bf16.mxu0 %v5065
  %5490 = vmatmul.mubr.bf16.gmra.mrb[0].mxu0 %v5064
  %v5491 = vpop.f32.mrb[0].mxu0
  %v5492 = vadd.f32 0.0, %v5491
  %v5493 = vpop.f32.mrb[0].mxu0
  %v5494 = vadd.f32 0.0, %v5493
  %v5495 = vpop.f32.mrb[0].mxu0
  %v5496 = vadd.f32 0.0, %v5495
  %v5497 = vpop.f32.mrb[0].mxu0
  %v5498 = vadd.f32 0.0, %v5497
  %5499 = vmatprep.mubr.bf16.mxu0 %v5068
  %5500 = vmatmul.mubr.bf16.gmra.mrb[0].mxu0 %v5067
  %v5501 = vpop.f32.mrb[0].mxu0
  %v5502 = vadd.f32 0.0, %v5501
  %v5503 = vpop.f32.mrb[0].mxu0
  %v5504 = vadd.f32 0.0, %v5503
  %v5505 = vpop.f32.mrb[0].mxu0
  %v5506 = vadd.f32 0.0, %v5505
  %v5507 = vpop.f32.mrb[0].mxu0
  %v5508 = vadd.f32 0.0, %v5507
  %5509 = vmatprep.mubr.bf16.mxu0 %v5071
  %5510 = vmatmul.mubr.bf16.gmra.mrb[0].mxu0 %v5070
  %v5511 = vpop.f32.mrb[0].mxu0
  %v5512 = vadd.f32 0.0, %v5511
  %v5513 = vpop.f32.mrb[0].mxu0
  %v5514 = vadd.f32 0.0, %v5513
  %v5515 = vpop.f32.mrb[0].mxu0
  %v5516 = vadd.f32 0.0, %v5515
  %v5517 = vpop.f32.mrb[0].mxu0
  %v5518 = vadd.f32 0.0, %v5517
  %5519 = vdwg.mxu0
  %5520 = vmatprep.subr.bf16.mxu0 %v5362
  %5521 = vmatpush1.bf16.msra.mxu0 %v5361
  %5522 = vmatprep.subr.bf16.mxu0 %v5365
  %5523 = vmatpush1.bf16.msra.mxu0 %v5364
  %5524 = vmatprep.subr.bf16.mxu0 %v5368
  %5525 = vmatpush1.bf16.msra.mxu0 %v5367
  %5526 = vmatprep.subr.bf16.mxu0 %v5371
  %5527 = vmatpush1.bf16.msra.mxu0 %v5370
  %5528 = vmatprep.subr.bf16.mxu0 %v5374
  %5529 = vmatpush1.bf16.msra.mxu0 %v5373
  %5530 = vmatprep.subr.bf16.mxu0 %v5377
  %5531 = vmatpush1.bf16.msra.mxu0 %v5376
  %5532 = vmatprep.subr.bf16.mxu0 %v5380
  %5533 = vmatpush1.bf16.msra.mxu0 %v5379
  %5534 = vmatprep.subr.bf16.mxu0 %v5383
  %5535 = vmatpush1.bf16.msra.mxu0 %v5382
  %5536 = vmatprep.subr.bf16.mxu0 0
  %5537 = vmatpush1.bf16.msra.mxu0 0
  %5538 = vmatprep.subr.bf16.mxu0 0
  %5539 = vmatpush1.bf16.msra.mxu0 0
  %5540 = vmatprep.subr.bf16.mxu0 0
  %5541 = vmatpush1.bf16.msra.mxu0 0
  %5542 = vmatprep.subr.bf16.mxu0 0
  %5543 = vmatpush1.bf16.msra.mxu0 0
  %5544 = vmatprep.subr.bf16.mxu0 0
  %5545 = vmatpush1.bf16.msra.mxu0 0
  %5546 = vmatprep.subr.bf16.mxu0 0
  %5547 = vmatpush1.bf16.msra.mxu0 0
  %5548 = vmatprep.subr.bf16.mxu0 0
  %5549 = vmatpush1.bf16.msra.mxu0 0
  %5550 = vmatprep.subr.bf16.mxu0 0
  %5551 = vmatpush1.bf16.msra.mxu0 0
  %5552 = vmatprep.mubr.bf16.mxu0 0
  %5553 = vmatmul.mubr.bf16.gmra.mrb[0].mxu0 %v5066
  %v5554 = vpop.f32.mrb[0].mxu0
  %v5555 = vadd.f32 %v5492, %v5554
  %v5556 = vpop.f32.mrb[0].mxu0
  %v5557 = vadd.f32 %v5494, %v5556
  %v5558 = vpop.f32.mrb[0].mxu0
  %v5559 = vadd.f32 %v5496, %v5558
  %v5560 = vpop.f32.mrb[0].mxu0
  %v5561 = vadd.f32 %v5498, %v5560
  %5562 = vmatprep.mubr.bf16.mxu0 0
  %5563 = vmatmul.mubr.bf16.gmra.mrb[0].mxu0 %v5069
  %v5564 = vpop.f32.mrb[0].mxu0
  %v5565 = vadd.f32 %v5502, %v5564
  %v5566 = vpop.f32.mrb[0].mxu0
  %v5567 = vadd.f32 %v5504, %v5566
  %v5568 = vpop.f32.mrb[0].mxu0
  %v5569 = vadd.f32 %v5506, %v5568
  %v5570 = vpop.f32.mrb[0].mxu0
  %v5571 = vadd.f32 %v5508, %v5570
  %5572 = vmatprep.mubr.bf16.mxu0 0
  %5573 = vmatmul.mubr.bf16.gmra.mrb[0].mxu0 %v5072
  %v5574 = vpop.f32.mrb[0].mxu0
  %v5575 = vadd.f32 %v5512, %v5574
  %v5576 = vpop.f32.mrb[0].mxu0
  %v5577 = vadd.f32 %v5514, %v5576
  %v5578 = vpop.f32.mrb[0].mxu0
  %v5579 = vadd.f32 %v5516, %v5578
  %v5580 = vpop.f32.mrb[0].mxu0
  %v5581 = vadd.f32 %v5518, %v5580
  %5582 = vdwg.mxu0
  %5583 = vmatprep.subr.bf16.mxu0 0
  %5584 = vmatpush1.bf16.msra.mxu0 %v5315
  %5585 = vmatprep.subr.bf16.mxu0 0
  %5586 = vmatpush1.bf16.msra.mxu0 %v5318
  %5587 = vmatprep.subr.bf16.mxu0 0
  %5588 = vmatpush1.bf16.msra.mxu0 %v5321
  %5589 = vmatprep.subr.bf16.mxu0 0
  %5590 = vmatpush1.bf16.msra.mxu0 %v5324
  %5591 = vmatprep.subr.bf16.mxu0 0
  %5592 = vmatpush1.bf16.msra.mxu0 %v5327
  %5593 = vmatprep.subr.bf16.mxu0 0
  %5594 = vmatpush1.bf16.msra.mxu0 %v5330
  %5595 = vmatprep.subr.bf16.mxu0 0
  %5596 = vmatpush1.bf16.msra.mxu0 %v5333
  %5597 = vmatprep.subr.bf16.mxu0 0
  %5598 = vmatpush1.bf16.msra.mxu0 %v5336
  %5599 = vmatprep.subr.bf16.mxu0 0
  %5600 = vmatpush1.bf16.msra.mxu0 %v5339
  %5601 = vmatprep.subr.bf16.mxu0 0
  %5602 = vmatpush1.bf16.msra.mxu0 %v5342
  %5603 = vmatprep.subr.bf16.mxu0 0
  %5604 = vmatpush1.bf16.msra.mxu0 %v5345
  %5605 = vmatprep.subr.bf16.mxu0 0
  %5606 = vmatpush1.bf16.msra.mxu0 %v5348
  %5607 = vmatprep.subr.bf16.mxu0 0
  %5608 = vmatpush1.bf16.msra.mxu0 %v5351
  %5609 = vmatprep.subr.bf16.mxu0 0
  %5610 = vmatpush1.bf16.msra.mxu0 %v5354
  %5611 = vmatprep.subr.bf16.mxu0 0
  %5612 = vmatpush1.bf16.msra.mxu0 %v5357
  %5613 = vmatprep.subr.bf16.mxu0 0
  %5614 = vmatpush1.bf16.msra.mxu0 %v5360
  %5615 = vmatprep.mubr.bf16.mxu0 %v5065
  %5616 = vmatmul.mubr.bf16.gmra.mrb[0].mxu0 %v5064
  %v5617 = vpop.f32.mrb[0].mxu0
  %v5618 = vadd.f32 0.0, %v5617
  %v5619 = vpop.f32.mrb[0].mxu0
  %v5620 = vpop.f32.mrb[0].mxu0
  %v5621 = vadd.f32 0.0, %v5620
  %v5622 = vpop.f32.mrb[0].mxu0
  %5623 = vmatprep.mubr.bf16.mxu0 %v5068
  %5624 = vmatmul.mubr.bf16.gmra.mrb[0].mxu0 %v5067
  %v5625 = vpop.f32.mrb[0].mxu0
  %v5626 = vadd.f32 0.0, %v5625
  %v5627 = vpop.f32.mrb[0].mxu0
  %v5628 = vpop.f32.mrb[0].mxu0
  %v5629 = vadd.f32 0.0, %v5628
  %v5630 = vpop.f32.mrb[0].mxu0
  %5631 = vmatprep.mubr.bf16.mxu0 %v5071
  %5632 = vmatmul.mubr.bf16.gmra.mrb[0].mxu0 %v5070
  %v5633 = vpop.f32.mrb[0].mxu0
  %v5634 = vadd.f32 0.0, %v5633
  %v5635 = vpop.f32.mrb[0].mxu0
  %v5636 = vpop.f32.mrb[0].mxu0
  %v5637 = vadd.f32 0.0, %v5636
  %v5638 = vpop.f32.mrb[0].mxu0
  %5639 = vdwg.mxu0
  %5640 = vmatprep.subr.bf16.mxu0 0
  %5641 = vmatpush1.bf16.msra.mxu0 %v5363
  %5642 = vmatprep.subr.bf16.mxu0 0
  %5643 = vmatpush1.bf16.msra.mxu0 %v5366
  %5644 = vmatprep.subr.bf16.mxu0 0
  %5645 = vmatpush1.bf16.msra.mxu0 %v5369
  %5646 = vmatprep.subr.bf16.mxu0 0
  %5647 = vmatpush1.bf16.msra.mxu0 %v5372
  %5648 = vmatprep.subr.bf16.mxu0 0
  %5649 = vmatpush1.bf16.msra.mxu0 %v5375
  %5650 = vmatprep.subr.bf16.mxu0 0
  %5651 = vmatpush1.bf16.msra.mxu0 %v5378
  %5652 = vmatprep.subr.bf16.mxu0 0
  %5653 = vmatpush1.bf16.msra.mxu0 %v5381
  %5654 = vmatprep.subr.bf16.mxu0 0
  %5655 = vmatpush1.bf16.msra.mxu0 %v5384
  %5656 = vmatprep.subr.bf16.mxu0 0
  %5657 = vmatpush1.bf16.msra.mxu0 0
  %5658 = vmatprep.subr.bf16.mxu0 0
  %5659 = vmatpush1.bf16.msra.mxu0 0
  %5660 = vmatprep.subr.bf16.mxu0 0
  %5661 = vmatpush1.bf16.msra.mxu0 0
  %5662 = vmatprep.subr.bf16.mxu0 0
  %5663 = vmatpush1.bf16.msra.mxu0 0
  %5664 = vmatprep.subr.bf16.mxu0 0
  %5665 = vmatpush1.bf16.msra.mxu0 0
  %5666 = vmatprep.subr.bf16.mxu0 0
  %5667 = vmatpush1.bf16.msra.mxu0 0
  %5668 = vmatprep.subr.bf16.mxu0 0
  %5669 = vmatpush1.bf16.msra.mxu0 0
  %5670 = vmatprep.subr.bf16.mxu0 0
  %5671 = vmatpush1.bf16.msra.mxu0 0
  %5672 = vmatprep.mubr.bf16.mxu0 0
  %5673 = vmatmul.mubr.bf16.gmra.mrb[0].mxu0 %v5066
  %v5674 = vpop.f32.mrb[0].mxu0
  %v5675 = vadd.f32 %v5618, %v5674
  %v5676 = vpop.f32.mrb[0].mxu0
  %v5677 = vpop.f32.mrb[0].mxu0
  %v5678 = vadd.f32 %v5621, %v5677
  %v5679 = vpop.f32.mrb[0].mxu0
  %5680 = vmatprep.mubr.bf16.mxu0 0
  %5681 = vmatmul.mubr.bf16.gmra.mrb[0].mxu0 %v5069
  %v5682 = vpop.f32.mrb[0].mxu0
  %v5683 = vadd.f32 %v5626, %v5682
  %v5684 = vpop.f32.mrb[0].mxu0
  %v5685 = vpop.f32.mrb[0].mxu0
  %v5686 = vadd.f32 %v5629, %v5685
  %v5687 = vpop.f32.mrb[0].mxu0
  %5688 = vmatprep.mubr.bf16.mxu0 0
  %5689 = vmatmul.mubr.bf16.gmra.mrb[0].mxu0 %v5072
  %v5690 = vpop.f32.mrb[0].mxu0
  %v5691 = vadd.f32 %v5634, %v5690
  %v5692 = vpop.f32.mrb[0].mxu0
  %v5693 = vpop.f32.mrb[0].mxu0
  %v5694 = vadd.f32 %v5637, %v5693
  %v5695 = vpop.f32.mrb[0].mxu0
  %5696 = vdwg.mxu0
  %v5697 = vpack.c.bf16 %v5559, %v5555
  %v5698 = vpack.c.bf16 %v5561, %v5557
  %v5699 = vpack.c.bf16 %v5678, %v5675
  %v5700 = vpack.c.bf16 %v5565, %v5565
  %v5701 = vpack.c.bf16 %v5567, %v5567
  %v5702 = vpack.c.bf16 %v5683, %v5683
  %v5704 = vsel %vm1926, %v5697, 0
  %v5707 = vsel %vm1926, %v5700, 0
  %v5710 = vsel %vm1926, %v5698, 0
  %v5713 = vsel %vm1926, %v5701, 0
  %5715 = vmatprep.subr.bf16.mxu0 0
  %5716 = vmatpush1.bf16.xpose.msra.mxu0 %v5710
  %5717 = vmatprep.subr.bf16.mxu0 0
  %5718 = vmatpush1.bf16.xpose.msra.mxu0 %v5713
  %5719 = vmatprep.subr.bf16.mxu0 0
  %5720 = vmatpush1.bf16.xpose.msra.mxu0 0
  %5721 = vmatprep.subr.bf16.mxu0 0
  %5722 = vmatpush1.bf16.xpose.msra.mxu0 0
  %5723 = vmatprep.subr.bf16.mxu0 0
  %5724 = vmatpush1.bf16.xpose.msra.mxu0 0
  %5725 = vmatprep.subr.bf16.mxu0 0
  %5726 = vmatpush1.bf16.xpose.msra.mxu0 0
  %5727 = vmatprep.subr.bf16.mxu0 0
  %5728 = vmatpush1.bf16.xpose.msra.mxu0 0
  %5729 = vmatprep.subr.bf16.mxu0 0
  %5730 = vmatpush1.bf16.xpose.msra.mxu0 0
  %5731 = vmatprep.subr.bf16.mxu0 0
  %5732 = vmatpush1.bf16.xpose.msra.mxu0 0
  %5733 = vmatprep.subr.bf16.mxu0 0
  %5734 = vmatpush1.bf16.xpose.msra.mxu0 0
  %5735 = vmatprep.subr.bf16.mxu0 0
  %5736 = vmatpush1.bf16.xpose.msra.mxu0 0
  %5737 = vmatprep.subr.bf16.mxu0 0
  %5738 = vmatpush1.bf16.xpose.msra.mxu0 0
  %5739 = vmatprep.subr.bf16.mxu0 0
  %5740 = vmatpush1.bf16.xpose.msra.mxu0 0
  %5741 = vmatprep.subr.bf16.mxu0 0
  %5742 = vmatpush1.bf16.xpose.msra.mxu0 0
  %5743 = vmatprep.subr.bf16.mxu0 0
  %5744 = vmatpush1.bf16.xpose.msra.mxu0 0
  %5745 = vmatprep.subr.bf16.mxu0 0
  %5746 = vmatpush1.bf16.xpose.msra.mxu0 0
  %5747 = vmatprep.mubr.bf16.mxu0 0
  %5748 = vmatmul.mubr.bf16.gmra.mrb[0].mxu0 %v5704
  %v5749 = vpop.f32.mrb[0].mxu0
  %v5750 = vadd.f32 0.0, %v5749
  %v5751 = vpop.f32.mrb[0].mxu0
  %v5752 = vpop.f32.mrb[0].mxu0
  %v5753 = vadd.f32 0.0, %v5752
  %v5754 = vpop.f32.mrb[0].mxu0
  %5755 = vmatprep.mubr.bf16.mxu0 0
  %5756 = vmatmul.mubr.bf16.gmra.mrb[0].mxu0 %v5707
  %v5757 = vpop.f32.mrb[0].mxu0
  %v5758 = vadd.f32 0.0, %v5757
  %v5759 = vpop.f32.mrb[0].mxu0
  %v5760 = vpop.f32.mrb[0].mxu0
  %v5761 = vpop.f32.mrb[0].mxu0
  %5762 = vdwg.mxu0
  %v5763 = vmul.f32 %v5750, 0.17677669
  %v5764 = vmul.f32 %v5753, 0.17677669
  %v5765 = vmul.f32 %v5758, 0.17677669
  %v5766 = vsel %vm70, %v5763, -1e+30
  %v5767 = vsel %vm70, %v5764, -1e+30
  %v5768 = vsel %vm70, %v5765, -1e+30
  %v5769 = vsel %vm1993, %v5766, -inf
  %5770 = vmax.xlane.f32.xlu0 %v5769
  %v5771 = vpop.xlane.xlu0 %5770
  %v5772 = vsel %vm1993, %v5767, -inf
  %5773 = vmax.xlane.f32.xlu0 %v5772
  %v5774 = vpop.xlane.xlu0 %5773
  %v5775 = vsel %vm1993, %v5768, -inf
  %5776 = vmax.xlane.f32.xlu0 %v5775
  %v5777 = vpop.xlane.xlu0 %5776
  %v5778 = vsub.f32 %v5766, %v5771
  %v5779 = vsub.f32 %v5767, %v5774
  %v5780 = vsub.f32 %v5768, %v5777
  %v5781 = vmul.f32 %v5778, 1.442695
  %v5782 = vpow.pop %v5781
  %v5783 = vmul.f32 %v5779, 1.442695
  %v5784 = vpow.pop %v5783
  %v5785 = vmul.f32 %v5780, 1.442695
  %v5786 = vpow.pop %v5785
  %v5787 = vsel %vm1993, %v5782, 0.0
  %5788 = vadd.xlane.f32.xlu0 %v5787
  %v5789 = vpop.xlane.xlu0 %5788
  %v5790 = vsel %vm1993, %v5784, 0.0
  %5791 = vadd.xlane.f32.xlu0 %v5790
  %v5792 = vpop.xlane.xlu0 %5791
  %v5793 = vsel %vm1993, %v5786, 0.0
  %5794 = vadd.xlane.f32.xlu0 %v5793
  %v5795 = vpop.xlane.xlu0 %5794
  %v5796 = vrcp.pop %v5789
  %v5797 = vrcp.pop %v5792
  %v5798 = vrcp.pop %v5795
  %v5799 = vmul.f32 %v5782, %v5796
  %v5800 = vmul.f32 %v5784, %v5797
  %v5801 = vmul.f32 %v5786, %v5798
  %v5802 = vpack.c.bf16 %v5800, %v5799
  %v5803 = vpack.c.bf16 %v5801, %v5801
  %v5805 = vsel %vm1993, %v5802, 0
  %v5808 = vsel %vm1993, %v5803, 0
  %v5811 = vsel %vm2035, %v5702, 0
  %5813 = vmatprep.subr.bf16.mxu0 0
  %5814 = vmatpush1.bf16.msra.mxu0 %v5699
  %5815 = vmatprep.subr.bf16.mxu0 0
  %5816 = vmatpush1.bf16.msra.mxu0 %v5811
  %5817 = vmatprep.subr.bf16.mxu0 0
  %5818 = vmatpush1.bf16.msra.mxu0 0
  %5819 = vmatprep.subr.bf16.mxu0 0
  %5820 = vmatpush1.bf16.msra.mxu0 0
  %5821 = vmatprep.subr.bf16.mxu0 0
  %5822 = vmatpush1.bf16.msra.mxu0 0
  %5823 = vmatprep.subr.bf16.mxu0 0
  %5824 = vmatpush1.bf16.msra.mxu0 0
  %5825 = vmatprep.subr.bf16.mxu0 0
  %5826 = vmatpush1.bf16.msra.mxu0 0
  %5827 = vmatprep.subr.bf16.mxu0 0
  %5828 = vmatpush1.bf16.msra.mxu0 0
  %5829 = vmatprep.subr.bf16.mxu0 0
  %5830 = vmatpush1.bf16.msra.mxu0 0
  %5831 = vmatprep.subr.bf16.mxu0 0
  %5832 = vmatpush1.bf16.msra.mxu0 0
  %5833 = vmatprep.subr.bf16.mxu0 0
  %5834 = vmatpush1.bf16.msra.mxu0 0
  %5835 = vmatprep.subr.bf16.mxu0 0
  %5836 = vmatpush1.bf16.msra.mxu0 0
  %5837 = vmatprep.subr.bf16.mxu0 0
  %5838 = vmatpush1.bf16.msra.mxu0 0
  %5839 = vmatprep.subr.bf16.mxu0 0
  %5840 = vmatpush1.bf16.msra.mxu0 0
  %5841 = vmatprep.subr.bf16.mxu0 0
  %5842 = vmatpush1.bf16.msra.mxu0 0
  %5843 = vmatprep.subr.bf16.mxu0 0
  %5844 = vmatpush1.bf16.msra.mxu0 0
  %5845 = vmatprep.mubr.bf16.mxu0 0
  %5846 = vmatmul.mubr.bf16.gmra.mrb[0].mxu0 %v5805
  %v5847 = vpop.f32.mrb[0].mxu0
  %v5848 = vadd.f32 0.0, %v5847
  %v5849 = vpop.f32.mrb[0].mxu0
  %v5850 = vpop.f32.mrb[0].mxu0
  %v5851 = vadd.f32 0.0, %v5850
  %v5852 = vpop.f32.mrb[0].mxu0
  %5853 = vmatprep.mubr.bf16.mxu0 0
  %5854 = vmatmul.mubr.bf16.gmra.mrb[0].mxu0 %v5808
  %v5855 = vpop.f32.mrb[0].mxu0
  %v5856 = vadd.f32 0.0, %v5855
  %v5857 = vpop.f32.mrb[0].mxu0
  %v5858 = vpop.f32.mrb[0].mxu0
  %v5859 = vpop.f32.mrb[0].mxu0
  %5860 = vdwg.mxu0
  %5863 = vrot.lane.b32.xlu0 %v5697, 96
  %v5864 = vpop.permute.xlu0 %5863
  %5865 = vrot.lane.b32.xlu0 %v5700, 96
  %v5866 = vpop.permute.xlu0 %5865
  %5869 = vrot.lane.b32.xlu0 %v5698, 96
  %v5870 = vpop.permute.xlu0 %5869
  %5871 = vrot.lane.b32.xlu0 %v5701, 96
  %v5872 = vpop.permute.xlu0 %5871
  %v5874 = vsel %vm1926, %v5864, 0
  %v5877 = vsel %vm1926, %v5866, 0
  %v5880 = vsel %vm1926, %v5870, 0
  %v5883 = vsel %vm1926, %v5872, 0
  %5885 = vmatprep.subr.bf16.mxu0 0
  %5886 = vmatpush1.bf16.xpose.msra.mxu0 %v5880
  %5887 = vmatprep.subr.bf16.mxu0 0
  %5888 = vmatpush1.bf16.xpose.msra.mxu0 %v5883
  %5889 = vmatprep.subr.bf16.mxu0 0
  %5890 = vmatpush1.bf16.xpose.msra.mxu0 0
  %5891 = vmatprep.subr.bf16.mxu0 0
  %5892 = vmatpush1.bf16.xpose.msra.mxu0 0
  %5893 = vmatprep.subr.bf16.mxu0 0
  %5894 = vmatpush1.bf16.xpose.msra.mxu0 0
  %5895 = vmatprep.subr.bf16.mxu0 0
  %5896 = vmatpush1.bf16.xpose.msra.mxu0 0
  %5897 = vmatprep.subr.bf16.mxu0 0
  %5898 = vmatpush1.bf16.xpose.msra.mxu0 0
  %5899 = vmatprep.subr.bf16.mxu0 0
  %5900 = vmatpush1.bf16.xpose.msra.mxu0 0
  %5901 = vmatprep.subr.bf16.mxu0 0
  %5902 = vmatpush1.bf16.xpose.msra.mxu0 0
  %5903 = vmatprep.subr.bf16.mxu0 0
  %5904 = vmatpush1.bf16.xpose.msra.mxu0 0
  %5905 = vmatprep.subr.bf16.mxu0 0
  %5906 = vmatpush1.bf16.xpose.msra.mxu0 0
  %5907 = vmatprep.subr.bf16.mxu0 0
  %5908 = vmatpush1.bf16.xpose.msra.mxu0 0
  %5909 = vmatprep.subr.bf16.mxu0 0
  %5910 = vmatpush1.bf16.xpose.msra.mxu0 0
  %5911 = vmatprep.subr.bf16.mxu0 0
  %5912 = vmatpush1.bf16.xpose.msra.mxu0 0
  %5913 = vmatprep.subr.bf16.mxu0 0
  %5914 = vmatpush1.bf16.xpose.msra.mxu0 0
  %5915 = vmatprep.subr.bf16.mxu0 0
  %5916 = vmatpush1.bf16.xpose.msra.mxu0 0
  %5917 = vmatprep.mubr.bf16.mxu0 0
  %5918 = vmatmul.mubr.bf16.gmra.mrb[0].mxu0 %v5874
  %v5919 = vpop.f32.mrb[0].mxu0
  %v5920 = vadd.f32 0.0, %v5919
  %v5921 = vpop.f32.mrb[0].mxu0
  %v5922 = vpop.f32.mrb[0].mxu0
  %v5923 = vadd.f32 0.0, %v5922
  %v5924 = vpop.f32.mrb[0].mxu0
  %5925 = vmatprep.mubr.bf16.mxu0 0
  %5926 = vmatmul.mubr.bf16.gmra.mrb[0].mxu0 %v5877
  %v5927 = vpop.f32.mrb[0].mxu0
  %v5928 = vadd.f32 0.0, %v5927
  %v5929 = vpop.f32.mrb[0].mxu0
  %v5930 = vpop.f32.mrb[0].mxu0
  %v5931 = vpop.f32.mrb[0].mxu0
  %5932 = vdwg.mxu0
  %v5933 = vmul.f32 %v5920, 0.17677669
  %v5934 = vmul.f32 %v5923, 0.17677669
  %v5935 = vmul.f32 %v5928, 0.17677669
  %v5936 = vsel %vm70, %v5933, -1e+30
  %v5937 = vsel %vm70, %v5934, -1e+30
  %v5938 = vsel %vm70, %v5935, -1e+30
  %v5939 = vsel %vm1993, %v5936, -inf
  %5940 = vmax.xlane.f32.xlu0 %v5939
  %v5941 = vpop.xlane.xlu0 %5940
  %v5942 = vsel %vm1993, %v5937, -inf
  %5943 = vmax.xlane.f32.xlu0 %v5942
  %v5944 = vpop.xlane.xlu0 %5943
  %v5945 = vsel %vm1993, %v5938, -inf
  %5946 = vmax.xlane.f32.xlu0 %v5945
  %v5947 = vpop.xlane.xlu0 %5946
  %v5948 = vsub.f32 %v5936, %v5941
  %v5949 = vsub.f32 %v5937, %v5944
  %v5950 = vsub.f32 %v5938, %v5947
  %v5951 = vmul.f32 %v5948, 1.442695
  %v5952 = vpow.pop %v5951
  %v5953 = vmul.f32 %v5949, 1.442695
  %v5954 = vpow.pop %v5953
  %v5955 = vmul.f32 %v5950, 1.442695
  %v5956 = vpow.pop %v5955
  %v5957 = vsel %vm1993, %v5952, 0.0
  %5958 = vadd.xlane.f32.xlu0 %v5957
  %v5959 = vpop.xlane.xlu0 %5958
  %v5960 = vsel %vm1993, %v5954, 0.0
  %5961 = vadd.xlane.f32.xlu0 %v5960
  %v5962 = vpop.xlane.xlu0 %5961
  %v5963 = vsel %vm1993, %v5956, 0.0
  %5964 = vadd.xlane.f32.xlu0 %v5963
  %v5965 = vpop.xlane.xlu0 %5964
  %v5966 = vrcp.pop %v5959
  %v5967 = vrcp.pop %v5962
  %v5968 = vrcp.pop %v5965
  %v5969 = vmul.f32 %v5952, %v5966
  %v5970 = vmul.f32 %v5954, %v5967
  %v5971 = vmul.f32 %v5956, %v5968
  %v5972 = vpack.c.bf16 %v5970, %v5969
  %v5973 = vpack.c.bf16 %v5971, %v5971
  %5976 = vrot.lane.b32.xlu0 %v5699, 96
  %v5977 = vpop.permute.xlu0 %5976
  %5978 = vrot.lane.b32.xlu0 %v5702, 96
  %v5979 = vpop.permute.xlu0 %5978
  %v5982 = vsel %vm1993, %v5972, 0
  %v5985 = vsel %vm1993, %v5973, 0
  %v5988 = vsel %vm2035, %v5979, 0
  %5990 = vmatprep.subr.bf16.mxu0 0
  %5991 = vmatpush1.bf16.msra.mxu0 %v5977
  %5992 = vmatprep.subr.bf16.mxu0 0
  %5993 = vmatpush1.bf16.msra.mxu0 %v5988
  %5994 = vmatprep.subr.bf16.mxu0 0
  %5995 = vmatpush1.bf16.msra.mxu0 0
  %5996 = vmatprep.subr.bf16.mxu0 0
  %5997 = vmatpush1.bf16.msra.mxu0 0
  %5998 = vmatprep.subr.bf16.mxu0 0
  %5999 = vmatpush1.bf16.msra.mxu0 0
  %6000 = vmatprep.subr.bf16.mxu0 0
  %6001 = vmatpush1.bf16.msra.mxu0 0
  %6002 = vmatprep.subr.bf16.mxu0 0
  %6003 = vmatpush1.bf16.msra.mxu0 0
  %6004 = vmatprep.subr.bf16.mxu0 0
  %6005 = vmatpush1.bf16.msra.mxu0 0
  %6006 = vmatprep.subr.bf16.mxu0 0
  %6007 = vmatpush1.bf16.msra.mxu0 0
  %6008 = vmatprep.subr.bf16.mxu0 0
  %6009 = vmatpush1.bf16.msra.mxu0 0
  %6010 = vmatprep.subr.bf16.mxu0 0
  %6011 = vmatpush1.bf16.msra.mxu0 0
  %6012 = vmatprep.subr.bf16.mxu0 0
  %6013 = vmatpush1.bf16.msra.mxu0 0
  %6014 = vmatprep.subr.bf16.mxu0 0
  %6015 = vmatpush1.bf16.msra.mxu0 0
  %6016 = vmatprep.subr.bf16.mxu0 0
  %6017 = vmatpush1.bf16.msra.mxu0 0
  %6018 = vmatprep.subr.bf16.mxu0 0
  %6019 = vmatpush1.bf16.msra.mxu0 0
  %6020 = vmatprep.subr.bf16.mxu0 0
  %6021 = vmatpush1.bf16.msra.mxu0 0
  %6022 = vmatprep.mubr.bf16.mxu0 0
  %6023 = vmatmul.mubr.bf16.gmra.mrb[0].mxu0 %v5982
  %v6024 = vpop.f32.mrb[0].mxu0
  %v6025 = vadd.f32 0.0, %v6024
  %v6026 = vpop.f32.mrb[0].mxu0
  %v6027 = vpop.f32.mrb[0].mxu0
  %v6028 = vadd.f32 0.0, %v6027
  %v6029 = vpop.f32.mrb[0].mxu0
  %6030 = vmatprep.mubr.bf16.mxu0 0
  %6031 = vmatmul.mubr.bf16.gmra.mrb[0].mxu0 %v5985
  %v6032 = vpop.f32.mrb[0].mxu0
  %v6033 = vadd.f32 0.0, %v6032
  %v6034 = vpop.f32.mrb[0].mxu0
  %v6035 = vpop.f32.mrb[0].mxu0
  %v6036 = vpop.f32.mrb[0].mxu0
  %6037 = vdwg.mxu0
  %6038 = vrot.lane.b32.xlu0 %v5697, 64
  %v6039 = vpop.permute.xlu0 %6038
  %6040 = vrot.lane.b32.xlu0 %v5700, 64
  %v6041 = vpop.permute.xlu0 %6040
  %6042 = vrot.lane.b32.xlu0 %v5698, 64
  %v6043 = vpop.permute.xlu0 %6042
  %6044 = vrot.lane.b32.xlu0 %v5701, 64
  %v6045 = vpop.permute.xlu0 %6044
  %v6047 = vsel %vm1926, %v6039, 0
  %v6050 = vsel %vm1926, %v6041, 0
  %v6053 = vsel %vm1926, %v6043, 0
  %v6056 = vsel %vm1926, %v6045, 0
  %6058 = vmatprep.subr.bf16.mxu0 0
  %6059 = vmatpush1.bf16.xpose.msra.mxu0 %v6053
  %6060 = vmatprep.subr.bf16.mxu0 0
  %6061 = vmatpush1.bf16.xpose.msra.mxu0 %v6056
  %6062 = vmatprep.subr.bf16.mxu0 0
  %6063 = vmatpush1.bf16.xpose.msra.mxu0 0
  %6064 = vmatprep.subr.bf16.mxu0 0
  %6065 = vmatpush1.bf16.xpose.msra.mxu0 0
  %6066 = vmatprep.subr.bf16.mxu0 0
  %6067 = vmatpush1.bf16.xpose.msra.mxu0 0
  %6068 = vmatprep.subr.bf16.mxu0 0
  %6069 = vmatpush1.bf16.xpose.msra.mxu0 0
  %6070 = vmatprep.subr.bf16.mxu0 0
  %6071 = vmatpush1.bf16.xpose.msra.mxu0 0
  %6072 = vmatprep.subr.bf16.mxu0 0
  %6073 = vmatpush1.bf16.xpose.msra.mxu0 0
  %6074 = vmatprep.subr.bf16.mxu0 0
  %6075 = vmatpush1.bf16.xpose.msra.mxu0 0
  %6076 = vmatprep.subr.bf16.mxu0 0
  %6077 = vmatpush1.bf16.xpose.msra.mxu0 0
  %6078 = vmatprep.subr.bf16.mxu0 0
  %6079 = vmatpush1.bf16.xpose.msra.mxu0 0
  %6080 = vmatprep.subr.bf16.mxu0 0
  %6081 = vmatpush1.bf16.xpose.msra.mxu0 0
  %6082 = vmatprep.subr.bf16.mxu0 0
  %6083 = vmatpush1.bf16.xpose.msra.mxu0 0
  %6084 = vmatprep.subr.bf16.mxu0 0
  %6085 = vmatpush1.bf16.xpose.msra.mxu0 0
  %6086 = vmatprep.subr.bf16.mxu0 0
  %6087 = vmatpush1.bf16.xpose.msra.mxu0 0
  %6088 = vmatprep.subr.bf16.mxu0 0
  %6089 = vmatpush1.bf16.xpose.msra.mxu0 0
  %6090 = vmatprep.mubr.bf16.mxu0 0
  %6091 = vmatmul.mubr.bf16.gmra.mrb[0].mxu0 %v6047
  %v6092 = vpop.f32.mrb[0].mxu0
  %v6093 = vadd.f32 0.0, %v6092
  %v6094 = vpop.f32.mrb[0].mxu0
  %v6095 = vpop.f32.mrb[0].mxu0
  %v6096 = vadd.f32 0.0, %v6095
  %v6097 = vpop.f32.mrb[0].mxu0
  %6098 = vmatprep.mubr.bf16.mxu0 0
  %6099 = vmatmul.mubr.bf16.gmra.mrb[0].mxu0 %v6050
  %v6100 = vpop.f32.mrb[0].mxu0
  %v6101 = vadd.f32 0.0, %v6100
  %v6102 = vpop.f32.mrb[0].mxu0
  %v6103 = vpop.f32.mrb[0].mxu0
  %v6104 = vpop.f32.mrb[0].mxu0
  %6105 = vdwg.mxu0
  %v6106 = vmul.f32 %v6093, 0.17677669
  %v6107 = vmul.f32 %v6096, 0.17677669
  %v6108 = vmul.f32 %v6101, 0.17677669
  %v6109 = vsel %vm70, %v6106, -1e+30
  %v6110 = vsel %vm70, %v6107, -1e+30
  %v6111 = vsel %vm70, %v6108, -1e+30
  %v6112 = vsel %vm1993, %v6109, -inf
  %6113 = vmax.xlane.f32.xlu0 %v6112
  %v6114 = vpop.xlane.xlu0 %6113
  %v6115 = vsel %vm1993, %v6110, -inf
  %6116 = vmax.xlane.f32.xlu0 %v6115
  %v6117 = vpop.xlane.xlu0 %6116
  %v6118 = vsel %vm1993, %v6111, -inf
  %6119 = vmax.xlane.f32.xlu0 %v6118
  %v6120 = vpop.xlane.xlu0 %6119
  %v6121 = vsub.f32 %v6109, %v6114
  %v6122 = vsub.f32 %v6110, %v6117
  %v6123 = vsub.f32 %v6111, %v6120
  %v6124 = vmul.f32 %v6121, 1.442695
  %v6125 = vpow.pop %v6124
  %v6126 = vmul.f32 %v6122, 1.442695
  %v6127 = vpow.pop %v6126
  %v6128 = vmul.f32 %v6123, 1.442695
  %v6129 = vpow.pop %v6128
  %v6130 = vsel %vm1993, %v6125, 0.0
  %6131 = vadd.xlane.f32.xlu0 %v6130
  %v6132 = vpop.xlane.xlu0 %6131
  %v6133 = vsel %vm1993, %v6127, 0.0
  %6134 = vadd.xlane.f32.xlu0 %v6133
  %v6135 = vpop.xlane.xlu0 %6134
  %v6136 = vsel %vm1993, %v6129, 0.0
  %6137 = vadd.xlane.f32.xlu0 %v6136
  %v6138 = vpop.xlane.xlu0 %6137
  %v6139 = vrcp.pop %v6132
  %v6140 = vrcp.pop %v6135
  %v6141 = vrcp.pop %v6138
  %v6142 = vmul.f32 %v6125, %v6139
  %v6143 = vmul.f32 %v6127, %v6140
  %v6144 = vmul.f32 %v6129, %v6141
  %v6145 = vpack.c.bf16 %v6143, %v6142
  %v6146 = vpack.c.bf16 %v6144, %v6144
  %6147 = vrot.lane.b32.xlu0 %v5699, 64
  %v6148 = vpop.permute.xlu0 %6147
  %6149 = vrot.lane.b32.xlu0 %v5702, 64
  %v6150 = vpop.permute.xlu0 %6149
  %v6153 = vsel %vm1993, %v6145, 0
  %v6156 = vsel %vm1993, %v6146, 0
  %v6159 = vsel %vm2035, %v6150, 0
  %6161 = vmatprep.subr.bf16.mxu0 0
  %6162 = vmatpush1.bf16.msra.mxu0 %v6148
  %6163 = vmatprep.subr.bf16.mxu0 0
  %6164 = vmatpush1.bf16.msra.mxu0 %v6159
  %6165 = vmatprep.subr.bf16.mxu0 0
  %6166 = vmatpush1.bf16.msra.mxu0 0
  %6167 = vmatprep.subr.bf16.mxu0 0
  %6168 = vmatpush1.bf16.msra.mxu0 0
  %6169 = vmatprep.subr.bf16.mxu0 0
  %6170 = vmatpush1.bf16.msra.mxu0 0
  %6171 = vmatprep.subr.bf16.mxu0 0
  %6172 = vmatpush1.bf16.msra.mxu0 0
  %6173 = vmatprep.subr.bf16.mxu0 0
  %6174 = vmatpush1.bf16.msra.mxu0 0
  %6175 = vmatprep.subr.bf16.mxu0 0
  %6176 = vmatpush1.bf16.msra.mxu0 0
  %6177 = vmatprep.subr.bf16.mxu0 0
  %6178 = vmatpush1.bf16.msra.mxu0 0
  %6179 = vmatprep.subr.bf16.mxu0 0
  %6180 = vmatpush1.bf16.msra.mxu0 0
  %6181 = vmatprep.subr.bf16.mxu0 0
  %6182 = vmatpush1.bf16.msra.mxu0 0
  %6183 = vmatprep.subr.bf16.mxu0 0
  %6184 = vmatpush1.bf16.msra.mxu0 0
  %6185 = vmatprep.subr.bf16.mxu0 0
  %6186 = vmatpush1.bf16.msra.mxu0 0
  %6187 = vmatprep.subr.bf16.mxu0 0
  %6188 = vmatpush1.bf16.msra.mxu0 0
  %6189 = vmatprep.subr.bf16.mxu0 0
  %6190 = vmatpush1.bf16.msra.mxu0 0
  %6191 = vmatprep.subr.bf16.mxu0 0
  %6192 = vmatpush1.bf16.msra.mxu0 0
  %6193 = vmatprep.mubr.bf16.mxu0 0
  %6194 = vmatmul.mubr.bf16.gmra.mrb[0].mxu0 %v6153
  %v6195 = vpop.f32.mrb[0].mxu0
  %v6196 = vadd.f32 0.0, %v6195
  %v6197 = vpop.f32.mrb[0].mxu0
  %v6198 = vpop.f32.mrb[0].mxu0
  %v6199 = vadd.f32 0.0, %v6198
  %v6200 = vpop.f32.mrb[0].mxu0
  %6201 = vmatprep.mubr.bf16.mxu0 0
  %6202 = vmatmul.mubr.bf16.gmra.mrb[0].mxu0 %v6156
  %v6203 = vpop.f32.mrb[0].mxu0
  %v6204 = vadd.f32 0.0, %v6203
  %v6205 = vpop.f32.mrb[0].mxu0
  %v6206 = vpop.f32.mrb[0].mxu0
  %v6207 = vpop.f32.mrb[0].mxu0
  %6208 = vdwg.mxu0
  %6209 = vrot.lane.b32.xlu0 %v5697, 32
  %v6210 = vpop.permute.xlu0 %6209
  %6211 = vrot.lane.b32.xlu0 %v5700, 32
  %v6212 = vpop.permute.xlu0 %6211
  %6213 = vrot.lane.b32.xlu0 %v5698, 32
  %v6214 = vpop.permute.xlu0 %6213
  %6215 = vrot.lane.b32.xlu0 %v5701, 32
  %v6216 = vpop.permute.xlu0 %6215
  %v6218 = vsel %vm1926, %v6210, 0
  %v6221 = vsel %vm1926, %v6212, 0
  %v6224 = vsel %vm1926, %v6214, 0
  %v6227 = vsel %vm1926, %v6216, 0
  %6229 = vmatprep.subr.bf16.mxu0 0
  %6230 = vmatpush1.bf16.xpose.msra.mxu0 %v6224
  %6231 = vmatprep.subr.bf16.mxu0 0
  %6232 = vmatpush1.bf16.xpose.msra.mxu0 %v6227
  %6233 = vmatprep.subr.bf16.mxu0 0
  %6234 = vmatpush1.bf16.xpose.msra.mxu0 0
  %6235 = vmatprep.subr.bf16.mxu0 0
  %6236 = vmatpush1.bf16.xpose.msra.mxu0 0
  %6237 = vmatprep.subr.bf16.mxu0 0
  %6238 = vmatpush1.bf16.xpose.msra.mxu0 0
  %6239 = vmatprep.subr.bf16.mxu0 0
  %6240 = vmatpush1.bf16.xpose.msra.mxu0 0
  %6241 = vmatprep.subr.bf16.mxu0 0
  %6242 = vmatpush1.bf16.xpose.msra.mxu0 0
  %6243 = vmatprep.subr.bf16.mxu0 0
  %6244 = vmatpush1.bf16.xpose.msra.mxu0 0
  %6245 = vmatprep.subr.bf16.mxu0 0
  %6246 = vmatpush1.bf16.xpose.msra.mxu0 0
  %6247 = vmatprep.subr.bf16.mxu0 0
  %6248 = vmatpush1.bf16.xpose.msra.mxu0 0
  %6249 = vmatprep.subr.bf16.mxu0 0
  %6250 = vmatpush1.bf16.xpose.msra.mxu0 0
  %6251 = vmatprep.subr.bf16.mxu0 0
  %6252 = vmatpush1.bf16.xpose.msra.mxu0 0
  %6253 = vmatprep.subr.bf16.mxu0 0
  %6254 = vmatpush1.bf16.xpose.msra.mxu0 0
  %6255 = vmatprep.subr.bf16.mxu0 0
  %6256 = vmatpush1.bf16.xpose.msra.mxu0 0
  %6257 = vmatprep.subr.bf16.mxu0 0
  %6258 = vmatpush1.bf16.xpose.msra.mxu0 0
  %6259 = vmatprep.subr.bf16.mxu0 0
  %6260 = vmatpush1.bf16.xpose.msra.mxu0 0
  %6261 = vmatprep.mubr.bf16.mxu0 0
  %6262 = vmatmul.mubr.bf16.gmra.mrb[0].mxu0 %v6218
  %v6263 = vpop.f32.mrb[0].mxu0
  %v6264 = vadd.f32 0.0, %v6263
  %v6265 = vpop.f32.mrb[0].mxu0
  %v6266 = vpop.f32.mrb[0].mxu0
  %v6267 = vadd.f32 0.0, %v6266
  %v6268 = vpop.f32.mrb[0].mxu0
  %6269 = vmatprep.mubr.bf16.mxu0 0
  %6270 = vmatmul.mubr.bf16.gmra.mrb[0].mxu0 %v6221
  %v6271 = vpop.f32.mrb[0].mxu0
  %v6272 = vadd.f32 0.0, %v6271
  %v6273 = vpop.f32.mrb[0].mxu0
  %v6274 = vpop.f32.mrb[0].mxu0
  %v6275 = vpop.f32.mrb[0].mxu0
  %6276 = vdwg.mxu0
  %v6277 = vmul.f32 %v6264, 0.17677669
  %v6278 = vmul.f32 %v6267, 0.17677669
  %v6279 = vmul.f32 %v6272, 0.17677669
  %v6280 = vsel %vm70, %v6277, -1e+30
  %v6281 = vsel %vm70, %v6278, -1e+30
  %v6282 = vsel %vm70, %v6279, -1e+30
  %v6283 = vsel %vm1993, %v6280, -inf
  %6284 = vmax.xlane.f32.xlu0 %v6283
  %v6285 = vpop.xlane.xlu0 %6284
  %v6286 = vsel %vm1993, %v6281, -inf
  %6287 = vmax.xlane.f32.xlu0 %v6286
  %v6288 = vpop.xlane.xlu0 %6287
  %v6289 = vsel %vm1993, %v6282, -inf
  %6290 = vmax.xlane.f32.xlu0 %v6289
  %v6291 = vpop.xlane.xlu0 %6290
  %v6292 = vsub.f32 %v6280, %v6285
  %v6293 = vsub.f32 %v6281, %v6288
  %v6294 = vsub.f32 %v6282, %v6291
  %v6295 = vmul.f32 %v6292, 1.442695
  %v6296 = vpow.pop %v6295
  %v6297 = vmul.f32 %v6293, 1.442695
  %v6298 = vpow.pop %v6297
  %v6299 = vmul.f32 %v6294, 1.442695
  %v6300 = vpow.pop %v6299
  %v6301 = vsel %vm1993, %v6296, 0.0
  %6302 = vadd.xlane.f32.xlu0 %v6301
  %v6303 = vpop.xlane.xlu0 %6302
  %v6304 = vsel %vm1993, %v6298, 0.0
  %6305 = vadd.xlane.f32.xlu0 %v6304
  %v6306 = vpop.xlane.xlu0 %6305
  %v6307 = vsel %vm1993, %v6300, 0.0
  %6308 = vadd.xlane.f32.xlu0 %v6307
  %v6309 = vpop.xlane.xlu0 %6308
  %v6310 = vrcp.pop %v6303
  %v6311 = vrcp.pop %v6306
  %v6312 = vrcp.pop %v6309
  %v6313 = vmul.f32 %v6296, %v6310
  %v6314 = vmul.f32 %v6298, %v6311
  %v6315 = vmul.f32 %v6300, %v6312
  %v6316 = vpack.c.bf16 %v6314, %v6313
  %v6317 = vpack.c.bf16 %v6315, %v6315
  %6318 = vrot.lane.b32.xlu0 %v5699, 32
  %v6319 = vpop.permute.xlu0 %6318
  %6320 = vrot.lane.b32.xlu0 %v5702, 32
  %v6321 = vpop.permute.xlu0 %6320
  %v6324 = vsel %vm1993, %v6316, 0
  %v6327 = vsel %vm1993, %v6317, 0
  %v6330 = vsel %vm2035, %v6321, 0
  %6332 = vmatprep.subr.bf16.mxu0 0
  %6333 = vmatpush1.bf16.msra.mxu0 %v6319
  %6334 = vmatprep.subr.bf16.mxu0 0
  %6335 = vmatpush1.bf16.msra.mxu0 %v6330
  %6336 = vmatprep.subr.bf16.mxu0 0
  %6337 = vmatpush1.bf16.msra.mxu0 0
  %6338 = vmatprep.subr.bf16.mxu0 0
  %6339 = vmatpush1.bf16.msra.mxu0 0
  %6340 = vmatprep.subr.bf16.mxu0 0
  %6341 = vmatpush1.bf16.msra.mxu0 0
  %6342 = vmatprep.subr.bf16.mxu0 0
  %6343 = vmatpush1.bf16.msra.mxu0 0
  %6344 = vmatprep.subr.bf16.mxu0 0
  %6345 = vmatpush1.bf16.msra.mxu0 0
  %6346 = vmatprep.subr.bf16.mxu0 0
  %6347 = vmatpush1.bf16.msra.mxu0 0
  %6348 = vmatprep.subr.bf16.mxu0 0
  %6349 = vmatpush1.bf16.msra.mxu0 0
  %6350 = vmatprep.subr.bf16.mxu0 0
  %6351 = vmatpush1.bf16.msra.mxu0 0
  %6352 = vmatprep.subr.bf16.mxu0 0
  %6353 = vmatpush1.bf16.msra.mxu0 0
  %6354 = vmatprep.subr.bf16.mxu0 0
  %6355 = vmatpush1.bf16.msra.mxu0 0
  %6356 = vmatprep.subr.bf16.mxu0 0
  %6357 = vmatpush1.bf16.msra.mxu0 0
  %6358 = vmatprep.subr.bf16.mxu0 0
  %6359 = vmatpush1.bf16.msra.mxu0 0
  %6360 = vmatprep.subr.bf16.mxu0 0
  %6361 = vmatpush1.bf16.msra.mxu0 0
  %6362 = vmatprep.subr.bf16.mxu0 0
  %6363 = vmatpush1.bf16.msra.mxu0 0
  %6364 = vmatprep.mubr.bf16.mxu0 0
  %6365 = vmatmul.mubr.bf16.gmra.mrb[0].mxu0 %v6324
  %v6366 = vpop.f32.mrb[0].mxu0
  %v6367 = vadd.f32 0.0, %v6366
  %v6368 = vpop.f32.mrb[0].mxu0
  %v6369 = vpop.f32.mrb[0].mxu0
  %v6370 = vadd.f32 0.0, %v6369
  %v6371 = vpop.f32.mrb[0].mxu0
  %6372 = vmatprep.mubr.bf16.mxu0 0
  %6373 = vmatmul.mubr.bf16.gmra.mrb[0].mxu0 %v6327
  %v6374 = vpop.f32.mrb[0].mxu0
  %v6375 = vadd.f32 0.0, %v6374
  %v6376 = vpop.f32.mrb[0].mxu0
  %v6377 = vpop.f32.mrb[0].mxu0
  %v6378 = vpop.f32.mrb[0].mxu0
  %6379 = vdwg.mxu0
  %6383 = vrot.lane.b32.xlu0 %v6025, 32
  %v6384 = vpop.permute.xlu0 %6383
  %6385 = vrot.lane.b32.xlu0 %v6028, 32
  %v6386 = vpop.permute.xlu0 %6385
  %6387 = vrot.lane.b32.xlu0 %v6033, 32
  %v6388 = vpop.permute.xlu0 %6387
  %6395 = vrot.lane.b32.xlu0 %v6196, 64
  %v6396 = vpop.permute.xlu0 %6395
  %6397 = vrot.lane.b32.xlu0 %v6199, 64
  %v6398 = vpop.permute.xlu0 %6397
  %6399 = vrot.lane.b32.xlu0 %v6204, 64
  %v6400 = vpop.permute.xlu0 %6399
  %6407 = vrot.lane.b32.xlu0 %v6367, 96
  %v6408 = vpop.permute.xlu0 %6407
  %6409 = vrot.lane.b32.xlu0 %v6370, 96
  %v6410 = vpop.permute.xlu0 %6409
  %6411 = vrot.lane.b32.xlu0 %v6375, 96
  %v6412 = vpop.permute.xlu0 %6411
  %v6416 = vsel %vm1926, %v5848, %v6384
  %v6417 = vsel %vm1926, %v5851, %v6386
  %v6418 = vsel %vm1926, %v5856, %v6388
  %v6419 = vsel %vm2645, %v6416, %v6396
  %v6420 = vsel %vm2645, %v6417, %v6398
  %v6421 = vsel %vm2645, %v6418, %v6400
  %v6422 = vsel %vm2649, %v6419, %v6408
  %v6423 = vsel %vm2649, %v6420, %v6410
  %v6424 = vsel %vm2649, %v6421, %v6412
  %v6425 = vpack.c.bf16 %v5575, %v5569
  %v6426 = vpack.c.bf16 %v5577, %v5571
  %v6427 = vpack.c.bf16 %v5691, %v5686
  %v6428 = vpack.c.bf16 %v5579, %v5579
  %v6429 = vpack.c.bf16 %v5581, %v5581
  %v6430 = vpack.c.bf16 %v5694, %v5694
  %v6432 = vsel %vm1926, %v6425, 0
  %v6435 = vsel %vm1926, %v6428, 0
  %v6438 = vsel %vm1926, %v6426, 0
  %v6441 = vsel %vm1926, %v6429, 0
  %6443 = vmatprep.subr.bf16.mxu0 0
  %6444 = vmatpush1.bf16.xpose.msra.mxu0 %v6438
  %6445 = vmatprep.subr.bf16.mxu0 0
  %6446 = vmatpush1.bf16.xpose.msra.mxu0 %v6441
  %6447 = vmatprep.subr.bf16.mxu0 0
  %6448 = vmatpush1.bf16.xpose.msra.mxu0 0
  %6449 = vmatprep.subr.bf16.mxu0 0
  %6450 = vmatpush1.bf16.xpose.msra.mxu0 0
  %6451 = vmatprep.subr.bf16.mxu0 0
  %6452 = vmatpush1.bf16.xpose.msra.mxu0 0
  %6453 = vmatprep.subr.bf16.mxu0 0
  %6454 = vmatpush1.bf16.xpose.msra.mxu0 0
  %6455 = vmatprep.subr.bf16.mxu0 0
  %6456 = vmatpush1.bf16.xpose.msra.mxu0 0
  %6457 = vmatprep.subr.bf16.mxu0 0
  %6458 = vmatpush1.bf16.xpose.msra.mxu0 0
  %6459 = vmatprep.subr.bf16.mxu0 0
  %6460 = vmatpush1.bf16.xpose.msra.mxu0 0
  %6461 = vmatprep.subr.bf16.mxu0 0
  %6462 = vmatpush1.bf16.xpose.msra.mxu0 0
  %6463 = vmatprep.subr.bf16.mxu0 0
  %6464 = vmatpush1.bf16.xpose.msra.mxu0 0
  %6465 = vmatprep.subr.bf16.mxu0 0
  %6466 = vmatpush1.bf16.xpose.msra.mxu0 0
  %6467 = vmatprep.subr.bf16.mxu0 0
  %6468 = vmatpush1.bf16.xpose.msra.mxu0 0
  %6469 = vmatprep.subr.bf16.mxu0 0
  %6470 = vmatpush1.bf16.xpose.msra.mxu0 0
  %6471 = vmatprep.subr.bf16.mxu0 0
  %6472 = vmatpush1.bf16.xpose.msra.mxu0 0
  %6473 = vmatprep.subr.bf16.mxu0 0
  %6474 = vmatpush1.bf16.xpose.msra.mxu0 0
  %6475 = vmatprep.mubr.bf16.mxu0 0
  %6476 = vmatmul.mubr.bf16.gmra.mrb[0].mxu0 %v6432
  %v6477 = vpop.f32.mrb[0].mxu0
  %v6478 = vadd.f32 0.0, %v6477
  %v6479 = vpop.f32.mrb[0].mxu0
  %v6480 = vpop.f32.mrb[0].mxu0
  %v6481 = vadd.f32 0.0, %v6480
  %v6482 = vpop.f32.mrb[0].mxu0
  %6483 = vmatprep.mubr.bf16.mxu0 0
  %6484 = vmatmul.mubr.bf16.gmra.mrb[0].mxu0 %v6435
  %v6485 = vpop.f32.mrb[0].mxu0
  %v6486 = vadd.f32 0.0, %v6485
  %v6487 = vpop.f32.mrb[0].mxu0
  %v6488 = vpop.f32.mrb[0].mxu0
  %v6489 = vpop.f32.mrb[0].mxu0
  %6490 = vdwg.mxu0
  %v6491 = vmul.f32 %v6478, 0.17677669
  %v6492 = vmul.f32 %v6481, 0.17677669
  %v6493 = vmul.f32 %v6486, 0.17677669
  %v6494 = vsel %vm70, %v6491, -1e+30
  %v6495 = vsel %vm70, %v6492, -1e+30
  %v6496 = vsel %vm70, %v6493, -1e+30
  %v6497 = vsel %vm1993, %v6494, -inf
  %6498 = vmax.xlane.f32.xlu0 %v6497
  %v6499 = vpop.xlane.xlu0 %6498
  %v6500 = vsel %vm1993, %v6495, -inf
  %6501 = vmax.xlane.f32.xlu0 %v6500
  %v6502 = vpop.xlane.xlu0 %6501
  %v6503 = vsel %vm1993, %v6496, -inf
  %6504 = vmax.xlane.f32.xlu0 %v6503
  %v6505 = vpop.xlane.xlu0 %6504
  %v6506 = vsub.f32 %v6494, %v6499
  %v6507 = vsub.f32 %v6495, %v6502
  %v6508 = vsub.f32 %v6496, %v6505
  %v6509 = vmul.f32 %v6506, 1.442695
  %v6510 = vpow.pop %v6509
  %v6511 = vmul.f32 %v6507, 1.442695
  %v6512 = vpow.pop %v6511
  %v6513 = vmul.f32 %v6508, 1.442695
  %v6514 = vpow.pop %v6513
  %v6515 = vsel %vm1993, %v6510, 0.0
  %6516 = vadd.xlane.f32.xlu0 %v6515
  %v6517 = vpop.xlane.xlu0 %6516
  %v6518 = vsel %vm1993, %v6512, 0.0
  %6519 = vadd.xlane.f32.xlu0 %v6518
  %v6520 = vpop.xlane.xlu0 %6519
  %v6521 = vsel %vm1993, %v6514, 0.0
  %6522 = vadd.xlane.f32.xlu0 %v6521
  %v6523 = vpop.xlane.xlu0 %6522
  %v6524 = vrcp.pop %v6517
  %v6525 = vrcp.pop %v6520
  %v6526 = vrcp.pop %v6523
  %v6527 = vmul.f32 %v6510, %v6524
  %v6528 = vmul.f32 %v6512, %v6525
  %v6529 = vmul.f32 %v6514, %v6526
  %v6530 = vpack.c.bf16 %v6528, %v6527
  %v6531 = vpack.c.bf16 %v6529, %v6529
  %v6533 = vsel %vm1993, %v6530, 0
  %v6536 = vsel %vm1993, %v6531, 0
  %v6539 = vsel %vm2035, %v6430, 0
  %6541 = vmatprep.subr.bf16.mxu0 0
  %6542 = vmatpush1.bf16.msra.mxu0 %v6427
  %6543 = vmatprep.subr.bf16.mxu0 0
  %6544 = vmatpush1.bf16.msra.mxu0 %v6539
  %6545 = vmatprep.subr.bf16.mxu0 0
  %6546 = vmatpush1.bf16.msra.mxu0 0
  %6547 = vmatprep.subr.bf16.mxu0 0
  %6548 = vmatpush1.bf16.msra.mxu0 0
  %6549 = vmatprep.subr.bf16.mxu0 0
  %6550 = vmatpush1.bf16.msra.mxu0 0
  %6551 = vmatprep.subr.bf16.mxu0 0
  %6552 = vmatpush1.bf16.msra.mxu0 0
  %6553 = vmatprep.subr.bf16.mxu0 0
  %6554 = vmatpush1.bf16.msra.mxu0 0
  %6555 = vmatprep.subr.bf16.mxu0 0
  %6556 = vmatpush1.bf16.msra.mxu0 0
  %6557 = vmatprep.subr.bf16.mxu0 0
  %6558 = vmatpush1.bf16.msra.mxu0 0
  %6559 = vmatprep.subr.bf16.mxu0 0
  %6560 = vmatpush1.bf16.msra.mxu0 0
  %6561 = vmatprep.subr.bf16.mxu0 0
  %6562 = vmatpush1.bf16.msra.mxu0 0
  %6563 = vmatprep.subr.bf16.mxu0 0
  %6564 = vmatpush1.bf16.msra.mxu0 0
  %6565 = vmatprep.subr.bf16.mxu0 0
  %6566 = vmatpush1.bf16.msra.mxu0 0
  %6567 = vmatprep.subr.bf16.mxu0 0
  %6568 = vmatpush1.bf16.msra.mxu0 0
  %6569 = vmatprep.subr.bf16.mxu0 0
  %6570 = vmatpush1.bf16.msra.mxu0 0
  %6571 = vmatprep.subr.bf16.mxu0 0
  %6572 = vmatpush1.bf16.msra.mxu0 0
  %6573 = vmatprep.mubr.bf16.mxu0 0
  %6574 = vmatmul.mubr.bf16.gmra.mrb[0].mxu0 %v6533
  %v6575 = vpop.f32.mrb[0].mxu0
  %v6576 = vadd.f32 0.0, %v6575
  %v6577 = vpop.f32.mrb[0].mxu0
  %v6578 = vpop.f32.mrb[0].mxu0
  %v6579 = vadd.f32 0.0, %v6578
  %v6580 = vpop.f32.mrb[0].mxu0
  %6581 = vmatprep.mubr.bf16.mxu0 0
  %6582 = vmatmul.mubr.bf16.gmra.mrb[0].mxu0 %v6536
  %v6583 = vpop.f32.mrb[0].mxu0
  %v6584 = vadd.f32 0.0, %v6583
  %v6585 = vpop.f32.mrb[0].mxu0
  %v6586 = vpop.f32.mrb[0].mxu0
  %v6587 = vpop.f32.mrb[0].mxu0
  %6588 = vdwg.mxu0
  %6591 = vrot.lane.b32.xlu0 %v6425, 96
  %v6592 = vpop.permute.xlu0 %6591
  %6593 = vrot.lane.b32.xlu0 %v6428, 96
  %v6594 = vpop.permute.xlu0 %6593
  %6597 = vrot.lane.b32.xlu0 %v6426, 96
  %v6598 = vpop.permute.xlu0 %6597
  %6599 = vrot.lane.b32.xlu0 %v6429, 96
  %v6600 = vpop.permute.xlu0 %6599
  %v6602 = vsel %vm1926, %v6592, 0
  %v6605 = vsel %vm1926, %v6594, 0
  %v6608 = vsel %vm1926, %v6598, 0
  %v6611 = vsel %vm1926, %v6600, 0
  %6613 = vmatprep.subr.bf16.mxu0 0
  %6614 = vmatpush1.bf16.xpose.msra.mxu0 %v6608
  %6615 = vmatprep.subr.bf16.mxu0 0
  %6616 = vmatpush1.bf16.xpose.msra.mxu0 %v6611
  %6617 = vmatprep.subr.bf16.mxu0 0
  %6618 = vmatpush1.bf16.xpose.msra.mxu0 0
  %6619 = vmatprep.subr.bf16.mxu0 0
  %6620 = vmatpush1.bf16.xpose.msra.mxu0 0
  %6621 = vmatprep.subr.bf16.mxu0 0
  %6622 = vmatpush1.bf16.xpose.msra.mxu0 0
  %6623 = vmatprep.subr.bf16.mxu0 0
  %6624 = vmatpush1.bf16.xpose.msra.mxu0 0
  %6625 = vmatprep.subr.bf16.mxu0 0
  %6626 = vmatpush1.bf16.xpose.msra.mxu0 0
  %6627 = vmatprep.subr.bf16.mxu0 0
  %6628 = vmatpush1.bf16.xpose.msra.mxu0 0
  %6629 = vmatprep.subr.bf16.mxu0 0
  %6630 = vmatpush1.bf16.xpose.msra.mxu0 0
  %6631 = vmatprep.subr.bf16.mxu0 0
  %6632 = vmatpush1.bf16.xpose.msra.mxu0 0
  %6633 = vmatprep.subr.bf16.mxu0 0
  %6634 = vmatpush1.bf16.xpose.msra.mxu0 0
  %6635 = vmatprep.subr.bf16.mxu0 0
  %6636 = vmatpush1.bf16.xpose.msra.mxu0 0
  %6637 = vmatprep.subr.bf16.mxu0 0
  %6638 = vmatpush1.bf16.xpose.msra.mxu0 0
  %6639 = vmatprep.subr.bf16.mxu0 0
  %6640 = vmatpush1.bf16.xpose.msra.mxu0 0
  %6641 = vmatprep.subr.bf16.mxu0 0
  %6642 = vmatpush1.bf16.xpose.msra.mxu0 0
  %6643 = vmatprep.subr.bf16.mxu0 0
  %6644 = vmatpush1.bf16.xpose.msra.mxu0 0
  %6645 = vmatprep.mubr.bf16.mxu0 0
  %6646 = vmatmul.mubr.bf16.gmra.mrb[0].mxu0 %v6602
  %v6647 = vpop.f32.mrb[0].mxu0
  %v6648 = vadd.f32 0.0, %v6647
  %v6649 = vpop.f32.mrb[0].mxu0
  %v6650 = vpop.f32.mrb[0].mxu0
  %v6651 = vadd.f32 0.0, %v6650
  %v6652 = vpop.f32.mrb[0].mxu0
  %6653 = vmatprep.mubr.bf16.mxu0 0
  %6654 = vmatmul.mubr.bf16.gmra.mrb[0].mxu0 %v6605
  %v6655 = vpop.f32.mrb[0].mxu0
  %v6656 = vadd.f32 0.0, %v6655
  %v6657 = vpop.f32.mrb[0].mxu0
  %v6658 = vpop.f32.mrb[0].mxu0
  %v6659 = vpop.f32.mrb[0].mxu0
  %6660 = vdwg.mxu0
  %v6661 = vmul.f32 %v6648, 0.17677669
  %v6662 = vmul.f32 %v6651, 0.17677669
  %v6663 = vmul.f32 %v6656, 0.17677669
  %v6664 = vsel %vm70, %v6661, -1e+30
  %v6665 = vsel %vm70, %v6662, -1e+30
  %v6666 = vsel %vm70, %v6663, -1e+30
  %v6667 = vsel %vm1993, %v6664, -inf
  %6668 = vmax.xlane.f32.xlu0 %v6667
  %v6669 = vpop.xlane.xlu0 %6668
  %v6670 = vsel %vm1993, %v6665, -inf
  %6671 = vmax.xlane.f32.xlu0 %v6670
  %v6672 = vpop.xlane.xlu0 %6671
  %v6673 = vsel %vm1993, %v6666, -inf
  %6674 = vmax.xlane.f32.xlu0 %v6673
  %v6675 = vpop.xlane.xlu0 %6674
  %v6676 = vsub.f32 %v6664, %v6669
  %v6677 = vsub.f32 %v6665, %v6672
  %v6678 = vsub.f32 %v6666, %v6675
  %v6679 = vmul.f32 %v6676, 1.442695
  %v6680 = vpow.pop %v6679
  %v6681 = vmul.f32 %v6677, 1.442695
  %v6682 = vpow.pop %v6681
  %v6683 = vmul.f32 %v6678, 1.442695
  %v6684 = vpow.pop %v6683
  %v6685 = vsel %vm1993, %v6680, 0.0
  %6686 = vadd.xlane.f32.xlu0 %v6685
  %v6687 = vpop.xlane.xlu0 %6686
  %v6688 = vsel %vm1993, %v6682, 0.0
  %6689 = vadd.xlane.f32.xlu0 %v6688
  %v6690 = vpop.xlane.xlu0 %6689
  %v6691 = vsel %vm1993, %v6684, 0.0
  %6692 = vadd.xlane.f32.xlu0 %v6691
  %v6693 = vpop.xlane.xlu0 %6692
  %v6694 = vrcp.pop %v6687
  %v6695 = vrcp.pop %v6690
  %v6696 = vrcp.pop %v6693
  %v6697 = vmul.f32 %v6680, %v6694
  %v6698 = vmul.f32 %v6682, %v6695
  %v6699 = vmul.f32 %v6684, %v6696
  %v6700 = vpack.c.bf16 %v6698, %v6697
  %v6701 = vpack.c.bf16 %v6699, %v6699
  %6704 = vrot.lane.b32.xlu0 %v6427, 96
  %v6705 = vpop.permute.xlu0 %6704
  %6706 = vrot.lane.b32.xlu0 %v6430, 96
  %v6707 = vpop.permute.xlu0 %6706
  %v6710 = vsel %vm1993, %v6700, 0
  %v6713 = vsel %vm1993, %v6701, 0
  %v6716 = vsel %vm2035, %v6707, 0
  %6718 = vmatprep.subr.bf16.mxu0 0
  %6719 = vmatpush1.bf16.msra.mxu0 %v6705
  %6720 = vmatprep.subr.bf16.mxu0 0
  %6721 = vmatpush1.bf16.msra.mxu0 %v6716
  %6722 = vmatprep.subr.bf16.mxu0 0
  %6723 = vmatpush1.bf16.msra.mxu0 0
  %6724 = vmatprep.subr.bf16.mxu0 0
  %6725 = vmatpush1.bf16.msra.mxu0 0
  %6726 = vmatprep.subr.bf16.mxu0 0
  %6727 = vmatpush1.bf16.msra.mxu0 0
  %6728 = vmatprep.subr.bf16.mxu0 0
  %6729 = vmatpush1.bf16.msra.mxu0 0
  %6730 = vmatprep.subr.bf16.mxu0 0
  %6731 = vmatpush1.bf16.msra.mxu0 0
  %6732 = vmatprep.subr.bf16.mxu0 0
  %6733 = vmatpush1.bf16.msra.mxu0 0
  %6734 = vmatprep.subr.bf16.mxu0 0
  %6735 = vmatpush1.bf16.msra.mxu0 0
  %6736 = vmatprep.subr.bf16.mxu0 0
  %6737 = vmatpush1.bf16.msra.mxu0 0
  %6738 = vmatprep.subr.bf16.mxu0 0
  %6739 = vmatpush1.bf16.msra.mxu0 0
  %6740 = vmatprep.subr.bf16.mxu0 0
  %6741 = vmatpush1.bf16.msra.mxu0 0
  %6742 = vmatprep.subr.bf16.mxu0 0
  %6743 = vmatpush1.bf16.msra.mxu0 0
  %6744 = vmatprep.subr.bf16.mxu0 0
  %6745 = vmatpush1.bf16.msra.mxu0 0
  %6746 = vmatprep.subr.bf16.mxu0 0
  %6747 = vmatpush1.bf16.msra.mxu0 0
  %6748 = vmatprep.subr.bf16.mxu0 0
  %6749 = vmatpush1.bf16.msra.mxu0 0
  %6750 = vmatprep.mubr.bf16.mxu0 0
  %6751 = vmatmul.mubr.bf16.gmra.mrb[0].mxu0 %v6710
  %v6752 = vpop.f32.mrb[0].mxu0
  %v6753 = vadd.f32 0.0, %v6752
  %v6754 = vpop.f32.mrb[0].mxu0
  %v6755 = vpop.f32.mrb[0].mxu0
  %v6756 = vadd.f32 0.0, %v6755
  %v6757 = vpop.f32.mrb[0].mxu0
  %6758 = vmatprep.mubr.bf16.mxu0 0
  %6759 = vmatmul.mubr.bf16.gmra.mrb[0].mxu0 %v6713
  %v6760 = vpop.f32.mrb[0].mxu0
  %v6761 = vadd.f32 0.0, %v6760
  %v6762 = vpop.f32.mrb[0].mxu0
  %v6763 = vpop.f32.mrb[0].mxu0
  %v6764 = vpop.f32.mrb[0].mxu0
  %6765 = vdwg.mxu0
  %6766 = vrot.lane.b32.xlu0 %v6425, 64
  %v6767 = vpop.permute.xlu0 %6766
  %6768 = vrot.lane.b32.xlu0 %v6428, 64
  %v6769 = vpop.permute.xlu0 %6768
  %6770 = vrot.lane.b32.xlu0 %v6426, 64
  %v6771 = vpop.permute.xlu0 %6770
  %6772 = vrot.lane.b32.xlu0 %v6429, 64
  %v6773 = vpop.permute.xlu0 %6772
  %v6775 = vsel %vm1926, %v6767, 0
  %v6778 = vsel %vm1926, %v6769, 0
  %v6781 = vsel %vm1926, %v6771, 0
  %v6784 = vsel %vm1926, %v6773, 0
  %6786 = vmatprep.subr.bf16.mxu0 0
  %6787 = vmatpush1.bf16.xpose.msra.mxu0 %v6781
  %6788 = vmatprep.subr.bf16.mxu0 0
  %6789 = vmatpush1.bf16.xpose.msra.mxu0 %v6784
  %6790 = vmatprep.subr.bf16.mxu0 0
  %6791 = vmatpush1.bf16.xpose.msra.mxu0 0
  %6792 = vmatprep.subr.bf16.mxu0 0
  %6793 = vmatpush1.bf16.xpose.msra.mxu0 0
  %6794 = vmatprep.subr.bf16.mxu0 0
  %6795 = vmatpush1.bf16.xpose.msra.mxu0 0
  %6796 = vmatprep.subr.bf16.mxu0 0
  %6797 = vmatpush1.bf16.xpose.msra.mxu0 0
  %6798 = vmatprep.subr.bf16.mxu0 0
  %6799 = vmatpush1.bf16.xpose.msra.mxu0 0
  %6800 = vmatprep.subr.bf16.mxu0 0
  %6801 = vmatpush1.bf16.xpose.msra.mxu0 0
  %6802 = vmatprep.subr.bf16.mxu0 0
  %6803 = vmatpush1.bf16.xpose.msra.mxu0 0
  %6804 = vmatprep.subr.bf16.mxu0 0
  %6805 = vmatpush1.bf16.xpose.msra.mxu0 0
  %6806 = vmatprep.subr.bf16.mxu0 0
  %6807 = vmatpush1.bf16.xpose.msra.mxu0 0
  %6808 = vmatprep.subr.bf16.mxu0 0
  %6809 = vmatpush1.bf16.xpose.msra.mxu0 0
  %6810 = vmatprep.subr.bf16.mxu0 0
  %6811 = vmatpush1.bf16.xpose.msra.mxu0 0
  %6812 = vmatprep.subr.bf16.mxu0 0
  %6813 = vmatpush1.bf16.xpose.msra.mxu0 0
  %6814 = vmatprep.subr.bf16.mxu0 0
  %6815 = vmatpush1.bf16.xpose.msra.mxu0 0
  %6816 = vmatprep.subr.bf16.mxu0 0
  %6817 = vmatpush1.bf16.xpose.msra.mxu0 0
  %6818 = vmatprep.mubr.bf16.mxu0 0
  %6819 = vmatmul.mubr.bf16.gmra.mrb[0].mxu0 %v6775
  %v6820 = vpop.f32.mrb[0].mxu0
  %v6821 = vadd.f32 0.0, %v6820
  %v6822 = vpop.f32.mrb[0].mxu0
  %v6823 = vpop.f32.mrb[0].mxu0
  %v6824 = vadd.f32 0.0, %v6823
  %v6825 = vpop.f32.mrb[0].mxu0
  %6826 = vmatprep.mubr.bf16.mxu0 0
  %6827 = vmatmul.mubr.bf16.gmra.mrb[0].mxu0 %v6778
  %v6828 = vpop.f32.mrb[0].mxu0
  %v6829 = vadd.f32 0.0, %v6828
  %v6830 = vpop.f32.mrb[0].mxu0
  %v6831 = vpop.f32.mrb[0].mxu0
  %v6832 = vpop.f32.mrb[0].mxu0
  %6833 = vdwg.mxu0
  %v6834 = vmul.f32 %v6821, 0.17677669
  %v6835 = vmul.f32 %v6824, 0.17677669
  %v6836 = vmul.f32 %v6829, 0.17677669
  %v6837 = vsel %vm70, %v6834, -1e+30
  %v6838 = vsel %vm70, %v6835, -1e+30
  %v6839 = vsel %vm70, %v6836, -1e+30
  %v6840 = vsel %vm1993, %v6837, -inf
  %6841 = vmax.xlane.f32.xlu0 %v6840
  %v6842 = vpop.xlane.xlu0 %6841
  %v6843 = vsel %vm1993, %v6838, -inf
  %6844 = vmax.xlane.f32.xlu0 %v6843
  %v6845 = vpop.xlane.xlu0 %6844
  %v6846 = vsel %vm1993, %v6839, -inf
  %6847 = vmax.xlane.f32.xlu0 %v6846
  %v6848 = vpop.xlane.xlu0 %6847
  %v6849 = vsub.f32 %v6837, %v6842
  %v6850 = vsub.f32 %v6838, %v6845
  %v6851 = vsub.f32 %v6839, %v6848
  %v6852 = vmul.f32 %v6849, 1.442695
  %v6853 = vpow.pop %v6852
  %v6854 = vmul.f32 %v6850, 1.442695
  %v6855 = vpow.pop %v6854
  %v6856 = vmul.f32 %v6851, 1.442695
  %v6857 = vpow.pop %v6856
  %v6858 = vsel %vm1993, %v6853, 0.0
  %6859 = vadd.xlane.f32.xlu0 %v6858
  %v6860 = vpop.xlane.xlu0 %6859
  %v6861 = vsel %vm1993, %v6855, 0.0
  %6862 = vadd.xlane.f32.xlu0 %v6861
  %v6863 = vpop.xlane.xlu0 %6862
  %v6864 = vsel %vm1993, %v6857, 0.0
  %6865 = vadd.xlane.f32.xlu0 %v6864
  %v6866 = vpop.xlane.xlu0 %6865
  %v6867 = vrcp.pop %v6860
  %v6868 = vrcp.pop %v6863
  %v6869 = vrcp.pop %v6866
  %v6870 = vmul.f32 %v6853, %v6867
  %v6871 = vmul.f32 %v6855, %v6868
  %v6872 = vmul.f32 %v6857, %v6869
  %v6873 = vpack.c.bf16 %v6871, %v6870
  %v6874 = vpack.c.bf16 %v6872, %v6872
  %6875 = vrot.lane.b32.xlu0 %v6427, 64
  %v6876 = vpop.permute.xlu0 %6875
  %6877 = vrot.lane.b32.xlu0 %v6430, 64
  %v6878 = vpop.permute.xlu0 %6877
  %v6881 = vsel %vm1993, %v6873, 0
  %v6884 = vsel %vm1993, %v6874, 0
  %v6887 = vsel %vm2035, %v6878, 0
  %6889 = vmatprep.subr.bf16.mxu0 0
  %6890 = vmatpush1.bf16.msra.mxu0 %v6876
  %6891 = vmatprep.subr.bf16.mxu0 0
  %6892 = vmatpush1.bf16.msra.mxu0 %v6887
  %6893 = vmatprep.subr.bf16.mxu0 0
  %6894 = vmatpush1.bf16.msra.mxu0 0
  %6895 = vmatprep.subr.bf16.mxu0 0
  %6896 = vmatpush1.bf16.msra.mxu0 0
  %6897 = vmatprep.subr.bf16.mxu0 0
  %6898 = vmatpush1.bf16.msra.mxu0 0
  %6899 = vmatprep.subr.bf16.mxu0 0
  %6900 = vmatpush1.bf16.msra.mxu0 0
  %6901 = vmatprep.subr.bf16.mxu0 0
  %6902 = vmatpush1.bf16.msra.mxu0 0
  %6903 = vmatprep.subr.bf16.mxu0 0
  %6904 = vmatpush1.bf16.msra.mxu0 0
  %6905 = vmatprep.subr.bf16.mxu0 0
  %6906 = vmatpush1.bf16.msra.mxu0 0
  %6907 = vmatprep.subr.bf16.mxu0 0
  %6908 = vmatpush1.bf16.msra.mxu0 0
  %6909 = vmatprep.subr.bf16.mxu0 0
  %6910 = vmatpush1.bf16.msra.mxu0 0
  %6911 = vmatprep.subr.bf16.mxu0 0
  %6912 = vmatpush1.bf16.msra.mxu0 0
  %6913 = vmatprep.subr.bf16.mxu0 0
  %6914 = vmatpush1.bf16.msra.mxu0 0
  %6915 = vmatprep.subr.bf16.mxu0 0
  %6916 = vmatpush1.bf16.msra.mxu0 0
  %6917 = vmatprep.subr.bf16.mxu0 0
  %6918 = vmatpush1.bf16.msra.mxu0 0
  %6919 = vmatprep.subr.bf16.mxu0 0
  %6920 = vmatpush1.bf16.msra.mxu0 0
  %6921 = vmatprep.mubr.bf16.mxu0 0
  %6922 = vmatmul.mubr.bf16.gmra.mrb[0].mxu0 %v6881
  %v6923 = vpop.f32.mrb[0].mxu0
  %v6924 = vadd.f32 0.0, %v6923
  %v6925 = vpop.f32.mrb[0].mxu0
  %v6926 = vpop.f32.mrb[0].mxu0
  %v6927 = vadd.f32 0.0, %v6926
  %v6928 = vpop.f32.mrb[0].mxu0
  %6929 = vmatprep.mubr.bf16.mxu0 0
  %6930 = vmatmul.mubr.bf16.gmra.mrb[0].mxu0 %v6884
  %v6931 = vpop.f32.mrb[0].mxu0
  %v6932 = vadd.f32 0.0, %v6931
  %v6933 = vpop.f32.mrb[0].mxu0
  %v6934 = vpop.f32.mrb[0].mxu0
  %v6935 = vpop.f32.mrb[0].mxu0
  %6936 = vdwg.mxu0
  %6937 = vrot.lane.b32.xlu0 %v6425, 32
  %v6938 = vpop.permute.xlu0 %6937
  %6939 = vrot.lane.b32.xlu0 %v6428, 32
  %v6940 = vpop.permute.xlu0 %6939
  %6941 = vrot.lane.b32.xlu0 %v6426, 32
  %v6942 = vpop.permute.xlu0 %6941
  %6943 = vrot.lane.b32.xlu0 %v6429, 32
  %v6944 = vpop.permute.xlu0 %6943
  %v6946 = vsel %vm1926, %v6938, 0
  %v6949 = vsel %vm1926, %v6940, 0
  %v6952 = vsel %vm1926, %v6942, 0
  %v6955 = vsel %vm1926, %v6944, 0
  %6957 = vmatprep.subr.bf16.mxu0 0
  %6958 = vmatpush1.bf16.xpose.msra.mxu0 %v6952
  %6959 = vmatprep.subr.bf16.mxu0 0
  %6960 = vmatpush1.bf16.xpose.msra.mxu0 %v6955
  %6961 = vmatprep.subr.bf16.mxu0 0
  %6962 = vmatpush1.bf16.xpose.msra.mxu0 0
  %6963 = vmatprep.subr.bf16.mxu0 0
  %6964 = vmatpush1.bf16.xpose.msra.mxu0 0
  %6965 = vmatprep.subr.bf16.mxu0 0
  %6966 = vmatpush1.bf16.xpose.msra.mxu0 0
  %6967 = vmatprep.subr.bf16.mxu0 0
  %6968 = vmatpush1.bf16.xpose.msra.mxu0 0
  %6969 = vmatprep.subr.bf16.mxu0 0
  %6970 = vmatpush1.bf16.xpose.msra.mxu0 0
  %6971 = vmatprep.subr.bf16.mxu0 0
  %6972 = vmatpush1.bf16.xpose.msra.mxu0 0
  %6973 = vmatprep.subr.bf16.mxu0 0
  %6974 = vmatpush1.bf16.xpose.msra.mxu0 0
  %6975 = vmatprep.subr.bf16.mxu0 0
  %6976 = vmatpush1.bf16.xpose.msra.mxu0 0
  %6977 = vmatprep.subr.bf16.mxu0 0
  %6978 = vmatpush1.bf16.xpose.msra.mxu0 0
  %6979 = vmatprep.subr.bf16.mxu0 0
  %6980 = vmatpush1.bf16.xpose.msra.mxu0 0
  %6981 = vmatprep.subr.bf16.mxu0 0
  %6982 = vmatpush1.bf16.xpose.msra.mxu0 0
  %6983 = vmatprep.subr.bf16.mxu0 0
  %6984 = vmatpush1.bf16.xpose.msra.mxu0 0
  %6985 = vmatprep.subr.bf16.mxu0 0
  %6986 = vmatpush1.bf16.xpose.msra.mxu0 0
  %6987 = vmatprep.subr.bf16.mxu0 0
  %6988 = vmatpush1.bf16.xpose.msra.mxu0 0
  %6989 = vmatprep.mubr.bf16.mxu0 0
  %6990 = vmatmul.mubr.bf16.gmra.mrb[0].mxu0 %v6946
  %v6991 = vpop.f32.mrb[0].mxu0
  %v6992 = vadd.f32 0.0, %v6991
  %v6993 = vpop.f32.mrb[0].mxu0
  %v6994 = vpop.f32.mrb[0].mxu0
  %v6995 = vadd.f32 0.0, %v6994
  %v6996 = vpop.f32.mrb[0].mxu0
  %6997 = vmatprep.mubr.bf16.mxu0 0
  %6998 = vmatmul.mubr.bf16.gmra.mrb[0].mxu0 %v6949
  %v6999 = vpop.f32.mrb[0].mxu0
  %v7000 = vadd.f32 0.0, %v6999
  %v7001 = vpop.f32.mrb[0].mxu0
  %v7002 = vpop.f32.mrb[0].mxu0
  %v7003 = vpop.f32.mrb[0].mxu0
  %7004 = vdwg.mxu0
  %v7005 = vmul.f32 %v6992, 0.17677669
  %v7006 = vmul.f32 %v6995, 0.17677669
  %v7007 = vmul.f32 %v7000, 0.17677669
  %v7008 = vsel %vm70, %v7005, -1e+30
  %v7009 = vsel %vm70, %v7006, -1e+30
  %v7010 = vsel %vm70, %v7007, -1e+30
  %v7011 = vsel %vm1993, %v7008, -inf
  %7012 = vmax.xlane.f32.xlu0 %v7011
  %v7013 = vpop.xlane.xlu0 %7012
  %v7014 = vsel %vm1993, %v7009, -inf
  %7015 = vmax.xlane.f32.xlu0 %v7014
  %v7016 = vpop.xlane.xlu0 %7015
  %v7017 = vsel %vm1993, %v7010, -inf
  %7018 = vmax.xlane.f32.xlu0 %v7017
  %v7019 = vpop.xlane.xlu0 %7018
  %v7020 = vsub.f32 %v7008, %v7013
  %v7021 = vsub.f32 %v7009, %v7016
  %v7022 = vsub.f32 %v7010, %v7019
  %v7023 = vmul.f32 %v7020, 1.442695
  %v7024 = vpow.pop %v7023
  %v7025 = vmul.f32 %v7021, 1.442695
  %v7026 = vpow.pop %v7025
  %v7027 = vmul.f32 %v7022, 1.442695
  %v7028 = vpow.pop %v7027
  %v7029 = vsel %vm1993, %v7024, 0.0
  %7030 = vadd.xlane.f32.xlu0 %v7029
  %v7031 = vpop.xlane.xlu0 %7030
  %v7032 = vsel %vm1993, %v7026, 0.0
  %7033 = vadd.xlane.f32.xlu0 %v7032
  %v7034 = vpop.xlane.xlu0 %7033
  %v7035 = vsel %vm1993, %v7028, 0.0
  %7036 = vadd.xlane.f32.xlu0 %v7035
  %v7037 = vpop.xlane.xlu0 %7036
  %v7038 = vrcp.pop %v7031
  %v7039 = vrcp.pop %v7034
  %v7040 = vrcp.pop %v7037
  %v7041 = vmul.f32 %v7024, %v7038
  %v7042 = vmul.f32 %v7026, %v7039
  %v7043 = vmul.f32 %v7028, %v7040
  %v7044 = vpack.c.bf16 %v7042, %v7041
  %v7045 = vpack.c.bf16 %v7043, %v7043
  %7046 = vrot.lane.b32.xlu0 %v6427, 32
  %v7047 = vpop.permute.xlu0 %7046
  %7048 = vrot.lane.b32.xlu0 %v6430, 32
  %v7049 = vpop.permute.xlu0 %7048
  %v7052 = vsel %vm1993, %v7044, 0
  %v7055 = vsel %vm1993, %v7045, 0
  %v7058 = vsel %vm2035, %v7049, 0
  %7060 = vmatprep.subr.bf16.mxu0 0
  %7061 = vmatpush1.bf16.msra.mxu0 %v7047
  %7062 = vmatprep.subr.bf16.mxu0 0
  %7063 = vmatpush1.bf16.msra.mxu0 %v7058
  %7064 = vmatprep.subr.bf16.mxu0 0
  %7065 = vmatpush1.bf16.msra.mxu0 0
  %7066 = vmatprep.subr.bf16.mxu0 0
  %7067 = vmatpush1.bf16.msra.mxu0 0
  %7068 = vmatprep.subr.bf16.mxu0 0
  %7069 = vmatpush1.bf16.msra.mxu0 0
  %7070 = vmatprep.subr.bf16.mxu0 0
  %7071 = vmatpush1.bf16.msra.mxu0 0
  %7072 = vmatprep.subr.bf16.mxu0 0
  %7073 = vmatpush1.bf16.msra.mxu0 0
  %7074 = vmatprep.subr.bf16.mxu0 0
  %7075 = vmatpush1.bf16.msra.mxu0 0
  %7076 = vmatprep.subr.bf16.mxu0 0
  %7077 = vmatpush1.bf16.msra.mxu0 0
  %7078 = vmatprep.subr.bf16.mxu0 0
  %7079 = vmatpush1.bf16.msra.mxu0 0
  %7080 = vmatprep.subr.bf16.mxu0 0
  %7081 = vmatpush1.bf16.msra.mxu0 0
  %7082 = vmatprep.subr.bf16.mxu0 0
  %7083 = vmatpush1.bf16.msra.mxu0 0
  %7084 = vmatprep.subr.bf16.mxu0 0
  %7085 = vmatpush1.bf16.msra.mxu0 0
  %7086 = vmatprep.subr.bf16.mxu0 0
  %7087 = vmatpush1.bf16.msra.mxu0 0
  %7088 = vmatprep.subr.bf16.mxu0 0
  %7089 = vmatpush1.bf16.msra.mxu0 0
  %7090 = vmatprep.subr.bf16.mxu0 0
  %7091 = vmatpush1.bf16.msra.mxu0 0
  %7092 = vmatprep.mubr.bf16.mxu0 0
  %7093 = vmatmul.mubr.bf16.gmra.mrb[0].mxu0 %v7052
  %v7094 = vpop.f32.mrb[0].mxu0
  %v7095 = vadd.f32 0.0, %v7094
  %v7096 = vpop.f32.mrb[0].mxu0
  %v7097 = vpop.f32.mrb[0].mxu0
  %v7098 = vadd.f32 0.0, %v7097
  %v7099 = vpop.f32.mrb[0].mxu0
  %7100 = vmatprep.mubr.bf16.mxu0 0
  %7101 = vmatmul.mubr.bf16.gmra.mrb[0].mxu0 %v7055
  %v7102 = vpop.f32.mrb[0].mxu0
  %v7103 = vadd.f32 0.0, %v7102
  %v7104 = vpop.f32.mrb[0].mxu0
  %v7105 = vpop.f32.mrb[0].mxu0
  %v7106 = vpop.f32.mrb[0].mxu0
  %7107 = vdwg.mxu0
  %7111 = vrot.lane.b32.xlu0 %v6753, 32
  %v7112 = vpop.permute.xlu0 %7111
  %7113 = vrot.lane.b32.xlu0 %v6756, 32
  %v7114 = vpop.permute.xlu0 %7113
  %7115 = vrot.lane.b32.xlu0 %v6761, 32
  %v7116 = vpop.permute.xlu0 %7115
  %7123 = vrot.lane.b32.xlu0 %v6924, 64
  %v7124 = vpop.permute.xlu0 %7123
  %7125 = vrot.lane.b32.xlu0 %v6927, 64
  %v7126 = vpop.permute.xlu0 %7125
  %7127 = vrot.lane.b32.xlu0 %v6932, 64
  %v7128 = vpop.permute.xlu0 %7127
  %7135 = vrot.lane.b32.xlu0 %v7095, 96
  %v7136 = vpop.permute.xlu0 %7135
  %7137 = vrot.lane.b32.xlu0 %v7098, 96
  %v7138 = vpop.permute.xlu0 %7137
  %7139 = vrot.lane.b32.xlu0 %v7103, 96
  %v7140 = vpop.permute.xlu0 %7139
  %v7144 = vsel %vm1926, %v6576, %v7112
  %v7145 = vsel %vm1926, %v6579, %v7114
  %v7146 = vsel %vm1926, %v6584, %v7116
  %v7147 = vsel %vm2645, %v7144, %v7124
  %v7148 = vsel %vm2645, %v7145, %v7126
  %v7149 = vsel %vm2645, %v7146, %v7128
  %v7150 = vsel %vm2649, %v7147, %v7136
  %v7151 = vsel %vm2649, %v7148, %v7138
  %v7152 = vsel %vm2649, %v7149, %v7140
  %s7153 = scalar_lea.vmem %s7, 192
  %v7154 = vld [vmem:[%s7153] sm:$0xff]
  %v7155 = vld [vmem:[%s7153 + $0x8] sm:$0xf]
  %v7156 = vld [vmem:[%s7153 + $0xc] sm:$0xff]
  %v7157 = vld [vmem:[%s7153 + $0x14] sm:$0xf]
  %v7158 = vld [vmem:[%s7153 + $0x18] sm:$0xff]
  %v7159 = vld [vmem:[%s7153 + $0x20] sm:$0xf]
  %v7160 = vld [vmem:[%s7153 + $0x24] sm:$0xff]
  %v7161 = vld [vmem:[%s7153 + $0x2c] sm:$0xf]
  %v7162 = vld [vmem:[%s7153 + $0x30] sm:$0xff]
  %v7163 = vld [vmem:[%s7153 + $0x38] sm:$0xf]
  %v7164 = vld [vmem:[%s7153 + $0x3c] sm:$0xff]
  %v7165 = vld [vmem:[%s7153 + $0x44] sm:$0xf]
  %v7166 = vld [vmem:[%s7153 + $0x48] sm:$0xff]
  %v7167 = vld [vmem:[%s7153 + $0x50] sm:$0xf]
  %v7168 = vld [vmem:[%s7153 + $0x54] sm:$0xff]
  %v7169 = vld [vmem:[%s7153 + $0x5c] sm:$0xf]
  %v7170 = vld [vmem:[%s7153 + $0x60] sm:$0xff]
  %v7171 = vld [vmem:[%s7153 + $0x68] sm:$0xf]
  %v7172 = vld [vmem:[%s7153 + $0x6c] sm:$0xff]
  %v7173 = vld [vmem:[%s7153 + $0x74] sm:$0xf]
  %v7174 = vld [vmem:[%s7153 + $0x78] sm:$0xff]
  %v7175 = vld [vmem:[%s7153 + $0x80] sm:$0xf]
  %v7176 = vld [vmem:[%s7153 + $0x84] sm:$0xff]
  %v7177 = vld [vmem:[%s7153 + $0x8c] sm:$0xf]
  %v7178 = vld [vmem:[%s7153 + $0x90] sm:$0xff]
  %v7179 = vld [vmem:[%s7153 + $0x98] sm:$0xf]
  %v7180 = vld [vmem:[%s7153 + $0x9c] sm:$0xff]
  %v7181 = vld [vmem:[%s7153 + $0xa4] sm:$0xf]
  %v7182 = vld [vmem:[%s7153 + $0xa8] sm:$0xff]
  %v7183 = vld [vmem:[%s7153 + $0xb0] sm:$0xf]
  %v7184 = vld [vmem:[%s7153 + $0xb4] sm:$0xff]
  %v7185 = vld [vmem:[%s7153 + $0xbc] sm:$0xf]
  %v7186 = vpack.c.bf16 %v6423, %v6422
  %v7187 = vpack.c.bf16 %v7150, %v6424
  %v7188 = vpack.c.bf16 %v7152, %v7151
  %v7221 = vunpack.c.l.b16 %v7154
  %v7222 = vunpack.c.h.b16 %v7154
  %v7223 = vunpack.c.l.b16 %v7155
  %v7224 = vunpack.c.l.b16 %v7156
  %v7225 = vunpack.c.h.b16 %v7156
  %v7226 = vunpack.c.l.b16 %v7157
  %v7227 = vunpack.c.l.b16 %v7158
  %v7228 = vunpack.c.h.b16 %v7158
  %v7229 = vunpack.c.l.b16 %v7159
  %v7230 = vunpack.c.l.b16 %v7160
  %v7231 = vunpack.c.h.b16 %v7160
  %v7232 = vunpack.c.l.b16 %v7161
  %v7233 = vunpack.c.l.b16 %v7162
  %v7234 = vunpack.c.h.b16 %v7162
  %v7235 = vunpack.c.l.b16 %v7163
  %v7236 = vunpack.c.l.b16 %v7164
  %v7237 = vunpack.c.h.b16 %v7164
  %v7238 = vunpack.c.l.b16 %v7165
  %v7239 = vunpack.c.l.b16 %v7166
  %v7240 = vunpack.c.h.b16 %v7166
  %v7241 = vunpack.c.l.b16 %v7167
  %v7242 = vunpack.c.l.b16 %v7168
  %v7243 = vunpack.c.h.b16 %v7168
  %v7244 = vunpack.c.l.b16 %v7169
  %v7245 = vunpack.c.l.b16 %v7170
  %v7246 = vunpack.c.h.b16 %v7170
  %v7247 = vunpack.c.l.b16 %v7171
  %v7248 = vunpack.c.l.b16 %v7172
  %v7249 = vunpack.c.h.b16 %v7172
  %v7250 = vunpack.c.l.b16 %v7173
  %v7251 = vunpack.c.l.b16 %v7174
  %v7252 = vunpack.c.h.b16 %v7174
  %v7253 = vunpack.c.l.b16 %v7175
  %v7254 = vunpack.c.l.b16 %v7176
  %v7255 = vunpack.c.h.b16 %v7176
  %v7256 = vunpack.c.l.b16 %v7177
  %v7257 = vunpack.c.l.b16 %v7178
  %v7258 = vunpack.c.h.b16 %v7178
  %v7259 = vunpack.c.l.b16 %v7179
  %v7260 = vunpack.c.l.b16 %v7180
  %v7261 = vunpack.c.h.b16 %v7180
  %v7262 = vunpack.c.l.b16 %v7181
  %v7263 = vunpack.c.l.b16 %v7182
  %v7264 = vunpack.c.h.b16 %v7182
  %v7265 = vunpack.c.l.b16 %v7183
  %v7266 = vunpack.c.l.b16 %v7184
  %v7267 = vunpack.c.h.b16 %v7184
  %v7268 = vunpack.c.l.b16 %v7185
  %v7269 = vpack.c.b16 %v7224, %v7221
  %v7270 = vpack.c.b16 %v7225, %v7222
  %v7271 = vpack.c.b16 %v7226, %v7223
  %v7272 = vpack.c.b16 %v7230, %v7227
  %v7273 = vpack.c.b16 %v7231, %v7228
  %v7274 = vpack.c.b16 %v7232, %v7229
  %v7275 = vpack.c.b16 %v7236, %v7233
  %v7276 = vpack.c.b16 %v7237, %v7234
  %v7277 = vpack.c.b16 %v7238, %v7235
  %v7278 = vpack.c.b16 %v7242, %v7239
  %v7279 = vpack.c.b16 %v7243, %v7240
  %v7280 = vpack.c.b16 %v7244, %v7241
  %v7281 = vpack.c.b16 %v7248, %v7245
  %v7282 = vpack.c.b16 %v7249, %v7246
  %v7283 = vpack.c.b16 %v7250, %v7247
  %v7284 = vpack.c.b16 %v7254, %v7251
  %v7285 = vpack.c.b16 %v7255, %v7252
  %v7286 = vpack.c.b16 %v7256, %v7253
  %v7287 = vpack.c.b16 %v7260, %v7257
  %v7288 = vpack.c.b16 %v7261, %v7258
  %v7289 = vpack.c.b16 %v7262, %v7259
  %v7290 = vpack.c.b16 %v7266, %v7263
  %v7291 = vpack.c.b16 %v7267, %v7264
  %v7292 = vpack.c.b16 %v7268, %v7265
  %7317 = vmatprep.subr.bf16.mxu0 %v7270
  %7318 = vmatpush1.bf16.msra.mxu0 %v7269
  %7319 = vmatprep.subr.bf16.mxu0 %v7273
  %7320 = vmatpush1.bf16.msra.mxu0 %v7272
  %7321 = vmatprep.subr.bf16.mxu0 %v7276
  %7322 = vmatpush1.bf16.msra.mxu0 %v7275
  %7323 = vmatprep.subr.bf16.mxu0 %v7279
  %7324 = vmatpush1.bf16.msra.mxu0 %v7278
  %7325 = vmatprep.subr.bf16.mxu0 %v7282
  %7326 = vmatpush1.bf16.msra.mxu0 %v7281
  %7327 = vmatprep.subr.bf16.mxu0 %v7285
  %7328 = vmatpush1.bf16.msra.mxu0 %v7284
  %7329 = vmatprep.subr.bf16.mxu0 %v7288
  %7330 = vmatpush1.bf16.msra.mxu0 %v7287
  %7331 = vmatprep.subr.bf16.mxu0 %v7291
  %7332 = vmatpush1.bf16.msra.mxu0 %v7290
  %7333 = vmatprep.subr.bf16.mxu0 0
  %7334 = vmatpush1.bf16.msra.mxu0 0
  %7335 = vmatprep.subr.bf16.mxu0 0
  %7336 = vmatpush1.bf16.msra.mxu0 0
  %7337 = vmatprep.subr.bf16.mxu0 0
  %7338 = vmatpush1.bf16.msra.mxu0 0
  %7339 = vmatprep.subr.bf16.mxu0 0
  %7340 = vmatpush1.bf16.msra.mxu0 0
  %7341 = vmatprep.subr.bf16.mxu0 0
  %7342 = vmatpush1.bf16.msra.mxu0 0
  %7343 = vmatprep.subr.bf16.mxu0 0
  %7344 = vmatpush1.bf16.msra.mxu0 0
  %7345 = vmatprep.subr.bf16.mxu0 0
  %7346 = vmatpush1.bf16.msra.mxu0 0
  %7347 = vmatprep.subr.bf16.mxu0 0
  %7348 = vmatpush1.bf16.msra.mxu0 0
  %7349 = vmatprep.mubr.bf16.mxu0 0
  %7350 = vmatmul.mubr.bf16.gmra.mrb[0].mxu0 %v7186
  %v7351 = vpop.f32.mrb[0].mxu0
  %v7352 = vadd.f32 0.0, %v7351
  %v7353 = vpop.f32.mrb[0].mxu0
  %v7354 = vadd.f32 0.0, %v7353
  %v7355 = vpop.f32.mrb[0].mxu0
  %v7356 = vadd.f32 0.0, %v7355
  %v7357 = vpop.f32.mrb[0].mxu0
  %v7358 = vadd.f32 0.0, %v7357
  %7359 = vmatprep.mubr.bf16.mxu0 0
  %7360 = vmatmul.mubr.bf16.gmra.mrb[0].mxu0 %v7187
  %v7361 = vpop.f32.mrb[0].mxu0
  %v7362 = vadd.f32 0.0, %v7361
  %v7363 = vpop.f32.mrb[0].mxu0
  %v7364 = vadd.f32 0.0, %v7363
  %v7365 = vpop.f32.mrb[0].mxu0
  %v7366 = vadd.f32 0.0, %v7365
  %v7367 = vpop.f32.mrb[0].mxu0
  %v7368 = vadd.f32 0.0, %v7367
  %7369 = vmatprep.mubr.bf16.mxu0 0
  %7370 = vmatmul.mubr.bf16.gmra.mrb[0].mxu0 %v7188
  %v7371 = vpop.f32.mrb[0].mxu0
  %v7372 = vadd.f32 0.0, %v7371
  %v7373 = vpop.f32.mrb[0].mxu0
  %v7374 = vadd.f32 0.0, %v7373
  %v7375 = vpop.f32.mrb[0].mxu0
  %v7376 = vadd.f32 0.0, %v7375
  %v7377 = vpop.f32.mrb[0].mxu0
  %v7378 = vadd.f32 0.0, %v7377
  %7379 = vdwg.mxu0
  %7380 = vmatprep.subr.bf16.mxu0 0
  %7381 = vmatpush1.bf16.msra.mxu0 %v7271
  %7382 = vmatprep.subr.bf16.mxu0 0
  %7383 = vmatpush1.bf16.msra.mxu0 %v7274
  %7384 = vmatprep.subr.bf16.mxu0 0
  %7385 = vmatpush1.bf16.msra.mxu0 %v7277
  %7386 = vmatprep.subr.bf16.mxu0 0
  %7387 = vmatpush1.bf16.msra.mxu0 %v7280
  %7388 = vmatprep.subr.bf16.mxu0 0
  %7389 = vmatpush1.bf16.msra.mxu0 %v7283
  %7390 = vmatprep.subr.bf16.mxu0 0
  %7391 = vmatpush1.bf16.msra.mxu0 %v7286
  %7392 = vmatprep.subr.bf16.mxu0 0
  %7393 = vmatpush1.bf16.msra.mxu0 %v7289
  %7394 = vmatprep.subr.bf16.mxu0 0
  %7395 = vmatpush1.bf16.msra.mxu0 %v7292
  %7396 = vmatprep.subr.bf16.mxu0 0
  %7397 = vmatpush1.bf16.msra.mxu0 0
  %7398 = vmatprep.subr.bf16.mxu0 0
  %7399 = vmatpush1.bf16.msra.mxu0 0
  %7400 = vmatprep.subr.bf16.mxu0 0
  %7401 = vmatpush1.bf16.msra.mxu0 0
  %7402 = vmatprep.subr.bf16.mxu0 0
  %7403 = vmatpush1.bf16.msra.mxu0 0
  %7404 = vmatprep.subr.bf16.mxu0 0
  %7405 = vmatpush1.bf16.msra.mxu0 0
  %7406 = vmatprep.subr.bf16.mxu0 0
  %7407 = vmatpush1.bf16.msra.mxu0 0
  %7408 = vmatprep.subr.bf16.mxu0 0
  %7409 = vmatpush1.bf16.msra.mxu0 0
  %7410 = vmatprep.subr.bf16.mxu0 0
  %7411 = vmatpush1.bf16.msra.mxu0 0
  %7412 = vmatprep.mubr.bf16.mxu0 0
  %7413 = vmatmul.mubr.bf16.gmra.mrb[0].mxu0 %v7186
  %v7414 = vpop.f32.mrb[0].mxu0
  %v7415 = vadd.f32 0.0, %v7414
  %v7416 = vpop.f32.mrb[0].mxu0
  %v7417 = vpop.f32.mrb[0].mxu0
  %v7418 = vadd.f32 0.0, %v7417
  %v7419 = vpop.f32.mrb[0].mxu0
  %7420 = vmatprep.mubr.bf16.mxu0 0
  %7421 = vmatmul.mubr.bf16.gmra.mrb[0].mxu0 %v7187
  %v7422 = vpop.f32.mrb[0].mxu0
  %v7423 = vadd.f32 0.0, %v7422
  %v7424 = vpop.f32.mrb[0].mxu0
  %v7425 = vpop.f32.mrb[0].mxu0
  %v7426 = vadd.f32 0.0, %v7425
  %v7427 = vpop.f32.mrb[0].mxu0
  %7428 = vmatprep.mubr.bf16.mxu0 0
  %7429 = vmatmul.mubr.bf16.gmra.mrb[0].mxu0 %v7188
  %v7430 = vpop.f32.mrb[0].mxu0
  %v7431 = vadd.f32 0.0, %v7430
  %v7432 = vpop.f32.mrb[0].mxu0
  %v7433 = vpop.f32.mrb[0].mxu0
  %v7434 = vadd.f32 0.0, %v7433
  %v7435 = vpop.f32.mrb[0].mxu0
  %7436 = vdwg.mxu0
  %v7437 = vadd.f32 %v4733, %v7352
  %v7438 = vadd.f32 %v4734, %v7354
  %v7439 = vadd.f32 %v4735, %v7415
  %v7440 = vadd.f32 %v4736, %v7356
  %v7441 = vadd.f32 %v4737, %v7358
  %v7442 = vadd.f32 %v4738, %v7418
  %v7443 = vadd.f32 %v4739, %v7362
  %v7444 = vadd.f32 %v4740, %v7364
  %v7445 = vadd.f32 %v4741, %v7423
  %v7446 = vadd.f32 %v4742, %v7366
  %v7447 = vadd.f32 %v4743, %v7368
  %v7448 = vadd.f32 %v4744, %v7426
  %v7449 = vadd.f32 %v4745, %v7372
  %v7450 = vadd.f32 %v4746, %v7374
  %v7451 = vadd.f32 %v4747, %v7431
  %v7452 = vadd.f32 %v4748, %v7376
  %v7453 = vadd.f32 %v4749, %v7378
  %v7454 = vadd.f32 %v4750, %v7434
  %s7455 = scalar_lea.vmem %s8, 3
  %v7456 = vld [vmem:[%s7455] sm:$0x7]
  %v7458 = vlaneseq
  %v7459 = vshrl.u32 %v7458, 7
  %v7460 = vsub.s32 0, %v7459
  %v7461 = vrot.slane %v7456, %v7460
  %v7462 = vlaneseq
  %v7463 = vshrl.u32 %v7462, 7
  %v7464 = vsub.s32 1, %v7463
  %v7465 = vrot.slane %v7456, %v7464
  %v7466 = vlaneseq
  %v7467 = vshrl.u32 %v7466, 7
  %v7468 = vsub.s32 2, %v7467
  %v7469 = vrot.slane %v7456, %v7468
  %v7473 = vadd.f32 %v7437, %v7461
  %v7474 = vadd.f32 %v7438, %v7465
  %v7475 = vadd.f32 %v7439, %v7469
  %v7476 = vadd.f32 %v7440, %v7461
  %v7477 = vadd.f32 %v7441, %v7465
  %v7478 = vadd.f32 %v7442, %v7469
  %v7479 = vadd.f32 %v7443, %v7461
  %v7480 = vadd.f32 %v7444, %v7465
  %v7481 = vadd.f32 %v7445, %v7469
  %v7482 = vadd.f32 %v7446, %v7461
  %v7483 = vadd.f32 %v7447, %v7465
  %v7484 = vadd.f32 %v7448, %v7469
  %v7485 = vadd.f32 %v7449, %v7461
  %v7486 = vadd.f32 %v7450, %v7465
  %v7487 = vadd.f32 %v7451, %v7469
  %v7488 = vadd.f32 %v7452, %v7461
  %v7489 = vadd.f32 %v7453, %v7465
  %v7490 = vadd.f32 %v7454, %v7469
  %s7491 = scalar_lea.vmem %s9, 3
  %v7492 = vld [vmem:[%s7491] sm:$0x7]
  %s7493 = scalar_lea.vmem %s10, 3
  %v7494 = vld [vmem:[%s7493] sm:$0x7]
  %v7495 = vadd.f32 %v7473, %v7474
  %v7496 = vadd.f32 %v7495, %v7475
  %7497 = vadd.xlane.f32.xlu0 %v7496
  %v7498 = vpop.xlane.xlu0 %7497
  %v7499 = vadd.f32 %v7476, %v7477
  %v7500 = vadd.f32 %v7499, %v7478
  %7501 = vadd.xlane.f32.xlu0 %v7500
  %v7502 = vpop.xlane.xlu0 %7501
  %v7503 = vadd.f32 %v7479, %v7480
  %v7504 = vadd.f32 %v7503, %v7481
  %7505 = vadd.xlane.f32.xlu0 %v7504
  %v7506 = vpop.xlane.xlu0 %7505
  %v7507 = vadd.f32 %v7482, %v7483
  %v7508 = vadd.f32 %v7507, %v7484
  %7509 = vadd.xlane.f32.xlu0 %v7508
  %v7510 = vpop.xlane.xlu0 %7509
  %v7511 = vadd.f32 %v7485, %v7486
  %v7512 = vadd.f32 %v7511, %v7487
  %7513 = vadd.xlane.f32.xlu0 %v7512
  %v7514 = vpop.xlane.xlu0 %7513
  %v7515 = vadd.f32 %v7488, %v7489
  %v7516 = vadd.f32 %v7515, %v7490
  %7517 = vadd.xlane.f32.xlu0 %v7516
  %v7518 = vpop.xlane.xlu0 %7517
  %v7519 = vmul.f32 %v7498, 0.002770083
  %v7520 = vmul.f32 %v7502, 0.002770083
  %v7521 = vmul.f32 %v7506, 0.002770083
  %v7522 = vmul.f32 %v7510, 0.002770083
  %v7523 = vmul.f32 %v7514, 0.002770083
  %v7524 = vmul.f32 %v7518, 0.002770083
  %v7525 = vsub.f32 %v7473, %v7519
  %v7526 = vsub.f32 %v7474, %v7519
  %v7527 = vsub.f32 %v7475, %v7519
  %v7528 = vsub.f32 %v7476, %v7520
  %v7529 = vsub.f32 %v7477, %v7520
  %v7530 = vsub.f32 %v7478, %v7520
  %v7531 = vsub.f32 %v7479, %v7521
  %v7532 = vsub.f32 %v7480, %v7521
  %v7533 = vsub.f32 %v7481, %v7521
  %v7534 = vsub.f32 %v7482, %v7522
  %v7535 = vsub.f32 %v7483, %v7522
  %v7536 = vsub.f32 %v7484, %v7522
  %v7537 = vsub.f32 %v7485, %v7523
  %v7538 = vsub.f32 %v7486, %v7523
  %v7539 = vsub.f32 %v7487, %v7523
  %v7540 = vsub.f32 %v7488, %v7524
  %v7541 = vsub.f32 %v7489, %v7524
  %v7542 = vsub.f32 %v7490, %v7524
  %v7543 = vsel %vm1046, %v7525, 0.0
  %v7544 = vsel %vm1047, %v7526, 0.0
  %v7545 = vsel %vm1048, %v7527, 0.0
  %v7546 = vsel %vm1046, %v7528, 0.0
  %v7547 = vsel %vm1047, %v7529, 0.0
  %v7548 = vsel %vm1048, %v7530, 0.0
  %v7549 = vsel %vm1046, %v7531, 0.0
  %v7550 = vsel %vm1047, %v7532, 0.0
  %v7551 = vsel %vm1048, %v7533, 0.0
  %v7552 = vsel %vm1046, %v7534, 0.0
  %v7553 = vsel %vm1047, %v7535, 0.0
  %v7554 = vsel %vm1048, %v7536, 0.0
  %v7555 = vsel %vm1046, %v7537, 0.0
  %v7556 = vsel %vm1047, %v7538, 0.0
  %v7557 = vsel %vm1048, %v7539, 0.0
  %v7558 = vsel %vm1046, %v7540, 0.0
  %v7559 = vsel %vm1047, %v7541, 0.0
  %v7560 = vsel %vm1048, %v7542, 0.0
  %v7561 = vmul.f32 %v7543, %v7543
  %v7562 = vmul.f32 %v7544, %v7544
  %v7563 = vmul.f32 %v7545, %v7545
  %v7564 = vmul.f32 %v7546, %v7546
  %v7565 = vmul.f32 %v7547, %v7547
  %v7566 = vmul.f32 %v7548, %v7548
  %v7567 = vmul.f32 %v7549, %v7549
  %v7568 = vmul.f32 %v7550, %v7550
  %v7569 = vmul.f32 %v7551, %v7551
  %v7570 = vmul.f32 %v7552, %v7552
  %v7571 = vmul.f32 %v7553, %v7553
  %v7572 = vmul.f32 %v7554, %v7554
  %v7573 = vmul.f32 %v7555, %v7555
  %v7574 = vmul.f32 %v7556, %v7556
  %v7575 = vmul.f32 %v7557, %v7557
  %v7576 = vmul.f32 %v7558, %v7558
  %v7577 = vmul.f32 %v7559, %v7559
  %v7578 = vmul.f32 %v7560, %v7560
  %v7579 = vadd.f32 %v7561, %v7562
  %v7580 = vadd.f32 %v7579, %v7563
  %7581 = vadd.xlane.f32.xlu0 %v7580
  %v7582 = vpop.xlane.xlu0 %7581
  %v7583 = vadd.f32 %v7564, %v7565
  %v7584 = vadd.f32 %v7583, %v7566
  %7585 = vadd.xlane.f32.xlu0 %v7584
  %v7586 = vpop.xlane.xlu0 %7585
  %v7587 = vadd.f32 %v7567, %v7568
  %v7588 = vadd.f32 %v7587, %v7569
  %7589 = vadd.xlane.f32.xlu0 %v7588
  %v7590 = vpop.xlane.xlu0 %7589
  %v7591 = vadd.f32 %v7570, %v7571
  %v7592 = vadd.f32 %v7591, %v7572
  %7593 = vadd.xlane.f32.xlu0 %v7592
  %v7594 = vpop.xlane.xlu0 %7593
  %v7595 = vadd.f32 %v7573, %v7574
  %v7596 = vadd.f32 %v7595, %v7575
  %7597 = vadd.xlane.f32.xlu0 %v7596
  %v7598 = vpop.xlane.xlu0 %7597
  %v7599 = vadd.f32 %v7576, %v7577
  %v7600 = vadd.f32 %v7599, %v7578
  %7601 = vadd.xlane.f32.xlu0 %v7600
  %v7602 = vpop.xlane.xlu0 %7601
  %v7603 = vmul.f32 %v7582, 0.002770083
  %v7604 = vmul.f32 %v7586, 0.002770083
  %v7605 = vmul.f32 %v7590, 0.002770083
  %v7606 = vmul.f32 %v7594, 0.002770083
  %v7607 = vmul.f32 %v7598, 0.002770083
  %v7608 = vmul.f32 %v7602, 0.002770083
  %v7609 = vadd.f32 %v7603, 1e-05
  %v7610 = vadd.f32 %v7604, 1e-05
  %v7611 = vadd.f32 %v7605, 1e-05
  %v7612 = vadd.f32 %v7606, 1e-05
  %v7613 = vadd.f32 %v7607, 1e-05
  %v7614 = vadd.f32 %v7608, 1e-05
  %v7615 = vrsqrt.pop %v7609
  %v7616 = vrsqrt.pop %v7610
  %v7617 = vrsqrt.pop %v7611
  %v7618 = vrsqrt.pop %v7612
  %v7619 = vrsqrt.pop %v7613
  %v7620 = vrsqrt.pop %v7614
  %v7621 = vmul.f32 %v7543, %v7615
  %v7622 = vmul.f32 %v7544, %v7615
  %v7623 = vmul.f32 %v7545, %v7615
  %v7624 = vmul.f32 %v7546, %v7616
  %v7625 = vmul.f32 %v7547, %v7616
  %v7626 = vmul.f32 %v7548, %v7616
  %v7627 = vmul.f32 %v7549, %v7617
  %v7628 = vmul.f32 %v7550, %v7617
  %v7629 = vmul.f32 %v7551, %v7617
  %v7630 = vmul.f32 %v7552, %v7618
  %v7631 = vmul.f32 %v7553, %v7618
  %v7632 = vmul.f32 %v7554, %v7618
  %v7633 = vmul.f32 %v7555, %v7619
  %v7634 = vmul.f32 %v7556, %v7619
  %v7635 = vmul.f32 %v7557, %v7619
  %v7636 = vmul.f32 %v7558, %v7620
  %v7637 = vmul.f32 %v7559, %v7620
  %v7638 = vmul.f32 %v7560, %v7620
  %v7640 = vlaneseq
  %v7641 = vshrl.u32 %v7640, 7
  %v7642 = vsub.s32 0, %v7641
  %v7643 = vrot.slane %v7492, %v7642
  %v7644 = vlaneseq
  %v7645 = vshrl.u32 %v7644, 7
  %v7646 = vsub.s32 1, %v7645
  %v7647 = vrot.slane %v7492, %v7646
  %v7648 = vlaneseq
  %v7649 = vshrl.u32 %v7648, 7
  %v7650 = vsub.s32 2, %v7649
  %v7651 = vrot.slane %v7492, %v7650
  %v7655 = vmul.f32 %v7621, %v7643
  %v7656 = vmul.f32 %v7622, %v7647
  %v7657 = vmul.f32 %v7623, %v7651
  %v7658 = vmul.f32 %v7624, %v7643
  %v7659 = vmul.f32 %v7625, %v7647
  %v7660 = vmul.f32 %v7626, %v7651
  %v7661 = vmul.f32 %v7627, %v7643
  %v7662 = vmul.f32 %v7628, %v7647
  %v7663 = vmul.f32 %v7629, %v7651
  %v7664 = vmul.f32 %v7630, %v7643
  %v7665 = vmul.f32 %v7631, %v7647
  %v7666 = vmul.f32 %v7632, %v7651
  %v7667 = vmul.f32 %v7633, %v7643
  %v7668 = vmul.f32 %v7634, %v7647
  %v7669 = vmul.f32 %v7635, %v7651
  %v7670 = vmul.f32 %v7636, %v7643
  %v7671 = vmul.f32 %v7637, %v7647
  %v7672 = vmul.f32 %v7638, %v7651
  %v7674 = vlaneseq
  %v7675 = vshrl.u32 %v7674, 7
  %v7676 = vsub.s32 0, %v7675
  %v7677 = vrot.slane %v7494, %v7676
  %v7678 = vlaneseq
  %v7679 = vshrl.u32 %v7678, 7
  %v7680 = vsub.s32 1, %v7679
  %v7681 = vrot.slane %v7494, %v7680
  %v7682 = vlaneseq
  %v7683 = vshrl.u32 %v7682, 7
  %v7684 = vsub.s32 2, %v7683
  %v7685 = vrot.slane %v7494, %v7684
  %v7689 = vadd.f32 %v7655, %v7677
  %v7690 = vadd.f32 %v7656, %v7681
  %v7691 = vadd.f32 %v7657, %v7685
  %v7692 = vadd.f32 %v7658, %v7677
  %v7693 = vadd.f32 %v7659, %v7681
  %v7694 = vadd.f32 %v7660, %v7685
  %v7695 = vadd.f32 %v7661, %v7677
  %v7696 = vadd.f32 %v7662, %v7681
  %v7697 = vadd.f32 %v7663, %v7685
  %v7698 = vadd.f32 %v7664, %v7677
  %v7699 = vadd.f32 %v7665, %v7681
  %v7700 = vadd.f32 %v7666, %v7685
  %v7701 = vadd.f32 %v7667, %v7677
  %v7702 = vadd.f32 %v7668, %v7681
  %v7703 = vadd.f32 %v7669, %v7685
  %v7704 = vadd.f32 %v7670, %v7677
  %v7705 = vadd.f32 %v7671, %v7681
  %v7706 = vadd.f32 %v7672, %v7685
  %s7707 = scalar_lea.vmem %s11, 192
  %v7708 = vld [vmem:[%s7707] sm:$0xf]
  %v7709 = vld [vmem:[%s7707 + $0x4] sm:$0xf]
  %v7710 = vld [vmem:[%s7707 + $0x8] sm:$0xf]
  %v7711 = vld [vmem:[%s7707 + $0xc] sm:$0xf]
  %v7712 = vld [vmem:[%s7707 + $0x10] sm:$0xf]
  %v7713 = vld [vmem:[%s7707 + $0x14] sm:$0xf]
  %v7714 = vld [vmem:[%s7707 + $0x18] sm:$0xf]
  %v7715 = vld [vmem:[%s7707 + $0x1c] sm:$0xf]
  %v7716 = vld [vmem:[%s7707 + $0x20] sm:$0xf]
  %v7717 = vld [vmem:[%s7707 + $0x24] sm:$0xf]
  %v7718 = vld [vmem:[%s7707 + $0x28] sm:$0xf]
  %v7719 = vld [vmem:[%s7707 + $0x2c] sm:$0xf]
  %v7720 = vld [vmem:[%s7707 + $0x30] sm:$0xf]
  %v7721 = vld [vmem:[%s7707 + $0x34] sm:$0xf]
  %v7722 = vld [vmem:[%s7707 + $0x38] sm:$0xf]
  %v7723 = vld [vmem:[%s7707 + $0x3c] sm:$0xf]
  %v7724 = vld [vmem:[%s7707 + $0x40] sm:$0xf]
  %v7725 = vld [vmem:[%s7707 + $0x44] sm:$0xf]
  %v7726 = vld [vmem:[%s7707 + $0x48] sm:$0xf]
  %v7727 = vld [vmem:[%s7707 + $0x4c] sm:$0xf]
  %v7728 = vld [vmem:[%s7707 + $0x50] sm:$0xf]
  %v7729 = vld [vmem:[%s7707 + $0x54] sm:$0xf]
  %v7730 = vld [vmem:[%s7707 + $0x58] sm:$0xf]
  %v7731 = vld [vmem:[%s7707 + $0x5c] sm:$0xf]
  %v7732 = vld [vmem:[%s7707 + $0x60] sm:$0xf]
  %v7733 = vld [vmem:[%s7707 + $0x64] sm:$0xf]
  %v7734 = vld [vmem:[%s7707 + $0x68] sm:$0xf]
  %v7735 = vld [vmem:[%s7707 + $0x6c] sm:$0xf]
  %v7736 = vld [vmem:[%s7707 + $0x70] sm:$0xf]
  %v7737 = vld [vmem:[%s7707 + $0x74] sm:$0xf]
  %v7738 = vld [vmem:[%s7707 + $0x78] sm:$0xf]
  %v7739 = vld [vmem:[%s7707 + $0x7c] sm:$0xf]
  %v7740 = vld [vmem:[%s7707 + $0x80] sm:$0xf]
  %v7741 = vld [vmem:[%s7707 + $0x84] sm:$0xf]
  %v7742 = vld [vmem:[%s7707 + $0x88] sm:$0xf]
  %v7743 = vld [vmem:[%s7707 + $0x8c] sm:$0xf]
  %v7744 = vld [vmem:[%s7707 + $0x90] sm:$0xf]
  %v7745 = vld [vmem:[%s7707 + $0x94] sm:$0xf]
  %v7746 = vld [vmem:[%s7707 + $0x98] sm:$0xf]
  %v7747 = vld [vmem:[%s7707 + $0x9c] sm:$0xf]
  %v7748 = vld [vmem:[%s7707 + $0xa0] sm:$0xf]
  %v7749 = vld [vmem:[%s7707 + $0xa4] sm:$0xf]
  %v7750 = vld [vmem:[%s7707 + $0xa8] sm:$0xf]
  %v7751 = vld [vmem:[%s7707 + $0xac] sm:$0xf]
  %v7752 = vld [vmem:[%s7707 + $0xb0] sm:$0xf]
  %v7753 = vld [vmem:[%s7707 + $0xb4] sm:$0xf]
  %v7754 = vld [vmem:[%s7707 + $0xb8] sm:$0xf]
  %v7755 = vld [vmem:[%s7707 + $0xbc] sm:$0xf]
  %v7756 = vpack.c.bf16 %v7692, %v7689
  %v7757 = vpack.c.bf16 %v7693, %v7690
  %v7758 = vpack.c.bf16 %v7694, %v7691
  %v7759 = vpack.c.bf16 %v7698, %v7695
  %v7760 = vpack.c.bf16 %v7699, %v7696
  %v7761 = vpack.c.bf16 %v7700, %v7697
  %v7762 = vpack.c.bf16 %v7704, %v7701
  %v7763 = vpack.c.bf16 %v7705, %v7702
  %v7764 = vpack.c.bf16 %v7706, %v7703
  %s7765 = scalar_lea.vmem %s12, 1
  %v7766 = vld [vmem:[%s7765] sm:$0x1]
  %v7768 = vlaneseq
  %v7769 = vshrl.u32 %v7768, 7
  %v7770 = vsub.s32 0, %v7769
  %v7771 = vrot.slane %v7766, %v7770
  %v7821 = vunpack.c.l.b16 %v7708
  %v7822 = vunpack.c.l.b16 %v7709
  %v7823 = vunpack.c.l.b16 %v7710
  %v7824 = vunpack.c.l.b16 %v7711
  %v7825 = vunpack.c.l.b16 %v7712
  %v7826 = vunpack.c.l.b16 %v7713
  %v7827 = vunpack.c.l.b16 %v7714
  %v7828 = vunpack.c.l.b16 %v7715
  %v7829 = vunpack.c.l.b16 %v7716
  %v7830 = vunpack.c.l.b16 %v7717
  %v7831 = vunpack.c.l.b16 %v7718
  %v7832 = vunpack.c.l.b16 %v7719
  %v7833 = vunpack.c.l.b16 %v7720
  %v7834 = vunpack.c.l.b16 %v7721
  %v7835 = vunpack.c.l.b16 %v7722
  %v7836 = vunpack.c.l.b16 %v7723
  %v7837 = vunpack.c.l.b16 %v7724
  %v7838 = vunpack.c.l.b16 %v7725
  %v7839 = vunpack.c.l.b16 %v7726
  %v7840 = vunpack.c.l.b16 %v7727
  %v7841 = vunpack.c.l.b16 %v7728
  %v7842 = vunpack.c.l.b16 %v7729
  %v7843 = vunpack.c.l.b16 %v7730
  %v7844 = vunpack.c.l.b16 %v7731
  %v7845 = vunpack.c.l.b16 %v7732
  %v7846 = vunpack.c.l.b16 %v7733
  %v7847 = vunpack.c.l.b16 %v7734
  %v7848 = vunpack.c.l.b16 %v7735
  %v7849 = vunpack.c.l.b16 %v7736
  %v7850 = vunpack.c.l.b16 %v7737
  %v7851 = vunpack.c.l.b16 %v7738
  %v7852 = vunpack.c.l.b16 %v7739
  %v7853 = vunpack.c.l.b16 %v7740
  %v7854 = vunpack.c.l.b16 %v7741
  %v7855 = vunpack.c.l.b16 %v7742
  %v7856 = vunpack.c.l.b16 %v7743
  %v7857 = vunpack.c.l.b16 %v7744
  %v7858 = vunpack.c.l.b16 %v7745
  %v7859 = vunpack.c.l.b16 %v7746
  %v7860 = vunpack.c.l.b16 %v7747
  %v7861 = vunpack.c.l.b16 %v7748
  %v7862 = vunpack.c.l.b16 %v7749
  %v7863 = vunpack.c.l.b16 %v7750
  %v7864 = vunpack.c.l.b16 %v7751
  %v7865 = vunpack.c.l.b16 %v7752
  %v7866 = vunpack.c.l.b16 %v7753
  %v7867 = vunpack.c.l.b16 %v7754
  %v7868 = vunpack.c.l.b16 %v7755
  %v7869 = vpack.c.b16 %v7822, %v7821
  %v7870 = vpack.c.b16 %v7824, %v7823
  %v7871 = vpack.c.b16 %v7826, %v7825
  %v7872 = vpack.c.b16 %v7828, %v7827
  %v7873 = vpack.c.b16 %v7830, %v7829
  %v7874 = vpack.c.b16 %v7832, %v7831
  %v7875 = vpack.c.b16 %v7834, %v7833
  %v7876 = vpack.c.b16 %v7836, %v7835
  %v7877 = vpack.c.b16 %v7838, %v7837
  %v7878 = vpack.c.b16 %v7840, %v7839
  %v7879 = vpack.c.b16 %v7842, %v7841
  %v7880 = vpack.c.b16 %v7844, %v7843
  %v7881 = vpack.c.b16 %v7846, %v7845
  %v7882 = vpack.c.b16 %v7848, %v7847
  %v7883 = vpack.c.b16 %v7850, %v7849
  %v7884 = vpack.c.b16 %v7852, %v7851
  %v7885 = vpack.c.b16 %v7854, %v7853
  %v7886 = vpack.c.b16 %v7856, %v7855
  %v7887 = vpack.c.b16 %v7858, %v7857
  %v7888 = vpack.c.b16 %v7860, %v7859
  %v7889 = vpack.c.b16 %v7862, %v7861
  %v7890 = vpack.c.b16 %v7864, %v7863
  %v7891 = vpack.c.b16 %v7866, %v7865
  %v7892 = vpack.c.b16 %v7868, %v7867
  %7917 = vmatprep.subr.bf16.mxu0 0
  %7918 = vmatpush1.bf16.msra.mxu0 %v7869
  %7919 = vmatprep.subr.bf16.mxu0 0
  %7920 = vmatpush1.bf16.msra.mxu0 %v7870
  %7921 = vmatprep.subr.bf16.mxu0 0
  %7922 = vmatpush1.bf16.msra.mxu0 %v7871
  %7923 = vmatprep.subr.bf16.mxu0 0
  %7924 = vmatpush1.bf16.msra.mxu0 %v7872
  %7925 = vmatprep.subr.bf16.mxu0 0
  %7926 = vmatpush1.bf16.msra.mxu0 %v7873
  %7927 = vmatprep.subr.bf16.mxu0 0
  %7928 = vmatpush1.bf16.msra.mxu0 %v7874
  %7929 = vmatprep.subr.bf16.mxu0 0
  %7930 = vmatpush1.bf16.msra.mxu0 %v7875
  %7931 = vmatprep.subr.bf16.mxu0 0
  %7932 = vmatpush1.bf16.msra.mxu0 %v7876
  %7933 = vmatprep.subr.bf16.mxu0 0
  %7934 = vmatpush1.bf16.msra.mxu0 %v7877
  %7935 = vmatprep.subr.bf16.mxu0 0
  %7936 = vmatpush1.bf16.msra.mxu0 %v7878
  %7937 = vmatprep.subr.bf16.mxu0 0
  %7938 = vmatpush1.bf16.msra.mxu0 %v7879
  %7939 = vmatprep.subr.bf16.mxu0 0
  %7940 = vmatpush1.bf16.msra.mxu0 %v7880
  %7941 = vmatprep.subr.bf16.mxu0 0
  %7942 = vmatpush1.bf16.msra.mxu0 %v7881
  %7943 = vmatprep.subr.bf16.mxu0 0
  %7944 = vmatpush1.bf16.msra.mxu0 %v7882
  %7945 = vmatprep.subr.bf16.mxu0 0
  %7946 = vmatpush1.bf16.msra.mxu0 %v7883
  %7947 = vmatprep.subr.bf16.mxu0 0
  %7948 = vmatpush1.bf16.msra.mxu0 %v7884
  %7949 = vmatprep.mubr.bf16.mxu0 %v7757
  %7950 = vmatmul.mubr.bf16.gmra.mrb[0].mxu0 %v7756
  %v7951 = vpop.f32.mrb[0].mxu0
  %v7952 = vadd.f32 %v7771, %v7951
  %v7953 = vpop.f32.mrb[0].mxu0
  %v7954 = vpop.f32.mrb[0].mxu0
  %v7955 = vadd.f32 %v7771, %v7954
  %v7956 = vpop.f32.mrb[0].mxu0
  %7957 = vmatprep.mubr.bf16.mxu0 %v7760
  %7958 = vmatmul.mubr.bf16.gmra.mrb[0].mxu0 %v7759
  %v7959 = vpop.f32.mrb[0].mxu0
  %v7960 = vadd.f32 %v7771, %v7959
  %v7961 = vpop.f32.mrb[0].mxu0
  %v7962 = vpop.f32.mrb[0].mxu0
  %v7963 = vadd.f32 %v7771, %v7962
  %v7964 = vpop.f32.mrb[0].mxu0
  %7965 = vmatprep.mubr.bf16.mxu0 %v7763
  %7966 = vmatmul.mubr.bf16.gmra.mrb[0].mxu0 %v7762
  %v7967 = vpop.f32.mrb[0].mxu0
  %v7968 = vadd.f32 %v7771, %v7967
  %v7969 = vpop.f32.mrb[0].mxu0
  %v7970 = vpop.f32.mrb[0].mxu0
  %v7971 = vadd.f32 %v7771, %v7970
  %v7972 = vpop.f32.mrb[0].mxu0
  %7973 = vdwg.mxu0
  %7974 = vmatprep.subr.bf16.mxu0 0
  %7975 = vmatpush1.bf16.msra.mxu0 %v7885
  %7976 = vmatprep.subr.bf16.mxu0 0
  %7977 = vmatpush1.bf16.msra.mxu0 %v7886
  %7978 = vmatprep.subr.bf16.mxu0 0
  %7979 = vmatpush1.bf16.msra.mxu0 %v7887
  %7980 = vmatprep.subr.bf16.mxu0 0
  %7981 = vmatpush1.bf16.msra.mxu0 %v7888
  %7982 = vmatprep.subr.bf16.mxu0 0
  %7983 = vmatpush1.bf16.msra.mxu0 %v7889
  %7984 = vmatprep.subr.bf16.mxu0 0
  %7985 = vmatpush1.bf16.msra.mxu0 %v7890
  %7986 = vmatprep.subr.bf16.mxu0 0
  %7987 = vmatpush1.bf16.msra.mxu0 %v7891
  %7988 = vmatprep.subr.bf16.mxu0 0
  %7989 = vmatpush1.bf16.msra.mxu0 %v7892
  %7990 = vmatprep.subr.bf16.mxu0 0
  %7991 = vmatpush1.bf16.msra.mxu0 0
  %7992 = vmatprep.subr.bf16.mxu0 0
  %7993 = vmatpush1.bf16.msra.mxu0 0
  %7994 = vmatprep.subr.bf16.mxu0 0
  %7995 = vmatpush1.bf16.msra.mxu0 0
  %7996 = vmatprep.subr.bf16.mxu0 0
  %7997 = vmatpush1.bf16.msra.mxu0 0
  %7998 = vmatprep.subr.bf16.mxu0 0
  %7999 = vmatpush1.bf16.msra.mxu0 0
  %8000 = vmatprep.subr.bf16.mxu0 0
  %8001 = vmatpush1.bf16.msra.mxu0 0
  %8002 = vmatprep.subr.bf16.mxu0 0
  %8003 = vmatpush1.bf16.msra.mxu0 0
  %8004 = vmatprep.subr.bf16.mxu0 0
  %8005 = vmatpush1.bf16.msra.mxu0 0
  %8006 = vmatprep.mubr.bf16.mxu0 0
  %8007 = vmatmul.mubr.bf16.gmra.mrb[0].mxu0 %v7758
  %v8008 = vpop.f32.mrb[0].mxu0
  %v8009 = vadd.f32 %v7952, %v8008
  %v8010 = vpop.f32.mrb[0].mxu0
  %v8011 = vpop.f32.mrb[0].mxu0
  %v8012 = vadd.f32 %v7955, %v8011
  %v8013 = vpop.f32.mrb[0].mxu0
  %8014 = vmatprep.mubr.bf16.mxu0 0
  %8015 = vmatmul.mubr.bf16.gmra.mrb[0].mxu0 %v7761
  %v8016 = vpop.f32.mrb[0].mxu0
  %v8017 = vadd.f32 %v7960, %v8016
  %v8018 = vpop.f32.mrb[0].mxu0
  %v8019 = vpop.f32.mrb[0].mxu0
  %v8020 = vadd.f32 %v7963, %v8019
  %v8021 = vpop.f32.mrb[0].mxu0
  %8022 = vmatprep.mubr.bf16.mxu0 0
  %8023 = vmatmul.mubr.bf16.gmra.mrb[0].mxu0 %v7764
  %v8024 = vpop.f32.mrb[0].mxu0
  %v8025 = vadd.f32 %v7968, %v8024
  %v8026 = vpop.f32.mrb[0].mxu0
  %v8027 = vpop.f32.mrb[0].mxu0
  %v8028 = vadd.f32 %v7971, %v8027
  %v8029 = vpop.f32.mrb[0].mxu0
  %8030 = vdwg.mxu0
  %v8031 = vmul.f32 %v8009, 0.5
  %v8032 = vmul.f32 %v8012, 0.5
  %v8033 = vmul.f32 %v8017, 0.5
  %v8034 = vmul.f32 %v8020, 0.5
  %v8035 = vmul.f32 %v8025, 0.5
  %v8036 = vmul.f32 %v8028, 0.5
  %v8037 = vmul.f32 %v8009, 0.70710677
  %v8038 = vmul.f32 %v8012, 0.70710677
  %v8039 = vmul.f32 %v8017, 0.70710677
  %v8040 = vmul.f32 %v8020, 0.70710677
  %v8041 = vmul.f32 %v8025, 0.70710677
  %v8042 = vmul.f32 %v8028, 0.70710677
  %vm8043 = vcmp.ge.f32.partialorder %v8037, 0.0
  %vm8044 = vcmp.ge.f32.partialorder %v8038, 0.0
  %vm8045 = vcmp.ge.f32.partialorder %v8039, 0.0
  %vm8046 = vcmp.ge.f32.partialorder %v8040, 0.0
  %vm8047 = vcmp.ge.f32.partialorder %v8041, 0.0
  %vm8048 = vcmp.ge.f32.partialorder %v8042, 0.0
  %v8049 = vsel %vm8043, 1.0, -1.0
  %v8050 = vsel %vm8044, 1.0, -1.0
  %v8051 = vsel %vm8045, 1.0, -1.0
  %v8052 = vsel %vm8046, 1.0, -1.0
  %v8053 = vsel %vm8047, 1.0, -1.0
  %v8054 = vsel %vm8048, 1.0, -1.0
  %v8055 = vand.u32 2147483647, %v8037
  %v8056 = vand.u32 2147483647, %v8038
  %v8057 = vand.u32 2147483647, %v8039
  %v8058 = vand.u32 2147483647, %v8040
  %v8059 = vand.u32 2147483647, %v8041
  %v8060 = vand.u32 2147483647, %v8042
  %v8061 = vmul.f32 %v8055, 0.3275911
  %v8062 = vmul.f32 %v8056, 0.3275911
  %v8063 = vmul.f32 %v8057, 0.3275911
  %v8064 = vmul.f32 %v8058, 0.3275911
  %v8065 = vmul.f32 %v8059, 0.3275911
  %v8066 = vmul.f32 %v8060, 0.3275911
  %v8067 = vadd.f32 %v8061, 1.0
  %v8068 = vadd.f32 %v8062, 1.0
  %v8069 = vadd.f32 %v8063, 1.0
  %v8070 = vadd.f32 %v8064, 1.0
  %v8071 = vadd.f32 %v8065, 1.0
  %v8072 = vadd.f32 %v8066, 1.0
  %v8073 = vrcp.pop %v8067
  %v8074 = vmul.f32 1.0, %v8073
  %v8075 = vrcp.pop %v8068
  %v8076 = vmul.f32 1.0, %v8075
  %v8077 = vrcp.pop %v8069
  %v8078 = vmul.f32 1.0, %v8077
  %v8079 = vrcp.pop %v8070
  %v8080 = vmul.f32 1.0, %v8079
  %v8081 = vrcp.pop %v8071
  %v8082 = vmul.f32 1.0, %v8081
  %v8083 = vrcp.pop %v8072
  %v8084 = vmul.f32 1.0, %v8083
  %v8085 = vmul.f32 %v8074, 1.0614054
  %v8086 = vmul.f32 %v8076, 1.0614054
  %v8087 = vmul.f32 %v8078, 1.0614054
  %v8088 = vmul.f32 %v8080, 1.0614054
  %v8089 = vmul.f32 %v8082, 1.0614054
  %v8090 = vmul.f32 %v8084, 1.0614054
  %v8091 = vadd.f32 %v8085, -1.4531521
  %v8092 = vadd.f32 %v8086, -1.4531521
  %v8093 = vadd.f32 %v8087, -1.4531521
  %v8094 = vadd.f32 %v8088, -1.4531521
  %v8095 = vadd.f32 %v8089, -1.4531521
  %v8096 = vadd.f32 %v8090, -1.4531521
  %v8097 = vmul.f32 %v8091, %v8074
  %v8098 = vmul.f32 %v8092, %v8076
  %v8099 = vmul.f32 %v8093, %v8078
  %v8100 = vmul.f32 %v8094, %v8080
  %v8101 = vmul.f32 %v8095, %v8082
  %v8102 = vmul.f32 %v8096, %v8084
  %v8103 = vadd.f32 %v8097, 1.4214138
  %v8104 = vadd.f32 %v8098, 1.4214138
  %v8105 = vadd.f32 %v8099, 1.4214138
  %v8106 = vadd.f32 %v8100, 1.4214138
  %v8107 = vadd.f32 %v8101, 1.4214138
  %v8108 = vadd.f32 %v8102, 1.4214138
  %v8109 = vmul.f32 %v8103, %v8074
  %v8110 = vmul.f32 %v8104, %v8076
  %v8111 = vmul.f32 %v8105, %v8078
  %v8112 = vmul.f32 %v8106, %v8080
  %v8113 = vmul.f32 %v8107, %v8082
  %v8114 = vmul.f32 %v8108, %v8084
  %v8115 = vadd.f32 %v8109, -0.28449672
  %v8116 = vadd.f32 %v8110, -0.28449672
  %v8117 = vadd.f32 %v8111, -0.28449672
  %v8118 = vadd.f32 %v8112, -0.28449672
  %v8119 = vadd.f32 %v8113, -0.28449672
  %v8120 = vadd.f32 %v8114, -0.28449672
  %v8121 = vmul.f32 %v8115, %v8074
  %v8122 = vmul.f32 %v8116, %v8076
  %v8123 = vmul.f32 %v8117, %v8078
  %v8124 = vmul.f32 %v8118, %v8080
  %v8125 = vmul.f32 %v8119, %v8082
  %v8126 = vmul.f32 %v8120, %v8084
  %v8127 = vadd.f32 %v8121, 0.2548296
  %v8128 = vadd.f32 %v8122, 0.2548296
  %v8129 = vadd.f32 %v8123, 0.2548296
  %v8130 = vadd.f32 %v8124, 0.2548296
  %v8131 = vadd.f32 %v8125, 0.2548296
  %v8132 = vadd.f32 %v8126, 0.2548296
  %v8133 = vmul.f32 %v8127, %v8074
  %v8134 = vmul.f32 %v8128, %v8076
  %v8135 = vmul.f32 %v8129, %v8078
  %v8136 = vmul.f32 %v8130, %v8080
  %v8137 = vmul.f32 %v8131, %v8082
  %v8138 = vmul.f32 %v8132, %v8084
  %v8139 = vsub.f32 0.0, %v8055
  %v8140 = vsub.f32 0.0, %v8056
  %v8141 = vsub.f32 0.0, %v8057
  %v8142 = vsub.f32 0.0, %v8058
  %v8143 = vsub.f32 0.0, %v8059
  %v8144 = vsub.f32 0.0, %v8060
  %v8145 = vmul.f32 %v8139, %v8055
  %v8146 = vmul.f32 %v8140, %v8056
  %v8147 = vmul.f32 %v8141, %v8057
  %v8148 = vmul.f32 %v8142, %v8058
  %v8149 = vmul.f32 %v8143, %v8059
  %v8150 = vmul.f32 %v8144, %v8060
  %v8151 = vmul.f32 %v8145, 1.442695
  %v8152 = vpow.pop %v8151
  %v8153 = vmul.f32 %v8146, 1.442695
  %v8154 = vpow.pop %v8153
  %v8155 = vmul.f32 %v8147, 1.442695
  %v8156 = vpow.pop %v8155
  %v8157 = vmul.f32 %v8148, 1.442695
  %v8158 = vpow.pop %v8157
  %v8159 = vmul.f32 %v8149, 1.442695
  %v8160 = vpow.pop %v8159
  %v8161 = vmul.f32 %v8150, 1.442695
  %v8162 = vpow.pop %v8161
  %v8163 = vmul.f32 %v8133, %v8152
  %v8164 = vmul.f32 %v8134, %v8154
  %v8165 = vmul.f32 %v8135, %v8156
  %v8166 = vmul.f32 %v8136, %v8158
  %v8167 = vmul.f32 %v8137, %v8160
  %v8168 = vmul.f32 %v8138, %v8162
  %v8169 = vsub.f32 1.0, %v8163
  %v8170 = vsub.f32 1.0, %v8164
  %v8171 = vsub.f32 1.0, %v8165
  %v8172 = vsub.f32 1.0, %v8166
  %v8173 = vsub.f32 1.0, %v8167
  %v8174 = vsub.f32 1.0, %v8168
  %v8175 = vmul.f32 %v8049, %v8169
  %v8176 = vmul.f32 %v8050, %v8170
  %v8177 = vmul.f32 %v8051, %v8171
  %v8178 = vmul.f32 %v8052, %v8172
  %v8179 = vmul.f32 %v8053, %v8173
  %v8180 = vmul.f32 %v8054, %v8174
  %v8181 = vadd.f32 %v8175, 1.0
  %v8182 = vadd.f32 %v8176, 1.0
  %v8183 = vadd.f32 %v8177, 1.0
  %v8184 = vadd.f32 %v8178, 1.0
  %v8185 = vadd.f32 %v8179, 1.0
  %v8186 = vadd.f32 %v8180, 1.0
  %v8187 = vmul.f32 %v8031, %v8181
  %v8188 = vmul.f32 %v8032, %v8182
  %v8189 = vmul.f32 %v8033, %v8183
  %v8190 = vmul.f32 %v8034, %v8184
  %v8191 = vmul.f32 %v8035, %v8185
  %v8192 = vmul.f32 %v8036, %v8186
  %s8193 = scalar_lea.vmem %s13, 192
  %v8194 = vld [vmem:[%s8193] sm:$0xff]
  %v8195 = vld [vmem:[%s8193 + $0x8] sm:$0xf]
  %v8196 = vld [vmem:[%s8193 + $0xc] sm:$0xff]
  %v8197 = vld [vmem:[%s8193 + $0x14] sm:$0xf]
  %v8198 = vld [vmem:[%s8193 + $0x18] sm:$0xff]
  %v8199 = vld [vmem:[%s8193 + $0x20] sm:$0xf]
  %v8200 = vld [vmem:[%s8193 + $0x24] sm:$0xff]
  %v8201 = vld [vmem:[%s8193 + $0x2c] sm:$0xf]
  %v8202 = vld [vmem:[%s8193 + $0x30] sm:$0xff]
  %v8203 = vld [vmem:[%s8193 + $0x38] sm:$0xf]
  %v8204 = vld [vmem:[%s8193 + $0x3c] sm:$0xff]
  %v8205 = vld [vmem:[%s8193 + $0x44] sm:$0xf]
  %v8206 = vld [vmem:[%s8193 + $0x48] sm:$0xff]
  %v8207 = vld [vmem:[%s8193 + $0x50] sm:$0xf]
  %v8208 = vld [vmem:[%s8193 + $0x54] sm:$0xff]
  %v8209 = vld [vmem:[%s8193 + $0x5c] sm:$0xf]
  %v8210 = vld [vmem:[%s8193 + $0x60] sm:$0xff]
  %v8211 = vld [vmem:[%s8193 + $0x68] sm:$0xf]
  %v8212 = vld [vmem:[%s8193 + $0x6c] sm:$0xff]
  %v8213 = vld [vmem:[%s8193 + $0x74] sm:$0xf]
  %v8214 = vld [vmem:[%s8193 + $0x78] sm:$0xff]
  %v8215 = vld [vmem:[%s8193 + $0x80] sm:$0xf]
  %v8216 = vld [vmem:[%s8193 + $0x84] sm:$0xff]
  %v8217 = vld [vmem:[%s8193 + $0x8c] sm:$0xf]
  %v8218 = vld [vmem:[%s8193 + $0x90] sm:$0xff]
  %v8219 = vld [vmem:[%s8193 + $0x98] sm:$0xf]
  %v8220 = vld [vmem:[%s8193 + $0x9c] sm:$0xff]
  %v8221 = vld [vmem:[%s8193 + $0xa4] sm:$0xf]
  %v8222 = vld [vmem:[%s8193 + $0xa8] sm:$0xff]
  %v8223 = vld [vmem:[%s8193 + $0xb0] sm:$0xf]
  %v8224 = vld [vmem:[%s8193 + $0xb4] sm:$0xff]
  %v8225 = vld [vmem:[%s8193 + $0xbc] sm:$0xf]
  %v8226 = vpack.c.bf16 %v8188, %v8187
  %v8227 = vpack.c.bf16 %v8190, %v8189
  %v8228 = vpack.c.bf16 %v8192, %v8191
  %v8261 = vunpack.c.l.b16 %v8194
  %v8262 = vunpack.c.h.b16 %v8194
  %v8263 = vunpack.c.l.b16 %v8195
  %v8264 = vunpack.c.l.b16 %v8196
  %v8265 = vunpack.c.h.b16 %v8196
  %v8266 = vunpack.c.l.b16 %v8197
  %v8267 = vunpack.c.l.b16 %v8198
  %v8268 = vunpack.c.h.b16 %v8198
  %v8269 = vunpack.c.l.b16 %v8199
  %v8270 = vunpack.c.l.b16 %v8200
  %v8271 = vunpack.c.h.b16 %v8200
  %v8272 = vunpack.c.l.b16 %v8201
  %v8273 = vunpack.c.l.b16 %v8202
  %v8274 = vunpack.c.h.b16 %v8202
  %v8275 = vunpack.c.l.b16 %v8203
  %v8276 = vunpack.c.l.b16 %v8204
  %v8277 = vunpack.c.h.b16 %v8204
  %v8278 = vunpack.c.l.b16 %v8205
  %v8279 = vunpack.c.l.b16 %v8206
  %v8280 = vunpack.c.h.b16 %v8206
  %v8281 = vunpack.c.l.b16 %v8207
  %v8282 = vunpack.c.l.b16 %v8208
  %v8283 = vunpack.c.h.b16 %v8208
  %v8284 = vunpack.c.l.b16 %v8209
  %v8285 = vunpack.c.l.b16 %v8210
  %v8286 = vunpack.c.h.b16 %v8210
  %v8287 = vunpack.c.l.b16 %v8211
  %v8288 = vunpack.c.l.b16 %v8212
  %v8289 = vunpack.c.h.b16 %v8212
  %v8290 = vunpack.c.l.b16 %v8213
  %v8291 = vunpack.c.l.b16 %v8214
  %v8292 = vunpack.c.h.b16 %v8214
  %v8293 = vunpack.c.l.b16 %v8215
  %v8294 = vunpack.c.l.b16 %v8216
  %v8295 = vunpack.c.h.b16 %v8216
  %v8296 = vunpack.c.l.b16 %v8217
  %v8297 = vunpack.c.l.b16 %v8218
  %v8298 = vunpack.c.h.b16 %v8218
  %v8299 = vunpack.c.l.b16 %v8219
  %v8300 = vunpack.c.l.b16 %v8220
  %v8301 = vunpack.c.h.b16 %v8220
  %v8302 = vunpack.c.l.b16 %v8221
  %v8303 = vunpack.c.l.b16 %v8222
  %v8304 = vunpack.c.h.b16 %v8222
  %v8305 = vunpack.c.l.b16 %v8223
  %v8306 = vunpack.c.l.b16 %v8224
  %v8307 = vunpack.c.h.b16 %v8224
  %v8308 = vunpack.c.l.b16 %v8225
  %v8309 = vpack.c.b16 %v8264, %v8261
  %v8310 = vpack.c.b16 %v8265, %v8262
  %v8311 = vpack.c.b16 %v8266, %v8263
  %v8312 = vpack.c.b16 %v8270, %v8267
  %v8313 = vpack.c.b16 %v8271, %v8268
  %v8314 = vpack.c.b16 %v8272, %v8269
  %v8315 = vpack.c.b16 %v8276, %v8273
  %v8316 = vpack.c.b16 %v8277, %v8274
  %v8317 = vpack.c.b16 %v8278, %v8275
  %v8318 = vpack.c.b16 %v8282, %v8279
  %v8319 = vpack.c.b16 %v8283, %v8280
  %v8320 = vpack.c.b16 %v8284, %v8281
  %v8321 = vpack.c.b16 %v8288, %v8285
  %v8322 = vpack.c.b16 %v8289, %v8286
  %v8323 = vpack.c.b16 %v8290, %v8287
  %v8324 = vpack.c.b16 %v8294, %v8291
  %v8325 = vpack.c.b16 %v8295, %v8292
  %v8326 = vpack.c.b16 %v8296, %v8293
  %v8327 = vpack.c.b16 %v8300, %v8297
  %v8328 = vpack.c.b16 %v8301, %v8298
  %v8329 = vpack.c.b16 %v8302, %v8299
  %v8330 = vpack.c.b16 %v8306, %v8303
  %v8331 = vpack.c.b16 %v8307, %v8304
  %v8332 = vpack.c.b16 %v8308, %v8305
  %8357 = vmatprep.subr.bf16.mxu0 %v8310
  %8358 = vmatpush1.bf16.msra.mxu0 %v8309
  %8359 = vmatprep.subr.bf16.mxu0 %v8313
  %8360 = vmatpush1.bf16.msra.mxu0 %v8312
  %8361 = vmatprep.subr.bf16.mxu0 %v8316
  %8362 = vmatpush1.bf16.msra.mxu0 %v8315
  %8363 = vmatprep.subr.bf16.mxu0 %v8319
  %8364 = vmatpush1.bf16.msra.mxu0 %v8318
  %8365 = vmatprep.subr.bf16.mxu0 %v8322
  %8366 = vmatpush1.bf16.msra.mxu0 %v8321
  %8367 = vmatprep.subr.bf16.mxu0 %v8325
  %8368 = vmatpush1.bf16.msra.mxu0 %v8324
  %8369 = vmatprep.subr.bf16.mxu0 %v8328
  %8370 = vmatpush1.bf16.msra.mxu0 %v8327
  %8371 = vmatprep.subr.bf16.mxu0 %v8331
  %8372 = vmatpush1.bf16.msra.mxu0 %v8330
  %8373 = vmatprep.subr.bf16.mxu0 0
  %8374 = vmatpush1.bf16.msra.mxu0 0
  %8375 = vmatprep.subr.bf16.mxu0 0
  %8376 = vmatpush1.bf16.msra.mxu0 0
  %8377 = vmatprep.subr.bf16.mxu0 0
  %8378 = vmatpush1.bf16.msra.mxu0 0
  %8379 = vmatprep.subr.bf16.mxu0 0
  %8380 = vmatpush1.bf16.msra.mxu0 0
  %8381 = vmatprep.subr.bf16.mxu0 0
  %8382 = vmatpush1.bf16.msra.mxu0 0
  %8383 = vmatprep.subr.bf16.mxu0 0
  %8384 = vmatpush1.bf16.msra.mxu0 0
  %8385 = vmatprep.subr.bf16.mxu0 0
  %8386 = vmatpush1.bf16.msra.mxu0 0
  %8387 = vmatprep.subr.bf16.mxu0 0
  %8388 = vmatpush1.bf16.msra.mxu0 0
  %8389 = vmatprep.mubr.bf16.mxu0 0
  %8390 = vmatmul.mubr.bf16.gmra.mrb[0].mxu0 %v8226
  %v8391 = vpop.f32.mrb[0].mxu0
  %v8392 = vpop.f32.mrb[0].mxu0
  %v8393 = vpop.f32.mrb[0].mxu0
  %v8394 = vpop.f32.mrb[0].mxu0
  %8395 = vmatprep.mubr.bf16.mxu0 0
  %8396 = vmatmul.mubr.bf16.gmra.mrb[0].mxu0 %v8227
  %v8397 = vpop.f32.mrb[0].mxu0
  %v8398 = vadd.f32 0.0, %v8397
  %v8399 = vpop.f32.mrb[0].mxu0
  %v8400 = vadd.f32 0.0, %v8399
  %v8401 = vpop.f32.mrb[0].mxu0
  %v8402 = vpop.f32.mrb[0].mxu0
  %8403 = vmatprep.mubr.bf16.mxu0 0
  %8404 = vmatmul.mubr.bf16.gmra.mrb[0].mxu0 %v8228
  %v8405 = vpop.f32.mrb[0].mxu0
  %v8406 = vpop.f32.mrb[0].mxu0
  %v8407 = vpop.f32.mrb[0].mxu0
  %v8408 = vadd.f32 0.0, %v8407
  %v8409 = vpop.f32.mrb[0].mxu0
  %v8410 = vadd.f32 0.0, %v8409
  %8411 = vdwg.mxu0
  %8412 = vmatprep.subr.bf16.mxu0 0
  %8413 = vmatpush1.bf16.msra.mxu0 %v8311
  %8414 = vmatprep.subr.bf16.mxu0 0
  %8415 = vmatpush1.bf16.msra.mxu0 %v8314
  %8416 = vmatprep.subr.bf16.mxu0 0
  %8417 = vmatpush1.bf16.msra.mxu0 %v8317
  %8418 = vmatprep.subr.bf16.mxu0 0
  %8419 = vmatpush1.bf16.msra.mxu0 %v8320
  %8420 = vmatprep.subr.bf16.mxu0 0
  %8421 = vmatpush1.bf16.msra.mxu0 %v8323
  %8422 = vmatprep.subr.bf16.mxu0 0
  %8423 = vmatpush1.bf16.msra.mxu0 %v8326
  %8424 = vmatprep.subr.bf16.mxu0 0
  %8425 = vmatpush1.bf16.msra.mxu0 %v8329
  %8426 = vmatprep.subr.bf16.mxu0 0
  %8427 = vmatpush1.bf16.msra.mxu0 %v8332
  %8428 = vmatprep.subr.bf16.mxu0 0
  %8429 = vmatpush1.bf16.msra.mxu0 0
  %8430 = vmatprep.subr.bf16.mxu0 0
  %8431 = vmatpush1.bf16.msra.mxu0 0
  %8432 = vmatprep.subr.bf16.mxu0 0
  %8433 = vmatpush1.bf16.msra.mxu0 0
  %8434 = vmatprep.subr.bf16.mxu0 0
  %8435 = vmatpush1.bf16.msra.mxu0 0
  %8436 = vmatprep.subr.bf16.mxu0 0
  %8437 = vmatpush1.bf16.msra.mxu0 0
  %8438 = vmatprep.subr.bf16.mxu0 0
  %8439 = vmatpush1.bf16.msra.mxu0 0
  %8440 = vmatprep.subr.bf16.mxu0 0
  %8441 = vmatpush1.bf16.msra.mxu0 0
  %8442 = vmatprep.subr.bf16.mxu0 0
  %8443 = vmatpush1.bf16.msra.mxu0 0
  %8444 = vmatprep.mubr.bf16.mxu0 0
  %8445 = vmatmul.mubr.bf16.gmra.mrb[0].mxu0 %v8226
  %v8446 = vpop.f32.mrb[0].mxu0
  %v8447 = vpop.f32.mrb[0].mxu0
  %v8448 = vpop.f32.mrb[0].mxu0
  %v8449 = vpop.f32.mrb[0].mxu0
  %8450 = vmatprep.mubr.bf16.mxu0 0
  %8451 = vmatmul.mubr.bf16.gmra.mrb[0].mxu0 %v8227
  %v8452 = vpop.f32.mrb[0].mxu0
  %v8453 = vadd.f32 0.0, %v8452
  %v8454 = vpop.f32.mrb[0].mxu0
  %v8455 = vpop.f32.mrb[0].mxu0
  %v8456 = vpop.f32.mrb[0].mxu0
  %8457 = vmatprep.mubr.bf16.mxu0 0
  %8458 = vmatmul.mubr.bf16.gmra.mrb[0].mxu0 %v8228
  %v8459 = vpop.f32.mrb[0].mxu0
  %v8460 = vpop.f32.mrb[0].mxu0
  %v8461 = vpop.f32.mrb[0].mxu0
  %v8462 = vadd.f32 0.0, %v8461
  %v8463 = vpop.f32.mrb[0].mxu0
  %8464 = vdwg.mxu0
  %v8465 = vadd.f32 %v7479, %v8398
  %v8466 = vadd.f32 %v7480, %v8400
  %v8467 = vadd.f32 %v7481, %v8453
  %v8468 = vadd.f32 %v7488, %v8408
  %v8469 = vadd.f32 %v7489, %v8410
  %v8470 = vadd.f32 %v7490, %v8462
  %s8471 = scalar_lea.vmem %s14, 3
  %v8472 = vld [vmem:[%s8471] sm:$0x7]
  %v8474 = vlaneseq
  %v8475 = vshrl.u32 %v8474, 7
  %v8476 = vsub.s32 0, %v8475
  %v8477 = vrot.slane %v8472, %v8476
  %v8478 = vlaneseq
  %v8479 = vshrl.u32 %v8478, 7
  %v8480 = vsub.s32 1, %v8479
  %v8481 = vrot.slane %v8472, %v8480
  %v8482 = vlaneseq
  %v8483 = vshrl.u32 %v8482, 7
  %v8484 = vsub.s32 2, %v8483
  %v8485 = vrot.slane %v8472, %v8484
  %v8489 = vadd.f32 %v8465, %v8477
  %v8490 = vadd.f32 %v8466, %v8481
  %v8491 = vadd.f32 %v8467, %v8485
  %v8492 = vadd.f32 %v8468, %v8477
  %v8493 = vadd.f32 %v8469, %v8481
  %v8494 = vadd.f32 %v8470, %v8485
  %v8498 = vrot.slane %v8492, 7
  %v8499 = vrot.slane %v8493, 7
  %v8500 = vrot.slane %v8494, 7
  %vm8504 = vcmask 1040384
  %v8505 = vsel %vm8504, %v8489, %v8498
  %v8506 = vsel %vm8504, %v8490, %v8499
  %v8507 = vsel %vm8504, %v8491, %v8500
  %v8508 = vld [vmem:[%s15] sm:$0x7]
  %v8509 = vld [vmem:[%s16] sm:$0x7]
  %vm8510 = vcmask 1041408
  %v8511 = vsel %vm8510, %v8505, 0.0
  %v8512 = vsel %vm8510, %v8506, 0.0
  %v8513 = vadd.f32 %v8511, %v8512
  %v8514 = vsel %vm8510, %v8507, 0.0
  %v8515 = vadd.f32 %v8513, %v8514
  %8516 = vadd.xlane.f32.xlu0 %v8515
  %v8517 = vpop.xlane.xlu0 %8516
  %v8518 = vmul.f32 %v8517, 0.002770083
  %v8519 = vsub.f32 %v8505, %v8518
  %v8520 = vsub.f32 %v8506, %v8518
  %v8521 = vsub.f32 %v8507, %v8518
  %v8522 = vsel %vm1046, %v8519, 0.0
  %v8523 = vsel %vm1047, %v8520, 0.0
  %v8524 = vsel %vm1048, %v8521, 0.0
  %v8525 = vmul.f32 %v8522, %v8522
  %v8526 = vmul.f32 %v8523, %v8523
  %v8527 = vmul.f32 %v8524, %v8524
  %v8528 = vsel %vm8510, %v8525, 0.0
  %v8529 = vsel %vm8510, %v8526, 0.0
  %v8530 = vadd.f32 %v8528, %v8529
  %v8531 = vsel %vm8510, %v8527, 0.0
  %v8532 = vadd.f32 %v8530, %v8531
  %8533 = vadd.xlane.f32.xlu0 %v8532
  %v8534 = vpop.xlane.xlu0 %8533
  %v8535 = vmul.f32 %v8534, 0.002770083
  %v8536 = vadd.f32 %v8535, 1e-05
  %v8537 = vrsqrt.pop %v8536
  %v8538 = vmul.f32 %v8522, %v8537
  %v8539 = vmul.f32 %v8523, %v8537
  %v8540 = vmul.f32 %v8524, %v8537
  %v8542 = vlaneseq
  %v8543 = vshrl.u32 %v8542, 7
  %v8544 = vsub.s32 0, %v8543
  %v8545 = vrot.slane %v8508, %v8544
  %v8546 = vlaneseq
  %v8547 = vshrl.u32 %v8546, 7
  %v8548 = vsub.s32 1, %v8547
  %v8549 = vrot.slane %v8508, %v8548
  %v8550 = vlaneseq
  %v8551 = vshrl.u32 %v8550, 7
  %v8552 = vsub.s32 2, %v8551
  %v8553 = vrot.slane %v8508, %v8552
  %v8557 = vmul.f32 %v8538, %v8545
  %v8558 = vmul.f32 %v8539, %v8549
  %v8559 = vmul.f32 %v8540, %v8553
  %v8561 = vlaneseq
  %v8562 = vshrl.u32 %v8561, 7
  %v8563 = vsub.s32 0, %v8562
  %v8564 = vrot.slane %v8509, %v8563
  %v8565 = vlaneseq
  %v8566 = vshrl.u32 %v8565, 7
  %v8567 = vsub.s32 1, %v8566
  %v8568 = vrot.slane %v8509, %v8567
  %v8569 = vlaneseq
  %v8570 = vshrl.u32 %v8569, 7
  %v8571 = vsub.s32 2, %v8570
  %v8572 = vrot.slane %v8509, %v8571
  %v8576 = vadd.f32 %v8557, %v8564
  %v8577 = vadd.f32 %v8558, %v8568
  %v8578 = vadd.f32 %v8559, %v8572
  %v8579 = vld [vmem:[%s17] sm:$0xff]
  %v8580 = vld [vmem:[%s17 + $0x8] sm:$0xf]
  %v8581 = vld [vmem:[%s17 + $0xc] sm:$0xff]
  %v8582 = vld [vmem:[%s17 + $0x14] sm:$0xf]
  %v8583 = vld [vmem:[%s17 + $0x18] sm:$0xff]
  %v8584 = vld [vmem:[%s17 + $0x20] sm:$0xf]
  %v8585 = vld [vmem:[%s17 + $0x24] sm:$0xff]
  %v8586 = vld [vmem:[%s17 + $0x2c] sm:$0xf]
  %v8587 = vld [vmem:[%s17 + $0x30] sm:$0xff]
  %v8588 = vld [vmem:[%s17 + $0x38] sm:$0xf]
  %v8589 = vld [vmem:[%s17 + $0x3c] sm:$0xff]
  %v8590 = vld [vmem:[%s17 + $0x44] sm:$0xf]
  %v8591 = vld [vmem:[%s17 + $0x48] sm:$0xff]
  %v8592 = vld [vmem:[%s17 + $0x50] sm:$0xf]
  %v8593 = vld [vmem:[%s17 + $0x54] sm:$0xff]
  %v8594 = vld [vmem:[%s17 + $0x5c] sm:$0xf]
  %v8595 = vld [vmem:[%s17 + $0x60] sm:$0xff]
  %v8596 = vld [vmem:[%s17 + $0x68] sm:$0xf]
  %v8597 = vld [vmem:[%s17 + $0x6c] sm:$0xff]
  %v8598 = vld [vmem:[%s17 + $0x74] sm:$0xf]
  %v8599 = vld [vmem:[%s17 + $0x78] sm:$0xff]
  %v8600 = vld [vmem:[%s17 + $0x80] sm:$0xf]
  %v8601 = vld [vmem:[%s17 + $0x84] sm:$0xff]
  %v8602 = vld [vmem:[%s17 + $0x8c] sm:$0xf]
  %v8603 = vld [vmem:[%s17 + $0x90] sm:$0xff]
  %v8604 = vld [vmem:[%s17 + $0x98] sm:$0xf]
  %v8605 = vld [vmem:[%s17 + $0x9c] sm:$0xff]
  %v8606 = vld [vmem:[%s17 + $0xa4] sm:$0xf]
  %v8607 = vld [vmem:[%s17 + $0xa8] sm:$0xff]
  %v8608 = vld [vmem:[%s17 + $0xb0] sm:$0xf]
  %v8609 = vld [vmem:[%s17 + $0xb4] sm:$0xff]
  %v8610 = vld [vmem:[%s17 + $0xbc] sm:$0xf]
  %v8611 = vld [vmem:[%s17 + $0xc0] sm:$0xff]
  %v8612 = vld [vmem:[%s17 + $0xc8] sm:$0xf]
  %v8613 = vld [vmem:[%s17 + $0xcc] sm:$0xff]
  %v8614 = vld [vmem:[%s17 + $0xd4] sm:$0xf]
  %v8615 = vld [vmem:[%s17 + $0xd8] sm:$0xff]
  %v8616 = vld [vmem:[%s17 + $0xe0] sm:$0xf]
  %v8617 = vld [vmem:[%s17 + $0xe4] sm:$0xff]
  %v8618 = vld [vmem:[%s17 + $0xec] sm:$0xf]
  %v8619 = vld [vmem:[%s17 + $0xf0] sm:$0xff]
  %v8620 = vld [vmem:[%s17 + $0xf8] sm:$0xf]
  %v8621 = vld [vmem:[%s17 + $0xfc] sm:$0xff]
  %v8622 = vld [vmem:[%s17 + $0x104] sm:$0xf]
  %v8623 = vld [vmem:[%s17 + $0x108] sm:$0xff]
  %v8624 = vld [vmem:[%s17 + $0x110] sm:$0xf]
  %v8625 = vld [vmem:[%s17 + $0x114] sm:$0xff]
  %v8626 = vld [vmem:[%s17 + $0x11c] sm:$0xf]
  %v8627 = vld [vmem:[%s17 + $0x120] sm:$0xff]
  %v8628 = vld [vmem:[%s17 + $0x128] sm:$0xf]
  %v8629 = vld [vmem:[%s17 + $0x12c] sm:$0xff]
  %v8630 = vld [vmem:[%s17 + $0x134] sm:$0xf]
  %v8631 = vld [vmem:[%s17 + $0x138] sm:$0xff]
  %v8632 = vld [vmem:[%s17 + $0x140] sm:$0xf]
  %v8633 = vld [vmem:[%s17 + $0x144] sm:$0xff]
  %v8634 = vld [vmem:[%s17 + $0x14c] sm:$0xf]
  %v8635 = vld [vmem:[%s17 + $0x150] sm:$0xff]
  %v8636 = vld [vmem:[%s17 + $0x158] sm:$0xf]
  %v8637 = vld [vmem:[%s17 + $0x15c] sm:$0xff]
  %v8638 = vld [vmem:[%s17 + $0x164] sm:$0xf]
  %v8639 = vld [vmem:[%s17 + $0x168] sm:$0xff]
  %v8640 = vld [vmem:[%s17 + $0x170] sm:$0xf]
  %v8641 = vld [vmem:[%s17 + $0x174] sm:$0xff]
  %v8642 = vld [vmem:[%s17 + $0x17c] sm:$0xf]
  %v8643 = vld [vmem:[%s17 + $0x180] sm:$0xff]
  %v8644 = vld [vmem:[%s17 + $0x188] sm:$0xf]
  %v8645 = vld [vmem:[%s17 + $0x18c] sm:$0xff]
  %v8646 = vld [vmem:[%s17 + $0x194] sm:$0xf]
  %v8647 = vld [vmem:[%s17 + $0x198] sm:$0xff]
  %v8648 = vld [vmem:[%s17 + $0x1a0] sm:$0xf]
  %v8649 = vld [vmem:[%s17 + $0x1a4] sm:$0xff]
  %v8650 = vld [vmem:[%s17 + $0x1ac] sm:$0xf]
  %v8651 = vld [vmem:[%s17 + $0x1b0] sm:$0xff]
  %v8652 = vld [vmem:[%s17 + $0x1b8] sm:$0xf]
  %v8653 = vld [vmem:[%s17 + $0x1bc] sm:$0xff]
  %v8654 = vld [vmem:[%s17 + $0x1c4] sm:$0xf]
  %v8655 = vld [vmem:[%s17 + $0x1c8] sm:$0xff]
  %v8656 = vld [vmem:[%s17 + $0x1d0] sm:$0xf]
  %v8657 = vld [vmem:[%s17 + $0x1d4] sm:$0xff]
  %v8658 = vld [vmem:[%s17 + $0x1dc] sm:$0xf]
  %v8659 = vld [vmem:[%s17 + $0x1e0] sm:$0xff]
  %v8660 = vld [vmem:[%s17 + $0x1e8] sm:$0xf]
  %v8661 = vld [vmem:[%s17 + $0x1ec] sm:$0xff]
  %v8662 = vld [vmem:[%s17 + $0x1f4] sm:$0xf]
  %v8663 = vld [vmem:[%s17 + $0x1f8] sm:$0xff]
  %v8664 = vld [vmem:[%s17 + $0x200] sm:$0xf]
  %v8665 = vld [vmem:[%s17 + $0x204] sm:$0xff]
  %v8666 = vld [vmem:[%s17 + $0x20c] sm:$0xf]
  %v8667 = vld [vmem:[%s17 + $0x210] sm:$0xff]
  %v8668 = vld [vmem:[%s17 + $0x218] sm:$0xf]
  %v8669 = vld [vmem:[%s17 + $0x21c] sm:$0xff]
  %v8670 = vld [vmem:[%s17 + $0x224] sm:$0xf]
  %v8671 = vld [vmem:[%s17 + $0x228] sm:$0xff]
  %v8672 = vld [vmem:[%s17 + $0x230] sm:$0xf]
  %v8673 = vld [vmem:[%s17 + $0x234] sm:$0xff]
  %v8674 = vld [vmem:[%s17 + $0x23c] sm:$0xf]
  %v8675 = vpack.c.bf16 %v8576, %v8576
  %v8676 = vpack.c.bf16 %v8577, %v8577
  %v8677 = vpack.c.bf16 %v8578, %v8578
  %v8678 = vld [vmem:[%s18] sm:$0x7]
  %v8680 = vlaneseq
  %v8681 = vshrl.u32 %v8680, 7
  %v8682 = vsub.s32 0, %v8681
  %v8683 = vrot.slane %v8678, %v8682
  %v8684 = vlaneseq
  %v8685 = vshrl.u32 %v8684, 7
  %v8686 = vsub.s32 1, %v8685
  %v8687 = vrot.slane %v8678, %v8686
  %v8688 = vlaneseq
  %v8689 = vshrl.u32 %v8688, 7
  %v8690 = vsub.s32 2, %v8689
  %v8691 = vrot.slane %v8678, %v8690
  %v8791 = vunpack.c.l.b16 %v8579
  %v8792 = vunpack.c.h.b16 %v8579
  %v8793 = vunpack.c.l.b16 %v8580
  %v8794 = vunpack.c.l.b16 %v8581
  %v8795 = vunpack.c.h.b16 %v8581
  %v8796 = vunpack.c.l.b16 %v8582
  %v8797 = vunpack.c.l.b16 %v8583
  %v8798 = vunpack.c.h.b16 %v8583
  %v8799 = vunpack.c.l.b16 %v8584
  %v8800 = vunpack.c.l.b16 %v8585
  %v8801 = vunpack.c.h.b16 %v8585
  %v8802 = vunpack.c.l.b16 %v8586
  %v8803 = vunpack.c.l.b16 %v8587
  %v8804 = vunpack.c.h.b16 %v8587
  %v8805 = vunpack.c.l.b16 %v8588
  %v8806 = vunpack.c.l.b16 %v8589
  %v8807 = vunpack.c.h.b16 %v8589
  %v8808 = vunpack.c.l.b16 %v8590
  %v8809 = vunpack.c.l.b16 %v8591
  %v8810 = vunpack.c.h.b16 %v8591
  %v8811 = vunpack.c.l.b16 %v8592
  %v8812 = vunpack.c.l.b16 %v8593
  %v8813 = vunpack.c.h.b16 %v8593
  %v8814 = vunpack.c.l.b16 %v8594
  %v8815 = vunpack.c.l.b16 %v8595
  %v8816 = vunpack.c.h.b16 %v8595
  %v8817 = vunpack.c.l.b16 %v8596
  %v8818 = vunpack.c.l.b16 %v8597
  %v8819 = vunpack.c.h.b16 %v8597
  %v8820 = vunpack.c.l.b16 %v8598
  %v8821 = vunpack.c.l.b16 %v8599
  %v8822 = vunpack.c.h.b16 %v8599
  %v8823 = vunpack.c.l.b16 %v8600
  %v8824 = vunpack.c.l.b16 %v8601
  %v8825 = vunpack.c.h.b16 %v8601
  %v8826 = vunpack.c.l.b16 %v8602
  %v8827 = vunpack.c.l.b16 %v8603
  %v8828 = vunpack.c.h.b16 %v8603
  %v8829 = vunpack.c.l.b16 %v8604
  %v8830 = vunpack.c.l.b16 %v8605
  %v8831 = vunpack.c.h.b16 %v8605
  %v8832 = vunpack.c.l.b16 %v8606
  %v8833 = vunpack.c.l.b16 %v8607
  %v8834 = vunpack.c.h.b16 %v8607
  %v8835 = vunpack.c.l.b16 %v8608
  %v8836 = vunpack.c.l.b16 %v8609
  %v8837 = vunpack.c.h.b16 %v8609
  %v8838 = vunpack.c.l.b16 %v8610
  %v8839 = vunpack.c.l.b16 %v8611
  %v8840 = vunpack.c.h.b16 %v8611
  %v8841 = vunpack.c.l.b16 %v8612
  %v8842 = vunpack.c.l.b16 %v8613
  %v8843 = vunpack.c.h.b16 %v8613
  %v8844 = vunpack.c.l.b16 %v8614
  %v8845 = vunpack.c.l.b16 %v8615
  %v8846 = vunpack.c.h.b16 %v8615
  %v8847 = vunpack.c.l.b16 %v8616
  %v8848 = vunpack.c.l.b16 %v8617
  %v8849 = vunpack.c.h.b16 %v8617
  %v8850 = vunpack.c.l.b16 %v8618
  %v8851 = vunpack.c.l.b16 %v8619
  %v8852 = vunpack.c.h.b16 %v8619
  %v8853 = vunpack.c.l.b16 %v8620
  %v8854 = vunpack.c.l.b16 %v8621
  %v8855 = vunpack.c.h.b16 %v8621
  %v8856 = vunpack.c.l.b16 %v8622
  %v8857 = vunpack.c.l.b16 %v8623
  %v8858 = vunpack.c.h.b16 %v8623
  %v8859 = vunpack.c.l.b16 %v8624
  %v8860 = vunpack.c.l.b16 %v8625
  %v8861 = vunpack.c.h.b16 %v8625
  %v8862 = vunpack.c.l.b16 %v8626
  %v8863 = vunpack.c.l.b16 %v8627
  %v8864 = vunpack.c.h.b16 %v8627
  %v8865 = vunpack.c.l.b16 %v8628
  %v8866 = vunpack.c.l.b16 %v8629
  %v8867 = vunpack.c.h.b16 %v8629
  %v8868 = vunpack.c.l.b16 %v8630
  %v8869 = vunpack.c.l.b16 %v8631
  %v8870 = vunpack.c.h.b16 %v8631
  %v8871 = vunpack.c.l.b16 %v8632
  %v8872 = vunpack.c.l.b16 %v8633
  %v8873 = vunpack.c.h.b16 %v8633
  %v8874 = vunpack.c.l.b16 %v8634
  %v8875 = vunpack.c.l.b16 %v8635
  %v8876 = vunpack.c.h.b16 %v8635
  %v8877 = vunpack.c.l.b16 %v8636
  %v8878 = vunpack.c.l.b16 %v8637
  %v8879 = vunpack.c.h.b16 %v8637
  %v8880 = vunpack.c.l.b16 %v8638
  %v8881 = vunpack.c.l.b16 %v8639
  %v8882 = vunpack.c.h.b16 %v8639
  %v8883 = vunpack.c.l.b16 %v8640
  %v8884 = vunpack.c.l.b16 %v8641
  %v8885 = vunpack.c.h.b16 %v8641
  %v8886 = vunpack.c.l.b16 %v8642
  %v8887 = vunpack.c.l.b16 %v8643
  %v8888 = vunpack.c.h.b16 %v8643
  %v8889 = vunpack.c.l.b16 %v8644
  %v8890 = vunpack.c.l.b16 %v8645
  %v8891 = vunpack.c.h.b16 %v8645
  %v8892 = vunpack.c.l.b16 %v8646
  %v8893 = vunpack.c.l.b16 %v8647
  %v8894 = vunpack.c.h.b16 %v8647
  %v8895 = vunpack.c.l.b16 %v8648
  %v8896 = vunpack.c.l.b16 %v8649
  %v8897 = vunpack.c.h.b16 %v8649
  %v8898 = vunpack.c.l.b16 %v8650
  %v8899 = vunpack.c.l.b16 %v8651
  %v8900 = vunpack.c.h.b16 %v8651
  %v8901 = vunpack.c.l.b16 %v8652
  %v8902 = vunpack.c.l.b16 %v8653
  %v8903 = vunpack.c.h.b16 %v8653
  %v8904 = vunpack.c.l.b16 %v8654
  %v8905 = vunpack.c.l.b16 %v8655
  %v8906 = vunpack.c.h.b16 %v8655
  %v8907 = vunpack.c.l.b16 %v8656
  %v8908 = vunpack.c.l.b16 %v8657
  %v8909 = vunpack.c.h.b16 %v8657
  %v8910 = vunpack.c.l.b16 %v8658
  %v8911 = vunpack.c.l.b16 %v8659
  %v8912 = vunpack.c.h.b16 %v8659
  %v8913 = vunpack.c.l.b16 %v8660
  %v8914 = vunpack.c.l.b16 %v8661
  %v8915 = vunpack.c.h.b16 %v8661
  %v8916 = vunpack.c.l.b16 %v8662
  %v8917 = vunpack.c.l.b16 %v8663
  %v8918 = vunpack.c.h.b16 %v8663
  %v8919 = vunpack.c.l.b16 %v8664
  %v8920 = vunpack.c.l.b16 %v8665
  %v8921 = vunpack.c.h.b16 %v8665
  %v8922 = vunpack.c.l.b16 %v8666
  %v8923 = vunpack.c.l.b16 %v8667
  %v8924 = vunpack.c.h.b16 %v8667
  %v8925 = vunpack.c.l.b16 %v8668
  %v8926 = vunpack.c.l.b16 %v8669
  %v8927 = vunpack.c.h.b16 %v8669
  %v8928 = vunpack.c.l.b16 %v8670
  %v8929 = vunpack.c.l.b16 %v8671
  %v8930 = vunpack.c.h.b16 %v8671
  %v8931 = vunpack.c.l.b16 %v8672
  %v8932 = vunpack.c.l.b16 %v8673
  %v8933 = vunpack.c.h.b16 %v8673
  %v8934 = vunpack.c.l.b16 %v8674
  %v8935 = vpack.c.b16 %v8794, %v8791
  %v8936 = vpack.c.b16 %v8795, %v8792
  %v8937 = vpack.c.b16 %v8796, %v8793
  %v8938 = vpack.c.b16 %v8800, %v8797
  %v8939 = vpack.c.b16 %v8801, %v8798
  %v8940 = vpack.c.b16 %v8802, %v8799
  %v8941 = vpack.c.b16 %v8806, %v8803
  %v8942 = vpack.c.b16 %v8807, %v8804
  %v8943 = vpack.c.b16 %v8808, %v8805
  %v8944 = vpack.c.b16 %v8812, %v8809
  %v8945 = vpack.c.b16 %v8813, %v8810
  %v8946 = vpack.c.b16 %v8814, %v8811
  %v8947 = vpack.c.b16 %v8818, %v8815
  %v8948 = vpack.c.b16 %v8819, %v8816
  %v8949 = vpack.c.b16 %v8820, %v8817
  %v8950 = vpack.c.b16 %v8824, %v8821
  %v8951 = vpack.c.b16 %v8825, %v8822
  %v8952 = vpack.c.b16 %v8826, %v8823
  %v8953 = vpack.c.b16 %v8830, %v8827
  %v8954 = vpack.c.b16 %v8831, %v8828
  %v8955 = vpack.c.b16 %v8832, %v8829
  %v8956 = vpack.c.b16 %v8836, %v8833
  %v8957 = vpack.c.b16 %v8837, %v8834
  %v8958 = vpack.c.b16 %v8838, %v8835
  %v8959 = vpack.c.b16 %v8842, %v8839
  %v8960 = vpack.c.b16 %v8843, %v8840
  %v8961 = vpack.c.b16 %v8844, %v8841
  %v8962 = vpack.c.b16 %v8848, %v8845
  %v8963 = vpack.c.b16 %v8849, %v8846
  %v8964 = vpack.c.b16 %v8850, %v8847
  %v8965 = vpack.c.b16 %v8854, %v8851
  %v8966 = vpack.c.b16 %v8855, %v8852
  %v8967 = vpack.c.b16 %v8856, %v8853
  %v8968 = vpack.c.b16 %v8860, %v8857
  %v8969 = vpack.c.b16 %v8861, %v8858
  %v8970 = vpack.c.b16 %v8862, %v8859
  %v8971 = vpack.c.b16 %v8866, %v8863
  %v8972 = vpack.c.b16 %v8867, %v8864
  %v8973 = vpack.c.b16 %v8868, %v8865
  %v8974 = vpack.c.b16 %v8872, %v8869
  %v8975 = vpack.c.b16 %v8873, %v8870
  %v8976 = vpack.c.b16 %v8874, %v8871
  %v8977 = vpack.c.b16 %v8878, %v8875
  %v8978 = vpack.c.b16 %v8879, %v8876
  %v8979 = vpack.c.b16 %v8880, %v8877
  %v8980 = vpack.c.b16 %v8884, %v8881
  %v8981 = vpack.c.b16 %v8885, %v8882
  %v8982 = vpack.c.b16 %v8886, %v8883
  %v8983 = vpack.c.b16 %v8890, %v8887
  %v8984 = vpack.c.b16 %v8891, %v8888
  %v8985 = vpack.c.b16 %v8892, %v8889
  %v8986 = vpack.c.b16 %v8896, %v8893
  %v8987 = vpack.c.b16 %v8897, %v8894
  %v8988 = vpack.c.b16 %v8898, %v8895
  %v8989 = vpack.c.b16 %v8902, %v8899
  %v8990 = vpack.c.b16 %v8903, %v8900
  %v8991 = vpack.c.b16 %v8904, %v8901
  %v8992 = vpack.c.b16 %v8908, %v8905
  %v8993 = vpack.c.b16 %v8909, %v8906
  %v8994 = vpack.c.b16 %v8910, %v8907
  %v8995 = vpack.c.b16 %v8914, %v8911
  %v8996 = vpack.c.b16 %v8915, %v8912
  %v8997 = vpack.c.b16 %v8916, %v8913
  %v8998 = vpack.c.b16 %v8920, %v8917
  %v8999 = vpack.c.b16 %v8921, %v8918
  %v9000 = vpack.c.b16 %v8922, %v8919
  %v9001 = vpack.c.b16 %v8926, %v8923
  %v9002 = vpack.c.b16 %v8927, %v8924
  %v9003 = vpack.c.b16 %v8928, %v8925
  %v9004 = vpack.c.b16 %v8932, %v8929
  %v9005 = vpack.c.b16 %v8933, %v8930
  %v9006 = vpack.c.b16 %v8934, %v8931
  %9079 = vmatprep.subr.bf16.mxu0 %v8936
  %9080 = vmatpush1.bf16.msra.mxu0 %v8935
  %9081 = vmatprep.subr.bf16.mxu0 %v8939
  %9082 = vmatpush1.bf16.msra.mxu0 %v8938
  %9083 = vmatprep.subr.bf16.mxu0 %v8942
  %9084 = vmatpush1.bf16.msra.mxu0 %v8941
  %9085 = vmatprep.subr.bf16.mxu0 %v8945
  %9086 = vmatpush1.bf16.msra.mxu0 %v8944
  %9087 = vmatprep.subr.bf16.mxu0 %v8948
  %9088 = vmatpush1.bf16.msra.mxu0 %v8947
  %9089 = vmatprep.subr.bf16.mxu0 %v8951
  %9090 = vmatpush1.bf16.msra.mxu0 %v8950
  %9091 = vmatprep.subr.bf16.mxu0 %v8954
  %9092 = vmatpush1.bf16.msra.mxu0 %v8953
  %9093 = vmatprep.subr.bf16.mxu0 %v8957
  %9094 = vmatpush1.bf16.msra.mxu0 %v8956
  %9095 = vmatprep.subr.bf16.mxu0 %v8960
  %9096 = vmatpush1.bf16.msra.mxu0 %v8959
  %9097 = vmatprep.subr.bf16.mxu0 %v8963
  %9098 = vmatpush1.bf16.msra.mxu0 %v8962
  %9099 = vmatprep.subr.bf16.mxu0 %v8966
  %9100 = vmatpush1.bf16.msra.mxu0 %v8965
  %9101 = vmatprep.subr.bf16.mxu0 %v8969
  %9102 = vmatpush1.bf16.msra.mxu0 %v8968
  %9103 = vmatprep.subr.bf16.mxu0 %v8972
  %9104 = vmatpush1.bf16.msra.mxu0 %v8971
  %9105 = vmatprep.subr.bf16.mxu0 %v8975
  %9106 = vmatpush1.bf16.msra.mxu0 %v8974
  %9107 = vmatprep.subr.bf16.mxu0 %v8978
  %9108 = vmatpush1.bf16.msra.mxu0 %v8977
  %9109 = vmatprep.subr.bf16.mxu0 %v8981
  %9110 = vmatpush1.bf16.msra.mxu0 %v8980
  %9111 = vmatprep.mubr.bf16.mxu0 %v8676
  %9112 = vmatmul.mubr.bf16.gmra.mrb[0].mxu0 %v8675
  %v9113 = vpop.f32.mrb[0].mxu0
  %v9114 = vadd.f32 %v8683, %v9113
  %v9115 = vpop.f32.mrb[0].mxu0
  %v9116 = vadd.f32 %v8687, %v9115
  %v9117 = vpop.f32.mrb[0].mxu0
  %v9118 = vpop.f32.mrb[0].mxu0
  %9119 = vdwg.mxu0
  %9120 = vmatprep.subr.bf16.mxu0 %v8984
  %9121 = vmatpush1.bf16.msra.mxu0 %v8983
  %9122 = vmatprep.subr.bf16.mxu0 %v8987
  %9123 = vmatpush1.bf16.msra.mxu0 %v8986
  %9124 = vmatprep.subr.bf16.mxu0 %v8990
  %9125 = vmatpush1.bf16.msra.mxu0 %v8989
  %9126 = vmatprep.subr.bf16.mxu0 %v8993
  %9127 = vmatpush1.bf16.msra.mxu0 %v8992
  %9128 = vmatprep.subr.bf16.mxu0 %v8996
  %9129 = vmatpush1.bf16.msra.mxu0 %v8995
  %9130 = vmatprep.subr.bf16.mxu0 %v8999
  %9131 = vmatpush1.bf16.msra.mxu0 %v8998
  %9132 = vmatprep.subr.bf16.mxu0 %v9002
  %9133 = vmatpush1.bf16.msra.mxu0 %v9001
  %9134 = vmatprep.subr.bf16.mxu0 %v9005
  %9135 = vmatpush1.bf16.msra.mxu0 %v9004
  %9136 = vmatprep.subr.bf16.mxu0 0
  %9137 = vmatpush1.bf16.msra.mxu0 0
  %9138 = vmatprep.subr.bf16.mxu0 0
  %9139 = vmatpush1.bf16.msra.mxu0 0
  %9140 = vmatprep.subr.bf16.mxu0 0
  %9141 = vmatpush1.bf16.msra.mxu0 0
  %9142 = vmatprep.subr.bf16.mxu0 0
  %9143 = vmatpush1.bf16.msra.mxu0 0
  %9144 = vmatprep.subr.bf16.mxu0 0
  %9145 = vmatpush1.bf16.msra.mxu0 0
  %9146 = vmatprep.subr.bf16.mxu0 0
  %9147 = vmatpush1.bf16.msra.mxu0 0
  %9148 = vmatprep.subr.bf16.mxu0 0
  %9149 = vmatpush1.bf16.msra.mxu0 0
  %9150 = vmatprep.subr.bf16.mxu0 0
  %9151 = vmatpush1.bf16.msra.mxu0 0
  %9152 = vmatprep.mubr.bf16.mxu0 0
  %9153 = vmatmul.mubr.bf16.gmra.mrb[0].mxu0 %v8677
  %v9154 = vpop.f32.mrb[0].mxu0
  %v9155 = vadd.f32 %v9114, %v9154
  %v9156 = vpop.f32.mrb[0].mxu0
  %v9157 = vadd.f32 %v9116, %v9156
  %v9158 = vpop.f32.mrb[0].mxu0
  %v9159 = vpop.f32.mrb[0].mxu0
  %9160 = vdwg.mxu0
  %9161 = vmatprep.subr.bf16.mxu0 0
  %9162 = vmatpush1.bf16.msra.mxu0 %v8937
  %9163 = vmatprep.subr.bf16.mxu0 0
  %9164 = vmatpush1.bf16.msra.mxu0 %v8940
  %9165 = vmatprep.subr.bf16.mxu0 0
  %9166 = vmatpush1.bf16.msra.mxu0 %v8943
  %9167 = vmatprep.subr.bf16.mxu0 0
  %9168 = vmatpush1.bf16.msra.mxu0 %v8946
  %9169 = vmatprep.subr.bf16.mxu0 0
  %9170 = vmatpush1.bf16.msra.mxu0 %v8949
  %9171 = vmatprep.subr.bf16.mxu0 0
  %9172 = vmatpush1.bf16.msra.mxu0 %v8952
  %9173 = vmatprep.subr.bf16.mxu0 0
  %9174 = vmatpush1.bf16.msra.mxu0 %v8955
  %9175 = vmatprep.subr.bf16.mxu0 0
  %9176 = vmatpush1.bf16.msra.mxu0 %v8958
  %9177 = vmatprep.subr.bf16.mxu0 0
  %9178 = vmatpush1.bf16.msra.mxu0 %v8961
  %9179 = vmatprep.subr.bf16.mxu0 0
  %9180 = vmatpush1.bf16.msra.mxu0 %v8964
  %9181 = vmatprep.subr.bf16.mxu0 0
  %9182 = vmatpush1.bf16.msra.mxu0 %v8967
  %9183 = vmatprep.subr.bf16.mxu0 0
  %9184 = vmatpush1.bf16.msra.mxu0 %v8970
  %9185 = vmatprep.subr.bf16.mxu0 0
  %9186 = vmatpush1.bf16.msra.mxu0 %v8973
  %9187 = vmatprep.subr.bf16.mxu0 0
  %9188 = vmatpush1.bf16.msra.mxu0 %v8976
  %9189 = vmatprep.subr.bf16.mxu0 0
  %9190 = vmatpush1.bf16.msra.mxu0 %v8979
  %9191 = vmatprep.subr.bf16.mxu0 0
  %9192 = vmatpush1.bf16.msra.mxu0 %v8982
  %9193 = vmatprep.mubr.bf16.mxu0 %v8676
  %9194 = vmatmul.mubr.bf16.gmra.mrb[0].mxu0 %v8675
  %v9195 = vpop.f32.mrb[0].mxu0
  %v9196 = vadd.f32 %v8691, %v9195
  %v9197 = vpop.f32.mrb[0].mxu0
  %v9198 = vpop.f32.mrb[0].mxu0
  %v9199 = vpop.f32.mrb[0].mxu0
  %9200 = vdwg.mxu0
  %9201 = vmatprep.subr.bf16.mxu0 0
  %9202 = vmatpush1.bf16.msra.mxu0 %v8985
  %9203 = vmatprep.subr.bf16.mxu0 0
  %9204 = vmatpush1.bf16.msra.mxu0 %v8988
  %9205 = vmatprep.subr.bf16.mxu0 0
  %9206 = vmatpush1.bf16.msra.mxu0 %v8991
  %9207 = vmatprep.subr.bf16.mxu0 0
  %9208 = vmatpush1.bf16.msra.mxu0 %v8994
  %9209 = vmatprep.subr.bf16.mxu0 0
  %9210 = vmatpush1.bf16.msra.mxu0 %v8997
  %9211 = vmatprep.subr.bf16.mxu0 0
  %9212 = vmatpush1.bf16.msra.mxu0 %v9000
  %9213 = vmatprep.subr.bf16.mxu0 0
  %9214 = vmatpush1.bf16.msra.mxu0 %v9003
  %9215 = vmatprep.subr.bf16.mxu0 0
  %9216 = vmatpush1.bf16.msra.mxu0 %v9006
  %9217 = vmatprep.subr.bf16.mxu0 0
  %9218 = vmatpush1.bf16.msra.mxu0 0
  %9219 = vmatprep.subr.bf16.mxu0 0
  %9220 = vmatpush1.bf16.msra.mxu0 0
  %9221 = vmatprep.subr.bf16.mxu0 0
  %9222 = vmatpush1.bf16.msra.mxu0 0
  %9223 = vmatprep.subr.bf16.mxu0 0
  %9224 = vmatpush1.bf16.msra.mxu0 0
  %9225 = vmatprep.subr.bf16.mxu0 0
  %9226 = vmatpush1.bf16.msra.mxu0 0
  %9227 = vmatprep.subr.bf16.mxu0 0
  %9228 = vmatpush1.bf16.msra.mxu0 0
  %9229 = vmatprep.subr.bf16.mxu0 0
  %9230 = vmatpush1.bf16.msra.mxu0 0
  %9231 = vmatprep.subr.bf16.mxu0 0
  %9232 = vmatpush1.bf16.msra.mxu0 0
  %9233 = vmatprep.mubr.bf16.mxu0 0
  %9234 = vmatmul.mubr.bf16.gmra.mrb[0].mxu0 %v8677
  %v9235 = vpop.f32.mrb[0].mxu0
  %v9236 = vadd.f32 %v9196, %v9235
  %v9237 = vpop.f32.mrb[0].mxu0
  %v9238 = vpop.f32.mrb[0].mxu0
  %v9239 = vpop.f32.mrb[0].mxu0
  %9240 = vdwg.mxu0
  %v9244 = vcombine.low %v9155, %v9157
  %v9246 = vunpack.c.l.s4 1983009808
  %v9247 = vunpack.c.0.s8 %v9246
  %v9248 = vlaneseq
  %v9249 = vshrl.u32 %v9248, 7
  %v9250 = vsub.s32 %v9247, %v9249
  %v9251 = vrot.slane %v9244, %v9250
  %v9253 = vunpack.c.l.s4 1983009808
  %v9254 = vunpack.c.0.s8 %v9253
  %v9255 = vlaneseq
  %v9256 = vshrl.u32 %v9255, 7
  %v9257 = vsub.s32 %v9254, %v9256
  %v9258 = vrot.slane %v9236, %v9257
  %v9259 = vcombine.low %v9251, %v9258
  %9261 = vst [vmem:[%s19] sm:$0x3f] %v9259
  // Predicated region
  $region78: #{vit_lstm_forward.2} parent=0 // pred_check
    _
  $region79: #{vit_lstm_forward.2} parent=0 // pred_check_branch
    %9263 = sbr.rel (0) target = $region81
  $region80: #{vit_lstm_forward.2} parent=0 // pred_region
    _
  $region81: #{vit_lstm_forward.2} parent=0 // pred_fallthru
    _
  // Predicated region
  $region82: #{vit_lstm_forward.2} parent=0 // pred_check
    _
  $region83: #{vit_lstm_forward.2} parent=0 // pred_check_branch
    %9265 = sbr.rel (0) target = $region85
  $region84: #{vit_lstm_forward.2} parent=0 // pred_region
    _
  $region85: #{vit_lstm_forward.2} parent=0 // pred_fallthru
    _

</llo_original>
